<compile_context>
chip_gen: v6e
topology: v6e:2x2x1
jax: 0.10.0
libtpu: 0.0.40
codegen_flags: <defaults>
</compile_context>

<pallas_src>
import jax
import jax.numpy as jnp
from jax.experimental import pallas as pl
from jax.experimental.pallas import tpu as pltpu


def _round_up(x, m):
    return ((x + m - 1) // m) * m


def actor_kernel(s_ref, w1_ref, b1_ref, w2_ref, b2_ref, w3_ref, b3_ref, out_ref):
    x = s_ref[...]  # (TB, K_pad) bf16

    # Layer 1: bf16 x bf16 -> f32 accumulate, bias + ReLU in f32
    h1 = jnp.dot(x, w1_ref[...], preferred_element_type=jnp.float32)
    h1 = jnp.maximum(h1 + b1_ref[...], 0.0)

    # Layer 2
    h2 = jnp.dot(h1.astype(jnp.bfloat16), w2_ref[...],
                 preferred_element_type=jnp.float32)
    h2 = jnp.maximum(h2 + b2_ref[...], 0.0)

    # Layer 3 + Tanh (output padded to 128 lane-dense columns)
    a = jnp.dot(h2.astype(jnp.bfloat16), w3_ref[...],
                preferred_element_type=jnp.float32)
    out_ref[...] = jnp.tanh(a + b3_ref[...]).astype(out_ref.dtype)


def prepare_actor_params(w1, b1, w2, b2, w3, b3):
    """One-time host-side weight prep: bf16 cast + hardware-friendly padding.

    w*: (in_features, out_features) f32 (already transposed vs. PyTorch)
    b*: (1, out_features) f32
    """
    state_dim, H1 = w1.shape
    H2 = w2.shape[1]
    action_dim = w3.shape[1]

    K_pad = _round_up(state_dim, 128)    # 1007 -> 1024
    A_pad = _round_up(action_dim, 128)   # 2    -> 128

    w1_p = (jnp.zeros((K_pad, H1), jnp.bfloat16)
            .at[:state_dim, :].set(w1.astype(jnp.bfloat16)))
    w2_p = w2.astype(jnp.bfloat16)
    w3_p = (jnp.zeros((H2, A_pad), jnp.bfloat16)
            .at[:, :action_dim].set(w3.astype(jnp.bfloat16)))
    b1_p = b1.reshape(1, H1).astype(jnp.float32)
    b2_p = b2.reshape(1, H2).astype(jnp.float32)
    b3_p = (jnp.zeros((1, A_pad), jnp.float32)
            .at[:, :action_dim].set(b3.reshape(1, action_dim).astype(jnp.float32)))

    return dict(w1=w1_p, b1=b1_p, w2=w2_p, b2=b2_p, w3=w3_p, b3=b3_p,
                state_dim=state_dim, action_dim=action_dim)


def actor_forward(s, params):
    """Forward pass of the Actor MLP.

    s:      (B, state_dim) f32
    params: output of prepare_actor_params()
    Returns (B, action_dim) f32.
    """
    w1, b1 = params["w1"], params["b1"]
    w2, b2 = params["w2"], params["b2"]
    w3, b3 = params["w3"], params["b3"]
    state_dim = params["state_dim"]
    action_dim = params["action_dim"]

    B = s.shape[0]
    K_pad, H1 = w1.shape
    H2 = w2.shape[1]
    A_pad = w3.shape[1]

    # Adaptive batch tile: single grid step for small batches (inference),
    # 256-row tiles for large batches (fills the MXU, amortizes step overhead).
    B8 = _round_up(B, 8)
    if B8 <= 256:
        TB, B_pad = B8, B8
    else:
        TB = 256
        B_pad = _round_up(B, TB)

    # Per-call input padding (bf16 halves the activation DMA as well).
    s_p = (jnp.zeros((B_pad, K_pad), jnp.bfloat16)
           .at[:B, :state_dim].set(s.astype(jnp.bfloat16)))

    grid = (B_pad // TB,)

    def run(single_buffer_weights):
        def const_spec(shape):
            if single_buffer_weights:
                return pl.BlockSpec(shape, lambda i: (0, 0),
                                    pipeline_mode=pl.Buffered(1))
            return pl.BlockSpec(shape, lambda i: (0, 0))

        return pl.pallas_call(
            actor_kernel,
            out_shape=jax.ShapeDtypeStruct((B_pad, A_pad), jnp.float32),
            grid_spec=pltpu.PrefetchScalarGridSpec(
                num_scalar_prefetch=0,
                grid=grid,
                in_specs=[
                    pl.BlockSpec((TB, K_pad), lambda i: (i, 0)),  # s: tiled over batch
                    const_spec((K_pad, H1)),                      # w1 (resident)
                    const_spec((1, H1)),                          # b1
                    const_spec((H1, H2)),                         # w2
                    const_spec((1, H2)),                          # b2
                    const_spec((H2, A_pad)),                      # w3 (padded cols)
                    const_spec((1, A_pad)),                       # b3 (padded cols)
                ],
                out_specs=pl.BlockSpec((TB, A_pad), lambda i: (i, 0)),
            ),
            compiler_params=pltpu.CompilerParams(
                dimension_semantics=("parallel",),   # batch tiles shard across TCs
                vmem_limit_bytes=16 << 20,
            ),
        )(s_p, w1, b1, w2, b2, w3, b3)

    try:
        out_p = run(hasattr(pl, "Buffered"))
    except Exception:
        # Fallback: default (double-buffered) weight operands.
        out_p = run(False)

    return out_p[:B, :action_dim]


def init_linear_params(key, in_features, out_features):
    """Deterministic init mimicking PyTorch nn.Linear default:
    U(-1/sqrt(fan_in), 1/sqrt(fan_in)) for both weight and bias."""
    kw, kb = jax.random.split(key)
    bound = 1.0 / jnp.sqrt(jnp.float32(in_features))
    # Weight stored directly as (in, out) so the kernel computes x @ W.
    w = jax.random.uniform(kw, (in_features, out_features), jnp.float32, -bound, bound)
    b = jax.random.uniform(kb, (1, out_features), jnp.float32, -bound, bound)
    return w, b


if __name__ == "__main__":
    environment_dim = 999
    robot_dim = 8
    state_dim = environment_dim + robot_dim  # 1007
    action_dim = 2
    batch = 2

    key = jax.random.PRNGKey(0)
    k_s, k1, k2, k3 = jax.random.split(key, 4)

    s = jax.random.normal(k_s, (batch, state_dim), dtype=jnp.float32)

    w1, b1 = init_linear_params(k1, state_dim, 1024)
    w2, b2 = init_linear_params(k2, 1024, 512)
    w3, b3 = init_linear_params(k3, 512, action_dim)

    params = prepare_actor_params(w1, b1, w2, b2, w3, b3)

    out = actor_forward(s, params)
    out = jax.block_until_ready(out)

    # Pure-JAX reference mimicking the kernel's numerics
    # (bf16 weights & activations, f32 accumulation, f32 bias/ReLU/tanh).
    sb = s.astype(jnp.bfloat16)
    w1b = w1.astype(jnp.bfloat16)
    w2b = w2.astype(jnp.bfloat16)
    w3b = w3.astype(jnp.bfloat16)
    h1 = jnp.maximum(jnp.dot(sb, w1b, preferred_element_type=jnp.float32) + b1, 0.0)
    h2 = jnp.maximum(
        jnp.dot(h1.astype(jnp.bfloat16), w2b, preferred_element_type=jnp.float32) + b2, 0.0)
    ref = jnp.tanh(
        jnp.dot(h2.astype(jnp.bfloat16), w3b, preferred_element_type=jnp.float32) + b3)

    assert out.shape == (batch, action_dim)
    assert jnp.allclose(out, ref, atol=1e-2, rtol=1e-2), (
        f"max abs err {jnp.max(jnp.abs(out - ref))}")

    print("KERNEL_OK")
</pallas_src>

<mosaic_0001>
module attributes {stable_mosaic.version = 11 : i64} {
  func.func @actor_kernel(%arg0: i32, %arg1: memref<8x1024xbf16, #tpu.memory_space<vmem>>, %arg2: memref<1024x1024xbf16, #tpu.memory_space<vmem>>, %arg3: memref<1x1024xf32, #tpu.memory_space<vmem>>, %arg4: memref<1024x512xbf16, #tpu.memory_space<vmem>>, %arg5: memref<1x512xf32, #tpu.memory_space<vmem>>, %arg6: memref<512x128xbf16, #tpu.memory_space<vmem>>, %arg7: memref<1x128xf32, #tpu.memory_space<vmem>>, %arg8: memref<8x128xf32, #tpu.memory_space<vmem>>) attributes {dimension_semantics = [#tpu.dimension_semantics<parallel>], iteration_bounds = array<i64: 1>, scalar_prefetch = 0 : i64, scratch_operands = 0 : i64, tpu.core_type = #tpu.core_type<tc>, window_params = [{transform_indices = @transform_0, window_bounds = array<i64: 8, 1024>}, {pipeline_mode = #tpu.pipeline_mode<synchronous>, transform_indices = @transform_1, window_bounds = array<i64: 1024, 1024>}, {pipeline_mode = #tpu.pipeline_mode<synchronous>, transform_indices = @transform_2, window_bounds = array<i64: 1, 1024>}, {pipeline_mode = #tpu.pipeline_mode<synchronous>, transform_indices = @transform_3, window_bounds = array<i64: 1024, 512>}, {pipeline_mode = #tpu.pipeline_mode<synchronous>, transform_indices = @transform_4, window_bounds = array<i64: 1, 512>}, {pipeline_mode = #tpu.pipeline_mode<synchronous>, transform_indices = @transform_5, window_bounds = array<i64: 512, 128>}, {pipeline_mode = #tpu.pipeline_mode<synchronous>, transform_indices = @transform_6, window_bounds = array<i64: 1, 128>}, {transform_indices = @transform_7, window_bounds = array<i64: 8, 128>}]} {
    %c0 = arith.constant 0 : index
    %c0_0 = arith.constant 0 : index
    %0 = vector.load %arg1[%c0, %c0_0] : memref<8x1024xbf16, #tpu.memory_space<vmem>>, vector<8x1024xbf16>
    %c0_1 = arith.constant 0 : index
    %c0_2 = arith.constant 0 : index
    %1 = vector.load %arg2[%c0_1, %c0_2] : memref<1024x1024xbf16, #tpu.memory_space<vmem>>, vector<1024x1024xbf16>
    %cst = arith.constant dense<0.000000e+00> : vector<8x1024xf32>
    %2 = tpu.matmul %0, %1, %cst {dimension_numbers = #tpu.dot_dimension_numbers<[1], [0], [0], [1], [0, 0, 1, 1], [], []>} : vector<8x1024xbf16>, vector<1024x1024xbf16>, vector<8x1024xf32> -> vector<8x1024xf32>
    %c0_3 = arith.constant 0 : index
    %c0_4 = arith.constant 0 : index
    %3 = vector.load %arg3[%c0_3, %c0_4] : memref<1x1024xf32, #tpu.memory_space<vmem>>, vector<1x1024xf32>
    %4 = vector.broadcast %3 : vector<1x1024xf32> to vector<8x1024xf32>
    %5 = arith.addf %2, %4 : vector<8x1024xf32>
    %cst_5 = arith.constant 0.000000e+00 : f32
    %6 = vector.broadcast %cst_5 : f32 to vector<8x1024xf32>
    %7 = arith.maximumf %5, %6 : vector<8x1024xf32>
    %8 = arith.truncf %7 : vector<8x1024xf32> to vector<8x1024xbf16>
    %c0_6 = arith.constant 0 : index
    %c0_7 = arith.constant 0 : index
    %9 = vector.load %arg4[%c0_6, %c0_7] : memref<1024x512xbf16, #tpu.memory_space<vmem>>, vector<1024x512xbf16>
    %cst_8 = arith.constant dense<0.000000e+00> : vector<8x512xf32>
    %10 = tpu.matmul %8, %9, %cst_8 {dimension_numbers = #tpu.dot_dimension_numbers<[1], [0], [0], [1], [0, 0, 1, 1], [], []>} : vector<8x1024xbf16>, vector<1024x512xbf16>, vector<8x512xf32> -> vector<8x512xf32>
    %c0_9 = arith.constant 0 : index
    %c0_10 = arith.constant 0 : index
    %11 = vector.load %arg5[%c0_9, %c0_10] : memref<1x512xf32, #tpu.memory_space<vmem>>, vector<1x512xf32>
    %12 = vector.broadcast %11 : vector<1x512xf32> to vector<8x512xf32>
    %13 = arith.addf %10, %12 : vector<8x512xf32>
    %cst_11 = arith.constant 0.000000e+00 : f32
    %14 = vector.broadcast %cst_11 : f32 to vector<8x512xf32>
    %15 = arith.maximumf %13, %14 : vector<8x512xf32>
    %16 = arith.truncf %15 : vector<8x512xf32> to vector<8x512xbf16>
    %c0_12 = arith.constant 0 : index
    %c0_13 = arith.constant 0 : index
    %17 = vector.load %arg6[%c0_12, %c0_13] : memref<512x128xbf16, #tpu.memory_space<vmem>>, vector<512x128xbf16>
    %cst_14 = arith.constant dense<0.000000e+00> : vector<8x128xf32>
    %18 = tpu.matmul %16, %17, %cst_14 {dimension_numbers = #tpu.dot_dimension_numbers<[1], [0], [0], [1], [0, 0, 1, 1], [], []>} : vector<8x512xbf16>, vector<512x128xbf16>, vector<8x128xf32> -> vector<8x128xf32>
    %c0_15 = arith.constant 0 : index
    %c0_16 = arith.constant 0 : index
    %19 = vector.load %arg7[%c0_15, %c0_16] : memref<1x128xf32, #tpu.memory_space<vmem>>, vector<1x128xf32>
    %20 = vector.broadcast %19 : vector<1x128xf32> to vector<8x128xf32>
    %21 = arith.addf %18, %20 : vector<8x128xf32>
    %22 = math.tanh %21 : vector<8x128xf32>
    %c0_17 = arith.constant 0 : index
    %c0_18 = arith.constant 0 : index
    %23 = vector.load %arg8[%c0_17, %c0_18] : memref<8x128xf32, #tpu.memory_space<vmem>>, vector<8x128xf32>
    tpu.vector_store %arg8[%c0_17, %c0_18], %22 {strides = array<i32>} : memref<8x128xf32, #tpu.memory_space<vmem>>, vector<8x128xf32>,
    return
  }
  func.func @transform_0(%arg0: i32) -> (i32, i32) {
    %c0_i32 = arith.constant 0 : i32
    %c0_i32_0 = arith.constant 0 : i32
    return %arg0, %c0_i32 : i32, i32
  }
  func.func @transform_1(%arg0: i32) -> (i32, i32) {
    %c0_i32 = arith.constant 0 : i32
    %c0_i32_0 = arith.constant 0 : i32
    %c0_i32_1 = arith.constant 0 : i32
    return %c0_i32, %c0_i32_0 : i32, i32
  }
  func.func @transform_2(%arg0: i32) -> (i32, i32) {
    %c0_i32 = arith.constant 0 : i32
    %c0_i32_0 = arith.constant 0 : i32
    %c0_i32_1 = arith.constant 0 : i32
    return %c0_i32, %c0_i32_0 : i32, i32
  }
  func.func @transform_3(%arg0: i32) -> (i32, i32) {
    %c0_i32 = arith.constant 0 : i32
    %c0_i32_0 = arith.constant 0 : i32
    %c0_i32_1 = arith.constant 0 : i32
    return %c0_i32, %c0_i32_0 : i32, i32
  }
  func.func @transform_4(%arg0: i32) -> (i32, i32) {
    %c0_i32 = arith.constant 0 : i32
    %c0_i32_0 = arith.constant 0 : i32
    %c0_i32_1 = arith.constant 0 : i32
    return %c0_i32, %c0_i32_0 : i32, i32
  }
  func.func @transform_5(%arg0: i32) -> (i32, i32) {
    %c0_i32 = arith.constant 0 : i32
    %c0_i32_0 = arith.constant 0 : i32
    %c0_i32_1 = arith.constant 0 : i32
    return %c0_i32, %c0_i32_0 : i32, i32
  }
  func.func @transform_6(%arg0: i32) -> (i32, i32) {
    %c0_i32 = arith.constant 0 : i32
    %c0_i32_0 = arith.constant 0 : i32
    %c0_i32_1 = arith.constant 0 : i32
    return %c0_i32, %c0_i32_0 : i32, i32
  }
  func.func @transform_7(%arg0: i32) -> (i32, i32) {
    %c0_i32 = arith.constant 0 : i32
    %c0_i32_0 = arith.constant 0 : i32
    return %arg0, %c0_i32 : i32, i32
  }
}

module attributes {stable_mosaic.version = 11 : i64} {
  func.func @actor_kernel(%arg0: i32, %arg1: memref<8x1024xbf16, #tpu.memory_space<vmem>>, %arg2: memref<1024x1024xbf16, #tpu.memory_space<vmem>>, %arg3: memref<1x1024xf32, #tpu.memory_space<vmem>>, %arg4: memref<1024x512xbf16, #tpu.memory_space<vmem>>, %arg5: memref<1x512xf32, #tpu.memory_space<vmem>>, %arg6: memref<512x128xbf16, #tpu.memory_space<vmem>>, %arg7: memref<1x128xf32, #tpu.memory_space<vmem>>, %arg8: memref<8x128xf32, #tpu.memory_space<vmem>>) attributes {dimension_semantics = [#tpu.dimension_semantics<parallel>], iteration_bounds = array<i64: 1>, scalar_prefetch = 0 : i64, scratch_operands = 0 : i64, tpu.core_type = #tpu.core_type<tc>, window_params = [{transform_indices = @transform_0, window_bounds = array<i64: 8, 1024>}, {pipeline_mode = #tpu.pipeline_mode<synchronous>, transform_indices = @transform_1, window_bounds = array<i64: 1024, 1024>}, {pipeline_mode = #tpu.pipeline_mode<synchronous>, transform_indices = @transform_2, window_bounds = array<i64: 1, 1024>}, {pipeline_mode = #tpu.pipeline_mode<synchronous>, transform_indices = @transform_3, window_bounds = array<i64: 1024, 512>}, {pipeline_mode = #tpu.pipeline_mode<synchronous>, transform_indices = @transform_4, window_bounds = array<i64: 1, 512>}, {pipeline_mode = #tpu.pipeline_mode<synchronous>, transform_indices = @transform_5, window_bounds = array<i64: 512, 128>}, {pipeline_mode = #tpu.pipeline_mode<synchronous>, transform_indices = @transform_6, window_bounds = array<i64: 1, 128>}, {transform_indices = @transform_7, window_bounds = array<i64: 8, 128>}]} {
    %c0 = arith.constant 0 : index
    %c0_0 = arith.constant 0 : index
    %0 = vector.load %arg1[%c0, %c0_0] : memref<8x1024xbf16, #tpu.memory_space<vmem>>, vector<8x1024xbf16>
    %c0_1 = arith.constant 0 : index
    %c0_2 = arith.constant 0 : index
    %1 = vector.load %arg2[%c0_1, %c0_2] : memref<1024x1024xbf16, #tpu.memory_space<vmem>>, vector<1024x1024xbf16>
    %cst = arith.constant dense<0.000000e+00> : vector<8x1024xf32>
    %2 = tpu.matmul %0, %1, %cst {dimension_numbers = #tpu.dot_dimension_numbers<[1], [0], [0], [1], [0, 0, 1, 1], [], []>} : vector<8x1024xbf16>, vector<1024x1024xbf16>, vector<8x1024xf32> -> vector<8x1024xf32>
    %c0_3 = arith.constant 0 : index
    %c0_4 = arith.constant 0 : index
    %3 = vector.load %arg3[%c0_3, %c0_4] : memref<1x1024xf32, #tpu.memory_space<vmem>>, vector<1x1024xf32>
    %4 = vector.broadcast %3 : vector<1x1024xf32> to vector<8x1024xf32>
    %5 = arith.addf %2, %4 : vector<8x1024xf32>
    %cst_5 = arith.constant 0.000000e+00 : f32
    %6 = vector.broadcast %cst_5 : f32 to vector<8x1024xf32>
    %7 = arith.maximumf %5, %6 : vector<8x1024xf32>
    %8 = arith.truncf %7 : vector<8x1024xf32> to vector<8x1024xbf16>
    %c0_6 = arith.constant 0 : index
    %c0_7 = arith.constant 0 : index
    %9 = vector.load %arg4[%c0_6, %c0_7] : memref<1024x512xbf16, #tpu.memory_space<vmem>>, vector<1024x512xbf16>
    %cst_8 = arith.constant dense<0.000000e+00> : vector<8x512xf32>
    %10 = tpu.matmul %8, %9, %cst_8 {dimension_numbers = #tpu.dot_dimension_numbers<[1], [0], [0], [1], [0, 0, 1, 1], [], []>} : vector<8x1024xbf16>, vector<1024x512xbf16>, vector<8x512xf32> -> vector<8x512xf32>
    %c0_9 = arith.constant 0 : index
    %c0_10 = arith.constant 0 : index
    %11 = vector.load %arg5[%c0_9, %c0_10] : memref<1x512xf32, #tpu.memory_space<vmem>>, vector<1x512xf32>
    %12 = vector.broadcast %11 : vector<1x512xf32> to vector<8x512xf32>
    %13 = arith.addf %10, %12 : vector<8x512xf32>
    %cst_11 = arith.constant 0.000000e+00 : f32
    %14 = vector.broadcast %cst_11 : f32 to vector<8x512xf32>
    %15 = arith.maximumf %13, %14 : vector<8x512xf32>
    %16 = arith.truncf %15 : vector<8x512xf32> to vector<8x512xbf16>
    %c0_12 = arith.constant 0 : index
    %c0_13 = arith.constant 0 : index
    %17 = vector.load %arg6[%c0_12, %c0_13] : memref<512x128xbf16, #tpu.memory_space<vmem>>, vector<512x128xbf16>
    %cst_14 = arith.constant dense<0.000000e+00> : vector<8x128xf32>
    %18 = tpu.matmul %16, %17, %cst_14 {dimension_numbers = #tpu.dot_dimension_numbers<[1], [0], [0], [1], [0, 0, 1, 1], [], []>} : vector<8x512xbf16>, vector<512x128xbf16>, vector<8x128xf32> -> vector<8x128xf32>
    %c0_15 = arith.constant 0 : index
    %c0_16 = arith.constant 0 : index
    %19 = vector.load %arg7[%c0_15, %c0_16] : memref<1x128xf32, #tpu.memory_space<vmem>>, vector<1x128xf32>
    %20 = vector.broadcast %19 : vector<1x128xf32> to vector<8x128xf32>
    %21 = arith.addf %18, %20 : vector<8x128xf32>
    %22 = math.tanh %21 : vector<8x128xf32>
    %c0_17 = arith.constant 0 : index
    %c0_18 = arith.constant 0 : index
    %23 = vector.load %arg8[%c0_17, %c0_18] : memref<8x128xf32, #tpu.memory_space<vmem>>, vector<8x128xf32>
    tpu.vector_store %arg8[%c0_17, %c0_18], %22 {strides = array<i32>} : memref<8x128xf32, #tpu.memory_space<vmem>>, vector<8x128xf32>,
    return
  }
  func.func @transform_0(%arg0: i32) -> (i32, i32) {
    %c0_i32 = arith.constant 0 : i32
    %c0_i32_0 = arith.constant 0 : i32
    return %arg0, %c0_i32 : i32, i32
  }
  func.func @transform_1(%arg0: i32) -> (i32, i32) {
    %c0_i32 = arith.constant 0 : i32
    %c0_i32_0 = arith.constant 0 : i32
    %c0_i32_1 = arith.constant 0 : i32
    return %c0_i32, %c0_i32_0 : i32, i32
  }
  func.func @transform_2(%arg0: i32) -> (i32, i32) {
    %c0_i32 = arith.constant 0 : i32
    %c0_i32_0 = arith.constant 0 : i32
    %c0_i32_1 = arith.constant 0 : i32
    return %c0_i32, %c0_i32_0 : i32, i32
  }
  func.func @transform_3(%arg0: i32) -> (i32, i32) {
    %c0_i32 = arith.constant 0 : i32
    %c0_i32_0 = arith.constant 0 : i32
    %c0_i32_1 = arith.constant 0 : i32
    return %c0_i32, %c0_i32_0 : i32, i32
  }
  func.func @transform_4(%arg0: i32) -> (i32, i32) {
    %c0_i32 = arith.constant 0 : i32
    %c0_i32_0 = arith.constant 0 : i32
    %c0_i32_1 = arith.constant 0 : i32
    return %c0_i32, %c0_i32_0 : i32, i32
  }
  func.func @transform_5(%arg0: i32) -> (i32, i32) {
    %c0_i32 = arith.constant 0 : i32
    %c0_i32_0 = arith.constant 0 : i32
    %c0_i32_1 = arith.constant 0 : i32
    return %c0_i32, %c0_i32_0 : i32, i32
  }
  func.func @transform_6(%arg0: i32) -> (i32, i32) {
    %c0_i32 = arith.constant 0 : i32
    %c0_i32_0 = arith.constant 0 : i32
    %c0_i32_1 = arith.constant 0 : i32
    return %c0_i32, %c0_i32_0 : i32, i32
  }
  func.func @transform_7(%arg0: i32) -> (i32, i32) {
    %c0_i32 = arith.constant 0 : i32
    %c0_i32_0 = arith.constant 0 : i32
    return %arg0, %c0_i32 : i32, i32
  }
}

</mosaic_0001>

<llo_original>
// kernel: tpu_custom_call.1
$region0: #{tpu_custom_call.1}
  #allocation0 [shape = 'u32[]', space=smem, size = 0x4, offset = 0x4, fixed_abs, tag = 'smem constant byte address 0x4 - core index']
  #allocation1 [shape = 'u32[144,128]{1,0:T(1,128)}', space=vmem, size = 0x12000, scoped, tag = 'internal scratch']
  %s0 = inlined_call_operand.hbm [shape: bf16[8,1024], index: 0, kind: input, shape index: {}]
  %s1 = inlined_call_operand.hbm [shape: bf16[1024,1024], index: 1, kind: input, shape index: {}]
  %s2 = inlined_call_operand.hbm [shape: f32[1,1024], index: 2, kind: input, shape index: {}]
  %s3 = inlined_call_operand.hbm [shape: bf16[1024,512], index: 3, kind: input, shape index: {}]
  %s4 = inlined_call_operand.hbm [shape: f32[1,512], index: 4, kind: input, shape index: {}]
  %s5 = inlined_call_operand.hbm [shape: bf16[512,128], index: 5, kind: input, shape index: {}]
  %s6 = inlined_call_operand.hbm [shape: f32[1,128], index: 6, kind: input, shape index: {}]
  %s7 = inlined_call_operand.hbm [shape: f32[8,128], index: 7, kind: output, shape index: {}]
  %s8 = sld [smem:[#allocation0]]
  $region66: #{tpu_custom_call.1} parent=0
    _
  %s10 = ssub.s32 1, %s8
  %s11 = scalar_select 0, %s10, %s8
  $region1: #{tpu_custom_call.1} parent=0
    #allocation2 [shape = 'u8[16384]{0}', space=vmem, size = 0x4000, scoped, tag = 'input window, operand 0, single buffered']
    #allocation3 [shape = 's32[1]{0}', space=sflag, size = 0x4, scoped, tag = 'scoped memory for tpu_custom_call.1']
    #allocation4 [shape = 's32[1]{0}', space=sflag, size = 0x4, scoped, tag = 'scoped memory for tpu_custom_call.1']
    #allocation5 [shape = 'u8[2097152]{0}', space=vmem, size = 0x200000, scoped, tag = 'input window, operand 1, single buffered']
    #allocation6 [shape = 's32[1]{0}', space=sflag, size = 0x4, scoped, tag = 'scoped memory for tpu_custom_call.1']
    #allocation7 [shape = 'u8[4096]{0}', space=vmem, size = 0x1000, scoped, tag = 'input window, operand 2, single buffered']
    #allocation8 [shape = 'u8[1048576]{0}', space=vmem, size = 0x100000, scoped, tag = 'input window, operand 3, single buffered']
    #allocation9 [shape = 's32[1]{0}', space=sflag, size = 0x4, scoped, tag = 'scoped memory for tpu_custom_call.1']
    #allocation10 [shape = 'u8[2048]{0}', space=vmem, size = 0x800, scoped, tag = 'input window, operand 4, single buffered']
    #allocation11 [shape = 'u8[131072]{0}', space=vmem, size = 0x20000, scoped, tag = 'input window, operand 5, single buffered']
    #allocation12 [shape = 's32[1]{0}', space=sflag, size = 0x4, scoped, tag = 'scoped memory for tpu_custom_call.1']
    #allocation13 [shape = 'u8[512]{0}', space=vmem, size = 0x400, scoped, tag = 'input window, operand 6, single buffered']
    #allocation14 [shape = 'u8[4096]{0}', space=vmem, size = 0x1000, scoped, tag = 'output window, operand 0, single buffered']
    %12 = vsyncpa [#allocation3], 0
    %13 = vsyncpa [#allocation6], 0
    %14 = vsyncpa [#allocation9], 0
    %15 = vsyncpa [#allocation12], 0
    %16 = vsyncpa [#allocation4], 0
    // Predicated region
    $region2: #{tpu_custom_call.1} parent=1 // pred_check
      _
    $region3: #{tpu_custom_call.1} parent=1 // pred_check_branch
      %18 = sbr.rel (0) target = $region5
    $region4: #{tpu_custom_call.1} parent=1 // pred_region
      %s20 = ssub.s32 512, 512
      %21 = vsyncadd [#allocation3], %s20
      %s23 = sshll.u32 [#allocation2], 4
      %s24 = int_to_ptr.vmem [resolvable:$true] %s23
      %26 = dma.hbm_to_vmem [thread:$0]  %s0, 512, %s24, [#allocation3]
    $region5: #{tpu_custom_call.1} parent=1 // pred_fallthru
      _
    // Predicated region
    $region6: #{tpu_custom_call.1} parent=1 // pred_check
      _
    $region7: #{tpu_custom_call.1} parent=1 // pred_check_branch
      %28 = sbr.rel (0) target = $region9
    $region8: #{tpu_custom_call.1} parent=1 // pred_region
      %s30 = ssub.s32 65536, 65536
      %31 = vsyncadd [#allocation6], %s30
      %s32 = sshll.u32 [#allocation5], 4
      %s33 = int_to_ptr.vmem [resolvable:$true] %s32
      %38 = dma.hbm_to_vmem [thread:$0]  %s1, 65536, %s33, [#allocation6], 512, 512, 32
    $region9: #{tpu_custom_call.1} parent=1 // pred_fallthru
      _
    // Predicated region
    $region10: #{tpu_custom_call.1} parent=1 // pred_check
      _
    $region11: #{tpu_custom_call.1} parent=1 // pred_check_branch
      %40 = sbr.rel (0) target = $region13
    $region12: #{tpu_custom_call.1} parent=1 // pred_region
      %s42 = ssub.s32 128, 128
      %43 = vsyncadd [#allocation6], %s42
      %s45 = sshll.u32 [#allocation7], 4
      %s46 = int_to_ptr.vmem [resolvable:$true] %s45
      %48 = dma.hbm_to_vmem [thread:$0]  %s2, 128, %s46, [#allocation6]
    $region13: #{tpu_custom_call.1} parent=1 // pred_fallthru
      _
    // Predicated region
    $region14: #{tpu_custom_call.1} parent=1 // pred_check
      _
    $region15: #{tpu_custom_call.1} parent=1 // pred_check_branch
      %50 = sbr.rel (0) target = $region17
    $region16: #{tpu_custom_call.1} parent=1 // pred_region
      %s52 = ssub.s32 32768, 32768
      %53 = vsyncadd [#allocation9], %s52
      %s54 = sshll.u32 [#allocation8], 4
      %s55 = int_to_ptr.vmem [resolvable:$true] %s54
      %60 = dma.hbm_to_vmem [thread:$0]  %s3, 32768, %s55, [#allocation9], 256, 256, 16
    $region17: #{tpu_custom_call.1} parent=1 // pred_fallthru
      _
    // Predicated region
    $region18: #{tpu_custom_call.1} parent=1 // pred_check
      _
    $region19: #{tpu_custom_call.1} parent=1 // pred_check_branch
      %62 = sbr.rel (0) target = $region21
    $region20: #{tpu_custom_call.1} parent=1 // pred_region
      %s64 = ssub.s32 64, 64
      %65 = vsyncadd [#allocation9], %s64
      %s67 = sshll.u32 [#allocation10], 4
      %s68 = int_to_ptr.vmem [resolvable:$true] %s67
      %70 = dma.hbm_to_vmem [thread:$0]  %s4, 64, %s68, [#allocation9]
    $region21: #{tpu_custom_call.1} parent=1 // pred_fallthru
      _
    // Predicated region
    $region22: #{tpu_custom_call.1} parent=1 // pred_check
      _
    $region23: #{tpu_custom_call.1} parent=1 // pred_check_branch
      %72 = sbr.rel (0) target = $region25
    $region24: #{tpu_custom_call.1} parent=1 // pred_region
      %s74 = ssub.s32 4096, 4096
      %75 = vsyncadd [#allocation12], %s74
      %s76 = sshll.u32 [#allocation11], 4
      %s77 = int_to_ptr.vmem [resolvable:$true] %s76
      %82 = dma.hbm_to_vmem [thread:$0]  %s5, 4096, %s77, [#allocation12], 64, 64, 4
    $region25: #{tpu_custom_call.1} parent=1 // pred_fallthru
      _
    // Predicated region
    $region26: #{tpu_custom_call.1} parent=1 // pred_check
      _
    $region27: #{tpu_custom_call.1} parent=1 // pred_check_branch
      %84 = sbr.rel (0) target = $region29
    $region28: #{tpu_custom_call.1} parent=1 // pred_region
      %s86 = ssub.s32 16, 16
      %87 = vsyncadd [#allocation12], %s86
      %s89 = sshll.u32 [#allocation13], 4
      %s90 = int_to_ptr.vmem [resolvable:$true] %s89
      %92 = dma.hbm_to_vmem [thread:$0]  %s6, 16, %s90, [#allocation12]
    $region29: #{tpu_custom_call.1} parent=1 // pred_fallthru
      _
    // Predicated region
    $region30: #{tpu_custom_call.1} parent=1 // pred_check
      _
    $region31: #{tpu_custom_call.1} parent=1 // pred_check_branch
      %94 = sbr.rel (0) target = $region33
    $region32: #{tpu_custom_call.1} parent=1 // pred_region
      %95 = dma.done [#allocation3], 512
    $region33: #{tpu_custom_call.1} parent=1 // pred_fallthru
      _
    // Predicated region
    $region34: #{tpu_custom_call.1} parent=1 // pred_check
      _
    $region35: #{tpu_custom_call.1} parent=1 // pred_check_branch
      %97 = sbr.rel (0) target = $region37
    $region36: #{tpu_custom_call.1} parent=1 // pred_region
      %98 = dma.done [#allocation6], 65536
    $region37: #{tpu_custom_call.1} parent=1 // pred_fallthru
      _
    // Predicated region
    $region38: #{tpu_custom_call.1} parent=1 // pred_check
      _
    $region39: #{tpu_custom_call.1} parent=1 // pred_check_branch
      %100 = sbr.rel (0) target = $region41
    $region40: #{tpu_custom_call.1} parent=1 // pred_region
      %101 = dma.done [#allocation6], 128
    $region41: #{tpu_custom_call.1} parent=1 // pred_fallthru
      _
    // Predicated region
    $region42: #{tpu_custom_call.1} parent=1 // pred_check
      _
    $region43: #{tpu_custom_call.1} parent=1 // pred_check_branch
      %103 = sbr.rel (0) target = $region45
    $region44: #{tpu_custom_call.1} parent=1 // pred_region
      %104 = dma.done [#allocation9], 32768
    $region45: #{tpu_custom_call.1} parent=1 // pred_fallthru
      _
    // Predicated region
    $region46: #{tpu_custom_call.1} parent=1 // pred_check
      _
    $region47: #{tpu_custom_call.1} parent=1 // pred_check_branch
      %106 = sbr.rel (0) target = $region49
    $region48: #{tpu_custom_call.1} parent=1 // pred_region
      %107 = dma.done [#allocation9], 64
    $region49: #{tpu_custom_call.1} parent=1 // pred_fallthru
      _
    // Predicated region
    $region50: #{tpu_custom_call.1} parent=1 // pred_check
      _
    $region51: #{tpu_custom_call.1} parent=1 // pred_check_branch
      %109 = sbr.rel (0) target = $region53
    $region52: #{tpu_custom_call.1} parent=1 // pred_region
      %110 = dma.done [#allocation12], 4096
    $region53: #{tpu_custom_call.1} parent=1 // pred_fallthru
      _
    // Predicated region
    $region54: #{tpu_custom_call.1} parent=1 // pred_check
      _
    $region55: #{tpu_custom_call.1} parent=1 // pred_check_branch
      %112 = sbr.rel (0) target = $region57
    $region56: #{tpu_custom_call.1} parent=1 // pred_region
      %113 = dma.done [#allocation12], 16
    $region57: #{tpu_custom_call.1} parent=1 // pred_fallthru
      _
    %v115 = vld [vmem:[#allocation2] sm:$0xff]
    %v116 = vld [vmem:[#allocation2 + $0x8] sm:$0xff]
    %v117 = vld [vmem:[#allocation2 + $0x10] sm:$0xff]
    %v118 = vld [vmem:[#allocation2 + $0x18] sm:$0xff]
    %v119 = vld [vmem:[#allocation5] sm:$0xff]
    %v120 = vld [vmem:[#allocation5 + $0x8] sm:$0xff]
    %v121 = vld [vmem:[#allocation5 + $0x10] sm:$0xff]
    %v122 = vld [vmem:[#allocation5 + $0x18] sm:$0xff]
    %v123 = vld [vmem:[#allocation5 + $0x20] sm:$0xff]
    %v124 = vld [vmem:[#allocation5 + $0x28] sm:$0xff]
    %v125 = vld [vmem:[#allocation5 + $0x30] sm:$0xff]
    %v126 = vld [vmem:[#allocation5 + $0x38] sm:$0xff]
    %v127 = vld [vmem:[#allocation5 + $0x40] sm:$0xff]
    %v128 = vld [vmem:[#allocation5 + $0x48] sm:$0xff]
    %v129 = vld [vmem:[#allocation5 + $0x50] sm:$0xff]
    %v130 = vld [vmem:[#allocation5 + $0x58] sm:$0xff]
    %v131 = vld [vmem:[#allocation5 + $0x60] sm:$0xff]
    %v132 = vld [vmem:[#allocation5 + $0x68] sm:$0xff]
    %v133 = vld [vmem:[#allocation5 + $0x70] sm:$0xff]
    %v134 = vld [vmem:[#allocation5 + $0x78] sm:$0xff]
    %v135 = vld [vmem:[#allocation5 + $0x80] sm:$0xff]
    %v136 = vld [vmem:[#allocation5 + $0x88] sm:$0xff]
    %v137 = vld [vmem:[#allocation5 + $0x90] sm:$0xff]
    %v138 = vld [vmem:[#allocation5 + $0x98] sm:$0xff]
    %v139 = vld [vmem:[#allocation5 + $0xa0] sm:$0xff]
    %v140 = vld [vmem:[#allocation5 + $0xa8] sm:$0xff]
    %v141 = vld [vmem:[#allocation5 + $0xb0] sm:$0xff]
    %v142 = vld [vmem:[#allocation5 + $0xb8] sm:$0xff]
    %v143 = vld [vmem:[#allocation5 + $0xc0] sm:$0xff]
    %v144 = vld [vmem:[#allocation5 + $0xc8] sm:$0xff]
    %v145 = vld [vmem:[#allocation5 + $0xd0] sm:$0xff]
    %v146 = vld [vmem:[#allocation5 + $0xd8] sm:$0xff]
    %v147 = vld [vmem:[#allocation5 + $0xe0] sm:$0xff]
    %v148 = vld [vmem:[#allocation5 + $0xe8] sm:$0xff]
    %v149 = vld [vmem:[#allocation5 + $0xf0] sm:$0xff]
    %v150 = vld [vmem:[#allocation5 + $0xf8] sm:$0xff]
    %v151 = vld [vmem:[#allocation5 + $0x100] sm:$0xff]
    %v152 = vld [vmem:[#allocation5 + $0x108] sm:$0xff]
    %v153 = vld [vmem:[#allocation5 + $0x110] sm:$0xff]
    %v154 = vld [vmem:[#allocation5 + $0x118] sm:$0xff]
    %v155 = vld [vmem:[#allocation5 + $0x120] sm:$0xff]
    %v156 = vld [vmem:[#allocation5 + $0x128] sm:$0xff]
    %v157 = vld [vmem:[#allocation5 + $0x130] sm:$0xff]
    %v158 = vld [vmem:[#allocation5 + $0x138] sm:$0xff]
    %v159 = vld [vmem:[#allocation5 + $0x140] sm:$0xff]
    %v160 = vld [vmem:[#allocation5 + $0x148] sm:$0xff]
    %v161 = vld [vmem:[#allocation5 + $0x150] sm:$0xff]
    %v162 = vld [vmem:[#allocation5 + $0x158] sm:$0xff]
    %v163 = vld [vmem:[#allocation5 + $0x160] sm:$0xff]
    %v164 = vld [vmem:[#allocation5 + $0x168] sm:$0xff]
    %v165 = vld [vmem:[#allocation5 + $0x170] sm:$0xff]
    %v166 = vld [vmem:[#allocation5 + $0x178] sm:$0xff]
    %v167 = vld [vmem:[#allocation5 + $0x180] sm:$0xff]
    %v168 = vld [vmem:[#allocation5 + $0x188] sm:$0xff]
    %v169 = vld [vmem:[#allocation5 + $0x190] sm:$0xff]
    %v170 = vld [vmem:[#allocation5 + $0x198] sm:$0xff]
    %v171 = vld [vmem:[#allocation5 + $0x1a0] sm:$0xff]
    %v172 = vld [vmem:[#allocation5 + $0x1a8] sm:$0xff]
    %v173 = vld [vmem:[#allocation5 + $0x1b0] sm:$0xff]
    %v174 = vld [vmem:[#allocation5 + $0x1b8] sm:$0xff]
    %v175 = vld [vmem:[#allocation5 + $0x1c0] sm:$0xff]
    %v176 = vld [vmem:[#allocation5 + $0x1c8] sm:$0xff]
    %v177 = vld [vmem:[#allocation5 + $0x1d0] sm:$0xff]
    %v178 = vld [vmem:[#allocation5 + $0x1d8] sm:$0xff]
    %v179 = vld [vmem:[#allocation5 + $0x1e0] sm:$0xff]
    %v180 = vld [vmem:[#allocation5 + $0x1e8] sm:$0xff]
    %v181 = vld [vmem:[#allocation5 + $0x1f0] sm:$0xff]
    %v182 = vld [vmem:[#allocation5 + $0x1f8] sm:$0xff]
    %v183 = vld [vmem:[#allocation5 + $0x200] sm:$0xff]
    %v184 = vld [vmem:[#allocation5 + $0x208] sm:$0xff]
    %v185 = vld [vmem:[#allocation5 + $0x210] sm:$0xff]
    %v186 = vld [vmem:[#allocation5 + $0x218] sm:$0xff]
    %v187 = vld [vmem:[#allocation5 + $0x220] sm:$0xff]
    %v188 = vld [vmem:[#allocation5 + $0x228] sm:$0xff]
    %v189 = vld [vmem:[#allocation5 + $0x230] sm:$0xff]
    %v190 = vld [vmem:[#allocation5 + $0x238] sm:$0xff]
    %v191 = vld [vmem:[#allocation5 + $0x240] sm:$0xff]
    %v192 = vld [vmem:[#allocation5 + $0x248] sm:$0xff]
    %v193 = vld [vmem:[#allocation5 + $0x250] sm:$0xff]
    %v194 = vld [vmem:[#allocation5 + $0x258] sm:$0xff]
    %v195 = vld [vmem:[#allocation5 + $0x260] sm:$0xff]
    %v196 = vld [vmem:[#allocation5 + $0x268] sm:$0xff]
    %v197 = vld [vmem:[#allocation5 + $0x270] sm:$0xff]
    %v198 = vld [vmem:[#allocation5 + $0x278] sm:$0xff]
    %v199 = vld [vmem:[#allocation5 + $0x280] sm:$0xff]
    %v200 = vld [vmem:[#allocation5 + $0x288] sm:$0xff]
    %v201 = vld [vmem:[#allocation5 + $0x290] sm:$0xff]
    %v202 = vld [vmem:[#allocation5 + $0x298] sm:$0xff]
    %v203 = vld [vmem:[#allocation5 + $0x2a0] sm:$0xff]
    %v204 = vld [vmem:[#allocation5 + $0x2a8] sm:$0xff]
    %v205 = vld [vmem:[#allocation5 + $0x2b0] sm:$0xff]
    %v206 = vld [vmem:[#allocation5 + $0x2b8] sm:$0xff]
    %v207 = vld [vmem:[#allocation5 + $0x2c0] sm:$0xff]
    %v208 = vld [vmem:[#allocation5 + $0x2c8] sm:$0xff]
    %v209 = vld [vmem:[#allocation5 + $0x2d0] sm:$0xff]
    %v210 = vld [vmem:[#allocation5 + $0x2d8] sm:$0xff]
    %v211 = vld [vmem:[#allocation5 + $0x2e0] sm:$0xff]
    %v212 = vld [vmem:[#allocation5 + $0x2e8] sm:$0xff]
    %v213 = vld [vmem:[#allocation5 + $0x2f0] sm:$0xff]
    %v214 = vld [vmem:[#allocation5 + $0x2f8] sm:$0xff]
    %v215 = vld [vmem:[#allocation5 + $0x300] sm:$0xff]
    %v216 = vld [vmem:[#allocation5 + $0x308] sm:$0xff]
    %v217 = vld [vmem:[#allocation5 + $0x310] sm:$0xff]
    %v218 = vld [vmem:[#allocation5 + $0x318] sm:$0xff]
    %v219 = vld [vmem:[#allocation5 + $0x320] sm:$0xff]
    %v220 = vld [vmem:[#allocation5 + $0x328] sm:$0xff]
    %v221 = vld [vmem:[#allocation5 + $0x330] sm:$0xff]
    %v222 = vld [vmem:[#allocation5 + $0x338] sm:$0xff]
    %v223 = vld [vmem:[#allocation5 + $0x340] sm:$0xff]
    %v224 = vld [vmem:[#allocation5 + $0x348] sm:$0xff]
    %v225 = vld [vmem:[#allocation5 + $0x350] sm:$0xff]
    %v226 = vld [vmem:[#allocation5 + $0x358] sm:$0xff]
    %v227 = vld [vmem:[#allocation5 + $0x360] sm:$0xff]
    %v228 = vld [vmem:[#allocation5 + $0x368] sm:$0xff]
    %v229 = vld [vmem:[#allocation5 + $0x370] sm:$0xff]
    %v230 = vld [vmem:[#allocation5 + $0x378] sm:$0xff]
    %v231 = vld [vmem:[#allocation5 + $0x380] sm:$0xff]
    %v232 = vld [vmem:[#allocation5 + $0x388] sm:$0xff]
    %v233 = vld [vmem:[#allocation5 + $0x390] sm:$0xff]
    %v234 = vld [vmem:[#allocation5 + $0x398] sm:$0xff]
    %v235 = vld [vmem:[#allocation5 + $0x3a0] sm:$0xff]
    %v236 = vld [vmem:[#allocation5 + $0x3a8] sm:$0xff]
    %v237 = vld [vmem:[#allocation5 + $0x3b0] sm:$0xff]
    %v238 = vld [vmem:[#allocation5 + $0x3b8] sm:$0xff]
    %v239 = vld [vmem:[#allocation5 + $0x3c0] sm:$0xff]
    %v240 = vld [vmem:[#allocation5 + $0x3c8] sm:$0xff]
    %v241 = vld [vmem:[#allocation5 + $0x3d0] sm:$0xff]
    %v242 = vld [vmem:[#allocation5 + $0x3d8] sm:$0xff]
    %v243 = vld [vmem:[#allocation5 + $0x3e0] sm:$0xff]
    %v244 = vld [vmem:[#allocation5 + $0x3e8] sm:$0xff]
    %v245 = vld [vmem:[#allocation5 + $0x3f0] sm:$0xff]
    %v246 = vld [vmem:[#allocation5 + $0x3f8] sm:$0xff]
    %v247 = vld [vmem:[#allocation5 + $0x400] sm:$0xff]
    %v248 = vld [vmem:[#allocation5 + $0x408] sm:$0xff]
    %v249 = vld [vmem:[#allocation5 + $0x410] sm:$0xff]
    %v250 = vld [vmem:[#allocation5 + $0x418] sm:$0xff]
    %v251 = vld [vmem:[#allocation5 + $0x420] sm:$0xff]
    %v252 = vld [vmem:[#allocation5 + $0x428] sm:$0xff]
    %v253 = vld [vmem:[#allocation5 + $0x430] sm:$0xff]
    %v254 = vld [vmem:[#allocation5 + $0x438] sm:$0xff]
    %v255 = vld [vmem:[#allocation5 + $0x440] sm:$0xff]
    %v256 = vld [vmem:[#allocation5 + $0x448] sm:$0xff]
    %v257 = vld [vmem:[#allocation5 + $0x450] sm:$0xff]
    %v258 = vld [vmem:[#allocation5 + $0x458] sm:$0xff]
    %v259 = vld [vmem:[#allocation5 + $0x460] sm:$0xff]
    %v260 = vld [vmem:[#allocation5 + $0x468] sm:$0xff]
    %v261 = vld [vmem:[#allocation5 + $0x470] sm:$0xff]
    %v262 = vld [vmem:[#allocation5 + $0x478] sm:$0xff]
    %v263 = vld [vmem:[#allocation5 + $0x480] sm:$0xff]
    %v264 = vld [vmem:[#allocation5 + $0x488] sm:$0xff]
    %v265 = vld [vmem:[#allocation5 + $0x490] sm:$0xff]
    %v266 = vld [vmem:[#allocation5 + $0x498] sm:$0xff]
    %v267 = vld [vmem:[#allocation5 + $0x4a0] sm:$0xff]
    %v268 = vld [vmem:[#allocation5 + $0x4a8] sm:$0xff]
    %v269 = vld [vmem:[#allocation5 + $0x4b0] sm:$0xff]
    %v270 = vld [vmem:[#allocation5 + $0x4b8] sm:$0xff]
    %v271 = vld [vmem:[#allocation5 + $0x4c0] sm:$0xff]
    %v272 = vld [vmem:[#allocation5 + $0x4c8] sm:$0xff]
    %v273 = vld [vmem:[#allocation5 + $0x4d0] sm:$0xff]
    %v274 = vld [vmem:[#allocation5 + $0x4d8] sm:$0xff]
    %v275 = vld [vmem:[#allocation5 + $0x4e0] sm:$0xff]
    %v276 = vld [vmem:[#allocation5 + $0x4e8] sm:$0xff]
    %v277 = vld [vmem:[#allocation5 + $0x4f0] sm:$0xff]
    %v278 = vld [vmem:[#allocation5 + $0x4f8] sm:$0xff]
    %v279 = vld [vmem:[#allocation5 + $0x500] sm:$0xff]
    %v280 = vld [vmem:[#allocation5 + $0x508] sm:$0xff]
    %v281 = vld [vmem:[#allocation5 + $0x510] sm:$0xff]
    %v282 = vld [vmem:[#allocation5 + $0x518] sm:$0xff]
    %v283 = vld [vmem:[#allocation5 + $0x520] sm:$0xff]
    %v284 = vld [vmem:[#allocation5 + $0x528] sm:$0xff]
    %v285 = vld [vmem:[#allocation5 + $0x530] sm:$0xff]
    %v286 = vld [vmem:[#allocation5 + $0x538] sm:$0xff]
    %v287 = vld [vmem:[#allocation5 + $0x540] sm:$0xff]
    %v288 = vld [vmem:[#allocation5 + $0x548] sm:$0xff]
    %v289 = vld [vmem:[#allocation5 + $0x550] sm:$0xff]
    %v290 = vld [vmem:[#allocation5 + $0x558] sm:$0xff]
    %v291 = vld [vmem:[#allocation5 + $0x560] sm:$0xff]
    %v292 = vld [vmem:[#allocation5 + $0x568] sm:$0xff]
    %v293 = vld [vmem:[#allocation5 + $0x570] sm:$0xff]
    %v294 = vld [vmem:[#allocation5 + $0x578] sm:$0xff]
    %v295 = vld [vmem:[#allocation5 + $0x580] sm:$0xff]
    %v296 = vld [vmem:[#allocation5 + $0x588] sm:$0xff]
    %v297 = vld [vmem:[#allocation5 + $0x590] sm:$0xff]
    %v298 = vld [vmem:[#allocation5 + $0x598] sm:$0xff]
    %v299 = vld [vmem:[#allocation5 + $0x5a0] sm:$0xff]
    %v300 = vld [vmem:[#allocation5 + $0x5a8] sm:$0xff]
    %v301 = vld [vmem:[#allocation5 + $0x5b0] sm:$0xff]
    %v302 = vld [vmem:[#allocation5 + $0x5b8] sm:$0xff]
    %v303 = vld [vmem:[#allocation5 + $0x5c0] sm:$0xff]
    %v304 = vld [vmem:[#allocation5 + $0x5c8] sm:$0xff]
    %v305 = vld [vmem:[#allocation5 + $0x5d0] sm:$0xff]
    %v306 = vld [vmem:[#allocation5 + $0x5d8] sm:$0xff]
    %v307 = vld [vmem:[#allocation5 + $0x5e0] sm:$0xff]
    %v308 = vld [vmem:[#allocation5 + $0x5e8] sm:$0xff]
    %v309 = vld [vmem:[#allocation5 + $0x5f0] sm:$0xff]
    %v310 = vld [vmem:[#allocation5 + $0x5f8] sm:$0xff]
    %v311 = vld [vmem:[#allocation5 + $0x600] sm:$0xff]
    %v312 = vld [vmem:[#allocation5 + $0x608] sm:$0xff]
    %v313 = vld [vmem:[#allocation5 + $0x610] sm:$0xff]
    %v314 = vld [vmem:[#allocation5 + $0x618] sm:$0xff]
    %v315 = vld [vmem:[#allocation5 + $0x620] sm:$0xff]
    %v316 = vld [vmem:[#allocation5 + $0x628] sm:$0xff]
    %v317 = vld [vmem:[#allocation5 + $0x630] sm:$0xff]
    %v318 = vld [vmem:[#allocation5 + $0x638] sm:$0xff]
    %v319 = vld [vmem:[#allocation5 + $0x640] sm:$0xff]
    %v320 = vld [vmem:[#allocation5 + $0x648] sm:$0xff]
    %v321 = vld [vmem:[#allocation5 + $0x650] sm:$0xff]
    %v322 = vld [vmem:[#allocation5 + $0x658] sm:$0xff]
    %v323 = vld [vmem:[#allocation5 + $0x660] sm:$0xff]
    %v324 = vld [vmem:[#allocation5 + $0x668] sm:$0xff]
    %v325 = vld [vmem:[#allocation5 + $0x670] sm:$0xff]
    %v326 = vld [vmem:[#allocation5 + $0x678] sm:$0xff]
    %v327 = vld [vmem:[#allocation5 + $0x680] sm:$0xff]
    %v328 = vld [vmem:[#allocation5 + $0x688] sm:$0xff]
    %v329 = vld [vmem:[#allocation5 + $0x690] sm:$0xff]
    %v330 = vld [vmem:[#allocation5 + $0x698] sm:$0xff]
    %v331 = vld [vmem:[#allocation5 + $0x6a0] sm:$0xff]
    %v332 = vld [vmem:[#allocation5 + $0x6a8] sm:$0xff]
    %v333 = vld [vmem:[#allocation5 + $0x6b0] sm:$0xff]
    %v334 = vld [vmem:[#allocation5 + $0x6b8] sm:$0xff]
    %v335 = vld [vmem:[#allocation5 + $0x6c0] sm:$0xff]
    %v336 = vld [vmem:[#allocation5 + $0x6c8] sm:$0xff]
    %v337 = vld [vmem:[#allocation5 + $0x6d0] sm:$0xff]
    %v338 = vld [vmem:[#allocation5 + $0x6d8] sm:$0xff]
    %v339 = vld [vmem:[#allocation5 + $0x6e0] sm:$0xff]
    %v340 = vld [vmem:[#allocation5 + $0x6e8] sm:$0xff]
    %v341 = vld [vmem:[#allocation5 + $0x6f0] sm:$0xff]
    %v342 = vld [vmem:[#allocation5 + $0x6f8] sm:$0xff]
    %v343 = vld [vmem:[#allocation5 + $0x700] sm:$0xff]
    %v344 = vld [vmem:[#allocation5 + $0x708] sm:$0xff]
    %v345 = vld [vmem:[#allocation5 + $0x710] sm:$0xff]
    %v346 = vld [vmem:[#allocation5 + $0x718] sm:$0xff]
    %v347 = vld [vmem:[#allocation5 + $0x720] sm:$0xff]
    %v348 = vld [vmem:[#allocation5 + $0x728] sm:$0xff]
    %v349 = vld [vmem:[#allocation5 + $0x730] sm:$0xff]
    %v350 = vld [vmem:[#allocation5 + $0x738] sm:$0xff]
    %v351 = vld [vmem:[#allocation5 + $0x740] sm:$0xff]
    %v352 = vld [vmem:[#allocation5 + $0x748] sm:$0xff]
    %v353 = vld [vmem:[#allocation5 + $0x750] sm:$0xff]
    %v354 = vld [vmem:[#allocation5 + $0x758] sm:$0xff]
    %v355 = vld [vmem:[#allocation5 + $0x760] sm:$0xff]
    %v356 = vld [vmem:[#allocation5 + $0x768] sm:$0xff]
    %v357 = vld [vmem:[#allocation5 + $0x770] sm:$0xff]
    %v358 = vld [vmem:[#allocation5 + $0x778] sm:$0xff]
    %v359 = vld [vmem:[#allocation5 + $0x780] sm:$0xff]
    %v360 = vld [vmem:[#allocation5 + $0x788] sm:$0xff]
    %v361 = vld [vmem:[#allocation5 + $0x790] sm:$0xff]
    %v362 = vld [vmem:[#allocation5 + $0x798] sm:$0xff]
    %v363 = vld [vmem:[#allocation5 + $0x7a0] sm:$0xff]
    %v364 = vld [vmem:[#allocation5 + $0x7a8] sm:$0xff]
    %v365 = vld [vmem:[#allocation5 + $0x7b0] sm:$0xff]
    %v366 = vld [vmem:[#allocation5 + $0x7b8] sm:$0xff]
    %v367 = vld [vmem:[#allocation5 + $0x7c0] sm:$0xff]
    %v368 = vld [vmem:[#allocation5 + $0x7c8] sm:$0xff]
    %v369 = vld [vmem:[#allocation5 + $0x7d0] sm:$0xff]
    %v370 = vld [vmem:[#allocation5 + $0x7d8] sm:$0xff]
    %v371 = vld [vmem:[#allocation5 + $0x7e0] sm:$0xff]
    %v372 = vld [vmem:[#allocation5 + $0x7e8] sm:$0xff]
    %v373 = vld [vmem:[#allocation5 + $0x7f0] sm:$0xff]
    %v374 = vld [vmem:[#allocation5 + $0x7f8] sm:$0xff]
    %v375 = vld [vmem:[#allocation5 + $0x800] sm:$0xff]
    %v376 = vld [vmem:[#allocation5 + $0x808] sm:$0xff]
    %v377 = vld [vmem:[#allocation5 + $0x810] sm:$0xff]
    %v378 = vld [vmem:[#allocation5 + $0x818] sm:$0xff]
    %v379 = vld [vmem:[#allocation5 + $0x820] sm:$0xff]
    %v380 = vld [vmem:[#allocation5 + $0x828] sm:$0xff]
    %v381 = vld [vmem:[#allocation5 + $0x830] sm:$0xff]
    %v382 = vld [vmem:[#allocation5 + $0x838] sm:$0xff]
    %v383 = vld [vmem:[#allocation5 + $0x840] sm:$0xff]
    %v384 = vld [vmem:[#allocation5 + $0x848] sm:$0xff]
    %v385 = vld [vmem:[#allocation5 + $0x850] sm:$0xff]
    %v386 = vld [vmem:[#allocation5 + $0x858] sm:$0xff]
    %v387 = vld [vmem:[#allocation5 + $0x860] sm:$0xff]
    %v388 = vld [vmem:[#allocation5 + $0x868] sm:$0xff]
    %v389 = vld [vmem:[#allocation5 + $0x870] sm:$0xff]
    %v390 = vld [vmem:[#allocation5 + $0x878] sm:$0xff]
    %v391 = vld [vmem:[#allocation5 + $0x880] sm:$0xff]
    %v392 = vld [vmem:[#allocation5 + $0x888] sm:$0xff]
    %v393 = vld [vmem:[#allocation5 + $0x890] sm:$0xff]
    %v394 = vld [vmem:[#allocation5 + $0x898] sm:$0xff]
    %v395 = vld [vmem:[#allocation5 + $0x8a0] sm:$0xff]
    %v396 = vld [vmem:[#allocation5 + $0x8a8] sm:$0xff]
    %v397 = vld [vmem:[#allocation5 + $0x8b0] sm:$0xff]
    %v398 = vld [vmem:[#allocation5 + $0x8b8] sm:$0xff]
    %v399 = vld [vmem:[#allocation5 + $0x8c0] sm:$0xff]
    %v400 = vld [vmem:[#allocation5 + $0x8c8] sm:$0xff]
    %v401 = vld [vmem:[#allocation5 + $0x8d0] sm:$0xff]
    %v402 = vld [vmem:[#allocation5 + $0x8d8] sm:$0xff]
    %v403 = vld [vmem:[#allocation5 + $0x8e0] sm:$0xff]
    %v404 = vld [vmem:[#allocation5 + $0x8e8] sm:$0xff]
    %v405 = vld [vmem:[#allocation5 + $0x8f0] sm:$0xff]
    %v406 = vld [vmem:[#allocation5 + $0x8f8] sm:$0xff]
    %v407 = vld [vmem:[#allocation5 + $0x900] sm:$0xff]
    %v408 = vld [vmem:[#allocation5 + $0x908] sm:$0xff]
    %v409 = vld [vmem:[#allocation5 + $0x910] sm:$0xff]
    %v410 = vld [vmem:[#allocation5 + $0x918] sm:$0xff]
    %v411 = vld [vmem:[#allocation5 + $0x920] sm:$0xff]
    %v412 = vld [vmem:[#allocation5 + $0x928] sm:$0xff]
    %v413 = vld [vmem:[#allocation5 + $0x930] sm:$0xff]
    %v414 = vld [vmem:[#allocation5 + $0x938] sm:$0xff]
    %v415 = vld [vmem:[#allocation5 + $0x940] sm:$0xff]
    %v416 = vld [vmem:[#allocation5 + $0x948] sm:$0xff]
    %v417 = vld [vmem:[#allocation5 + $0x950] sm:$0xff]
    %v418 = vld [vmem:[#allocation5 + $0x958] sm:$0xff]
    %v419 = vld [vmem:[#allocation5 + $0x960] sm:$0xff]
    %v420 = vld [vmem:[#allocation5 + $0x968] sm:$0xff]
    %v421 = vld [vmem:[#allocation5 + $0x970] sm:$0xff]
    %v422 = vld [vmem:[#allocation5 + $0x978] sm:$0xff]
    %v423 = vld [vmem:[#allocation5 + $0x980] sm:$0xff]
    %v424 = vld [vmem:[#allocation5 + $0x988] sm:$0xff]
    %v425 = vld [vmem:[#allocation5 + $0x990] sm:$0xff]
    %v426 = vld [vmem:[#allocation5 + $0x998] sm:$0xff]
    %v427 = vld [vmem:[#allocation5 + $0x9a0] sm:$0xff]
    %v428 = vld [vmem:[#allocation5 + $0x9a8] sm:$0xff]
    %v429 = vld [vmem:[#allocation5 + $0x9b0] sm:$0xff]
    %v430 = vld [vmem:[#allocation5 + $0x9b8] sm:$0xff]
    %v431 = vld [vmem:[#allocation5 + $0x9c0] sm:$0xff]
    %v432 = vld [vmem:[#allocation5 + $0x9c8] sm:$0xff]
    %v433 = vld [vmem:[#allocation5 + $0x9d0] sm:$0xff]
    %v434 = vld [vmem:[#allocation5 + $0x9d8] sm:$0xff]
    %v435 = vld [vmem:[#allocation5 + $0x9e0] sm:$0xff]
    %v436 = vld [vmem:[#allocation5 + $0x9e8] sm:$0xff]
    %v437 = vld [vmem:[#allocation5 + $0x9f0] sm:$0xff]
    %v438 = vld [vmem:[#allocation5 + $0x9f8] sm:$0xff]
    %v439 = vld [vmem:[#allocation5 + $0xa00] sm:$0xff]
    %v440 = vld [vmem:[#allocation5 + $0xa08] sm:$0xff]
    %v441 = vld [vmem:[#allocation5 + $0xa10] sm:$0xff]
    %v442 = vld [vmem:[#allocation5 + $0xa18] sm:$0xff]
    %v443 = vld [vmem:[#allocation5 + $0xa20] sm:$0xff]
    %v444 = vld [vmem:[#allocation5 + $0xa28] sm:$0xff]
    %v445 = vld [vmem:[#allocation5 + $0xa30] sm:$0xff]
    %v446 = vld [vmem:[#allocation5 + $0xa38] sm:$0xff]
    %v447 = vld [vmem:[#allocation5 + $0xa40] sm:$0xff]
    %v448 = vld [vmem:[#allocation5 + $0xa48] sm:$0xff]
    %v449 = vld [vmem:[#allocation5 + $0xa50] sm:$0xff]
    %v450 = vld [vmem:[#allocation5 + $0xa58] sm:$0xff]
    %v451 = vld [vmem:[#allocation5 + $0xa60] sm:$0xff]
    %v452 = vld [vmem:[#allocation5 + $0xa68] sm:$0xff]
    %v453 = vld [vmem:[#allocation5 + $0xa70] sm:$0xff]
    %v454 = vld [vmem:[#allocation5 + $0xa78] sm:$0xff]
    %v455 = vld [vmem:[#allocation5 + $0xa80] sm:$0xff]
    %v456 = vld [vmem:[#allocation5 + $0xa88] sm:$0xff]
    %v457 = vld [vmem:[#allocation5 + $0xa90] sm:$0xff]
    %v458 = vld [vmem:[#allocation5 + $0xa98] sm:$0xff]
    %v459 = vld [vmem:[#allocation5 + $0xaa0] sm:$0xff]
    %v460 = vld [vmem:[#allocation5 + $0xaa8] sm:$0xff]
    %v461 = vld [vmem:[#allocation5 + $0xab0] sm:$0xff]
    %v462 = vld [vmem:[#allocation5 + $0xab8] sm:$0xff]
    %v463 = vld [vmem:[#allocation5 + $0xac0] sm:$0xff]
    %v464 = vld [vmem:[#allocation5 + $0xac8] sm:$0xff]
    %v465 = vld [vmem:[#allocation5 + $0xad0] sm:$0xff]
    %v466 = vld [vmem:[#allocation5 + $0xad8] sm:$0xff]
    %v467 = vld [vmem:[#allocation5 + $0xae0] sm:$0xff]
    %v468 = vld [vmem:[#allocation5 + $0xae8] sm:$0xff]
    %v469 = vld [vmem:[#allocation5 + $0xaf0] sm:$0xff]
    %v470 = vld [vmem:[#allocation5 + $0xaf8] sm:$0xff]
    %v471 = vld [vmem:[#allocation5 + $0xb00] sm:$0xff]
    %v472 = vld [vmem:[#allocation5 + $0xb08] sm:$0xff]
    %v473 = vld [vmem:[#allocation5 + $0xb10] sm:$0xff]
    %v474 = vld [vmem:[#allocation5 + $0xb18] sm:$0xff]
    %v475 = vld [vmem:[#allocation5 + $0xb20] sm:$0xff]
    %v476 = vld [vmem:[#allocation5 + $0xb28] sm:$0xff]
    %v477 = vld [vmem:[#allocation5 + $0xb30] sm:$0xff]
    %v478 = vld [vmem:[#allocation5 + $0xb38] sm:$0xff]
    %v479 = vld [vmem:[#allocation5 + $0xb40] sm:$0xff]
    %v480 = vld [vmem:[#allocation5 + $0xb48] sm:$0xff]
    %v481 = vld [vmem:[#allocation5 + $0xb50] sm:$0xff]
    %v482 = vld [vmem:[#allocation5 + $0xb58] sm:$0xff]
    %v483 = vld [vmem:[#allocation5 + $0xb60] sm:$0xff]
    %v484 = vld [vmem:[#allocation5 + $0xb68] sm:$0xff]
    %v485 = vld [vmem:[#allocation5 + $0xb70] sm:$0xff]
    %v486 = vld [vmem:[#allocation5 + $0xb78] sm:$0xff]
    %v487 = vld [vmem:[#allocation5 + $0xb80] sm:$0xff]
    %v488 = vld [vmem:[#allocation5 + $0xb88] sm:$0xff]
    %v489 = vld [vmem:[#allocation5 + $0xb90] sm:$0xff]
    %v490 = vld [vmem:[#allocation5 + $0xb98] sm:$0xff]
    %v491 = vld [vmem:[#allocation5 + $0xba0] sm:$0xff]
    %v492 = vld [vmem:[#allocation5 + $0xba8] sm:$0xff]
    %v493 = vld [vmem:[#allocation5 + $0xbb0] sm:$0xff]
    %v494 = vld [vmem:[#allocation5 + $0xbb8] sm:$0xff]
    %v495 = vld [vmem:[#allocation5 + $0xbc0] sm:$0xff]
    %v496 = vld [vmem:[#allocation5 + $0xbc8] sm:$0xff]
    %v497 = vld [vmem:[#allocation5 + $0xbd0] sm:$0xff]
    %v498 = vld [vmem:[#allocation5 + $0xbd8] sm:$0xff]
    %v499 = vld [vmem:[#allocation5 + $0xbe0] sm:$0xff]
    %v500 = vld [vmem:[#allocation5 + $0xbe8] sm:$0xff]
    %v501 = vld [vmem:[#allocation5 + $0xbf0] sm:$0xff]
    %v502 = vld [vmem:[#allocation5 + $0xbf8] sm:$0xff]
    %v503 = vld [vmem:[#allocation5 + $0xc00] sm:$0xff]
    %v504 = vld [vmem:[#allocation5 + $0xc08] sm:$0xff]
    %v505 = vld [vmem:[#allocation5 + $0xc10] sm:$0xff]
    %v506 = vld [vmem:[#allocation5 + $0xc18] sm:$0xff]
    %v507 = vld [vmem:[#allocation5 + $0xc20] sm:$0xff]
    %v508 = vld [vmem:[#allocation5 + $0xc28] sm:$0xff]
    %v509 = vld [vmem:[#allocation5 + $0xc30] sm:$0xff]
    %v510 = vld [vmem:[#allocation5 + $0xc38] sm:$0xff]
    %v511 = vld [vmem:[#allocation5 + $0xc40] sm:$0xff]
    %v512 = vld [vmem:[#allocation5 + $0xc48] sm:$0xff]
    %v513 = vld [vmem:[#allocation5 + $0xc50] sm:$0xff]
    %v514 = vld [vmem:[#allocation5 + $0xc58] sm:$0xff]
    %v515 = vld [vmem:[#allocation5 + $0xc60] sm:$0xff]
    %v516 = vld [vmem:[#allocation5 + $0xc68] sm:$0xff]
    %v517 = vld [vmem:[#allocation5 + $0xc70] sm:$0xff]
    %v518 = vld [vmem:[#allocation5 + $0xc78] sm:$0xff]
    %v519 = vld [vmem:[#allocation5 + $0xc80] sm:$0xff]
    %v520 = vld [vmem:[#allocation5 + $0xc88] sm:$0xff]
    %v521 = vld [vmem:[#allocation5 + $0xc90] sm:$0xff]
    %v522 = vld [vmem:[#allocation5 + $0xc98] sm:$0xff]
    %v523 = vld [vmem:[#allocation5 + $0xca0] sm:$0xff]
    %v524 = vld [vmem:[#allocation5 + $0xca8] sm:$0xff]
    %v525 = vld [vmem:[#allocation5 + $0xcb0] sm:$0xff]
    %v526 = vld [vmem:[#allocation5 + $0xcb8] sm:$0xff]
    %v527 = vld [vmem:[#allocation5 + $0xcc0] sm:$0xff]
    %v528 = vld [vmem:[#allocation5 + $0xcc8] sm:$0xff]
    %v529 = vld [vmem:[#allocation5 + $0xcd0] sm:$0xff]
    %v530 = vld [vmem:[#allocation5 + $0xcd8] sm:$0xff]
    %v531 = vld [vmem:[#allocation5 + $0xce0] sm:$0xff]
    %v532 = vld [vmem:[#allocation5 + $0xce8] sm:$0xff]
    %v533 = vld [vmem:[#allocation5 + $0xcf0] sm:$0xff]
    %v534 = vld [vmem:[#allocation5 + $0xcf8] sm:$0xff]
    %v535 = vld [vmem:[#allocation5 + $0xd00] sm:$0xff]
    %v536 = vld [vmem:[#allocation5 + $0xd08] sm:$0xff]
    %v537 = vld [vmem:[#allocation5 + $0xd10] sm:$0xff]
    %v538 = vld [vmem:[#allocation5 + $0xd18] sm:$0xff]
    %v539 = vld [vmem:[#allocation5 + $0xd20] sm:$0xff]
    %v540 = vld [vmem:[#allocation5 + $0xd28] sm:$0xff]
    %v541 = vld [vmem:[#allocation5 + $0xd30] sm:$0xff]
    %v542 = vld [vmem:[#allocation5 + $0xd38] sm:$0xff]
    %v543 = vld [vmem:[#allocation5 + $0xd40] sm:$0xff]
    %v544 = vld [vmem:[#allocation5 + $0xd48] sm:$0xff]
    %v545 = vld [vmem:[#allocation5 + $0xd50] sm:$0xff]
    %v546 = vld [vmem:[#allocation5 + $0xd58] sm:$0xff]
    %v547 = vld [vmem:[#allocation5 + $0xd60] sm:$0xff]
    %v548 = vld [vmem:[#allocation5 + $0xd68] sm:$0xff]
    %v549 = vld [vmem:[#allocation5 + $0xd70] sm:$0xff]
    %v550 = vld [vmem:[#allocation5 + $0xd78] sm:$0xff]
    %v551 = vld [vmem:[#allocation5 + $0xd80] sm:$0xff]
    %v552 = vld [vmem:[#allocation5 + $0xd88] sm:$0xff]
    %v553 = vld [vmem:[#allocation5 + $0xd90] sm:$0xff]
    %v554 = vld [vmem:[#allocation5 + $0xd98] sm:$0xff]
    %v555 = vld [vmem:[#allocation5 + $0xda0] sm:$0xff]
    %v556 = vld [vmem:[#allocation5 + $0xda8] sm:$0xff]
    %v557 = vld [vmem:[#allocation5 + $0xdb0] sm:$0xff]
    %v558 = vld [vmem:[#allocation5 + $0xdb8] sm:$0xff]
    %v559 = vld [vmem:[#allocation5 + $0xdc0] sm:$0xff]
    %v560 = vld [vmem:[#allocation5 + $0xdc8] sm:$0xff]
    %v561 = vld [vmem:[#allocation5 + $0xdd0] sm:$0xff]
    %v562 = vld [vmem:[#allocation5 + $0xdd8] sm:$0xff]
    %v563 = vld [vmem:[#allocation5 + $0xde0] sm:$0xff]
    %v564 = vld [vmem:[#allocation5 + $0xde8] sm:$0xff]
    %v565 = vld [vmem:[#allocation5 + $0xdf0] sm:$0xff]
    %v566 = vld [vmem:[#allocation5 + $0xdf8] sm:$0xff]
    %v567 = vld [vmem:[#allocation5 + $0xe00] sm:$0xff]
    %v568 = vld [vmem:[#allocation5 + $0xe08] sm:$0xff]
    %v569 = vld [vmem:[#allocation5 + $0xe10] sm:$0xff]
    %v570 = vld [vmem:[#allocation5 + $0xe18] sm:$0xff]
    %v571 = vld [vmem:[#allocation5 + $0xe20] sm:$0xff]
    %v572 = vld [vmem:[#allocation5 + $0xe28] sm:$0xff]
    %v573 = vld [vmem:[#allocation5 + $0xe30] sm:$0xff]
    %v574 = vld [vmem:[#allocation5 + $0xe38] sm:$0xff]
    %v575 = vld [vmem:[#allocation5 + $0xe40] sm:$0xff]
    %v576 = vld [vmem:[#allocation5 + $0xe48] sm:$0xff]
    %v577 = vld [vmem:[#allocation5 + $0xe50] sm:$0xff]
    %v578 = vld [vmem:[#allocation5 + $0xe58] sm:$0xff]
    %v579 = vld [vmem:[#allocation5 + $0xe60] sm:$0xff]
    %v580 = vld [vmem:[#allocation5 + $0xe68] sm:$0xff]
    %v581 = vld [vmem:[#allocation5 + $0xe70] sm:$0xff]
    %v582 = vld [vmem:[#allocation5 + $0xe78] sm:$0xff]
    %v583 = vld [vmem:[#allocation5 + $0xe80] sm:$0xff]
    %v584 = vld [vmem:[#allocation5 + $0xe88] sm:$0xff]
    %v585 = vld [vmem:[#allocation5 + $0xe90] sm:$0xff]
    %v586 = vld [vmem:[#allocation5 + $0xe98] sm:$0xff]
    %v587 = vld [vmem:[#allocation5 + $0xea0] sm:$0xff]
    %v588 = vld [vmem:[#allocation5 + $0xea8] sm:$0xff]
    %v589 = vld [vmem:[#allocation5 + $0xeb0] sm:$0xff]
    %v590 = vld [vmem:[#allocation5 + $0xeb8] sm:$0xff]
    %v591 = vld [vmem:[#allocation5 + $0xec0] sm:$0xff]
    %v592 = vld [vmem:[#allocation5 + $0xec8] sm:$0xff]
    %v593 = vld [vmem:[#allocation5 + $0xed0] sm:$0xff]
    %v594 = vld [vmem:[#allocation5 + $0xed8] sm:$0xff]
    %v595 = vld [vmem:[#allocation5 + $0xee0] sm:$0xff]
    %v596 = vld [vmem:[#allocation5 + $0xee8] sm:$0xff]
    %v597 = vld [vmem:[#allocation5 + $0xef0] sm:$0xff]
    %v598 = vld [vmem:[#allocation5 + $0xef8] sm:$0xff]
    %v599 = vld [vmem:[#allocation5 + $0xf00] sm:$0xff]
    %v600 = vld [vmem:[#allocation5 + $0xf08] sm:$0xff]
    %v601 = vld [vmem:[#allocation5 + $0xf10] sm:$0xff]
    %v602 = vld [vmem:[#allocation5 + $0xf18] sm:$0xff]
    %v603 = vld [vmem:[#allocation5 + $0xf20] sm:$0xff]
    %v604 = vld [vmem:[#allocation5 + $0xf28] sm:$0xff]
    %v605 = vld [vmem:[#allocation5 + $0xf30] sm:$0xff]
    %v606 = vld [vmem:[#allocation5 + $0xf38] sm:$0xff]
    %v607 = vld [vmem:[#allocation5 + $0xf40] sm:$0xff]
    %v608 = vld [vmem:[#allocation5 + $0xf48] sm:$0xff]
    %v609 = vld [vmem:[#allocation5 + $0xf50] sm:$0xff]
    %v610 = vld [vmem:[#allocation5 + $0xf58] sm:$0xff]
    %v611 = vld [vmem:[#allocation5 + $0xf60] sm:$0xff]
    %v612 = vld [vmem:[#allocation5 + $0xf68] sm:$0xff]
    %v613 = vld [vmem:[#allocation5 + $0xf70] sm:$0xff]
    %v614 = vld [vmem:[#allocation5 + $0xf78] sm:$0xff]
    %v615 = vld [vmem:[#allocation5 + $0xf80] sm:$0xff]
    %v616 = vld [vmem:[#allocation5 + $0xf88] sm:$0xff]
    %v617 = vld [vmem:[#allocation5 + $0xf90] sm:$0xff]
    %v618 = vld [vmem:[#allocation5 + $0xf98] sm:$0xff]
    %v619 = vld [vmem:[#allocation5 + $0xfa0] sm:$0xff]
    %v620 = vld [vmem:[#allocation5 + $0xfa8] sm:$0xff]
    %v621 = vld [vmem:[#allocation5 + $0xfb0] sm:$0xff]
    %v622 = vld [vmem:[#allocation5 + $0xfb8] sm:$0xff]
    %v623 = vld [vmem:[#allocation5 + $0xfc0] sm:$0xff]
    %v624 = vld [vmem:[#allocation5 + $0xfc8] sm:$0xff]
    %v625 = vld [vmem:[#allocation5 + $0xfd0] sm:$0xff]
    %v626 = vld [vmem:[#allocation5 + $0xfd8] sm:$0xff]
    %v627 = vld [vmem:[#allocation5 + $0xfe0] sm:$0xff]
    %v628 = vld [vmem:[#allocation5 + $0xfe8] sm:$0xff]
    %v629 = vld [vmem:[#allocation5 + $0xff0] sm:$0xff]
    %v630 = vld [vmem:[#allocation5 + $0xff8] sm:$0xff]
    %v631 = vld [vmem:[#allocation7] sm:$0xff]
    %v633 = vlaneseq
    %v634 = vshrl.u32 %v633, 7
    %v635 = vsub.s32 0, %v634
    %v636 = vrot.slane %v631, %v635
    %v637 = vlaneseq
    %v638 = vshrl.u32 %v637, 7
    %v639 = vsub.s32 1, %v638
    %v640 = vrot.slane %v631, %v639
    %v641 = vlaneseq
    %v642 = vshrl.u32 %v641, 7
    %v643 = vsub.s32 2, %v642
    %v644 = vrot.slane %v631, %v643
    %v645 = vlaneseq
    %v646 = vshrl.u32 %v645, 7
    %v647 = vsub.s32 3, %v646
    %v648 = vrot.slane %v631, %v647
    %v649 = vlaneseq
    %v650 = vshrl.u32 %v649, 7
    %v651 = vsub.s32 4, %v650
    %v652 = vrot.slane %v631, %v651
    %v653 = vlaneseq
    %v654 = vshrl.u32 %v653, 7
    %v655 = vsub.s32 5, %v654
    %v656 = vrot.slane %v631, %v655
    %v657 = vlaneseq
    %v658 = vshrl.u32 %v657, 7
    %v659 = vsub.s32 6, %v658
    %v660 = vrot.slane %v631, %v659
    %v661 = vlaneseq
    %v662 = vshrl.u32 %v661, 7
    %v663 = vsub.s32 7, %v662
    %v664 = vrot.slane %v631, %v663
    %v677 = vunpack.c.l.b16 %v115
    %v678 = vunpack.c.h.b16 %v115
    %v679 = vunpack.c.l.b16 %v116
    %v680 = vunpack.c.h.b16 %v116
    %v681 = vunpack.c.l.b16 %v117
    %v682 = vunpack.c.h.b16 %v117
    %v683 = vunpack.c.l.b16 %v118
    %v684 = vunpack.c.h.b16 %v118
    %v685 = vpack.c.b16 %v677, %v677
    %v686 = vpack.c.b16 %v678, %v678
    %v687 = vpack.c.b16 %v679, %v679
    %v688 = vpack.c.b16 %v680, %v680
    %v689 = vpack.c.b16 %v681, %v681
    %v690 = vpack.c.b16 %v682, %v682
    %v691 = vpack.c.b16 %v683, %v683
    %v692 = vpack.c.b16 %v684, %v684
    %v1213 = vunpack.c.l.b16 %v119
    %v1214 = vunpack.c.h.b16 %v119
    %v1215 = vunpack.c.l.b16 %v120
    %v1216 = vunpack.c.h.b16 %v120
    %v1217 = vunpack.c.l.b16 %v121
    %v1218 = vunpack.c.h.b16 %v121
    %v1219 = vunpack.c.l.b16 %v122
    %v1220 = vunpack.c.h.b16 %v122
    %v1221 = vunpack.c.l.b16 %v123
    %v1222 = vunpack.c.h.b16 %v123
    %v1223 = vunpack.c.l.b16 %v124
    %v1224 = vunpack.c.h.b16 %v124
    %v1225 = vunpack.c.l.b16 %v125
    %v1226 = vunpack.c.h.b16 %v125
    %v1227 = vunpack.c.l.b16 %v126
    %v1228 = vunpack.c.h.b16 %v126
    %v1229 = vunpack.c.l.b16 %v127
    %v1230 = vunpack.c.h.b16 %v127
    %v1231 = vunpack.c.l.b16 %v128
    %v1232 = vunpack.c.h.b16 %v128
    %v1233 = vunpack.c.l.b16 %v129
    %v1234 = vunpack.c.h.b16 %v129
    %v1235 = vunpack.c.l.b16 %v130
    %v1236 = vunpack.c.h.b16 %v130
    %v1237 = vunpack.c.l.b16 %v131
    %v1238 = vunpack.c.h.b16 %v131
    %v1239 = vunpack.c.l.b16 %v132
    %v1240 = vunpack.c.h.b16 %v132
    %v1241 = vunpack.c.l.b16 %v133
    %v1242 = vunpack.c.h.b16 %v133
    %v1243 = vunpack.c.l.b16 %v134
    %v1244 = vunpack.c.h.b16 %v134
    %v1245 = vunpack.c.l.b16 %v135
    %v1246 = vunpack.c.h.b16 %v135
    %v1247 = vunpack.c.l.b16 %v136
    %v1248 = vunpack.c.h.b16 %v136
    %v1249 = vunpack.c.l.b16 %v137
    %v1250 = vunpack.c.h.b16 %v137
    %v1251 = vunpack.c.l.b16 %v138
    %v1252 = vunpack.c.h.b16 %v138
    %v1253 = vunpack.c.l.b16 %v139
    %v1254 = vunpack.c.h.b16 %v139
    %v1255 = vunpack.c.l.b16 %v140
    %v1256 = vunpack.c.h.b16 %v140
    %v1257 = vunpack.c.l.b16 %v141
    %v1258 = vunpack.c.h.b16 %v141
    %v1259 = vunpack.c.l.b16 %v142
    %v1260 = vunpack.c.h.b16 %v142
    %v1261 = vunpack.c.l.b16 %v143
    %v1262 = vunpack.c.h.b16 %v143
    %v1263 = vunpack.c.l.b16 %v144
    %v1264 = vunpack.c.h.b16 %v144
    %v1265 = vunpack.c.l.b16 %v145
    %v1266 = vunpack.c.h.b16 %v145
    %v1267 = vunpack.c.l.b16 %v146
    %v1268 = vunpack.c.h.b16 %v146
    %v1269 = vunpack.c.l.b16 %v147
    %v1270 = vunpack.c.h.b16 %v147
    %v1271 = vunpack.c.l.b16 %v148
    %v1272 = vunpack.c.h.b16 %v148
    %v1273 = vunpack.c.l.b16 %v149
    %v1274 = vunpack.c.h.b16 %v149
    %v1275 = vunpack.c.l.b16 %v150
    %v1276 = vunpack.c.h.b16 %v150
    %v1277 = vunpack.c.l.b16 %v151
    %v1278 = vunpack.c.h.b16 %v151
    %v1279 = vunpack.c.l.b16 %v152
    %v1280 = vunpack.c.h.b16 %v152
    %v1281 = vunpack.c.l.b16 %v153
    %v1282 = vunpack.c.h.b16 %v153
    %v1283 = vunpack.c.l.b16 %v154
    %v1284 = vunpack.c.h.b16 %v154
    %v1285 = vunpack.c.l.b16 %v155
    %v1286 = vunpack.c.h.b16 %v155
    %v1287 = vunpack.c.l.b16 %v156
    %v1288 = vunpack.c.h.b16 %v156
    %v1289 = vunpack.c.l.b16 %v157
    %v1290 = vunpack.c.h.b16 %v157
    %v1291 = vunpack.c.l.b16 %v158
    %v1292 = vunpack.c.h.b16 %v158
    %v1293 = vunpack.c.l.b16 %v159
    %v1294 = vunpack.c.h.b16 %v159
    %v1295 = vunpack.c.l.b16 %v160
    %v1296 = vunpack.c.h.b16 %v160
    %v1297 = vunpack.c.l.b16 %v161
    %v1298 = vunpack.c.h.b16 %v161
    %v1299 = vunpack.c.l.b16 %v162
    %v1300 = vunpack.c.h.b16 %v162
    %v1301 = vunpack.c.l.b16 %v163
    %v1302 = vunpack.c.h.b16 %v163
    %v1303 = vunpack.c.l.b16 %v164
    %v1304 = vunpack.c.h.b16 %v164
    %v1305 = vunpack.c.l.b16 %v165
    %v1306 = vunpack.c.h.b16 %v165
    %v1307 = vunpack.c.l.b16 %v166
    %v1308 = vunpack.c.h.b16 %v166
    %v1309 = vunpack.c.l.b16 %v167
    %v1310 = vunpack.c.h.b16 %v167
    %v1311 = vunpack.c.l.b16 %v168
    %v1312 = vunpack.c.h.b16 %v168
    %v1313 = vunpack.c.l.b16 %v169
    %v1314 = vunpack.c.h.b16 %v169
    %v1315 = vunpack.c.l.b16 %v170
    %v1316 = vunpack.c.h.b16 %v170
    %v1317 = vunpack.c.l.b16 %v171
    %v1318 = vunpack.c.h.b16 %v171
    %v1319 = vunpack.c.l.b16 %v172
    %v1320 = vunpack.c.h.b16 %v172
    %v1321 = vunpack.c.l.b16 %v173
    %v1322 = vunpack.c.h.b16 %v173
    %v1323 = vunpack.c.l.b16 %v174
    %v1324 = vunpack.c.h.b16 %v174
    %v1325 = vunpack.c.l.b16 %v175
    %v1326 = vunpack.c.h.b16 %v175
    %v1327 = vunpack.c.l.b16 %v176
    %v1328 = vunpack.c.h.b16 %v176
    %v1329 = vunpack.c.l.b16 %v177
    %v1330 = vunpack.c.h.b16 %v177
    %v1331 = vunpack.c.l.b16 %v178
    %v1332 = vunpack.c.h.b16 %v178
    %v1333 = vunpack.c.l.b16 %v179
    %v1334 = vunpack.c.h.b16 %v179
    %v1335 = vunpack.c.l.b16 %v180
    %v1336 = vunpack.c.h.b16 %v180
    %v1337 = vunpack.c.l.b16 %v181
    %v1338 = vunpack.c.h.b16 %v181
    %v1339 = vunpack.c.l.b16 %v182
    %v1340 = vunpack.c.h.b16 %v182
    %v1341 = vunpack.c.l.b16 %v183
    %v1342 = vunpack.c.h.b16 %v183
    %v1343 = vunpack.c.l.b16 %v184
    %v1344 = vunpack.c.h.b16 %v184
    %v1345 = vunpack.c.l.b16 %v185
    %v1346 = vunpack.c.h.b16 %v185
    %v1347 = vunpack.c.l.b16 %v186
    %v1348 = vunpack.c.h.b16 %v186
    %v1349 = vunpack.c.l.b16 %v187
    %v1350 = vunpack.c.h.b16 %v187
    %v1351 = vunpack.c.l.b16 %v188
    %v1352 = vunpack.c.h.b16 %v188
    %v1353 = vunpack.c.l.b16 %v189
    %v1354 = vunpack.c.h.b16 %v189
    %v1355 = vunpack.c.l.b16 %v190
    %v1356 = vunpack.c.h.b16 %v190
    %v1357 = vunpack.c.l.b16 %v191
    %v1358 = vunpack.c.h.b16 %v191
    %v1359 = vunpack.c.l.b16 %v192
    %v1360 = vunpack.c.h.b16 %v192
    %v1361 = vunpack.c.l.b16 %v193
    %v1362 = vunpack.c.h.b16 %v193
    %v1363 = vunpack.c.l.b16 %v194
    %v1364 = vunpack.c.h.b16 %v194
    %v1365 = vunpack.c.l.b16 %v195
    %v1366 = vunpack.c.h.b16 %v195
    %v1367 = vunpack.c.l.b16 %v196
    %v1368 = vunpack.c.h.b16 %v196
    %v1369 = vunpack.c.l.b16 %v197
    %v1370 = vunpack.c.h.b16 %v197
    %v1371 = vunpack.c.l.b16 %v198
    %v1372 = vunpack.c.h.b16 %v198
    %v1373 = vunpack.c.l.b16 %v199
    %v1374 = vunpack.c.h.b16 %v199
    %v1375 = vunpack.c.l.b16 %v200
    %v1376 = vunpack.c.h.b16 %v200
    %v1377 = vunpack.c.l.b16 %v201
    %v1378 = vunpack.c.h.b16 %v201
    %v1379 = vunpack.c.l.b16 %v202
    %v1380 = vunpack.c.h.b16 %v202
    %v1381 = vunpack.c.l.b16 %v203
    %v1382 = vunpack.c.h.b16 %v203
    %v1383 = vunpack.c.l.b16 %v204
    %v1384 = vunpack.c.h.b16 %v204
    %v1385 = vunpack.c.l.b16 %v205
    %v1386 = vunpack.c.h.b16 %v205
    %v1387 = vunpack.c.l.b16 %v206
    %v1388 = vunpack.c.h.b16 %v206
    %v1389 = vunpack.c.l.b16 %v207
    %v1390 = vunpack.c.h.b16 %v207
    %v1391 = vunpack.c.l.b16 %v208
    %v1392 = vunpack.c.h.b16 %v208
    %v1393 = vunpack.c.l.b16 %v209
    %v1394 = vunpack.c.h.b16 %v209
    %v1395 = vunpack.c.l.b16 %v210
    %v1396 = vunpack.c.h.b16 %v210
    %v1397 = vunpack.c.l.b16 %v211
    %v1398 = vunpack.c.h.b16 %v211
    %v1399 = vunpack.c.l.b16 %v212
    %v1400 = vunpack.c.h.b16 %v212
    %v1401 = vunpack.c.l.b16 %v213
    %v1402 = vunpack.c.h.b16 %v213
    %v1403 = vunpack.c.l.b16 %v214
    %v1404 = vunpack.c.h.b16 %v214
    %v1405 = vunpack.c.l.b16 %v215
    %v1406 = vunpack.c.h.b16 %v215
    %v1407 = vunpack.c.l.b16 %v216
    %v1408 = vunpack.c.h.b16 %v216
    %v1409 = vunpack.c.l.b16 %v217
    %v1410 = vunpack.c.h.b16 %v217
    %v1411 = vunpack.c.l.b16 %v218
    %v1412 = vunpack.c.h.b16 %v218
    %v1413 = vunpack.c.l.b16 %v219
    %v1414 = vunpack.c.h.b16 %v219
    %v1415 = vunpack.c.l.b16 %v220
    %v1416 = vunpack.c.h.b16 %v220
    %v1417 = vunpack.c.l.b16 %v221
    %v1418 = vunpack.c.h.b16 %v221
    %v1419 = vunpack.c.l.b16 %v222
    %v1420 = vunpack.c.h.b16 %v222
    %v1421 = vunpack.c.l.b16 %v223
    %v1422 = vunpack.c.h.b16 %v223
    %v1423 = vunpack.c.l.b16 %v224
    %v1424 = vunpack.c.h.b16 %v224
    %v1425 = vunpack.c.l.b16 %v225
    %v1426 = vunpack.c.h.b16 %v225
    %v1427 = vunpack.c.l.b16 %v226
    %v1428 = vunpack.c.h.b16 %v226
    %v1429 = vunpack.c.l.b16 %v227
    %v1430 = vunpack.c.h.b16 %v227
    %v1431 = vunpack.c.l.b16 %v228
    %v1432 = vunpack.c.h.b16 %v228
    %v1433 = vunpack.c.l.b16 %v229
    %v1434 = vunpack.c.h.b16 %v229
    %v1435 = vunpack.c.l.b16 %v230
    %v1436 = vunpack.c.h.b16 %v230
    %v1437 = vunpack.c.l.b16 %v231
    %v1438 = vunpack.c.h.b16 %v231
    %v1439 = vunpack.c.l.b16 %v232
    %v1440 = vunpack.c.h.b16 %v232
    %v1441 = vunpack.c.l.b16 %v233
    %v1442 = vunpack.c.h.b16 %v233
    %v1443 = vunpack.c.l.b16 %v234
    %v1444 = vunpack.c.h.b16 %v234
    %v1445 = vunpack.c.l.b16 %v235
    %v1446 = vunpack.c.h.b16 %v235
    %v1447 = vunpack.c.l.b16 %v236
    %v1448 = vunpack.c.h.b16 %v236
    %v1449 = vunpack.c.l.b16 %v237
    %v1450 = vunpack.c.h.b16 %v237
    %v1451 = vunpack.c.l.b16 %v238
    %v1452 = vunpack.c.h.b16 %v238
    %v1453 = vunpack.c.l.b16 %v239
    %v1454 = vunpack.c.h.b16 %v239
    %v1455 = vunpack.c.l.b16 %v240
    %v1456 = vunpack.c.h.b16 %v240
    %v1457 = vunpack.c.l.b16 %v241
    %v1458 = vunpack.c.h.b16 %v241
    %v1459 = vunpack.c.l.b16 %v242
    %v1460 = vunpack.c.h.b16 %v242
    %v1461 = vunpack.c.l.b16 %v243
    %v1462 = vunpack.c.h.b16 %v243
    %v1463 = vunpack.c.l.b16 %v244
    %v1464 = vunpack.c.h.b16 %v244
    %v1465 = vunpack.c.l.b16 %v245
    %v1466 = vunpack.c.h.b16 %v245
    %v1467 = vunpack.c.l.b16 %v246
    %v1468 = vunpack.c.h.b16 %v246
    %v1469 = vunpack.c.l.b16 %v247
    %v1470 = vunpack.c.h.b16 %v247
    %v1471 = vunpack.c.l.b16 %v248
    %v1472 = vunpack.c.h.b16 %v248
    %v1473 = vunpack.c.l.b16 %v249
    %v1474 = vunpack.c.h.b16 %v249
    %v1475 = vunpack.c.l.b16 %v250
    %v1476 = vunpack.c.h.b16 %v250
    %v1477 = vunpack.c.l.b16 %v251
    %v1478 = vunpack.c.h.b16 %v251
    %v1479 = vunpack.c.l.b16 %v252
    %v1480 = vunpack.c.h.b16 %v252
    %v1481 = vunpack.c.l.b16 %v253
    %v1482 = vunpack.c.h.b16 %v253
    %v1483 = vunpack.c.l.b16 %v254
    %v1484 = vunpack.c.h.b16 %v254
    %v1485 = vunpack.c.l.b16 %v255
    %v1486 = vunpack.c.h.b16 %v255
    %v1487 = vunpack.c.l.b16 %v256
    %v1488 = vunpack.c.h.b16 %v256
    %v1489 = vunpack.c.l.b16 %v257
    %v1490 = vunpack.c.h.b16 %v257
    %v1491 = vunpack.c.l.b16 %v258
    %v1492 = vunpack.c.h.b16 %v258
    %v1493 = vunpack.c.l.b16 %v259
    %v1494 = vunpack.c.h.b16 %v259
    %v1495 = vunpack.c.l.b16 %v260
    %v1496 = vunpack.c.h.b16 %v260
    %v1497 = vunpack.c.l.b16 %v261
    %v1498 = vunpack.c.h.b16 %v261
    %v1499 = vunpack.c.l.b16 %v262
    %v1500 = vunpack.c.h.b16 %v262
    %v1501 = vunpack.c.l.b16 %v263
    %v1502 = vunpack.c.h.b16 %v263
    %v1503 = vunpack.c.l.b16 %v264
    %v1504 = vunpack.c.h.b16 %v264
    %v1505 = vunpack.c.l.b16 %v265
    %v1506 = vunpack.c.h.b16 %v265
    %v1507 = vunpack.c.l.b16 %v266
    %v1508 = vunpack.c.h.b16 %v266
    %v1509 = vunpack.c.l.b16 %v267
    %v1510 = vunpack.c.h.b16 %v267
    %v1511 = vunpack.c.l.b16 %v268
    %v1512 = vunpack.c.h.b16 %v268
    %v1513 = vunpack.c.l.b16 %v269
    %v1514 = vunpack.c.h.b16 %v269
    %v1515 = vunpack.c.l.b16 %v270
    %v1516 = vunpack.c.h.b16 %v270
    %v1517 = vunpack.c.l.b16 %v271
    %v1518 = vunpack.c.h.b16 %v271
    %v1519 = vunpack.c.l.b16 %v272
    %v1520 = vunpack.c.h.b16 %v272
    %v1521 = vunpack.c.l.b16 %v273
    %v1522 = vunpack.c.h.b16 %v273
    %v1523 = vunpack.c.l.b16 %v274
    %v1524 = vunpack.c.h.b16 %v274
    %v1525 = vunpack.c.l.b16 %v275
    %v1526 = vunpack.c.h.b16 %v275
    %v1527 = vunpack.c.l.b16 %v276
    %v1528 = vunpack.c.h.b16 %v276
    %v1529 = vunpack.c.l.b16 %v277
    %v1530 = vunpack.c.h.b16 %v277
    %v1531 = vunpack.c.l.b16 %v278
    %v1532 = vunpack.c.h.b16 %v278
    %v1533 = vunpack.c.l.b16 %v279
    %v1534 = vunpack.c.h.b16 %v279
    %v1535 = vunpack.c.l.b16 %v280
    %v1536 = vunpack.c.h.b16 %v280
    %v1537 = vunpack.c.l.b16 %v281
    %v1538 = vunpack.c.h.b16 %v281
    %v1539 = vunpack.c.l.b16 %v282
    %v1540 = vunpack.c.h.b16 %v282
    %v1541 = vunpack.c.l.b16 %v283
    %v1542 = vunpack.c.h.b16 %v283
    %v1543 = vunpack.c.l.b16 %v284
    %v1544 = vunpack.c.h.b16 %v284
    %v1545 = vunpack.c.l.b16 %v285
    %v1546 = vunpack.c.h.b16 %v285
    %v1547 = vunpack.c.l.b16 %v286
    %v1548 = vunpack.c.h.b16 %v286
    %v1549 = vunpack.c.l.b16 %v287
    %v1550 = vunpack.c.h.b16 %v287
    %v1551 = vunpack.c.l.b16 %v288
    %v1552 = vunpack.c.h.b16 %v288
    %v1553 = vunpack.c.l.b16 %v289
    %v1554 = vunpack.c.h.b16 %v289
    %v1555 = vunpack.c.l.b16 %v290
    %v1556 = vunpack.c.h.b16 %v290
    %v1557 = vunpack.c.l.b16 %v291
    %v1558 = vunpack.c.h.b16 %v291
    %v1559 = vunpack.c.l.b16 %v292
    %v1560 = vunpack.c.h.b16 %v292
    %v1561 = vunpack.c.l.b16 %v293
    %v1562 = vunpack.c.h.b16 %v293
    %v1563 = vunpack.c.l.b16 %v294
    %v1564 = vunpack.c.h.b16 %v294
    %v1565 = vunpack.c.l.b16 %v295
    %v1566 = vunpack.c.h.b16 %v295
    %v1567 = vunpack.c.l.b16 %v296
    %v1568 = vunpack.c.h.b16 %v296
    %v1569 = vunpack.c.l.b16 %v297
    %v1570 = vunpack.c.h.b16 %v297
    %v1571 = vunpack.c.l.b16 %v298
    %v1572 = vunpack.c.h.b16 %v298
    %v1573 = vunpack.c.l.b16 %v299
    %v1574 = vunpack.c.h.b16 %v299
    %v1575 = vunpack.c.l.b16 %v300
    %v1576 = vunpack.c.h.b16 %v300
    %v1577 = vunpack.c.l.b16 %v301
    %v1578 = vunpack.c.h.b16 %v301
    %v1579 = vunpack.c.l.b16 %v302
    %v1580 = vunpack.c.h.b16 %v302
    %v1581 = vunpack.c.l.b16 %v303
    %v1582 = vunpack.c.h.b16 %v303
    %v1583 = vunpack.c.l.b16 %v304
    %v1584 = vunpack.c.h.b16 %v304
    %v1585 = vunpack.c.l.b16 %v305
    %v1586 = vunpack.c.h.b16 %v305
    %v1587 = vunpack.c.l.b16 %v306
    %v1588 = vunpack.c.h.b16 %v306
    %v1589 = vunpack.c.l.b16 %v307
    %v1590 = vunpack.c.h.b16 %v307
    %v1591 = vunpack.c.l.b16 %v308
    %v1592 = vunpack.c.h.b16 %v308
    %v1593 = vunpack.c.l.b16 %v309
    %v1594 = vunpack.c.h.b16 %v309
    %v1595 = vunpack.c.l.b16 %v310
    %v1596 = vunpack.c.h.b16 %v310
    %v1597 = vunpack.c.l.b16 %v311
    %v1598 = vunpack.c.h.b16 %v311
    %v1599 = vunpack.c.l.b16 %v312
    %v1600 = vunpack.c.h.b16 %v312
    %v1601 = vunpack.c.l.b16 %v313
    %v1602 = vunpack.c.h.b16 %v313
    %v1603 = vunpack.c.l.b16 %v314
    %v1604 = vunpack.c.h.b16 %v314
    %v1605 = vunpack.c.l.b16 %v315
    %v1606 = vunpack.c.h.b16 %v315
    %v1607 = vunpack.c.l.b16 %v316
    %v1608 = vunpack.c.h.b16 %v316
    %v1609 = vunpack.c.l.b16 %v317
    %v1610 = vunpack.c.h.b16 %v317
    %v1611 = vunpack.c.l.b16 %v318
    %v1612 = vunpack.c.h.b16 %v318
    %v1613 = vunpack.c.l.b16 %v319
    %v1614 = vunpack.c.h.b16 %v319
    %v1615 = vunpack.c.l.b16 %v320
    %v1616 = vunpack.c.h.b16 %v320
    %v1617 = vunpack.c.l.b16 %v321
    %v1618 = vunpack.c.h.b16 %v321
    %v1619 = vunpack.c.l.b16 %v322
    %v1620 = vunpack.c.h.b16 %v322
    %v1621 = vunpack.c.l.b16 %v323
    %v1622 = vunpack.c.h.b16 %v323
    %v1623 = vunpack.c.l.b16 %v324
    %v1624 = vunpack.c.h.b16 %v324
    %v1625 = vunpack.c.l.b16 %v325
    %v1626 = vunpack.c.h.b16 %v325
    %v1627 = vunpack.c.l.b16 %v326
    %v1628 = vunpack.c.h.b16 %v326
    %v1629 = vunpack.c.l.b16 %v327
    %v1630 = vunpack.c.h.b16 %v327
    %v1631 = vunpack.c.l.b16 %v328
    %v1632 = vunpack.c.h.b16 %v328
    %v1633 = vunpack.c.l.b16 %v329
    %v1634 = vunpack.c.h.b16 %v329
    %v1635 = vunpack.c.l.b16 %v330
    %v1636 = vunpack.c.h.b16 %v330
    %v1637 = vunpack.c.l.b16 %v331
    %v1638 = vunpack.c.h.b16 %v331
    %v1639 = vunpack.c.l.b16 %v332
    %v1640 = vunpack.c.h.b16 %v332
    %v1641 = vunpack.c.l.b16 %v333
    %v1642 = vunpack.c.h.b16 %v333
    %v1643 = vunpack.c.l.b16 %v334
    %v1644 = vunpack.c.h.b16 %v334
    %v1645 = vunpack.c.l.b16 %v335
    %v1646 = vunpack.c.h.b16 %v335
    %v1647 = vunpack.c.l.b16 %v336
    %v1648 = vunpack.c.h.b16 %v336
    %v1649 = vunpack.c.l.b16 %v337
    %v1650 = vunpack.c.h.b16 %v337
    %v1651 = vunpack.c.l.b16 %v338
    %v1652 = vunpack.c.h.b16 %v338
    %v1653 = vunpack.c.l.b16 %v339
    %v1654 = vunpack.c.h.b16 %v339
    %v1655 = vunpack.c.l.b16 %v340
    %v1656 = vunpack.c.h.b16 %v340
    %v1657 = vunpack.c.l.b16 %v341
    %v1658 = vunpack.c.h.b16 %v341
    %v1659 = vunpack.c.l.b16 %v342
    %v1660 = vunpack.c.h.b16 %v342
    %v1661 = vunpack.c.l.b16 %v343
    %v1662 = vunpack.c.h.b16 %v343
    %v1663 = vunpack.c.l.b16 %v344
    %v1664 = vunpack.c.h.b16 %v344
    %v1665 = vunpack.c.l.b16 %v345
    %v1666 = vunpack.c.h.b16 %v345
    %v1667 = vunpack.c.l.b16 %v346
    %v1668 = vunpack.c.h.b16 %v346
    %v1669 = vunpack.c.l.b16 %v347
    %v1670 = vunpack.c.h.b16 %v347
    %v1671 = vunpack.c.l.b16 %v348
    %v1672 = vunpack.c.h.b16 %v348
    %v1673 = vunpack.c.l.b16 %v349
    %v1674 = vunpack.c.h.b16 %v349
    %v1675 = vunpack.c.l.b16 %v350
    %v1676 = vunpack.c.h.b16 %v350
    %v1677 = vunpack.c.l.b16 %v351
    %v1678 = vunpack.c.h.b16 %v351
    %v1679 = vunpack.c.l.b16 %v352
    %v1680 = vunpack.c.h.b16 %v352
    %v1681 = vunpack.c.l.b16 %v353
    %v1682 = vunpack.c.h.b16 %v353
    %v1683 = vunpack.c.l.b16 %v354
    %v1684 = vunpack.c.h.b16 %v354
    %v1685 = vunpack.c.l.b16 %v355
    %v1686 = vunpack.c.h.b16 %v355
    %v1687 = vunpack.c.l.b16 %v356
    %v1688 = vunpack.c.h.b16 %v356
    %v1689 = vunpack.c.l.b16 %v357
    %v1690 = vunpack.c.h.b16 %v357
    %v1691 = vunpack.c.l.b16 %v358
    %v1692 = vunpack.c.h.b16 %v358
    %v1693 = vunpack.c.l.b16 %v359
    %v1694 = vunpack.c.h.b16 %v359
    %v1695 = vunpack.c.l.b16 %v360
    %v1696 = vunpack.c.h.b16 %v360
    %v1697 = vunpack.c.l.b16 %v361
    %v1698 = vunpack.c.h.b16 %v361
    %v1699 = vunpack.c.l.b16 %v362
    %v1700 = vunpack.c.h.b16 %v362
    %v1701 = vunpack.c.l.b16 %v363
    %v1702 = vunpack.c.h.b16 %v363
    %v1703 = vunpack.c.l.b16 %v364
    %v1704 = vunpack.c.h.b16 %v364
    %v1705 = vunpack.c.l.b16 %v365
    %v1706 = vunpack.c.h.b16 %v365
    %v1707 = vunpack.c.l.b16 %v366
    %v1708 = vunpack.c.h.b16 %v366
    %v1709 = vunpack.c.l.b16 %v367
    %v1710 = vunpack.c.h.b16 %v367
    %v1711 = vunpack.c.l.b16 %v368
    %v1712 = vunpack.c.h.b16 %v368
    %v1713 = vunpack.c.l.b16 %v369
    %v1714 = vunpack.c.h.b16 %v369
    %v1715 = vunpack.c.l.b16 %v370
    %v1716 = vunpack.c.h.b16 %v370
    %v1717 = vunpack.c.l.b16 %v371
    %v1718 = vunpack.c.h.b16 %v371
    %v1719 = vunpack.c.l.b16 %v372
    %v1720 = vunpack.c.h.b16 %v372
    %v1721 = vunpack.c.l.b16 %v373
    %v1722 = vunpack.c.h.b16 %v373
    %v1723 = vunpack.c.l.b16 %v374
    %v1724 = vunpack.c.h.b16 %v374
    %v1725 = vunpack.c.l.b16 %v375
    %v1726 = vunpack.c.h.b16 %v375
    %v1727 = vunpack.c.l.b16 %v376
    %v1728 = vunpack.c.h.b16 %v376
    %v1729 = vunpack.c.l.b16 %v377
    %v1730 = vunpack.c.h.b16 %v377
    %v1731 = vunpack.c.l.b16 %v378
    %v1732 = vunpack.c.h.b16 %v378
    %v1733 = vunpack.c.l.b16 %v379
    %v1734 = vunpack.c.h.b16 %v379
    %v1735 = vunpack.c.l.b16 %v380
    %v1736 = vunpack.c.h.b16 %v380
    %v1737 = vunpack.c.l.b16 %v381
    %v1738 = vunpack.c.h.b16 %v381
    %v1739 = vunpack.c.l.b16 %v382
    %v1740 = vunpack.c.h.b16 %v382
    %v1741 = vunpack.c.l.b16 %v383
    %v1742 = vunpack.c.h.b16 %v383
    %v1743 = vunpack.c.l.b16 %v384
    %v1744 = vunpack.c.h.b16 %v384
    %v1745 = vunpack.c.l.b16 %v385
    %v1746 = vunpack.c.h.b16 %v385
    %v1747 = vunpack.c.l.b16 %v386
    %v1748 = vunpack.c.h.b16 %v386
    %v1749 = vunpack.c.l.b16 %v387
    %v1750 = vunpack.c.h.b16 %v387
    %v1751 = vunpack.c.l.b16 %v388
    %v1752 = vunpack.c.h.b16 %v388
    %v1753 = vunpack.c.l.b16 %v389
    %v1754 = vunpack.c.h.b16 %v389
    %v1755 = vunpack.c.l.b16 %v390
    %v1756 = vunpack.c.h.b16 %v390
    %v1757 = vunpack.c.l.b16 %v391
    %v1758 = vunpack.c.h.b16 %v391
    %v1759 = vunpack.c.l.b16 %v392
    %v1760 = vunpack.c.h.b16 %v392
    %v1761 = vunpack.c.l.b16 %v393
    %v1762 = vunpack.c.h.b16 %v393
    %v1763 = vunpack.c.l.b16 %v394
    %v1764 = vunpack.c.h.b16 %v394
    %v1765 = vunpack.c.l.b16 %v395
    %v1766 = vunpack.c.h.b16 %v395
    %v1767 = vunpack.c.l.b16 %v396
    %v1768 = vunpack.c.h.b16 %v396
    %v1769 = vunpack.c.l.b16 %v397
    %v1770 = vunpack.c.h.b16 %v397
    %v1771 = vunpack.c.l.b16 %v398
    %v1772 = vunpack.c.h.b16 %v398
    %v1773 = vunpack.c.l.b16 %v399
    %v1774 = vunpack.c.h.b16 %v399
    %v1775 = vunpack.c.l.b16 %v400
    %v1776 = vunpack.c.h.b16 %v400
    %v1777 = vunpack.c.l.b16 %v401
    %v1778 = vunpack.c.h.b16 %v401
    %v1779 = vunpack.c.l.b16 %v402
    %v1780 = vunpack.c.h.b16 %v402
    %v1781 = vunpack.c.l.b16 %v403
    %v1782 = vunpack.c.h.b16 %v403
    %v1783 = vunpack.c.l.b16 %v404
    %v1784 = vunpack.c.h.b16 %v404
    %v1785 = vunpack.c.l.b16 %v405
    %v1786 = vunpack.c.h.b16 %v405
    %v1787 = vunpack.c.l.b16 %v406
    %v1788 = vunpack.c.h.b16 %v406
    %v1789 = vunpack.c.l.b16 %v407
    %v1790 = vunpack.c.h.b16 %v407
    %v1791 = vunpack.c.l.b16 %v408
    %v1792 = vunpack.c.h.b16 %v408
    %v1793 = vunpack.c.l.b16 %v409
    %v1794 = vunpack.c.h.b16 %v409
    %v1795 = vunpack.c.l.b16 %v410
    %v1796 = vunpack.c.h.b16 %v410
    %v1797 = vunpack.c.l.b16 %v411
    %v1798 = vunpack.c.h.b16 %v411
    %v1799 = vunpack.c.l.b16 %v412
    %v1800 = vunpack.c.h.b16 %v412
    %v1801 = vunpack.c.l.b16 %v413
    %v1802 = vunpack.c.h.b16 %v413
    %v1803 = vunpack.c.l.b16 %v414
    %v1804 = vunpack.c.h.b16 %v414
    %v1805 = vunpack.c.l.b16 %v415
    %v1806 = vunpack.c.h.b16 %v415
    %v1807 = vunpack.c.l.b16 %v416
    %v1808 = vunpack.c.h.b16 %v416
    %v1809 = vunpack.c.l.b16 %v417
    %v1810 = vunpack.c.h.b16 %v417
    %v1811 = vunpack.c.l.b16 %v418
    %v1812 = vunpack.c.h.b16 %v418
    %v1813 = vunpack.c.l.b16 %v419
    %v1814 = vunpack.c.h.b16 %v419
    %v1815 = vunpack.c.l.b16 %v420
    %v1816 = vunpack.c.h.b16 %v420
    %v1817 = vunpack.c.l.b16 %v421
    %v1818 = vunpack.c.h.b16 %v421
    %v1819 = vunpack.c.l.b16 %v422
    %v1820 = vunpack.c.h.b16 %v422
    %v1821 = vunpack.c.l.b16 %v423
    %v1822 = vunpack.c.h.b16 %v423
    %v1823 = vunpack.c.l.b16 %v424
    %v1824 = vunpack.c.h.b16 %v424
    %v1825 = vunpack.c.l.b16 %v425
    %v1826 = vunpack.c.h.b16 %v425
    %v1827 = vunpack.c.l.b16 %v426
    %v1828 = vunpack.c.h.b16 %v426
    %v1829 = vunpack.c.l.b16 %v427
    %v1830 = vunpack.c.h.b16 %v427
    %v1831 = vunpack.c.l.b16 %v428
    %v1832 = vunpack.c.h.b16 %v428
    %v1833 = vunpack.c.l.b16 %v429
    %v1834 = vunpack.c.h.b16 %v429
    %v1835 = vunpack.c.l.b16 %v430
    %v1836 = vunpack.c.h.b16 %v430
    %v1837 = vunpack.c.l.b16 %v431
    %v1838 = vunpack.c.h.b16 %v431
    %v1839 = vunpack.c.l.b16 %v432
    %v1840 = vunpack.c.h.b16 %v432
    %v1841 = vunpack.c.l.b16 %v433
    %v1842 = vunpack.c.h.b16 %v433
    %v1843 = vunpack.c.l.b16 %v434
    %v1844 = vunpack.c.h.b16 %v434
    %v1845 = vunpack.c.l.b16 %v435
    %v1846 = vunpack.c.h.b16 %v435
    %v1847 = vunpack.c.l.b16 %v436
    %v1848 = vunpack.c.h.b16 %v436
    %v1849 = vunpack.c.l.b16 %v437
    %v1850 = vunpack.c.h.b16 %v437
    %v1851 = vunpack.c.l.b16 %v438
    %v1852 = vunpack.c.h.b16 %v438
    %v1853 = vunpack.c.l.b16 %v439
    %v1854 = vunpack.c.h.b16 %v439
    %v1855 = vunpack.c.l.b16 %v440
    %v1856 = vunpack.c.h.b16 %v440
    %v1857 = vunpack.c.l.b16 %v441
    %v1858 = vunpack.c.h.b16 %v441
    %v1859 = vunpack.c.l.b16 %v442
    %v1860 = vunpack.c.h.b16 %v442
    %v1861 = vunpack.c.l.b16 %v443
    %v1862 = vunpack.c.h.b16 %v443
    %v1863 = vunpack.c.l.b16 %v444
    %v1864 = vunpack.c.h.b16 %v444
    %v1865 = vunpack.c.l.b16 %v445
    %v1866 = vunpack.c.h.b16 %v445
    %v1867 = vunpack.c.l.b16 %v446
    %v1868 = vunpack.c.h.b16 %v446
    %v1869 = vunpack.c.l.b16 %v447
    %v1870 = vunpack.c.h.b16 %v447
    %v1871 = vunpack.c.l.b16 %v448
    %v1872 = vunpack.c.h.b16 %v448
    %v1873 = vunpack.c.l.b16 %v449
    %v1874 = vunpack.c.h.b16 %v449
    %v1875 = vunpack.c.l.b16 %v450
    %v1876 = vunpack.c.h.b16 %v450
    %v1877 = vunpack.c.l.b16 %v451
    %v1878 = vunpack.c.h.b16 %v451
    %v1879 = vunpack.c.l.b16 %v452
    %v1880 = vunpack.c.h.b16 %v452
    %v1881 = vunpack.c.l.b16 %v453
    %v1882 = vunpack.c.h.b16 %v453
    %v1883 = vunpack.c.l.b16 %v454
    %v1884 = vunpack.c.h.b16 %v454
    %v1885 = vunpack.c.l.b16 %v455
    %v1886 = vunpack.c.h.b16 %v455
    %v1887 = vunpack.c.l.b16 %v456
    %v1888 = vunpack.c.h.b16 %v456
    %v1889 = vunpack.c.l.b16 %v457
    %v1890 = vunpack.c.h.b16 %v457
    %v1891 = vunpack.c.l.b16 %v458
    %v1892 = vunpack.c.h.b16 %v458
    %v1893 = vunpack.c.l.b16 %v459
    %v1894 = vunpack.c.h.b16 %v459
    %v1895 = vunpack.c.l.b16 %v460
    %v1896 = vunpack.c.h.b16 %v460
    %v1897 = vunpack.c.l.b16 %v461
    %v1898 = vunpack.c.h.b16 %v461
    %v1899 = vunpack.c.l.b16 %v462
    %v1900 = vunpack.c.h.b16 %v462
    %v1901 = vunpack.c.l.b16 %v463
    %v1902 = vunpack.c.h.b16 %v463
    %v1903 = vunpack.c.l.b16 %v464
    %v1904 = vunpack.c.h.b16 %v464
    %v1905 = vunpack.c.l.b16 %v465
    %v1906 = vunpack.c.h.b16 %v465
    %v1907 = vunpack.c.l.b16 %v466
    %v1908 = vunpack.c.h.b16 %v466
    %v1909 = vunpack.c.l.b16 %v467
    %v1910 = vunpack.c.h.b16 %v467
    %v1911 = vunpack.c.l.b16 %v468
    %v1912 = vunpack.c.h.b16 %v468
    %v1913 = vunpack.c.l.b16 %v469
    %v1914 = vunpack.c.h.b16 %v469
    %v1915 = vunpack.c.l.b16 %v470
    %v1916 = vunpack.c.h.b16 %v470
    %v1917 = vunpack.c.l.b16 %v471
    %v1918 = vunpack.c.h.b16 %v471
    %v1919 = vunpack.c.l.b16 %v472
    %v1920 = vunpack.c.h.b16 %v472
    %v1921 = vunpack.c.l.b16 %v473
    %v1922 = vunpack.c.h.b16 %v473
    %v1923 = vunpack.c.l.b16 %v474
    %v1924 = vunpack.c.h.b16 %v474
    %v1925 = vunpack.c.l.b16 %v475
    %v1926 = vunpack.c.h.b16 %v475
    %v1927 = vunpack.c.l.b16 %v476
    %v1928 = vunpack.c.h.b16 %v476
    %v1929 = vunpack.c.l.b16 %v477
    %v1930 = vunpack.c.h.b16 %v477
    %v1931 = vunpack.c.l.b16 %v478
    %v1932 = vunpack.c.h.b16 %v478
    %v1933 = vunpack.c.l.b16 %v479
    %v1934 = vunpack.c.h.b16 %v479
    %v1935 = vunpack.c.l.b16 %v480
    %v1936 = vunpack.c.h.b16 %v480
    %v1937 = vunpack.c.l.b16 %v481
    %v1938 = vunpack.c.h.b16 %v481
    %v1939 = vunpack.c.l.b16 %v482
    %v1940 = vunpack.c.h.b16 %v482
    %v1941 = vunpack.c.l.b16 %v483
    %v1942 = vunpack.c.h.b16 %v483
    %v1943 = vunpack.c.l.b16 %v484
    %v1944 = vunpack.c.h.b16 %v484
    %v1945 = vunpack.c.l.b16 %v485
    %v1946 = vunpack.c.h.b16 %v485
    %v1947 = vunpack.c.l.b16 %v486
    %v1948 = vunpack.c.h.b16 %v486
    %v1949 = vunpack.c.l.b16 %v487
    %v1950 = vunpack.c.h.b16 %v487
    %v1951 = vunpack.c.l.b16 %v488
    %v1952 = vunpack.c.h.b16 %v488
    %v1953 = vunpack.c.l.b16 %v489
    %v1954 = vunpack.c.h.b16 %v489
    %v1955 = vunpack.c.l.b16 %v490
    %v1956 = vunpack.c.h.b16 %v490
    %v1957 = vunpack.c.l.b16 %v491
    %v1958 = vunpack.c.h.b16 %v491
    %v1959 = vunpack.c.l.b16 %v492
    %v1960 = vunpack.c.h.b16 %v492
    %v1961 = vunpack.c.l.b16 %v493
    %v1962 = vunpack.c.h.b16 %v493
    %v1963 = vunpack.c.l.b16 %v494
    %v1964 = vunpack.c.h.b16 %v494
    %v1965 = vunpack.c.l.b16 %v495
    %v1966 = vunpack.c.h.b16 %v495
    %v1967 = vunpack.c.l.b16 %v496
    %v1968 = vunpack.c.h.b16 %v496
    %v1969 = vunpack.c.l.b16 %v497
    %v1970 = vunpack.c.h.b16 %v497
    %v1971 = vunpack.c.l.b16 %v498
    %v1972 = vunpack.c.h.b16 %v498
    %v1973 = vunpack.c.l.b16 %v499
    %v1974 = vunpack.c.h.b16 %v499
    %v1975 = vunpack.c.l.b16 %v500
    %v1976 = vunpack.c.h.b16 %v500
    %v1977 = vunpack.c.l.b16 %v501
    %v1978 = vunpack.c.h.b16 %v501
    %v1979 = vunpack.c.l.b16 %v502
    %v1980 = vunpack.c.h.b16 %v502
    %v1981 = vunpack.c.l.b16 %v503
    %v1982 = vunpack.c.h.b16 %v503
    %v1983 = vunpack.c.l.b16 %v504
    %v1984 = vunpack.c.h.b16 %v504
    %v1985 = vunpack.c.l.b16 %v505
    %v1986 = vunpack.c.h.b16 %v505
    %v1987 = vunpack.c.l.b16 %v506
    %v1988 = vunpack.c.h.b16 %v506
    %v1989 = vunpack.c.l.b16 %v507
    %v1990 = vunpack.c.h.b16 %v507
    %v1991 = vunpack.c.l.b16 %v508
    %v1992 = vunpack.c.h.b16 %v508
    %v1993 = vunpack.c.l.b16 %v509
    %v1994 = vunpack.c.h.b16 %v509
    %v1995 = vunpack.c.l.b16 %v510
    %v1996 = vunpack.c.h.b16 %v510
    %v1997 = vunpack.c.l.b16 %v511
    %v1998 = vunpack.c.h.b16 %v511
    %v1999 = vunpack.c.l.b16 %v512
    %v2000 = vunpack.c.h.b16 %v512
    %v2001 = vunpack.c.l.b16 %v513
    %v2002 = vunpack.c.h.b16 %v513
    %v2003 = vunpack.c.l.b16 %v514
    %v2004 = vunpack.c.h.b16 %v514
    %v2005 = vunpack.c.l.b16 %v515
    %v2006 = vunpack.c.h.b16 %v515
    %v2007 = vunpack.c.l.b16 %v516
    %v2008 = vunpack.c.h.b16 %v516
    %v2009 = vunpack.c.l.b16 %v517
    %v2010 = vunpack.c.h.b16 %v517
    %v2011 = vunpack.c.l.b16 %v518
    %v2012 = vunpack.c.h.b16 %v518
    %v2013 = vunpack.c.l.b16 %v519
    %v2014 = vunpack.c.h.b16 %v519
    %v2015 = vunpack.c.l.b16 %v520
    %v2016 = vunpack.c.h.b16 %v520
    %v2017 = vunpack.c.l.b16 %v521
    %v2018 = vunpack.c.h.b16 %v521
    %v2019 = vunpack.c.l.b16 %v522
    %v2020 = vunpack.c.h.b16 %v522
    %v2021 = vunpack.c.l.b16 %v523
    %v2022 = vunpack.c.h.b16 %v523
    %v2023 = vunpack.c.l.b16 %v524
    %v2024 = vunpack.c.h.b16 %v524
    %v2025 = vunpack.c.l.b16 %v525
    %v2026 = vunpack.c.h.b16 %v525
    %v2027 = vunpack.c.l.b16 %v526
    %v2028 = vunpack.c.h.b16 %v526
    %v2029 = vunpack.c.l.b16 %v527
    %v2030 = vunpack.c.h.b16 %v527
    %v2031 = vunpack.c.l.b16 %v528
    %v2032 = vunpack.c.h.b16 %v528
    %v2033 = vunpack.c.l.b16 %v529
    %v2034 = vunpack.c.h.b16 %v529
    %v2035 = vunpack.c.l.b16 %v530
    %v2036 = vunpack.c.h.b16 %v530
    %v2037 = vunpack.c.l.b16 %v531
    %v2038 = vunpack.c.h.b16 %v531
    %v2039 = vunpack.c.l.b16 %v532
    %v2040 = vunpack.c.h.b16 %v532
    %v2041 = vunpack.c.l.b16 %v533
    %v2042 = vunpack.c.h.b16 %v533
    %v2043 = vunpack.c.l.b16 %v534
    %v2044 = vunpack.c.h.b16 %v534
    %v2045 = vunpack.c.l.b16 %v535
    %v2046 = vunpack.c.h.b16 %v535
    %v2047 = vunpack.c.l.b16 %v536
    %v2048 = vunpack.c.h.b16 %v536
    %v2049 = vunpack.c.l.b16 %v537
    %v2050 = vunpack.c.h.b16 %v537
    %v2051 = vunpack.c.l.b16 %v538
    %v2052 = vunpack.c.h.b16 %v538
    %v2053 = vunpack.c.l.b16 %v539
    %v2054 = vunpack.c.h.b16 %v539
    %v2055 = vunpack.c.l.b16 %v540
    %v2056 = vunpack.c.h.b16 %v540
    %v2057 = vunpack.c.l.b16 %v541
    %v2058 = vunpack.c.h.b16 %v541
    %v2059 = vunpack.c.l.b16 %v542
    %v2060 = vunpack.c.h.b16 %v542
    %v2061 = vunpack.c.l.b16 %v543
    %v2062 = vunpack.c.h.b16 %v543
    %v2063 = vunpack.c.l.b16 %v544
    %v2064 = vunpack.c.h.b16 %v544
    %v2065 = vunpack.c.l.b16 %v545
    %v2066 = vunpack.c.h.b16 %v545
    %v2067 = vunpack.c.l.b16 %v546
    %v2068 = vunpack.c.h.b16 %v546
    %v2069 = vunpack.c.l.b16 %v547
    %v2070 = vunpack.c.h.b16 %v547
    %v2071 = vunpack.c.l.b16 %v548
    %v2072 = vunpack.c.h.b16 %v548
    %v2073 = vunpack.c.l.b16 %v549
    %v2074 = vunpack.c.h.b16 %v549
    %v2075 = vunpack.c.l.b16 %v550
    %v2076 = vunpack.c.h.b16 %v550
    %v2077 = vunpack.c.l.b16 %v551
    %v2078 = vunpack.c.h.b16 %v551
    %v2079 = vunpack.c.l.b16 %v552
    %v2080 = vunpack.c.h.b16 %v552
    %v2081 = vunpack.c.l.b16 %v553
    %v2082 = vunpack.c.h.b16 %v553
    %v2083 = vunpack.c.l.b16 %v554
    %v2084 = vunpack.c.h.b16 %v554
    %v2085 = vunpack.c.l.b16 %v555
    %v2086 = vunpack.c.h.b16 %v555
    %v2087 = vunpack.c.l.b16 %v556
    %v2088 = vunpack.c.h.b16 %v556
    %v2089 = vunpack.c.l.b16 %v557
    %v2090 = vunpack.c.h.b16 %v557
    %v2091 = vunpack.c.l.b16 %v558
    %v2092 = vunpack.c.h.b16 %v558
    %v2093 = vunpack.c.l.b16 %v559
    %v2094 = vunpack.c.h.b16 %v559
    %v2095 = vunpack.c.l.b16 %v560
    %v2096 = vunpack.c.h.b16 %v560
    %v2097 = vunpack.c.l.b16 %v561
    %v2098 = vunpack.c.h.b16 %v561
    %v2099 = vunpack.c.l.b16 %v562
    %v2100 = vunpack.c.h.b16 %v562
    %v2101 = vunpack.c.l.b16 %v563
    %v2102 = vunpack.c.h.b16 %v563
    %v2103 = vunpack.c.l.b16 %v564
    %v2104 = vunpack.c.h.b16 %v564
    %v2105 = vunpack.c.l.b16 %v565
    %v2106 = vunpack.c.h.b16 %v565
    %v2107 = vunpack.c.l.b16 %v566
    %v2108 = vunpack.c.h.b16 %v566
    %v2109 = vunpack.c.l.b16 %v567
    %v2110 = vunpack.c.h.b16 %v567
    %v2111 = vunpack.c.l.b16 %v568
    %v2112 = vunpack.c.h.b16 %v568
    %v2113 = vunpack.c.l.b16 %v569
    %v2114 = vunpack.c.h.b16 %v569
    %v2115 = vunpack.c.l.b16 %v570
    %v2116 = vunpack.c.h.b16 %v570
    %v2117 = vunpack.c.l.b16 %v571
    %v2118 = vunpack.c.h.b16 %v571
    %v2119 = vunpack.c.l.b16 %v572
    %v2120 = vunpack.c.h.b16 %v572
    %v2121 = vunpack.c.l.b16 %v573
    %v2122 = vunpack.c.h.b16 %v573
    %v2123 = vunpack.c.l.b16 %v574
    %v2124 = vunpack.c.h.b16 %v574
    %v2125 = vunpack.c.l.b16 %v575
    %v2126 = vunpack.c.h.b16 %v575
    %v2127 = vunpack.c.l.b16 %v576
    %v2128 = vunpack.c.h.b16 %v576
    %v2129 = vunpack.c.l.b16 %v577
    %v2130 = vunpack.c.h.b16 %v577
    %v2131 = vunpack.c.l.b16 %v578
    %v2132 = vunpack.c.h.b16 %v578
    %v2133 = vunpack.c.l.b16 %v579
    %v2134 = vunpack.c.h.b16 %v579
    %v2135 = vunpack.c.l.b16 %v580
    %v2136 = vunpack.c.h.b16 %v580
    %v2137 = vunpack.c.l.b16 %v581
    %v2138 = vunpack.c.h.b16 %v581
    %v2139 = vunpack.c.l.b16 %v582
    %v2140 = vunpack.c.h.b16 %v582
    %v2141 = vunpack.c.l.b16 %v583
    %v2142 = vunpack.c.h.b16 %v583
    %v2143 = vunpack.c.l.b16 %v584
    %v2144 = vunpack.c.h.b16 %v584
    %v2145 = vunpack.c.l.b16 %v585
    %v2146 = vunpack.c.h.b16 %v585
    %v2147 = vunpack.c.l.b16 %v586
    %v2148 = vunpack.c.h.b16 %v586
    %v2149 = vunpack.c.l.b16 %v587
    %v2150 = vunpack.c.h.b16 %v587
    %v2151 = vunpack.c.l.b16 %v588
    %v2152 = vunpack.c.h.b16 %v588
    %v2153 = vunpack.c.l.b16 %v589
    %v2154 = vunpack.c.h.b16 %v589
    %v2155 = vunpack.c.l.b16 %v590
    %v2156 = vunpack.c.h.b16 %v590
    %v2157 = vunpack.c.l.b16 %v591
    %v2158 = vunpack.c.h.b16 %v591
    %v2159 = vunpack.c.l.b16 %v592
    %v2160 = vunpack.c.h.b16 %v592
    %v2161 = vunpack.c.l.b16 %v593
    %v2162 = vunpack.c.h.b16 %v593
    %v2163 = vunpack.c.l.b16 %v594
    %v2164 = vunpack.c.h.b16 %v594
    %v2165 = vunpack.c.l.b16 %v595
    %v2166 = vunpack.c.h.b16 %v595
    %v2167 = vunpack.c.l.b16 %v596
    %v2168 = vunpack.c.h.b16 %v596
    %v2169 = vunpack.c.l.b16 %v597
    %v2170 = vunpack.c.h.b16 %v597
    %v2171 = vunpack.c.l.b16 %v598
    %v2172 = vunpack.c.h.b16 %v598
    %v2173 = vunpack.c.l.b16 %v599
    %v2174 = vunpack.c.h.b16 %v599
    %v2175 = vunpack.c.l.b16 %v600
    %v2176 = vunpack.c.h.b16 %v600
    %v2177 = vunpack.c.l.b16 %v601
    %v2178 = vunpack.c.h.b16 %v601
    %v2179 = vunpack.c.l.b16 %v602
    %v2180 = vunpack.c.h.b16 %v602
    %v2181 = vunpack.c.l.b16 %v603
    %v2182 = vunpack.c.h.b16 %v603
    %v2183 = vunpack.c.l.b16 %v604
    %v2184 = vunpack.c.h.b16 %v604
    %v2185 = vunpack.c.l.b16 %v605
    %v2186 = vunpack.c.h.b16 %v605
    %v2187 = vunpack.c.l.b16 %v606
    %v2188 = vunpack.c.h.b16 %v606
    %v2189 = vunpack.c.l.b16 %v607
    %v2190 = vunpack.c.h.b16 %v607
    %v2191 = vunpack.c.l.b16 %v608
    %v2192 = vunpack.c.h.b16 %v608
    %v2193 = vunpack.c.l.b16 %v609
    %v2194 = vunpack.c.h.b16 %v609
    %v2195 = vunpack.c.l.b16 %v610
    %v2196 = vunpack.c.h.b16 %v610
    %v2197 = vunpack.c.l.b16 %v611
    %v2198 = vunpack.c.h.b16 %v611
    %v2199 = vunpack.c.l.b16 %v612
    %v2200 = vunpack.c.h.b16 %v612
    %v2201 = vunpack.c.l.b16 %v613
    %v2202 = vunpack.c.h.b16 %v613
    %v2203 = vunpack.c.l.b16 %v614
    %v2204 = vunpack.c.h.b16 %v614
    %v2205 = vunpack.c.l.b16 %v615
    %v2206 = vunpack.c.h.b16 %v615
    %v2207 = vunpack.c.l.b16 %v616
    %v2208 = vunpack.c.h.b16 %v616
    %v2209 = vunpack.c.l.b16 %v617
    %v2210 = vunpack.c.h.b16 %v617
    %v2211 = vunpack.c.l.b16 %v618
    %v2212 = vunpack.c.h.b16 %v618
    %v2213 = vunpack.c.l.b16 %v619
    %v2214 = vunpack.c.h.b16 %v619
    %v2215 = vunpack.c.l.b16 %v620
    %v2216 = vunpack.c.h.b16 %v620
    %v2217 = vunpack.c.l.b16 %v621
    %v2218 = vunpack.c.h.b16 %v621
    %v2219 = vunpack.c.l.b16 %v622
    %v2220 = vunpack.c.h.b16 %v622
    %v2221 = vunpack.c.l.b16 %v623
    %v2222 = vunpack.c.h.b16 %v623
    %v2223 = vunpack.c.l.b16 %v624
    %v2224 = vunpack.c.h.b16 %v624
    %v2225 = vunpack.c.l.b16 %v625
    %v2226 = vunpack.c.h.b16 %v625
    %v2227 = vunpack.c.l.b16 %v626
    %v2228 = vunpack.c.h.b16 %v626
    %v2229 = vunpack.c.l.b16 %v627
    %v2230 = vunpack.c.h.b16 %v627
    %v2231 = vunpack.c.l.b16 %v628
    %v2232 = vunpack.c.h.b16 %v628
    %v2233 = vunpack.c.l.b16 %v629
    %v2234 = vunpack.c.h.b16 %v629
    %v2235 = vunpack.c.l.b16 %v630
    %v2236 = vunpack.c.h.b16 %v630
    %v2237 = vpack.c.b16 %v1221, %v1213
    %v2238 = vpack.c.b16 %v1222, %v1214
    %v2239 = vpack.c.b16 %v1223, %v1215
    %v2240 = vpack.c.b16 %v1224, %v1216
    %v2241 = vpack.c.b16 %v1225, %v1217
    %v2242 = vpack.c.b16 %v1226, %v1218
    %v2243 = vpack.c.b16 %v1227, %v1219
    %v2244 = vpack.c.b16 %v1228, %v1220
    %v2245 = vpack.c.b16 %v1237, %v1229
    %v2246 = vpack.c.b16 %v1238, %v1230
    %v2247 = vpack.c.b16 %v1239, %v1231
    %v2248 = vpack.c.b16 %v1240, %v1232
    %v2249 = vpack.c.b16 %v1241, %v1233
    %v2250 = vpack.c.b16 %v1242, %v1234
    %v2251 = vpack.c.b16 %v1243, %v1235
    %v2252 = vpack.c.b16 %v1244, %v1236
    %v2253 = vpack.c.b16 %v1253, %v1245
    %v2254 = vpack.c.b16 %v1254, %v1246
    %v2255 = vpack.c.b16 %v1255, %v1247
    %v2256 = vpack.c.b16 %v1256, %v1248
    %v2257 = vpack.c.b16 %v1257, %v1249
    %v2258 = vpack.c.b16 %v1258, %v1250
    %v2259 = vpack.c.b16 %v1259, %v1251
    %v2260 = vpack.c.b16 %v1260, %v1252
    %v2261 = vpack.c.b16 %v1269, %v1261
    %v2262 = vpack.c.b16 %v1270, %v1262
    %v2263 = vpack.c.b16 %v1271, %v1263
    %v2264 = vpack.c.b16 %v1272, %v1264
    %v2265 = vpack.c.b16 %v1273, %v1265
    %v2266 = vpack.c.b16 %v1274, %v1266
    %v2267 = vpack.c.b16 %v1275, %v1267
    %v2268 = vpack.c.b16 %v1276, %v1268
    %v2269 = vpack.c.b16 %v1285, %v1277
    %v2270 = vpack.c.b16 %v1286, %v1278
    %v2271 = vpack.c.b16 %v1287, %v1279
    %v2272 = vpack.c.b16 %v1288, %v1280
    %v2273 = vpack.c.b16 %v1289, %v1281
    %v2274 = vpack.c.b16 %v1290, %v1282
    %v2275 = vpack.c.b16 %v1291, %v1283
    %v2276 = vpack.c.b16 %v1292, %v1284
    %v2277 = vpack.c.b16 %v1301, %v1293
    %v2278 = vpack.c.b16 %v1302, %v1294
    %v2279 = vpack.c.b16 %v1303, %v1295
    %v2280 = vpack.c.b16 %v1304, %v1296
    %v2281 = vpack.c.b16 %v1305, %v1297
    %v2282 = vpack.c.b16 %v1306, %v1298
    %v2283 = vpack.c.b16 %v1307, %v1299
    %v2284 = vpack.c.b16 %v1308, %v1300
    %v2285 = vpack.c.b16 %v1317, %v1309
    %v2286 = vpack.c.b16 %v1318, %v1310
    %v2287 = vpack.c.b16 %v1319, %v1311
    %v2288 = vpack.c.b16 %v1320, %v1312
    %v2289 = vpack.c.b16 %v1321, %v1313
    %v2290 = vpack.c.b16 %v1322, %v1314
    %v2291 = vpack.c.b16 %v1323, %v1315
    %v2292 = vpack.c.b16 %v1324, %v1316
    %v2293 = vpack.c.b16 %v1333, %v1325
    %v2294 = vpack.c.b16 %v1334, %v1326
    %v2295 = vpack.c.b16 %v1335, %v1327
    %v2296 = vpack.c.b16 %v1336, %v1328
    %v2297 = vpack.c.b16 %v1337, %v1329
    %v2298 = vpack.c.b16 %v1338, %v1330
    %v2299 = vpack.c.b16 %v1339, %v1331
    %v2300 = vpack.c.b16 %v1340, %v1332
    %v2301 = vpack.c.b16 %v1349, %v1341
    %v2302 = vpack.c.b16 %v1350, %v1342
    %v2303 = vpack.c.b16 %v1351, %v1343
    %v2304 = vpack.c.b16 %v1352, %v1344
    %v2305 = vpack.c.b16 %v1353, %v1345
    %v2306 = vpack.c.b16 %v1354, %v1346
    %v2307 = vpack.c.b16 %v1355, %v1347
    %v2308 = vpack.c.b16 %v1356, %v1348
    %v2309 = vpack.c.b16 %v1365, %v1357
    %v2310 = vpack.c.b16 %v1366, %v1358
    %v2311 = vpack.c.b16 %v1367, %v1359
    %v2312 = vpack.c.b16 %v1368, %v1360
    %v2313 = vpack.c.b16 %v1369, %v1361
    %v2314 = vpack.c.b16 %v1370, %v1362
    %v2315 = vpack.c.b16 %v1371, %v1363
    %v2316 = vpack.c.b16 %v1372, %v1364
    %v2317 = vpack.c.b16 %v1381, %v1373
    %v2318 = vpack.c.b16 %v1382, %v1374
    %v2319 = vpack.c.b16 %v1383, %v1375
    %v2320 = vpack.c.b16 %v1384, %v1376
    %v2321 = vpack.c.b16 %v1385, %v1377
    %v2322 = vpack.c.b16 %v1386, %v1378
    %v2323 = vpack.c.b16 %v1387, %v1379
    %v2324 = vpack.c.b16 %v1388, %v1380
    %v2325 = vpack.c.b16 %v1397, %v1389
    %v2326 = vpack.c.b16 %v1398, %v1390
    %v2327 = vpack.c.b16 %v1399, %v1391
    %v2328 = vpack.c.b16 %v1400, %v1392
    %v2329 = vpack.c.b16 %v1401, %v1393
    %v2330 = vpack.c.b16 %v1402, %v1394
    %v2331 = vpack.c.b16 %v1403, %v1395
    %v2332 = vpack.c.b16 %v1404, %v1396
    %v2333 = vpack.c.b16 %v1413, %v1405
    %v2334 = vpack.c.b16 %v1414, %v1406
    %v2335 = vpack.c.b16 %v1415, %v1407
    %v2336 = vpack.c.b16 %v1416, %v1408
    %v2337 = vpack.c.b16 %v1417, %v1409
    %v2338 = vpack.c.b16 %v1418, %v1410
    %v2339 = vpack.c.b16 %v1419, %v1411
    %v2340 = vpack.c.b16 %v1420, %v1412
    %v2341 = vpack.c.b16 %v1429, %v1421
    %v2342 = vpack.c.b16 %v1430, %v1422
    %v2343 = vpack.c.b16 %v1431, %v1423
    %v2344 = vpack.c.b16 %v1432, %v1424
    %v2345 = vpack.c.b16 %v1433, %v1425
    %v2346 = vpack.c.b16 %v1434, %v1426
    %v2347 = vpack.c.b16 %v1435, %v1427
    %v2348 = vpack.c.b16 %v1436, %v1428
    %v2349 = vpack.c.b16 %v1445, %v1437
    %v2350 = vpack.c.b16 %v1446, %v1438
    %v2351 = vpack.c.b16 %v1447, %v1439
    %v2352 = vpack.c.b16 %v1448, %v1440
    %v2353 = vpack.c.b16 %v1449, %v1441
    %v2354 = vpack.c.b16 %v1450, %v1442
    %v2355 = vpack.c.b16 %v1451, %v1443
    %v2356 = vpack.c.b16 %v1452, %v1444
    %v2357 = vpack.c.b16 %v1461, %v1453
    %v2358 = vpack.c.b16 %v1462, %v1454
    %v2359 = vpack.c.b16 %v1463, %v1455
    %v2360 = vpack.c.b16 %v1464, %v1456
    %v2361 = vpack.c.b16 %v1465, %v1457
    %v2362 = vpack.c.b16 %v1466, %v1458
    %v2363 = vpack.c.b16 %v1467, %v1459
    %v2364 = vpack.c.b16 %v1468, %v1460
    %v2365 = vpack.c.b16 %v1477, %v1469
    %v2366 = vpack.c.b16 %v1478, %v1470
    %v2367 = vpack.c.b16 %v1479, %v1471
    %v2368 = vpack.c.b16 %v1480, %v1472
    %v2369 = vpack.c.b16 %v1481, %v1473
    %v2370 = vpack.c.b16 %v1482, %v1474
    %v2371 = vpack.c.b16 %v1483, %v1475
    %v2372 = vpack.c.b16 %v1484, %v1476
    %v2373 = vpack.c.b16 %v1493, %v1485
    %v2374 = vpack.c.b16 %v1494, %v1486
    %v2375 = vpack.c.b16 %v1495, %v1487
    %v2376 = vpack.c.b16 %v1496, %v1488
    %v2377 = vpack.c.b16 %v1497, %v1489
    %v2378 = vpack.c.b16 %v1498, %v1490
    %v2379 = vpack.c.b16 %v1499, %v1491
    %v2380 = vpack.c.b16 %v1500, %v1492
    %v2381 = vpack.c.b16 %v1509, %v1501
    %v2382 = vpack.c.b16 %v1510, %v1502
    %v2383 = vpack.c.b16 %v1511, %v1503
    %v2384 = vpack.c.b16 %v1512, %v1504
    %v2385 = vpack.c.b16 %v1513, %v1505
    %v2386 = vpack.c.b16 %v1514, %v1506
    %v2387 = vpack.c.b16 %v1515, %v1507
    %v2388 = vpack.c.b16 %v1516, %v1508
    %v2389 = vpack.c.b16 %v1525, %v1517
    %v2390 = vpack.c.b16 %v1526, %v1518
    %v2391 = vpack.c.b16 %v1527, %v1519
    %v2392 = vpack.c.b16 %v1528, %v1520
    %v2393 = vpack.c.b16 %v1529, %v1521
    %v2394 = vpack.c.b16 %v1530, %v1522
    %v2395 = vpack.c.b16 %v1531, %v1523
    %v2396 = vpack.c.b16 %v1532, %v1524
    %v2397 = vpack.c.b16 %v1541, %v1533
    %v2398 = vpack.c.b16 %v1542, %v1534
    %v2399 = vpack.c.b16 %v1543, %v1535
    %v2400 = vpack.c.b16 %v1544, %v1536
    %v2401 = vpack.c.b16 %v1545, %v1537
    %v2402 = vpack.c.b16 %v1546, %v1538
    %v2403 = vpack.c.b16 %v1547, %v1539
    %v2404 = vpack.c.b16 %v1548, %v1540
    %v2405 = vpack.c.b16 %v1557, %v1549
    %v2406 = vpack.c.b16 %v1558, %v1550
    %v2407 = vpack.c.b16 %v1559, %v1551
    %v2408 = vpack.c.b16 %v1560, %v1552
    %v2409 = vpack.c.b16 %v1561, %v1553
    %v2410 = vpack.c.b16 %v1562, %v1554
    %v2411 = vpack.c.b16 %v1563, %v1555
    %v2412 = vpack.c.b16 %v1564, %v1556
    %v2413 = vpack.c.b16 %v1573, %v1565
    %v2414 = vpack.c.b16 %v1574, %v1566
    %v2415 = vpack.c.b16 %v1575, %v1567
    %v2416 = vpack.c.b16 %v1576, %v1568
    %v2417 = vpack.c.b16 %v1577, %v1569
    %v2418 = vpack.c.b16 %v1578, %v1570
    %v2419 = vpack.c.b16 %v1579, %v1571
    %v2420 = vpack.c.b16 %v1580, %v1572
    %v2421 = vpack.c.b16 %v1589, %v1581
    %v2422 = vpack.c.b16 %v1590, %v1582
    %v2423 = vpack.c.b16 %v1591, %v1583
    %v2424 = vpack.c.b16 %v1592, %v1584
    %v2425 = vpack.c.b16 %v1593, %v1585
    %v2426 = vpack.c.b16 %v1594, %v1586
    %v2427 = vpack.c.b16 %v1595, %v1587
    %v2428 = vpack.c.b16 %v1596, %v1588
    %v2429 = vpack.c.b16 %v1605, %v1597
    %v2430 = vpack.c.b16 %v1606, %v1598
    %v2431 = vpack.c.b16 %v1607, %v1599
    %v2432 = vpack.c.b16 %v1608, %v1600
    %v2433 = vpack.c.b16 %v1609, %v1601
    %v2434 = vpack.c.b16 %v1610, %v1602
    %v2435 = vpack.c.b16 %v1611, %v1603
    %v2436 = vpack.c.b16 %v1612, %v1604
    %v2437 = vpack.c.b16 %v1621, %v1613
    %v2438 = vpack.c.b16 %v1622, %v1614
    %v2439 = vpack.c.b16 %v1623, %v1615
    %v2440 = vpack.c.b16 %v1624, %v1616
    %v2441 = vpack.c.b16 %v1625, %v1617
    %v2442 = vpack.c.b16 %v1626, %v1618
    %v2443 = vpack.c.b16 %v1627, %v1619
    %v2444 = vpack.c.b16 %v1628, %v1620
    %v2445 = vpack.c.b16 %v1637, %v1629
    %v2446 = vpack.c.b16 %v1638, %v1630
    %v2447 = vpack.c.b16 %v1639, %v1631
    %v2448 = vpack.c.b16 %v1640, %v1632
    %v2449 = vpack.c.b16 %v1641, %v1633
    %v2450 = vpack.c.b16 %v1642, %v1634
    %v2451 = vpack.c.b16 %v1643, %v1635
    %v2452 = vpack.c.b16 %v1644, %v1636
    %v2453 = vpack.c.b16 %v1653, %v1645
    %v2454 = vpack.c.b16 %v1654, %v1646
    %v2455 = vpack.c.b16 %v1655, %v1647
    %v2456 = vpack.c.b16 %v1656, %v1648
    %v2457 = vpack.c.b16 %v1657, %v1649
    %v2458 = vpack.c.b16 %v1658, %v1650
    %v2459 = vpack.c.b16 %v1659, %v1651
    %v2460 = vpack.c.b16 %v1660, %v1652
    %v2461 = vpack.c.b16 %v1669, %v1661
    %v2462 = vpack.c.b16 %v1670, %v1662
    %v2463 = vpack.c.b16 %v1671, %v1663
    %v2464 = vpack.c.b16 %v1672, %v1664
    %v2465 = vpack.c.b16 %v1673, %v1665
    %v2466 = vpack.c.b16 %v1674, %v1666
    %v2467 = vpack.c.b16 %v1675, %v1667
    %v2468 = vpack.c.b16 %v1676, %v1668
    %v2469 = vpack.c.b16 %v1685, %v1677
    %v2470 = vpack.c.b16 %v1686, %v1678
    %v2471 = vpack.c.b16 %v1687, %v1679
    %v2472 = vpack.c.b16 %v1688, %v1680
    %v2473 = vpack.c.b16 %v1689, %v1681
    %v2474 = vpack.c.b16 %v1690, %v1682
    %v2475 = vpack.c.b16 %v1691, %v1683
    %v2476 = vpack.c.b16 %v1692, %v1684
    %v2477 = vpack.c.b16 %v1701, %v1693
    %v2478 = vpack.c.b16 %v1702, %v1694
    %v2479 = vpack.c.b16 %v1703, %v1695
    %v2480 = vpack.c.b16 %v1704, %v1696
    %v2481 = vpack.c.b16 %v1705, %v1697
    %v2482 = vpack.c.b16 %v1706, %v1698
    %v2483 = vpack.c.b16 %v1707, %v1699
    %v2484 = vpack.c.b16 %v1708, %v1700
    %v2485 = vpack.c.b16 %v1717, %v1709
    %v2486 = vpack.c.b16 %v1718, %v1710
    %v2487 = vpack.c.b16 %v1719, %v1711
    %v2488 = vpack.c.b16 %v1720, %v1712
    %v2489 = vpack.c.b16 %v1721, %v1713
    %v2490 = vpack.c.b16 %v1722, %v1714
    %v2491 = vpack.c.b16 %v1723, %v1715
    %v2492 = vpack.c.b16 %v1724, %v1716
    %v2493 = vpack.c.b16 %v1733, %v1725
    %v2494 = vpack.c.b16 %v1734, %v1726
    %v2495 = vpack.c.b16 %v1735, %v1727
    %v2496 = vpack.c.b16 %v1736, %v1728
    %v2497 = vpack.c.b16 %v1737, %v1729
    %v2498 = vpack.c.b16 %v1738, %v1730
    %v2499 = vpack.c.b16 %v1739, %v1731
    %v2500 = vpack.c.b16 %v1740, %v1732
    %v2501 = vpack.c.b16 %v1749, %v1741
    %v2502 = vpack.c.b16 %v1750, %v1742
    %v2503 = vpack.c.b16 %v1751, %v1743
    %v2504 = vpack.c.b16 %v1752, %v1744
    %v2505 = vpack.c.b16 %v1753, %v1745
    %v2506 = vpack.c.b16 %v1754, %v1746
    %v2507 = vpack.c.b16 %v1755, %v1747
    %v2508 = vpack.c.b16 %v1756, %v1748
    %v2509 = vpack.c.b16 %v1765, %v1757
    %v2510 = vpack.c.b16 %v1766, %v1758
    %v2511 = vpack.c.b16 %v1767, %v1759
    %v2512 = vpack.c.b16 %v1768, %v1760
    %v2513 = vpack.c.b16 %v1769, %v1761
    %v2514 = vpack.c.b16 %v1770, %v1762
    %v2515 = vpack.c.b16 %v1771, %v1763
    %v2516 = vpack.c.b16 %v1772, %v1764
    %v2517 = vpack.c.b16 %v1781, %v1773
    %v2518 = vpack.c.b16 %v1782, %v1774
    %v2519 = vpack.c.b16 %v1783, %v1775
    %v2520 = vpack.c.b16 %v1784, %v1776
    %v2521 = vpack.c.b16 %v1785, %v1777
    %v2522 = vpack.c.b16 %v1786, %v1778
    %v2523 = vpack.c.b16 %v1787, %v1779
    %v2524 = vpack.c.b16 %v1788, %v1780
    %v2525 = vpack.c.b16 %v1797, %v1789
    %v2526 = vpack.c.b16 %v1798, %v1790
    %v2527 = vpack.c.b16 %v1799, %v1791
    %v2528 = vpack.c.b16 %v1800, %v1792
    %v2529 = vpack.c.b16 %v1801, %v1793
    %v2530 = vpack.c.b16 %v1802, %v1794
    %v2531 = vpack.c.b16 %v1803, %v1795
    %v2532 = vpack.c.b16 %v1804, %v1796
    %v2533 = vpack.c.b16 %v1813, %v1805
    %v2534 = vpack.c.b16 %v1814, %v1806
    %v2535 = vpack.c.b16 %v1815, %v1807
    %v2536 = vpack.c.b16 %v1816, %v1808
    %v2537 = vpack.c.b16 %v1817, %v1809
    %v2538 = vpack.c.b16 %v1818, %v1810
    %v2539 = vpack.c.b16 %v1819, %v1811
    %v2540 = vpack.c.b16 %v1820, %v1812
    %v2541 = vpack.c.b16 %v1829, %v1821
    %v2542 = vpack.c.b16 %v1830, %v1822
    %v2543 = vpack.c.b16 %v1831, %v1823
    %v2544 = vpack.c.b16 %v1832, %v1824
    %v2545 = vpack.c.b16 %v1833, %v1825
    %v2546 = vpack.c.b16 %v1834, %v1826
    %v2547 = vpack.c.b16 %v1835, %v1827
    %v2548 = vpack.c.b16 %v1836, %v1828
    %v2549 = vpack.c.b16 %v1845, %v1837
    %v2550 = vpack.c.b16 %v1846, %v1838
    %v2551 = vpack.c.b16 %v1847, %v1839
    %v2552 = vpack.c.b16 %v1848, %v1840
    %v2553 = vpack.c.b16 %v1849, %v1841
    %v2554 = vpack.c.b16 %v1850, %v1842
    %v2555 = vpack.c.b16 %v1851, %v1843
    %v2556 = vpack.c.b16 %v1852, %v1844
    %v2557 = vpack.c.b16 %v1861, %v1853
    %v2558 = vpack.c.b16 %v1862, %v1854
    %v2559 = vpack.c.b16 %v1863, %v1855
    %v2560 = vpack.c.b16 %v1864, %v1856
    %v2561 = vpack.c.b16 %v1865, %v1857
    %v2562 = vpack.c.b16 %v1866, %v1858
    %v2563 = vpack.c.b16 %v1867, %v1859
    %v2564 = vpack.c.b16 %v1868, %v1860
    %v2565 = vpack.c.b16 %v1877, %v1869
    %v2566 = vpack.c.b16 %v1878, %v1870
    %v2567 = vpack.c.b16 %v1879, %v1871
    %v2568 = vpack.c.b16 %v1880, %v1872
    %v2569 = vpack.c.b16 %v1881, %v1873
    %v2570 = vpack.c.b16 %v1882, %v1874
    %v2571 = vpack.c.b16 %v1883, %v1875
    %v2572 = vpack.c.b16 %v1884, %v1876
    %v2573 = vpack.c.b16 %v1893, %v1885
    %v2574 = vpack.c.b16 %v1894, %v1886
    %v2575 = vpack.c.b16 %v1895, %v1887
    %v2576 = vpack.c.b16 %v1896, %v1888
    %v2577 = vpack.c.b16 %v1897, %v1889
    %v2578 = vpack.c.b16 %v1898, %v1890
    %v2579 = vpack.c.b16 %v1899, %v1891
    %v2580 = vpack.c.b16 %v1900, %v1892
    %v2581 = vpack.c.b16 %v1909, %v1901
    %v2582 = vpack.c.b16 %v1910, %v1902
    %v2583 = vpack.c.b16 %v1911, %v1903
    %v2584 = vpack.c.b16 %v1912, %v1904
    %v2585 = vpack.c.b16 %v1913, %v1905
    %v2586 = vpack.c.b16 %v1914, %v1906
    %v2587 = vpack.c.b16 %v1915, %v1907
    %v2588 = vpack.c.b16 %v1916, %v1908
    %v2589 = vpack.c.b16 %v1925, %v1917
    %v2590 = vpack.c.b16 %v1926, %v1918
    %v2591 = vpack.c.b16 %v1927, %v1919
    %v2592 = vpack.c.b16 %v1928, %v1920
    %v2593 = vpack.c.b16 %v1929, %v1921
    %v2594 = vpack.c.b16 %v1930, %v1922
    %v2595 = vpack.c.b16 %v1931, %v1923
    %v2596 = vpack.c.b16 %v1932, %v1924
    %v2597 = vpack.c.b16 %v1941, %v1933
    %v2598 = vpack.c.b16 %v1942, %v1934
    %v2599 = vpack.c.b16 %v1943, %v1935
    %v2600 = vpack.c.b16 %v1944, %v1936
    %v2601 = vpack.c.b16 %v1945, %v1937
    %v2602 = vpack.c.b16 %v1946, %v1938
    %v2603 = vpack.c.b16 %v1947, %v1939
    %v2604 = vpack.c.b16 %v1948, %v1940
    %v2605 = vpack.c.b16 %v1957, %v1949
    %v2606 = vpack.c.b16 %v1958, %v1950
    %v2607 = vpack.c.b16 %v1959, %v1951
    %v2608 = vpack.c.b16 %v1960, %v1952
    %v2609 = vpack.c.b16 %v1961, %v1953
    %v2610 = vpack.c.b16 %v1962, %v1954
    %v2611 = vpack.c.b16 %v1963, %v1955
    %v2612 = vpack.c.b16 %v1964, %v1956
    %v2613 = vpack.c.b16 %v1973, %v1965
    %v2614 = vpack.c.b16 %v1974, %v1966
    %v2615 = vpack.c.b16 %v1975, %v1967
    %v2616 = vpack.c.b16 %v1976, %v1968
    %v2617 = vpack.c.b16 %v1977, %v1969
    %v2618 = vpack.c.b16 %v1978, %v1970
    %v2619 = vpack.c.b16 %v1979, %v1971
    %v2620 = vpack.c.b16 %v1980, %v1972
    %v2621 = vpack.c.b16 %v1989, %v1981
    %v2622 = vpack.c.b16 %v1990, %v1982
    %v2623 = vpack.c.b16 %v1991, %v1983
    %v2624 = vpack.c.b16 %v1992, %v1984
    %v2625 = vpack.c.b16 %v1993, %v1985
    %v2626 = vpack.c.b16 %v1994, %v1986
    %v2627 = vpack.c.b16 %v1995, %v1987
    %v2628 = vpack.c.b16 %v1996, %v1988
    %v2629 = vpack.c.b16 %v2005, %v1997
    %v2630 = vpack.c.b16 %v2006, %v1998
    %v2631 = vpack.c.b16 %v2007, %v1999
    %v2632 = vpack.c.b16 %v2008, %v2000
    %v2633 = vpack.c.b16 %v2009, %v2001
    %v2634 = vpack.c.b16 %v2010, %v2002
    %v2635 = vpack.c.b16 %v2011, %v2003
    %v2636 = vpack.c.b16 %v2012, %v2004
    %v2637 = vpack.c.b16 %v2021, %v2013
    %v2638 = vpack.c.b16 %v2022, %v2014
    %v2639 = vpack.c.b16 %v2023, %v2015
    %v2640 = vpack.c.b16 %v2024, %v2016
    %v2641 = vpack.c.b16 %v2025, %v2017
    %v2642 = vpack.c.b16 %v2026, %v2018
    %v2643 = vpack.c.b16 %v2027, %v2019
    %v2644 = vpack.c.b16 %v2028, %v2020
    %v2645 = vpack.c.b16 %v2037, %v2029
    %v2646 = vpack.c.b16 %v2038, %v2030
    %v2647 = vpack.c.b16 %v2039, %v2031
    %v2648 = vpack.c.b16 %v2040, %v2032
    %v2649 = vpack.c.b16 %v2041, %v2033
    %v2650 = vpack.c.b16 %v2042, %v2034
    %v2651 = vpack.c.b16 %v2043, %v2035
    %v2652 = vpack.c.b16 %v2044, %v2036
    %v2653 = vpack.c.b16 %v2053, %v2045
    %v2654 = vpack.c.b16 %v2054, %v2046
    %v2655 = vpack.c.b16 %v2055, %v2047
    %v2656 = vpack.c.b16 %v2056, %v2048
    %v2657 = vpack.c.b16 %v2057, %v2049
    %v2658 = vpack.c.b16 %v2058, %v2050
    %v2659 = vpack.c.b16 %v2059, %v2051
    %v2660 = vpack.c.b16 %v2060, %v2052
    %v2661 = vpack.c.b16 %v2069, %v2061
    %v2662 = vpack.c.b16 %v2070, %v2062
    %v2663 = vpack.c.b16 %v2071, %v2063
    %v2664 = vpack.c.b16 %v2072, %v2064
    %v2665 = vpack.c.b16 %v2073, %v2065
    %v2666 = vpack.c.b16 %v2074, %v2066
    %v2667 = vpack.c.b16 %v2075, %v2067
    %v2668 = vpack.c.b16 %v2076, %v2068
    %v2669 = vpack.c.b16 %v2085, %v2077
    %v2670 = vpack.c.b16 %v2086, %v2078
    %v2671 = vpack.c.b16 %v2087, %v2079
    %v2672 = vpack.c.b16 %v2088, %v2080
    %v2673 = vpack.c.b16 %v2089, %v2081
    %v2674 = vpack.c.b16 %v2090, %v2082
    %v2675 = vpack.c.b16 %v2091, %v2083
    %v2676 = vpack.c.b16 %v2092, %v2084
    %v2677 = vpack.c.b16 %v2101, %v2093
    %v2678 = vpack.c.b16 %v2102, %v2094
    %v2679 = vpack.c.b16 %v2103, %v2095
    %v2680 = vpack.c.b16 %v2104, %v2096
    %v2681 = vpack.c.b16 %v2105, %v2097
    %v2682 = vpack.c.b16 %v2106, %v2098
    %v2683 = vpack.c.b16 %v2107, %v2099
    %v2684 = vpack.c.b16 %v2108, %v2100
    %v2685 = vpack.c.b16 %v2117, %v2109
    %v2686 = vpack.c.b16 %v2118, %v2110
    %v2687 = vpack.c.b16 %v2119, %v2111
    %v2688 = vpack.c.b16 %v2120, %v2112
    %v2689 = vpack.c.b16 %v2121, %v2113
    %v2690 = vpack.c.b16 %v2122, %v2114
    %v2691 = vpack.c.b16 %v2123, %v2115
    %v2692 = vpack.c.b16 %v2124, %v2116
    %v2693 = vpack.c.b16 %v2133, %v2125
    %v2694 = vpack.c.b16 %v2134, %v2126
    %v2695 = vpack.c.b16 %v2135, %v2127
    %v2696 = vpack.c.b16 %v2136, %v2128
    %v2697 = vpack.c.b16 %v2137, %v2129
    %v2698 = vpack.c.b16 %v2138, %v2130
    %v2699 = vpack.c.b16 %v2139, %v2131
    %v2700 = vpack.c.b16 %v2140, %v2132
    %v2701 = vpack.c.b16 %v2149, %v2141
    %v2702 = vpack.c.b16 %v2150, %v2142
    %v2703 = vpack.c.b16 %v2151, %v2143
    %v2704 = vpack.c.b16 %v2152, %v2144
    %v2705 = vpack.c.b16 %v2153, %v2145
    %v2706 = vpack.c.b16 %v2154, %v2146
    %v2707 = vpack.c.b16 %v2155, %v2147
    %v2708 = vpack.c.b16 %v2156, %v2148
    %v2709 = vpack.c.b16 %v2165, %v2157
    %v2710 = vpack.c.b16 %v2166, %v2158
    %v2711 = vpack.c.b16 %v2167, %v2159
    %v2712 = vpack.c.b16 %v2168, %v2160
    %v2713 = vpack.c.b16 %v2169, %v2161
    %v2714 = vpack.c.b16 %v2170, %v2162
    %v2715 = vpack.c.b16 %v2171, %v2163
    %v2716 = vpack.c.b16 %v2172, %v2164
    %v2717 = vpack.c.b16 %v2181, %v2173
    %v2718 = vpack.c.b16 %v2182, %v2174
    %v2719 = vpack.c.b16 %v2183, %v2175
    %v2720 = vpack.c.b16 %v2184, %v2176
    %v2721 = vpack.c.b16 %v2185, %v2177
    %v2722 = vpack.c.b16 %v2186, %v2178
    %v2723 = vpack.c.b16 %v2187, %v2179
    %v2724 = vpack.c.b16 %v2188, %v2180
    %v2725 = vpack.c.b16 %v2197, %v2189
    %v2726 = vpack.c.b16 %v2198, %v2190
    %v2727 = vpack.c.b16 %v2199, %v2191
    %v2728 = vpack.c.b16 %v2200, %v2192
    %v2729 = vpack.c.b16 %v2201, %v2193
    %v2730 = vpack.c.b16 %v2202, %v2194
    %v2731 = vpack.c.b16 %v2203, %v2195
    %v2732 = vpack.c.b16 %v2204, %v2196
    %v2733 = vpack.c.b16 %v2213, %v2205
    %v2734 = vpack.c.b16 %v2214, %v2206
    %v2735 = vpack.c.b16 %v2215, %v2207
    %v2736 = vpack.c.b16 %v2216, %v2208
    %v2737 = vpack.c.b16 %v2217, %v2209
    %v2738 = vpack.c.b16 %v2218, %v2210
    %v2739 = vpack.c.b16 %v2219, %v2211
    %v2740 = vpack.c.b16 %v2220, %v2212
    %v2741 = vpack.c.b16 %v2229, %v2221
    %v2742 = vpack.c.b16 %v2230, %v2222
    %v2743 = vpack.c.b16 %v2231, %v2223
    %v2744 = vpack.c.b16 %v2232, %v2224
    %v2745 = vpack.c.b16 %v2233, %v2225
    %v2746 = vpack.c.b16 %v2234, %v2226
    %v2747 = vpack.c.b16 %v2235, %v2227
    %v2748 = vpack.c.b16 %v2236, %v2228
    %3261 = vmatprep.subr.bf16.mxu0 %v2294
    %3262 = vmatpush1.bf16.msra.mxu0 %v2293
    %3263 = vmatprep.subr.bf16.mxu0 %v2286
    %3264 = vmatpush1.bf16.msra.mxu0 %v2285
    %3265 = vmatprep.subr.bf16.mxu0 %v2278
    %3266 = vmatpush1.bf16.msra.mxu0 %v2277
    %3267 = vmatprep.subr.bf16.mxu0 %v2270
    %3268 = vmatpush1.bf16.msra.mxu0 %v2269
    %3269 = vmatprep.subr.bf16.mxu0 %v2262
    %3270 = vmatpush1.bf16.msra.mxu0 %v2261
    %3271 = vmatprep.subr.bf16.mxu0 %v2254
    %3272 = vmatpush1.bf16.msra.mxu0 %v2253
    %3273 = vmatprep.subr.bf16.mxu0 %v2246
    %3274 = vmatpush1.bf16.msra.mxu0 %v2245
    %3275 = vmatprep.subr.bf16.mxu0 %v2238
    %3276 = vmatpush1.bf16.msra.mxu0 %v2237
    %3277 = vmatprep.subr.bf16.mxu0 %v2358
    %3278 = vmatpush2.bf16.msra.mxu0 %v2357
    %3279 = vmatprep.subr.bf16.mxu0 %v2350
    %3280 = vmatpush2.bf16.msra.mxu0 %v2349
    %3281 = vmatprep.subr.bf16.mxu0 %v2342
    %3282 = vmatpush2.bf16.msra.mxu0 %v2341
    %3283 = vmatprep.subr.bf16.mxu0 %v2334
    %3284 = vmatpush2.bf16.msra.mxu0 %v2333
    %3285 = vmatprep.subr.bf16.mxu0 %v2326
    %3286 = vmatpush2.bf16.msra.mxu0 %v2325
    %3287 = vmatprep.subr.bf16.mxu0 %v2318
    %3288 = vmatpush2.bf16.msra.mxu0 %v2317
    %3289 = vmatprep.subr.bf16.mxu0 %v2310
    %3290 = vmatpush2.bf16.msra.mxu0 %v2309
    %3291 = vmatprep.subr.bf16.mxu0 %v2302
    %3292 = vmatpush2.bf16.msra.mxu0 %v2301
    %3293 = vmatprep.mubr.bf16.mxu0 %v686
    %3294 = vmatmul.mubr.bf16.gmra.mxu0 %v685
    %v3295 = vpop.f32.mrf.mxu0
    %v3296 = vadd.f32 %v636, %v3295
    %v3297 = vpop.f32.mrf.mxu0
    %v3298 = vadd.f32 %v640, %v3297
    %v3299 = vpop.f32.mrf.mxu0
    %v3300 = vpop.f32.mrf.mxu0
    %3301 = vdwg.mxu0
    %3302 = vmatprep.subr.bf16.mxu0 %v2422
    %3303 = vmatpush1.bf16.msra.mxu0 %v2421
    %3304 = vmatprep.subr.bf16.mxu0 %v2414
    %3305 = vmatpush1.bf16.msra.mxu0 %v2413
    %3306 = vmatprep.subr.bf16.mxu0 %v2406
    %3307 = vmatpush1.bf16.msra.mxu0 %v2405
    %3308 = vmatprep.subr.bf16.mxu0 %v2398
    %3309 = vmatpush1.bf16.msra.mxu0 %v2397
    %3310 = vmatprep.subr.bf16.mxu0 %v2390
    %3311 = vmatpush1.bf16.msra.mxu0 %v2389
    %3312 = vmatprep.subr.bf16.mxu0 %v2382
    %3313 = vmatpush1.bf16.msra.mxu0 %v2381
    %3314 = vmatprep.subr.bf16.mxu0 %v2374
    %3315 = vmatpush1.bf16.msra.mxu0 %v2373
    %3316 = vmatprep.subr.bf16.mxu0 %v2366
    %3317 = vmatpush1.bf16.msra.mxu0 %v2365
    %3318 = vmatprep.subr.bf16.mxu0 %v2486
    %3319 = vmatpush2.bf16.msra.mxu0 %v2485
    %3320 = vmatprep.subr.bf16.mxu0 %v2478
    %3321 = vmatpush2.bf16.msra.mxu0 %v2477
    %3322 = vmatprep.subr.bf16.mxu0 %v2470
    %3323 = vmatpush2.bf16.msra.mxu0 %v2469
    %3324 = vmatprep.subr.bf16.mxu0 %v2462
    %3325 = vmatpush2.bf16.msra.mxu0 %v2461
    %3326 = vmatprep.subr.bf16.mxu0 %v2454
    %3327 = vmatpush2.bf16.msra.mxu0 %v2453
    %3328 = vmatprep.subr.bf16.mxu0 %v2446
    %3329 = vmatpush2.bf16.msra.mxu0 %v2445
    %3330 = vmatprep.subr.bf16.mxu0 %v2438
    %3331 = vmatpush2.bf16.msra.mxu0 %v2437
    %3332 = vmatprep.subr.bf16.mxu0 %v2430
    %3333 = vmatpush2.bf16.msra.mxu0 %v2429
    %3334 = vmatprep.mubr.bf16.mxu0 %v688
    %3335 = vmatmul.mubr.bf16.gmra.mxu0 %v687
    %v3336 = vpop.f32.mrf.mxu0
    %v3337 = vadd.f32 %v3296, %v3336
    %v3338 = vpop.f32.mrf.mxu0
    %v3339 = vadd.f32 %v3298, %v3338
    %v3340 = vpop.f32.mrf.mxu0
    %v3341 = vpop.f32.mrf.mxu0
    %3342 = vdwg.mxu0
    %3343 = vmatprep.subr.bf16.mxu0 %v2550
    %3344 = vmatpush1.bf16.msra.mxu0 %v2549
    %3345 = vmatprep.subr.bf16.mxu0 %v2542
    %3346 = vmatpush1.bf16.msra.mxu0 %v2541
    %3347 = vmatprep.subr.bf16.mxu0 %v2534
    %3348 = vmatpush1.bf16.msra.mxu0 %v2533
    %3349 = vmatprep.subr.bf16.mxu0 %v2526
    %3350 = vmatpush1.bf16.msra.mxu0 %v2525
    %3351 = vmatprep.subr.bf16.mxu0 %v2518
    %3352 = vmatpush1.bf16.msra.mxu0 %v2517
    %3353 = vmatprep.subr.bf16.mxu0 %v2510
    %3354 = vmatpush1.bf16.msra.mxu0 %v2509
    %3355 = vmatprep.subr.bf16.mxu0 %v2502
    %3356 = vmatpush1.bf16.msra.mxu0 %v2501
    %3357 = vmatprep.subr.bf16.mxu0 %v2494
    %3358 = vmatpush1.bf16.msra.mxu0 %v2493
    %3359 = vmatprep.subr.bf16.mxu0 %v2614
    %3360 = vmatpush2.bf16.msra.mxu0 %v2613
    %3361 = vmatprep.subr.bf16.mxu0 %v2606
    %3362 = vmatpush2.bf16.msra.mxu0 %v2605
    %3363 = vmatprep.subr.bf16.mxu0 %v2598
    %3364 = vmatpush2.bf16.msra.mxu0 %v2597
    %3365 = vmatprep.subr.bf16.mxu0 %v2590
    %3366 = vmatpush2.bf16.msra.mxu0 %v2589
    %3367 = vmatprep.subr.bf16.mxu0 %v2582
    %3368 = vmatpush2.bf16.msra.mxu0 %v2581
    %3369 = vmatprep.subr.bf16.mxu0 %v2574
    %3370 = vmatpush2.bf16.msra.mxu0 %v2573
    %3371 = vmatprep.subr.bf16.mxu0 %v2566
    %3372 = vmatpush2.bf16.msra.mxu0 %v2565
    %3373 = vmatprep.subr.bf16.mxu0 %v2558
    %3374 = vmatpush2.bf16.msra.mxu0 %v2557
    %3375 = vmatprep.mubr.bf16.mxu0 %v690
    %3376 = vmatmul.mubr.bf16.gmra.mxu0 %v689
    %v3377 = vpop.f32.mrf.mxu0
    %v3378 = vadd.f32 %v3337, %v3377
    %v3379 = vpop.f32.mrf.mxu0
    %v3380 = vadd.f32 %v3339, %v3379
    %v3381 = vpop.f32.mrf.mxu0
    %v3382 = vpop.f32.mrf.mxu0
    %3383 = vdwg.mxu0
    %3384 = vmatprep.subr.bf16.mxu0 %v2678
    %3385 = vmatpush1.bf16.msra.mxu0 %v2677
    %3386 = vmatprep.subr.bf16.mxu0 %v2670
    %3387 = vmatpush1.bf16.msra.mxu0 %v2669
    %3388 = vmatprep.subr.bf16.mxu0 %v2662
    %3389 = vmatpush1.bf16.msra.mxu0 %v2661
    %3390 = vmatprep.subr.bf16.mxu0 %v2654
    %3391 = vmatpush1.bf16.msra.mxu0 %v2653
    %3392 = vmatprep.subr.bf16.mxu0 %v2646
    %3393 = vmatpush1.bf16.msra.mxu0 %v2645
    %3394 = vmatprep.subr.bf16.mxu0 %v2638
    %3395 = vmatpush1.bf16.msra.mxu0 %v2637
    %3396 = vmatprep.subr.bf16.mxu0 %v2630
    %3397 = vmatpush1.bf16.msra.mxu0 %v2629
    %3398 = vmatprep.subr.bf16.mxu0 %v2622
    %3399 = vmatpush1.bf16.msra.mxu0 %v2621
    %3400 = vmatprep.subr.bf16.mxu0 %v2742
    %3401 = vmatpush2.bf16.msra.mxu0 %v2741
    %3402 = vmatprep.subr.bf16.mxu0 %v2734
    %3403 = vmatpush2.bf16.msra.mxu0 %v2733
    %3404 = vmatprep.subr.bf16.mxu0 %v2726
    %3405 = vmatpush2.bf16.msra.mxu0 %v2725
    %3406 = vmatprep.subr.bf16.mxu0 %v2718
    %3407 = vmatpush2.bf16.msra.mxu0 %v2717
    %3408 = vmatprep.subr.bf16.mxu0 %v2710
    %3409 = vmatpush2.bf16.msra.mxu0 %v2709
    %3410 = vmatprep.subr.bf16.mxu0 %v2702
    %3411 = vmatpush2.bf16.msra.mxu0 %v2701
    %3412 = vmatprep.subr.bf16.mxu0 %v2694
    %3413 = vmatpush2.bf16.msra.mxu0 %v2693
    %3414 = vmatprep.subr.bf16.mxu0 %v2686
    %3415 = vmatpush2.bf16.msra.mxu0 %v2685
    %3416 = vmatprep.mubr.bf16.mxu0 %v692
    %3417 = vmatmul.mubr.bf16.gmra.mxu0 %v691
    %v3418 = vpop.f32.mrf.mxu0
    %v3419 = vadd.f32 %v3378, %v3418
    %v3420 = vpop.f32.mrf.mxu0
    %v3421 = vadd.f32 %v3380, %v3420
    %v3422 = vpop.f32.mrf.mxu0
    %v3423 = vpop.f32.mrf.mxu0
    %3424 = vdwg.mxu0
    %3425 = vmatprep.subr.bf16.mxu0 %v2296
    %3426 = vmatpush1.bf16.msra.mxu0 %v2295
    %3427 = vmatprep.subr.bf16.mxu0 %v2288
    %3428 = vmatpush1.bf16.msra.mxu0 %v2287
    %3429 = vmatprep.subr.bf16.mxu0 %v2280
    %3430 = vmatpush1.bf16.msra.mxu0 %v2279
    %3431 = vmatprep.subr.bf16.mxu0 %v2272
    %3432 = vmatpush1.bf16.msra.mxu0 %v2271
    %3433 = vmatprep.subr.bf16.mxu0 %v2264
    %3434 = vmatpush1.bf16.msra.mxu0 %v2263
    %3435 = vmatprep.subr.bf16.mxu0 %v2256
    %3436 = vmatpush1.bf16.msra.mxu0 %v2255
    %3437 = vmatprep.subr.bf16.mxu0 %v2248
    %3438 = vmatpush1.bf16.msra.mxu0 %v2247
    %3439 = vmatprep.subr.bf16.mxu0 %v2240
    %3440 = vmatpush1.bf16.msra.mxu0 %v2239
    %3441 = vmatprep.subr.bf16.mxu0 %v2360
    %3442 = vmatpush2.bf16.msra.mxu0 %v2359
    %3443 = vmatprep.subr.bf16.mxu0 %v2352
    %3444 = vmatpush2.bf16.msra.mxu0 %v2351
    %3445 = vmatprep.subr.bf16.mxu0 %v2344
    %3446 = vmatpush2.bf16.msra.mxu0 %v2343
    %3447 = vmatprep.subr.bf16.mxu0 %v2336
    %3448 = vmatpush2.bf16.msra.mxu0 %v2335
    %3449 = vmatprep.subr.bf16.mxu0 %v2328
    %3450 = vmatpush2.bf16.msra.mxu0 %v2327
    %3451 = vmatprep.subr.bf16.mxu0 %v2320
    %3452 = vmatpush2.bf16.msra.mxu0 %v2319
    %3453 = vmatprep.subr.bf16.mxu0 %v2312
    %3454 = vmatpush2.bf16.msra.mxu0 %v2311
    %3455 = vmatprep.subr.bf16.mxu0 %v2304
    %3456 = vmatpush2.bf16.msra.mxu0 %v2303
    %3457 = vmatprep.mubr.bf16.mxu0 %v686
    %3458 = vmatmul.mubr.bf16.gmra.mxu0 %v685
    %v3459 = vpop.f32.mrf.mxu0
    %v3460 = vadd.f32 %v644, %v3459
    %v3461 = vpop.f32.mrf.mxu0
    %v3462 = vadd.f32 %v648, %v3461
    %v3463 = vpop.f32.mrf.mxu0
    %v3464 = vpop.f32.mrf.mxu0
    %3465 = vdwg.mxu0
    %3466 = vmatprep.subr.bf16.mxu0 %v2424
    %3467 = vmatpush1.bf16.msra.mxu0 %v2423
    %3468 = vmatprep.subr.bf16.mxu0 %v2416
    %3469 = vmatpush1.bf16.msra.mxu0 %v2415
    %3470 = vmatprep.subr.bf16.mxu0 %v2408
    %3471 = vmatpush1.bf16.msra.mxu0 %v2407
    %3472 = vmatprep.subr.bf16.mxu0 %v2400
    %3473 = vmatpush1.bf16.msra.mxu0 %v2399
    %3474 = vmatprep.subr.bf16.mxu0 %v2392
    %3475 = vmatpush1.bf16.msra.mxu0 %v2391
    %3476 = vmatprep.subr.bf16.mxu0 %v2384
    %3477 = vmatpush1.bf16.msra.mxu0 %v2383
    %3478 = vmatprep.subr.bf16.mxu0 %v2376
    %3479 = vmatpush1.bf16.msra.mxu0 %v2375
    %3480 = vmatprep.subr.bf16.mxu0 %v2368
    %3481 = vmatpush1.bf16.msra.mxu0 %v2367
    %3482 = vmatprep.subr.bf16.mxu0 %v2488
    %3483 = vmatpush2.bf16.msra.mxu0 %v2487
    %3484 = vmatprep.subr.bf16.mxu0 %v2480
    %3485 = vmatpush2.bf16.msra.mxu0 %v2479
    %3486 = vmatprep.subr.bf16.mxu0 %v2472
    %3487 = vmatpush2.bf16.msra.mxu0 %v2471
    %3488 = vmatprep.subr.bf16.mxu0 %v2464
    %3489 = vmatpush2.bf16.msra.mxu0 %v2463
    %3490 = vmatprep.subr.bf16.mxu0 %v2456
    %3491 = vmatpush2.bf16.msra.mxu0 %v2455
    %3492 = vmatprep.subr.bf16.mxu0 %v2448
    %3493 = vmatpush2.bf16.msra.mxu0 %v2447
    %3494 = vmatprep.subr.bf16.mxu0 %v2440
    %3495 = vmatpush2.bf16.msra.mxu0 %v2439
    %3496 = vmatprep.subr.bf16.mxu0 %v2432
    %3497 = vmatpush2.bf16.msra.mxu0 %v2431
    %3498 = vmatprep.mubr.bf16.mxu0 %v688
    %3499 = vmatmul.mubr.bf16.gmra.mxu0 %v687
    %v3500 = vpop.f32.mrf.mxu0
    %v3501 = vadd.f32 %v3460, %v3500
    %v3502 = vpop.f32.mrf.mxu0
    %v3503 = vadd.f32 %v3462, %v3502
    %v3504 = vpop.f32.mrf.mxu0
    %v3505 = vpop.f32.mrf.mxu0
    %3506 = vdwg.mxu0
    %3507 = vmatprep.subr.bf16.mxu0 %v2552
    %3508 = vmatpush1.bf16.msra.mxu0 %v2551
    %3509 = vmatprep.subr.bf16.mxu0 %v2544
    %3510 = vmatpush1.bf16.msra.mxu0 %v2543
    %3511 = vmatprep.subr.bf16.mxu0 %v2536
    %3512 = vmatpush1.bf16.msra.mxu0 %v2535
    %3513 = vmatprep.subr.bf16.mxu0 %v2528
    %3514 = vmatpush1.bf16.msra.mxu0 %v2527
    %3515 = vmatprep.subr.bf16.mxu0 %v2520
    %3516 = vmatpush1.bf16.msra.mxu0 %v2519
    %3517 = vmatprep.subr.bf16.mxu0 %v2512
    %3518 = vmatpush1.bf16.msra.mxu0 %v2511
    %3519 = vmatprep.subr.bf16.mxu0 %v2504
    %3520 = vmatpush1.bf16.msra.mxu0 %v2503
    %3521 = vmatprep.subr.bf16.mxu0 %v2496
    %3522 = vmatpush1.bf16.msra.mxu0 %v2495
    %3523 = vmatprep.subr.bf16.mxu0 %v2616
    %3524 = vmatpush2.bf16.msra.mxu0 %v2615
    %3525 = vmatprep.subr.bf16.mxu0 %v2608
    %3526 = vmatpush2.bf16.msra.mxu0 %v2607
    %3527 = vmatprep.subr.bf16.mxu0 %v2600
    %3528 = vmatpush2.bf16.msra.mxu0 %v2599
    %3529 = vmatprep.subr.bf16.mxu0 %v2592
    %3530 = vmatpush2.bf16.msra.mxu0 %v2591
    %3531 = vmatprep.subr.bf16.mxu0 %v2584
    %3532 = vmatpush2.bf16.msra.mxu0 %v2583
    %3533 = vmatprep.subr.bf16.mxu0 %v2576
    %3534 = vmatpush2.bf16.msra.mxu0 %v2575
    %3535 = vmatprep.subr.bf16.mxu0 %v2568
    %3536 = vmatpush2.bf16.msra.mxu0 %v2567
    %3537 = vmatprep.subr.bf16.mxu0 %v2560
    %3538 = vmatpush2.bf16.msra.mxu0 %v2559
    %3539 = vmatprep.mubr.bf16.mxu0 %v690
    %3540 = vmatmul.mubr.bf16.gmra.mxu0 %v689
    %v3541 = vpop.f32.mrf.mxu0
    %v3542 = vadd.f32 %v3501, %v3541
    %v3543 = vpop.f32.mrf.mxu0
    %v3544 = vadd.f32 %v3503, %v3543
    %v3545 = vpop.f32.mrf.mxu0
    %v3546 = vpop.f32.mrf.mxu0
    %3547 = vdwg.mxu0
    %3548 = vmatprep.subr.bf16.mxu0 %v2680
    %3549 = vmatpush1.bf16.msra.mxu0 %v2679
    %3550 = vmatprep.subr.bf16.mxu0 %v2672
    %3551 = vmatpush1.bf16.msra.mxu0 %v2671
    %3552 = vmatprep.subr.bf16.mxu0 %v2664
    %3553 = vmatpush1.bf16.msra.mxu0 %v2663
    %3554 = vmatprep.subr.bf16.mxu0 %v2656
    %3555 = vmatpush1.bf16.msra.mxu0 %v2655
    %3556 = vmatprep.subr.bf16.mxu0 %v2648
    %3557 = vmatpush1.bf16.msra.mxu0 %v2647
    %3558 = vmatprep.subr.bf16.mxu0 %v2640
    %3559 = vmatpush1.bf16.msra.mxu0 %v2639
    %3560 = vmatprep.subr.bf16.mxu0 %v2632
    %3561 = vmatpush1.bf16.msra.mxu0 %v2631
    %3562 = vmatprep.subr.bf16.mxu0 %v2624
    %3563 = vmatpush1.bf16.msra.mxu0 %v2623
    %3564 = vmatprep.subr.bf16.mxu0 %v2744
    %3565 = vmatpush2.bf16.msra.mxu0 %v2743
    %3566 = vmatprep.subr.bf16.mxu0 %v2736
    %3567 = vmatpush2.bf16.msra.mxu0 %v2735
    %3568 = vmatprep.subr.bf16.mxu0 %v2728
    %3569 = vmatpush2.bf16.msra.mxu0 %v2727
    %3570 = vmatprep.subr.bf16.mxu0 %v2720
    %3571 = vmatpush2.bf16.msra.mxu0 %v2719
    %3572 = vmatprep.subr.bf16.mxu0 %v2712
    %3573 = vmatpush2.bf16.msra.mxu0 %v2711
    %3574 = vmatprep.subr.bf16.mxu0 %v2704
    %3575 = vmatpush2.bf16.msra.mxu0 %v2703
    %3576 = vmatprep.subr.bf16.mxu0 %v2696
    %3577 = vmatpush2.bf16.msra.mxu0 %v2695
    %3578 = vmatprep.subr.bf16.mxu0 %v2688
    %3579 = vmatpush2.bf16.msra.mxu0 %v2687
    %3580 = vmatprep.mubr.bf16.mxu0 %v692
    %3581 = vmatmul.mubr.bf16.gmra.mxu0 %v691
    %v3582 = vpop.f32.mrf.mxu0
    %v3583 = vadd.f32 %v3542, %v3582
    %v3584 = vpop.f32.mrf.mxu0
    %v3585 = vadd.f32 %v3544, %v3584
    %v3586 = vpop.f32.mrf.mxu0
    %v3587 = vpop.f32.mrf.mxu0
    %3588 = vdwg.mxu0
    %3589 = vmatprep.subr.bf16.mxu0 %v2298
    %3590 = vmatpush1.bf16.msra.mxu0 %v2297
    %3591 = vmatprep.subr.bf16.mxu0 %v2290
    %3592 = vmatpush1.bf16.msra.mxu0 %v2289
    %3593 = vmatprep.subr.bf16.mxu0 %v2282
    %3594 = vmatpush1.bf16.msra.mxu0 %v2281
    %3595 = vmatprep.subr.bf16.mxu0 %v2274
    %3596 = vmatpush1.bf16.msra.mxu0 %v2273
    %3597 = vmatprep.subr.bf16.mxu0 %v2266
    %3598 = vmatpush1.bf16.msra.mxu0 %v2265
    %3599 = vmatprep.subr.bf16.mxu0 %v2258
    %3600 = vmatpush1.bf16.msra.mxu0 %v2257
    %3601 = vmatprep.subr.bf16.mxu0 %v2250
    %3602 = vmatpush1.bf16.msra.mxu0 %v2249
    %3603 = vmatprep.subr.bf16.mxu0 %v2242
    %3604 = vmatpush1.bf16.msra.mxu0 %v2241
    %3605 = vmatprep.subr.bf16.mxu0 %v2362
    %3606 = vmatpush2.bf16.msra.mxu0 %v2361
    %3607 = vmatprep.subr.bf16.mxu0 %v2354
    %3608 = vmatpush2.bf16.msra.mxu0 %v2353
    %3609 = vmatprep.subr.bf16.mxu0 %v2346
    %3610 = vmatpush2.bf16.msra.mxu0 %v2345
    %3611 = vmatprep.subr.bf16.mxu0 %v2338
    %3612 = vmatpush2.bf16.msra.mxu0 %v2337
    %3613 = vmatprep.subr.bf16.mxu0 %v2330
    %3614 = vmatpush2.bf16.msra.mxu0 %v2329
    %3615 = vmatprep.subr.bf16.mxu0 %v2322
    %3616 = vmatpush2.bf16.msra.mxu0 %v2321
    %3617 = vmatprep.subr.bf16.mxu0 %v2314
    %3618 = vmatpush2.bf16.msra.mxu0 %v2313
    %3619 = vmatprep.subr.bf16.mxu0 %v2306
    %3620 = vmatpush2.bf16.msra.mxu0 %v2305
    %3621 = vmatprep.mubr.bf16.mxu0 %v686
    %3622 = vmatmul.mubr.bf16.gmra.mxu0 %v685
    %v3623 = vpop.f32.mrf.mxu0
    %v3624 = vadd.f32 %v652, %v3623
    %v3625 = vpop.f32.mrf.mxu0
    %v3626 = vadd.f32 %v656, %v3625
    %v3627 = vpop.f32.mrf.mxu0
    %v3628 = vpop.f32.mrf.mxu0
    %3629 = vdwg.mxu0
    %3630 = vmatprep.subr.bf16.mxu0 %v2426
    %3631 = vmatpush1.bf16.msra.mxu0 %v2425
    %3632 = vmatprep.subr.bf16.mxu0 %v2418
    %3633 = vmatpush1.bf16.msra.mxu0 %v2417
    %3634 = vmatprep.subr.bf16.mxu0 %v2410
    %3635 = vmatpush1.bf16.msra.mxu0 %v2409
    %3636 = vmatprep.subr.bf16.mxu0 %v2402
    %3637 = vmatpush1.bf16.msra.mxu0 %v2401
    %3638 = vmatprep.subr.bf16.mxu0 %v2394
    %3639 = vmatpush1.bf16.msra.mxu0 %v2393
    %3640 = vmatprep.subr.bf16.mxu0 %v2386
    %3641 = vmatpush1.bf16.msra.mxu0 %v2385
    %3642 = vmatprep.subr.bf16.mxu0 %v2378
    %3643 = vmatpush1.bf16.msra.mxu0 %v2377
    %3644 = vmatprep.subr.bf16.mxu0 %v2370
    %3645 = vmatpush1.bf16.msra.mxu0 %v2369
    %3646 = vmatprep.subr.bf16.mxu0 %v2490
    %3647 = vmatpush2.bf16.msra.mxu0 %v2489
    %3648 = vmatprep.subr.bf16.mxu0 %v2482
    %3649 = vmatpush2.bf16.msra.mxu0 %v2481
    %3650 = vmatprep.subr.bf16.mxu0 %v2474
    %3651 = vmatpush2.bf16.msra.mxu0 %v2473
    %3652 = vmatprep.subr.bf16.mxu0 %v2466
    %3653 = vmatpush2.bf16.msra.mxu0 %v2465
    %3654 = vmatprep.subr.bf16.mxu0 %v2458
    %3655 = vmatpush2.bf16.msra.mxu0 %v2457
    %3656 = vmatprep.subr.bf16.mxu0 %v2450
    %3657 = vmatpush2.bf16.msra.mxu0 %v2449
    %3658 = vmatprep.subr.bf16.mxu0 %v2442
    %3659 = vmatpush2.bf16.msra.mxu0 %v2441
    %3660 = vmatprep.subr.bf16.mxu0 %v2434
    %3661 = vmatpush2.bf16.msra.mxu0 %v2433
    %3662 = vmatprep.mubr.bf16.mxu0 %v688
    %3663 = vmatmul.mubr.bf16.gmra.mxu0 %v687
    %v3664 = vpop.f32.mrf.mxu0
    %v3665 = vadd.f32 %v3624, %v3664
    %v3666 = vpop.f32.mrf.mxu0
    %v3667 = vadd.f32 %v3626, %v3666
    %v3668 = vpop.f32.mrf.mxu0
    %v3669 = vpop.f32.mrf.mxu0
    %3670 = vdwg.mxu0
    %3671 = vmatprep.subr.bf16.mxu0 %v2554
    %3672 = vmatpush1.bf16.msra.mxu0 %v2553
    %3673 = vmatprep.subr.bf16.mxu0 %v2546
    %3674 = vmatpush1.bf16.msra.mxu0 %v2545
    %3675 = vmatprep.subr.bf16.mxu0 %v2538
    %3676 = vmatpush1.bf16.msra.mxu0 %v2537
    %3677 = vmatprep.subr.bf16.mxu0 %v2530
    %3678 = vmatpush1.bf16.msra.mxu0 %v2529
    %3679 = vmatprep.subr.bf16.mxu0 %v2522
    %3680 = vmatpush1.bf16.msra.mxu0 %v2521
    %3681 = vmatprep.subr.bf16.mxu0 %v2514
    %3682 = vmatpush1.bf16.msra.mxu0 %v2513
    %3683 = vmatprep.subr.bf16.mxu0 %v2506
    %3684 = vmatpush1.bf16.msra.mxu0 %v2505
    %3685 = vmatprep.subr.bf16.mxu0 %v2498
    %3686 = vmatpush1.bf16.msra.mxu0 %v2497
    %3687 = vmatprep.subr.bf16.mxu0 %v2618
    %3688 = vmatpush2.bf16.msra.mxu0 %v2617
    %3689 = vmatprep.subr.bf16.mxu0 %v2610
    %3690 = vmatpush2.bf16.msra.mxu0 %v2609
    %3691 = vmatprep.subr.bf16.mxu0 %v2602
    %3692 = vmatpush2.bf16.msra.mxu0 %v2601
    %3693 = vmatprep.subr.bf16.mxu0 %v2594
    %3694 = vmatpush2.bf16.msra.mxu0 %v2593
    %3695 = vmatprep.subr.bf16.mxu0 %v2586
    %3696 = vmatpush2.bf16.msra.mxu0 %v2585
    %3697 = vmatprep.subr.bf16.mxu0 %v2578
    %3698 = vmatpush2.bf16.msra.mxu0 %v2577
    %3699 = vmatprep.subr.bf16.mxu0 %v2570
    %3700 = vmatpush2.bf16.msra.mxu0 %v2569
    %3701 = vmatprep.subr.bf16.mxu0 %v2562
    %3702 = vmatpush2.bf16.msra.mxu0 %v2561
    %3703 = vmatprep.mubr.bf16.mxu0 %v690
    %3704 = vmatmul.mubr.bf16.gmra.mxu0 %v689
    %v3705 = vpop.f32.mrf.mxu0
    %v3706 = vadd.f32 %v3665, %v3705
    %v3707 = vpop.f32.mrf.mxu0
    %v3708 = vadd.f32 %v3667, %v3707
    %v3709 = vpop.f32.mrf.mxu0
    %v3710 = vpop.f32.mrf.mxu0
    %3711 = vdwg.mxu0
    %3712 = vmatprep.subr.bf16.mxu0 %v2682
    %3713 = vmatpush1.bf16.msra.mxu0 %v2681
    %3714 = vmatprep.subr.bf16.mxu0 %v2674
    %3715 = vmatpush1.bf16.msra.mxu0 %v2673
    %3716 = vmatprep.subr.bf16.mxu0 %v2666
    %3717 = vmatpush1.bf16.msra.mxu0 %v2665
    %3718 = vmatprep.subr.bf16.mxu0 %v2658
    %3719 = vmatpush1.bf16.msra.mxu0 %v2657
    %3720 = vmatprep.subr.bf16.mxu0 %v2650
    %3721 = vmatpush1.bf16.msra.mxu0 %v2649
    %3722 = vmatprep.subr.bf16.mxu0 %v2642
    %3723 = vmatpush1.bf16.msra.mxu0 %v2641
    %3724 = vmatprep.subr.bf16.mxu0 %v2634
    %3725 = vmatpush1.bf16.msra.mxu0 %v2633
    %3726 = vmatprep.subr.bf16.mxu0 %v2626
    %3727 = vmatpush1.bf16.msra.mxu0 %v2625
    %3728 = vmatprep.subr.bf16.mxu0 %v2746
    %3729 = vmatpush2.bf16.msra.mxu0 %v2745
    %3730 = vmatprep.subr.bf16.mxu0 %v2738
    %3731 = vmatpush2.bf16.msra.mxu0 %v2737
    %3732 = vmatprep.subr.bf16.mxu0 %v2730
    %3733 = vmatpush2.bf16.msra.mxu0 %v2729
    %3734 = vmatprep.subr.bf16.mxu0 %v2722
    %3735 = vmatpush2.bf16.msra.mxu0 %v2721
    %3736 = vmatprep.subr.bf16.mxu0 %v2714
    %3737 = vmatpush2.bf16.msra.mxu0 %v2713
    %3738 = vmatprep.subr.bf16.mxu0 %v2706
    %3739 = vmatpush2.bf16.msra.mxu0 %v2705
    %3740 = vmatprep.subr.bf16.mxu0 %v2698
    %3741 = vmatpush2.bf16.msra.mxu0 %v2697
    %3742 = vmatprep.subr.bf16.mxu0 %v2690
    %3743 = vmatpush2.bf16.msra.mxu0 %v2689
    %3744 = vmatprep.mubr.bf16.mxu0 %v692
    %3745 = vmatmul.mubr.bf16.gmra.mxu0 %v691
    %v3746 = vpop.f32.mrf.mxu0
    %v3747 = vadd.f32 %v3706, %v3746
    %v3748 = vpop.f32.mrf.mxu0
    %v3749 = vadd.f32 %v3708, %v3748
    %v3750 = vpop.f32.mrf.mxu0
    %v3751 = vpop.f32.mrf.mxu0
    %3752 = vdwg.mxu0
    %3753 = vmatprep.subr.bf16.mxu0 %v2300
    %3754 = vmatpush1.bf16.msra.mxu0 %v2299
    %3755 = vmatprep.subr.bf16.mxu0 %v2292
    %3756 = vmatpush1.bf16.msra.mxu0 %v2291
    %3757 = vmatprep.subr.bf16.mxu0 %v2284
    %3758 = vmatpush1.bf16.msra.mxu0 %v2283
    %3759 = vmatprep.subr.bf16.mxu0 %v2276
    %3760 = vmatpush1.bf16.msra.mxu0 %v2275
    %3761 = vmatprep.subr.bf16.mxu0 %v2268
    %3762 = vmatpush1.bf16.msra.mxu0 %v2267
    %3763 = vmatprep.subr.bf16.mxu0 %v2260
    %3764 = vmatpush1.bf16.msra.mxu0 %v2259
    %3765 = vmatprep.subr.bf16.mxu0 %v2252
    %3766 = vmatpush1.bf16.msra.mxu0 %v2251
    %3767 = vmatprep.subr.bf16.mxu0 %v2244
    %3768 = vmatpush1.bf16.msra.mxu0 %v2243
    %3769 = vmatprep.subr.bf16.mxu0 %v2364
    %3770 = vmatpush2.bf16.msra.mxu0 %v2363
    %3771 = vmatprep.subr.bf16.mxu0 %v2356
    %3772 = vmatpush2.bf16.msra.mxu0 %v2355
    %3773 = vmatprep.subr.bf16.mxu0 %v2348
    %3774 = vmatpush2.bf16.msra.mxu0 %v2347
    %3775 = vmatprep.subr.bf16.mxu0 %v2340
    %3776 = vmatpush2.bf16.msra.mxu0 %v2339
    %3777 = vmatprep.subr.bf16.mxu0 %v2332
    %3778 = vmatpush2.bf16.msra.mxu0 %v2331
    %3779 = vmatprep.subr.bf16.mxu0 %v2324
    %3780 = vmatpush2.bf16.msra.mxu0 %v2323
    %3781 = vmatprep.subr.bf16.mxu0 %v2316
    %3782 = vmatpush2.bf16.msra.mxu0 %v2315
    %3783 = vmatprep.subr.bf16.mxu0 %v2308
    %3784 = vmatpush2.bf16.msra.mxu0 %v2307
    %3785 = vmatprep.mubr.bf16.mxu0 %v686
    %3786 = vmatmul.mubr.bf16.gmra.mxu0 %v685
    %v3787 = vpop.f32.mrf.mxu0
    %v3788 = vadd.f32 %v660, %v3787
    %v3789 = vpop.f32.mrf.mxu0
    %v3790 = vadd.f32 %v664, %v3789
    %v3791 = vpop.f32.mrf.mxu0
    %v3792 = vpop.f32.mrf.mxu0
    %3793 = vdwg.mxu0
    %3794 = vmatprep.subr.bf16.mxu0 %v2428
    %3795 = vmatpush1.bf16.msra.mxu0 %v2427
    %3796 = vmatprep.subr.bf16.mxu0 %v2420
    %3797 = vmatpush1.bf16.msra.mxu0 %v2419
    %3798 = vmatprep.subr.bf16.mxu0 %v2412
    %3799 = vmatpush1.bf16.msra.mxu0 %v2411
    %3800 = vmatprep.subr.bf16.mxu0 %v2404
    %3801 = vmatpush1.bf16.msra.mxu0 %v2403
    %3802 = vmatprep.subr.bf16.mxu0 %v2396
    %3803 = vmatpush1.bf16.msra.mxu0 %v2395
    %3804 = vmatprep.subr.bf16.mxu0 %v2388
    %3805 = vmatpush1.bf16.msra.mxu0 %v2387
    %3806 = vmatprep.subr.bf16.mxu0 %v2380
    %3807 = vmatpush1.bf16.msra.mxu0 %v2379
    %3808 = vmatprep.subr.bf16.mxu0 %v2372
    %3809 = vmatpush1.bf16.msra.mxu0 %v2371
    %3810 = vmatprep.subr.bf16.mxu0 %v2492
    %3811 = vmatpush2.bf16.msra.mxu0 %v2491
    %3812 = vmatprep.subr.bf16.mxu0 %v2484
    %3813 = vmatpush2.bf16.msra.mxu0 %v2483
    %3814 = vmatprep.subr.bf16.mxu0 %v2476
    %3815 = vmatpush2.bf16.msra.mxu0 %v2475
    %3816 = vmatprep.subr.bf16.mxu0 %v2468
    %3817 = vmatpush2.bf16.msra.mxu0 %v2467
    %3818 = vmatprep.subr.bf16.mxu0 %v2460
    %3819 = vmatpush2.bf16.msra.mxu0 %v2459
    %3820 = vmatprep.subr.bf16.mxu0 %v2452
    %3821 = vmatpush2.bf16.msra.mxu0 %v2451
    %3822 = vmatprep.subr.bf16.mxu0 %v2444
    %3823 = vmatpush2.bf16.msra.mxu0 %v2443
    %3824 = vmatprep.subr.bf16.mxu0 %v2436
    %3825 = vmatpush2.bf16.msra.mxu0 %v2435
    %3826 = vmatprep.mubr.bf16.mxu0 %v688
    %3827 = vmatmul.mubr.bf16.gmra.mxu0 %v687
    %v3828 = vpop.f32.mrf.mxu0
    %v3829 = vadd.f32 %v3788, %v3828
    %v3830 = vpop.f32.mrf.mxu0
    %v3831 = vadd.f32 %v3790, %v3830
    %v3832 = vpop.f32.mrf.mxu0
    %v3833 = vpop.f32.mrf.mxu0
    %3834 = vdwg.mxu0
    %3835 = vmatprep.subr.bf16.mxu0 %v2556
    %3836 = vmatpush1.bf16.msra.mxu0 %v2555
    %3837 = vmatprep.subr.bf16.mxu0 %v2548
    %3838 = vmatpush1.bf16.msra.mxu0 %v2547
    %3839 = vmatprep.subr.bf16.mxu0 %v2540
    %3840 = vmatpush1.bf16.msra.mxu0 %v2539
    %3841 = vmatprep.subr.bf16.mxu0 %v2532
    %3842 = vmatpush1.bf16.msra.mxu0 %v2531
    %3843 = vmatprep.subr.bf16.mxu0 %v2524
    %3844 = vmatpush1.bf16.msra.mxu0 %v2523
    %3845 = vmatprep.subr.bf16.mxu0 %v2516
    %3846 = vmatpush1.bf16.msra.mxu0 %v2515
    %3847 = vmatprep.subr.bf16.mxu0 %v2508
    %3848 = vmatpush1.bf16.msra.mxu0 %v2507
    %3849 = vmatprep.subr.bf16.mxu0 %v2500
    %3850 = vmatpush1.bf16.msra.mxu0 %v2499
    %3851 = vmatprep.subr.bf16.mxu0 %v2620
    %3852 = vmatpush2.bf16.msra.mxu0 %v2619
    %3853 = vmatprep.subr.bf16.mxu0 %v2612
    %3854 = vmatpush2.bf16.msra.mxu0 %v2611
    %3855 = vmatprep.subr.bf16.mxu0 %v2604
    %3856 = vmatpush2.bf16.msra.mxu0 %v2603
    %3857 = vmatprep.subr.bf16.mxu0 %v2596
    %3858 = vmatpush2.bf16.msra.mxu0 %v2595
    %3859 = vmatprep.subr.bf16.mxu0 %v2588
    %3860 = vmatpush2.bf16.msra.mxu0 %v2587
    %3861 = vmatprep.subr.bf16.mxu0 %v2580
    %3862 = vmatpush2.bf16.msra.mxu0 %v2579
    %3863 = vmatprep.subr.bf16.mxu0 %v2572
    %3864 = vmatpush2.bf16.msra.mxu0 %v2571
    %3865 = vmatprep.subr.bf16.mxu0 %v2564
    %3866 = vmatpush2.bf16.msra.mxu0 %v2563
    %3867 = vmatprep.mubr.bf16.mxu0 %v690
    %3868 = vmatmul.mubr.bf16.gmra.mxu0 %v689
    %v3869 = vpop.f32.mrf.mxu0
    %v3870 = vadd.f32 %v3829, %v3869
    %v3871 = vpop.f32.mrf.mxu0
    %v3872 = vadd.f32 %v3831, %v3871
    %v3873 = vpop.f32.mrf.mxu0
    %v3874 = vpop.f32.mrf.mxu0
    %3875 = vdwg.mxu0
    %3876 = vmatprep.subr.bf16.mxu0 %v2684
    %3877 = vmatpush1.bf16.msra.mxu0 %v2683
    %3878 = vmatprep.subr.bf16.mxu0 %v2676
    %3879 = vmatpush1.bf16.msra.mxu0 %v2675
    %3880 = vmatprep.subr.bf16.mxu0 %v2668
    %3881 = vmatpush1.bf16.msra.mxu0 %v2667
    %3882 = vmatprep.subr.bf16.mxu0 %v2660
    %3883 = vmatpush1.bf16.msra.mxu0 %v2659
    %3884 = vmatprep.subr.bf16.mxu0 %v2652
    %3885 = vmatpush1.bf16.msra.mxu0 %v2651
    %3886 = vmatprep.subr.bf16.mxu0 %v2644
    %3887 = vmatpush1.bf16.msra.mxu0 %v2643
    %3888 = vmatprep.subr.bf16.mxu0 %v2636
    %3889 = vmatpush1.bf16.msra.mxu0 %v2635
    %3890 = vmatprep.subr.bf16.mxu0 %v2628
    %3891 = vmatpush1.bf16.msra.mxu0 %v2627
    %3892 = vmatprep.subr.bf16.mxu0 %v2748
    %3893 = vmatpush2.bf16.msra.mxu0 %v2747
    %3894 = vmatprep.subr.bf16.mxu0 %v2740
    %3895 = vmatpush2.bf16.msra.mxu0 %v2739
    %3896 = vmatprep.subr.bf16.mxu0 %v2732
    %3897 = vmatpush2.bf16.msra.mxu0 %v2731
    %3898 = vmatprep.subr.bf16.mxu0 %v2724
    %3899 = vmatpush2.bf16.msra.mxu0 %v2723
    %3900 = vmatprep.subr.bf16.mxu0 %v2716
    %3901 = vmatpush2.bf16.msra.mxu0 %v2715
    %3902 = vmatprep.subr.bf16.mxu0 %v2708
    %3903 = vmatpush2.bf16.msra.mxu0 %v2707
    %3904 = vmatprep.subr.bf16.mxu0 %v2700
    %3905 = vmatpush2.bf16.msra.mxu0 %v2699
    %3906 = vmatprep.subr.bf16.mxu0 %v2692
    %3907 = vmatpush2.bf16.msra.mxu0 %v2691
    %3908 = vmatprep.mubr.bf16.mxu0 %v692
    %3909 = vmatmul.mubr.bf16.gmra.mxu0 %v691
    %v3910 = vpop.f32.mrf.mxu0
    %v3911 = vadd.f32 %v3870, %v3910
    %v3912 = vpop.f32.mrf.mxu0
    %v3913 = vadd.f32 %v3872, %v3912
    %v3914 = vpop.f32.mrf.mxu0
    %v3915 = vpop.f32.mrf.mxu0
    %3916 = vdwg.mxu0
    %v3917 = vmax.f32 %v3419, 0.0
    %v3918 = vmax.f32 %v3421, 0.0
    %v3919 = vmax.f32 %v3583, 0.0
    %v3920 = vmax.f32 %v3585, 0.0
    %v3921 = vmax.f32 %v3747, 0.0
    %v3922 = vmax.f32 %v3749, 0.0
    %v3923 = vmax.f32 %v3911, 0.0
    %v3924 = vmax.f32 %v3913, 0.0
    %v3925 = vpack.c.bf16 %v3917, %v3917
    %v3926 = vpack.c.bf16 %v3918, %v3918
    %v3927 = vpack.c.bf16 %v3919, %v3919
    %v3928 = vpack.c.bf16 %v3920, %v3920
    %v3929 = vpack.c.bf16 %v3921, %v3921
    %v3930 = vpack.c.bf16 %v3922, %v3922
    %v3931 = vpack.c.bf16 %v3923, %v3923
    %v3932 = vpack.c.bf16 %v3924, %v3924
    %v3933 = vld [vmem:[#allocation8] sm:$0xff]
    %v3934 = vld [vmem:[#allocation8 + $0x8] sm:$0xff]
    %v3935 = vld [vmem:[#allocation8 + $0x10] sm:$0xff]
    %v3936 = vld [vmem:[#allocation8 + $0x18] sm:$0xff]
    %v3937 = vld [vmem:[#allocation8 + $0x20] sm:$0xff]
    %v3938 = vld [vmem:[#allocation8 + $0x28] sm:$0xff]
    %v3939 = vld [vmem:[#allocation8 + $0x30] sm:$0xff]
    %v3940 = vld [vmem:[#allocation8 + $0x38] sm:$0xff]
    %v3941 = vld [vmem:[#allocation8 + $0x40] sm:$0xff]
    %v3942 = vld [vmem:[#allocation8 + $0x48] sm:$0xff]
    %v3943 = vld [vmem:[#allocation8 + $0x50] sm:$0xff]
    %v3944 = vld [vmem:[#allocation8 + $0x58] sm:$0xff]
    %v3945 = vld [vmem:[#allocation8 + $0x60] sm:$0xff]
    %v3946 = vld [vmem:[#allocation8 + $0x68] sm:$0xff]
    %v3947 = vld [vmem:[#allocation8 + $0x70] sm:$0xff]
    %v3948 = vld [vmem:[#allocation8 + $0x78] sm:$0xff]
    %v3949 = vld [vmem:[#allocation8 + $0x80] sm:$0xff]
    %v3950 = vld [vmem:[#allocation8 + $0x88] sm:$0xff]
    %v3951 = vld [vmem:[#allocation8 + $0x90] sm:$0xff]
    %v3952 = vld [vmem:[#allocation8 + $0x98] sm:$0xff]
    %v3953 = vld [vmem:[#allocation8 + $0xa0] sm:$0xff]
    %v3954 = vld [vmem:[#allocation8 + $0xa8] sm:$0xff]
    %v3955 = vld [vmem:[#allocation8 + $0xb0] sm:$0xff]
    %v3956 = vld [vmem:[#allocation8 + $0xb8] sm:$0xff]
    %v3957 = vld [vmem:[#allocation8 + $0xc0] sm:$0xff]
    %v3958 = vld [vmem:[#allocation8 + $0xc8] sm:$0xff]
    %v3959 = vld [vmem:[#allocation8 + $0xd0] sm:$0xff]
    %v3960 = vld [vmem:[#allocation8 + $0xd8] sm:$0xff]
    %v3961 = vld [vmem:[#allocation8 + $0xe0] sm:$0xff]
    %v3962 = vld [vmem:[#allocation8 + $0xe8] sm:$0xff]
    %v3963 = vld [vmem:[#allocation8 + $0xf0] sm:$0xff]
    %v3964 = vld [vmem:[#allocation8 + $0xf8] sm:$0xff]
    %v3965 = vld [vmem:[#allocation8 + $0x100] sm:$0xff]
    %v3966 = vld [vmem:[#allocation8 + $0x108] sm:$0xff]
    %v3967 = vld [vmem:[#allocation8 + $0x110] sm:$0xff]
    %v3968 = vld [vmem:[#allocation8 + $0x118] sm:$0xff]
    %v3969 = vld [vmem:[#allocation8 + $0x120] sm:$0xff]
    %v3970 = vld [vmem:[#allocation8 + $0x128] sm:$0xff]
    %v3971 = vld [vmem:[#allocation8 + $0x130] sm:$0xff]
    %v3972 = vld [vmem:[#allocation8 + $0x138] sm:$0xff]
    %v3973 = vld [vmem:[#allocation8 + $0x140] sm:$0xff]
    %v3974 = vld [vmem:[#allocation8 + $0x148] sm:$0xff]
    %v3975 = vld [vmem:[#allocation8 + $0x150] sm:$0xff]
    %v3976 = vld [vmem:[#allocation8 + $0x158] sm:$0xff]
    %v3977 = vld [vmem:[#allocation8 + $0x160] sm:$0xff]
    %v3978 = vld [vmem:[#allocation8 + $0x168] sm:$0xff]
    %v3979 = vld [vmem:[#allocation8 + $0x170] sm:$0xff]
    %v3980 = vld [vmem:[#allocation8 + $0x178] sm:$0xff]
    %v3981 = vld [vmem:[#allocation8 + $0x180] sm:$0xff]
    %v3982 = vld [vmem:[#allocation8 + $0x188] sm:$0xff]
    %v3983 = vld [vmem:[#allocation8 + $0x190] sm:$0xff]
    %v3984 = vld [vmem:[#allocation8 + $0x198] sm:$0xff]
    %v3985 = vld [vmem:[#allocation8 + $0x1a0] sm:$0xff]
    %v3986 = vld [vmem:[#allocation8 + $0x1a8] sm:$0xff]
    %v3987 = vld [vmem:[#allocation8 + $0x1b0] sm:$0xff]
    %v3988 = vld [vmem:[#allocation8 + $0x1b8] sm:$0xff]
    %v3989 = vld [vmem:[#allocation8 + $0x1c0] sm:$0xff]
    %v3990 = vld [vmem:[#allocation8 + $0x1c8] sm:$0xff]
    %v3991 = vld [vmem:[#allocation8 + $0x1d0] sm:$0xff]
    %v3992 = vld [vmem:[#allocation8 + $0x1d8] sm:$0xff]
    %v3993 = vld [vmem:[#allocation8 + $0x1e0] sm:$0xff]
    %v3994 = vld [vmem:[#allocation8 + $0x1e8] sm:$0xff]
    %v3995 = vld [vmem:[#allocation8 + $0x1f0] sm:$0xff]
    %v3996 = vld [vmem:[#allocation8 + $0x1f8] sm:$0xff]
    %v3997 = vld [vmem:[#allocation8 + $0x200] sm:$0xff]
    %v3998 = vld [vmem:[#allocation8 + $0x208] sm:$0xff]
    %v3999 = vld [vmem:[#allocation8 + $0x210] sm:$0xff]
    %v4000 = vld [vmem:[#allocation8 + $0x218] sm:$0xff]
    %v4001 = vld [vmem:[#allocation8 + $0x220] sm:$0xff]
    %v4002 = vld [vmem:[#allocation8 + $0x228] sm:$0xff]
    %v4003 = vld [vmem:[#allocation8 + $0x230] sm:$0xff]
    %v4004 = vld [vmem:[#allocation8 + $0x238] sm:$0xff]
    %v4005 = vld [vmem:[#allocation8 + $0x240] sm:$0xff]
    %v4006 = vld [vmem:[#allocation8 + $0x248] sm:$0xff]
    %v4007 = vld [vmem:[#allocation8 + $0x250] sm:$0xff]
    %v4008 = vld [vmem:[#allocation8 + $0x258] sm:$0xff]
    %v4009 = vld [vmem:[#allocation8 + $0x260] sm:$0xff]
    %v4010 = vld [vmem:[#allocation8 + $0x268] sm:$0xff]
    %v4011 = vld [vmem:[#allocation8 + $0x270] sm:$0xff]
    %v4012 = vld [vmem:[#allocation8 + $0x278] sm:$0xff]
    %v4013 = vld [vmem:[#allocation8 + $0x280] sm:$0xff]
    %v4014 = vld [vmem:[#allocation8 + $0x288] sm:$0xff]
    %v4015 = vld [vmem:[#allocation8 + $0x290] sm:$0xff]
    %v4016 = vld [vmem:[#allocation8 + $0x298] sm:$0xff]
    %v4017 = vld [vmem:[#allocation8 + $0x2a0] sm:$0xff]
    %v4018 = vld [vmem:[#allocation8 + $0x2a8] sm:$0xff]
    %v4019 = vld [vmem:[#allocation8 + $0x2b0] sm:$0xff]
    %v4020 = vld [vmem:[#allocation8 + $0x2b8] sm:$0xff]
    %v4021 = vld [vmem:[#allocation8 + $0x2c0] sm:$0xff]
    %v4022 = vld [vmem:[#allocation8 + $0x2c8] sm:$0xff]
    %v4023 = vld [vmem:[#allocation8 + $0x2d0] sm:$0xff]
    %v4024 = vld [vmem:[#allocation8 + $0x2d8] sm:$0xff]
    %v4025 = vld [vmem:[#allocation8 + $0x2e0] sm:$0xff]
    %v4026 = vld [vmem:[#allocation8 + $0x2e8] sm:$0xff]
    %v4027 = vld [vmem:[#allocation8 + $0x2f0] sm:$0xff]
    %v4028 = vld [vmem:[#allocation8 + $0x2f8] sm:$0xff]
    %v4029 = vld [vmem:[#allocation8 + $0x300] sm:$0xff]
    %v4030 = vld [vmem:[#allocation8 + $0x308] sm:$0xff]
    %v4031 = vld [vmem:[#allocation8 + $0x310] sm:$0xff]
    %v4032 = vld [vmem:[#allocation8 + $0x318] sm:$0xff]
    %v4033 = vld [vmem:[#allocation8 + $0x320] sm:$0xff]
    %v4034 = vld [vmem:[#allocation8 + $0x328] sm:$0xff]
    %v4035 = vld [vmem:[#allocation8 + $0x330] sm:$0xff]
    %v4036 = vld [vmem:[#allocation8 + $0x338] sm:$0xff]
    %v4037 = vld [vmem:[#allocation8 + $0x340] sm:$0xff]
    %v4038 = vld [vmem:[#allocation8 + $0x348] sm:$0xff]
    %v4039 = vld [vmem:[#allocation8 + $0x350] sm:$0xff]
    %v4040 = vld [vmem:[#allocation8 + $0x358] sm:$0xff]
    %v4041 = vld [vmem:[#allocation8 + $0x360] sm:$0xff]
    %v4042 = vld [vmem:[#allocation8 + $0x368] sm:$0xff]
    %v4043 = vld [vmem:[#allocation8 + $0x370] sm:$0xff]
    %v4044 = vld [vmem:[#allocation8 + $0x378] sm:$0xff]
    %v4045 = vld [vmem:[#allocation8 + $0x380] sm:$0xff]
    %v4046 = vld [vmem:[#allocation8 + $0x388] sm:$0xff]
    %v4047 = vld [vmem:[#allocation8 + $0x390] sm:$0xff]
    %v4048 = vld [vmem:[#allocation8 + $0x398] sm:$0xff]
    %v4049 = vld [vmem:[#allocation8 + $0x3a0] sm:$0xff]
    %v4050 = vld [vmem:[#allocation8 + $0x3a8] sm:$0xff]
    %v4051 = vld [vmem:[#allocation8 + $0x3b0] sm:$0xff]
    %v4052 = vld [vmem:[#allocation8 + $0x3b8] sm:$0xff]
    %v4053 = vld [vmem:[#allocation8 + $0x3c0] sm:$0xff]
    %v4054 = vld [vmem:[#allocation8 + $0x3c8] sm:$0xff]
    %v4055 = vld [vmem:[#allocation8 + $0x3d0] sm:$0xff]
    %v4056 = vld [vmem:[#allocation8 + $0x3d8] sm:$0xff]
    %v4057 = vld [vmem:[#allocation8 + $0x3e0] sm:$0xff]
    %v4058 = vld [vmem:[#allocation8 + $0x3e8] sm:$0xff]
    %v4059 = vld [vmem:[#allocation8 + $0x3f0] sm:$0xff]
    %v4060 = vld [vmem:[#allocation8 + $0x3f8] sm:$0xff]
    %v4061 = vld [vmem:[#allocation8 + $0x400] sm:$0xff]
    %v4062 = vld [vmem:[#allocation8 + $0x408] sm:$0xff]
    %v4063 = vld [vmem:[#allocation8 + $0x410] sm:$0xff]
    %v4064 = vld [vmem:[#allocation8 + $0x418] sm:$0xff]
    %v4065 = vld [vmem:[#allocation8 + $0x420] sm:$0xff]
    %v4066 = vld [vmem:[#allocation8 + $0x428] sm:$0xff]
    %v4067 = vld [vmem:[#allocation8 + $0x430] sm:$0xff]
    %v4068 = vld [vmem:[#allocation8 + $0x438] sm:$0xff]
    %v4069 = vld [vmem:[#allocation8 + $0x440] sm:$0xff]
    %v4070 = vld [vmem:[#allocation8 + $0x448] sm:$0xff]
    %v4071 = vld [vmem:[#allocation8 + $0x450] sm:$0xff]
    %v4072 = vld [vmem:[#allocation8 + $0x458] sm:$0xff]
    %v4073 = vld [vmem:[#allocation8 + $0x460] sm:$0xff]
    %v4074 = vld [vmem:[#allocation8 + $0x468] sm:$0xff]
    %v4075 = vld [vmem:[#allocation8 + $0x470] sm:$0xff]
    %v4076 = vld [vmem:[#allocation8 + $0x478] sm:$0xff]
    %v4077 = vld [vmem:[#allocation8 + $0x480] sm:$0xff]
    %v4078 = vld [vmem:[#allocation8 + $0x488] sm:$0xff]
    %v4079 = vld [vmem:[#allocation8 + $0x490] sm:$0xff]
    %v4080 = vld [vmem:[#allocation8 + $0x498] sm:$0xff]
    %v4081 = vld [vmem:[#allocation8 + $0x4a0] sm:$0xff]
    %v4082 = vld [vmem:[#allocation8 + $0x4a8] sm:$0xff]
    %v4083 = vld [vmem:[#allocation8 + $0x4b0] sm:$0xff]
    %v4084 = vld [vmem:[#allocation8 + $0x4b8] sm:$0xff]
    %v4085 = vld [vmem:[#allocation8 + $0x4c0] sm:$0xff]
    %v4086 = vld [vmem:[#allocation8 + $0x4c8] sm:$0xff]
    %v4087 = vld [vmem:[#allocation8 + $0x4d0] sm:$0xff]
    %v4088 = vld [vmem:[#allocation8 + $0x4d8] sm:$0xff]
    %v4089 = vld [vmem:[#allocation8 + $0x4e0] sm:$0xff]
    %v4090 = vld [vmem:[#allocation8 + $0x4e8] sm:$0xff]
    %v4091 = vld [vmem:[#allocation8 + $0x4f0] sm:$0xff]
    %v4092 = vld [vmem:[#allocation8 + $0x4f8] sm:$0xff]
    %v4093 = vld [vmem:[#allocation8 + $0x500] sm:$0xff]
    %v4094 = vld [vmem:[#allocation8 + $0x508] sm:$0xff]
    %v4095 = vld [vmem:[#allocation8 + $0x510] sm:$0xff]
    %v4096 = vld [vmem:[#allocation8 + $0x518] sm:$0xff]
    %v4097 = vld [vmem:[#allocation8 + $0x520] sm:$0xff]
    %v4098 = vld [vmem:[#allocation8 + $0x528] sm:$0xff]
    %v4099 = vld [vmem:[#allocation8 + $0x530] sm:$0xff]
    %v4100 = vld [vmem:[#allocation8 + $0x538] sm:$0xff]
    %v4101 = vld [vmem:[#allocation8 + $0x540] sm:$0xff]
    %v4102 = vld [vmem:[#allocation8 + $0x548] sm:$0xff]
    %v4103 = vld [vmem:[#allocation8 + $0x550] sm:$0xff]
    %v4104 = vld [vmem:[#allocation8 + $0x558] sm:$0xff]
    %v4105 = vld [vmem:[#allocation8 + $0x560] sm:$0xff]
    %v4106 = vld [vmem:[#allocation8 + $0x568] sm:$0xff]
    %v4107 = vld [vmem:[#allocation8 + $0x570] sm:$0xff]
    %v4108 = vld [vmem:[#allocation8 + $0x578] sm:$0xff]
    %v4109 = vld [vmem:[#allocation8 + $0x580] sm:$0xff]
    %v4110 = vld [vmem:[#allocation8 + $0x588] sm:$0xff]
    %v4111 = vld [vmem:[#allocation8 + $0x590] sm:$0xff]
    %v4112 = vld [vmem:[#allocation8 + $0x598] sm:$0xff]
    %v4113 = vld [vmem:[#allocation8 + $0x5a0] sm:$0xff]
    %v4114 = vld [vmem:[#allocation8 + $0x5a8] sm:$0xff]
    %v4115 = vld [vmem:[#allocation8 + $0x5b0] sm:$0xff]
    %v4116 = vld [vmem:[#allocation8 + $0x5b8] sm:$0xff]
    %v4117 = vld [vmem:[#allocation8 + $0x5c0] sm:$0xff]
    %v4118 = vld [vmem:[#allocation8 + $0x5c8] sm:$0xff]
    %v4119 = vld [vmem:[#allocation8 + $0x5d0] sm:$0xff]
    %v4120 = vld [vmem:[#allocation8 + $0x5d8] sm:$0xff]
    %v4121 = vld [vmem:[#allocation8 + $0x5e0] sm:$0xff]
    %v4122 = vld [vmem:[#allocation8 + $0x5e8] sm:$0xff]
    %v4123 = vld [vmem:[#allocation8 + $0x5f0] sm:$0xff]
    %v4124 = vld [vmem:[#allocation8 + $0x5f8] sm:$0xff]
    %v4125 = vld [vmem:[#allocation8 + $0x600] sm:$0xff]
    %v4126 = vld [vmem:[#allocation8 + $0x608] sm:$0xff]
    %v4127 = vld [vmem:[#allocation8 + $0x610] sm:$0xff]
    %v4128 = vld [vmem:[#allocation8 + $0x618] sm:$0xff]
    %v4129 = vld [vmem:[#allocation8 + $0x620] sm:$0xff]
    %v4130 = vld [vmem:[#allocation8 + $0x628] sm:$0xff]
    %v4131 = vld [vmem:[#allocation8 + $0x630] sm:$0xff]
    %v4132 = vld [vmem:[#allocation8 + $0x638] sm:$0xff]
    %v4133 = vld [vmem:[#allocation8 + $0x640] sm:$0xff]
    %v4134 = vld [vmem:[#allocation8 + $0x648] sm:$0xff]
    %v4135 = vld [vmem:[#allocation8 + $0x650] sm:$0xff]
    %v4136 = vld [vmem:[#allocation8 + $0x658] sm:$0xff]
    %v4137 = vld [vmem:[#allocation8 + $0x660] sm:$0xff]
    %v4138 = vld [vmem:[#allocation8 + $0x668] sm:$0xff]
    %v4139 = vld [vmem:[#allocation8 + $0x670] sm:$0xff]
    %v4140 = vld [vmem:[#allocation8 + $0x678] sm:$0xff]
    %v4141 = vld [vmem:[#allocation8 + $0x680] sm:$0xff]
    %v4142 = vld [vmem:[#allocation8 + $0x688] sm:$0xff]
    %v4143 = vld [vmem:[#allocation8 + $0x690] sm:$0xff]
    %v4144 = vld [vmem:[#allocation8 + $0x698] sm:$0xff]
    %v4145 = vld [vmem:[#allocation8 + $0x6a0] sm:$0xff]
    %v4146 = vld [vmem:[#allocation8 + $0x6a8] sm:$0xff]
    %v4147 = vld [vmem:[#allocation8 + $0x6b0] sm:$0xff]
    %v4148 = vld [vmem:[#allocation8 + $0x6b8] sm:$0xff]
    %v4149 = vld [vmem:[#allocation8 + $0x6c0] sm:$0xff]
    %v4150 = vld [vmem:[#allocation8 + $0x6c8] sm:$0xff]
    %v4151 = vld [vmem:[#allocation8 + $0x6d0] sm:$0xff]
    %v4152 = vld [vmem:[#allocation8 + $0x6d8] sm:$0xff]
    %v4153 = vld [vmem:[#allocation8 + $0x6e0] sm:$0xff]
    %v4154 = vld [vmem:[#allocation8 + $0x6e8] sm:$0xff]
    %v4155 = vld [vmem:[#allocation8 + $0x6f0] sm:$0xff]
    %v4156 = vld [vmem:[#allocation8 + $0x6f8] sm:$0xff]
    %v4157 = vld [vmem:[#allocation8 + $0x700] sm:$0xff]
    %v4158 = vld [vmem:[#allocation8 + $0x708] sm:$0xff]
    %v4159 = vld [vmem:[#allocation8 + $0x710] sm:$0xff]
    %v4160 = vld [vmem:[#allocation8 + $0x718] sm:$0xff]
    %v4161 = vld [vmem:[#allocation8 + $0x720] sm:$0xff]
    %v4162 = vld [vmem:[#allocation8 + $0x728] sm:$0xff]
    %v4163 = vld [vmem:[#allocation8 + $0x730] sm:$0xff]
    %v4164 = vld [vmem:[#allocation8 + $0x738] sm:$0xff]
    %v4165 = vld [vmem:[#allocation8 + $0x740] sm:$0xff]
    %v4166 = vld [vmem:[#allocation8 + $0x748] sm:$0xff]
    %v4167 = vld [vmem:[#allocation8 + $0x750] sm:$0xff]
    %v4168 = vld [vmem:[#allocation8 + $0x758] sm:$0xff]
    %v4169 = vld [vmem:[#allocation8 + $0x760] sm:$0xff]
    %v4170 = vld [vmem:[#allocation8 + $0x768] sm:$0xff]
    %v4171 = vld [vmem:[#allocation8 + $0x770] sm:$0xff]
    %v4172 = vld [vmem:[#allocation8 + $0x778] sm:$0xff]
    %v4173 = vld [vmem:[#allocation8 + $0x780] sm:$0xff]
    %v4174 = vld [vmem:[#allocation8 + $0x788] sm:$0xff]
    %v4175 = vld [vmem:[#allocation8 + $0x790] sm:$0xff]
    %v4176 = vld [vmem:[#allocation8 + $0x798] sm:$0xff]
    %v4177 = vld [vmem:[#allocation8 + $0x7a0] sm:$0xff]
    %v4178 = vld [vmem:[#allocation8 + $0x7a8] sm:$0xff]
    %v4179 = vld [vmem:[#allocation8 + $0x7b0] sm:$0xff]
    %v4180 = vld [vmem:[#allocation8 + $0x7b8] sm:$0xff]
    %v4181 = vld [vmem:[#allocation8 + $0x7c0] sm:$0xff]
    %v4182 = vld [vmem:[#allocation8 + $0x7c8] sm:$0xff]
    %v4183 = vld [vmem:[#allocation8 + $0x7d0] sm:$0xff]
    %v4184 = vld [vmem:[#allocation8 + $0x7d8] sm:$0xff]
    %v4185 = vld [vmem:[#allocation8 + $0x7e0] sm:$0xff]
    %v4186 = vld [vmem:[#allocation8 + $0x7e8] sm:$0xff]
    %v4187 = vld [vmem:[#allocation8 + $0x7f0] sm:$0xff]
    %v4188 = vld [vmem:[#allocation8 + $0x7f8] sm:$0xff]
    %v4189 = vld [vmem:[#allocation10] sm:$0xf]
    %v4191 = vlaneseq
    %v4192 = vshrl.u32 %v4191, 7
    %v4193 = vsub.s32 0, %v4192
    %v4194 = vrot.slane %v4189, %v4193
    %v4195 = vlaneseq
    %v4196 = vshrl.u32 %v4195, 7
    %v4197 = vsub.s32 1, %v4196
    %v4198 = vrot.slane %v4189, %v4197
    %v4199 = vlaneseq
    %v4200 = vshrl.u32 %v4199, 7
    %v4201 = vsub.s32 2, %v4200
    %v4202 = vrot.slane %v4189, %v4201
    %v4203 = vlaneseq
    %v4204 = vshrl.u32 %v4203, 7
    %v4205 = vsub.s32 3, %v4204
    %v4206 = vrot.slane %v4189, %v4205
    %v4467 = vunpack.c.l.b16 %v3933
    %v4468 = vunpack.c.h.b16 %v3933
    %v4469 = vunpack.c.l.b16 %v3934
    %v4470 = vunpack.c.h.b16 %v3934
    %v4471 = vunpack.c.l.b16 %v3935
    %v4472 = vunpack.c.h.b16 %v3935
    %v4473 = vunpack.c.l.b16 %v3936
    %v4474 = vunpack.c.h.b16 %v3936
    %v4475 = vunpack.c.l.b16 %v3937
    %v4476 = vunpack.c.h.b16 %v3937
    %v4477 = vunpack.c.l.b16 %v3938
    %v4478 = vunpack.c.h.b16 %v3938
    %v4479 = vunpack.c.l.b16 %v3939
    %v4480 = vunpack.c.h.b16 %v3939
    %v4481 = vunpack.c.l.b16 %v3940
    %v4482 = vunpack.c.h.b16 %v3940
    %v4483 = vunpack.c.l.b16 %v3941
    %v4484 = vunpack.c.h.b16 %v3941
    %v4485 = vunpack.c.l.b16 %v3942
    %v4486 = vunpack.c.h.b16 %v3942
    %v4487 = vunpack.c.l.b16 %v3943
    %v4488 = vunpack.c.h.b16 %v3943
    %v4489 = vunpack.c.l.b16 %v3944
    %v4490 = vunpack.c.h.b16 %v3944
    %v4491 = vunpack.c.l.b16 %v3945
    %v4492 = vunpack.c.h.b16 %v3945
    %v4493 = vunpack.c.l.b16 %v3946
    %v4494 = vunpack.c.h.b16 %v3946
    %v4495 = vunpack.c.l.b16 %v3947
    %v4496 = vunpack.c.h.b16 %v3947
    %v4497 = vunpack.c.l.b16 %v3948
    %v4498 = vunpack.c.h.b16 %v3948
    %v4499 = vunpack.c.l.b16 %v3949
    %v4500 = vunpack.c.h.b16 %v3949
    %v4501 = vunpack.c.l.b16 %v3950
    %v4502 = vunpack.c.h.b16 %v3950
    %v4503 = vunpack.c.l.b16 %v3951
    %v4504 = vunpack.c.h.b16 %v3951
    %v4505 = vunpack.c.l.b16 %v3952
    %v4506 = vunpack.c.h.b16 %v3952
    %v4507 = vunpack.c.l.b16 %v3953
    %v4508 = vunpack.c.h.b16 %v3953
    %v4509 = vunpack.c.l.b16 %v3954
    %v4510 = vunpack.c.h.b16 %v3954
    %v4511 = vunpack.c.l.b16 %v3955
    %v4512 = vunpack.c.h.b16 %v3955
    %v4513 = vunpack.c.l.b16 %v3956
    %v4514 = vunpack.c.h.b16 %v3956
    %v4515 = vunpack.c.l.b16 %v3957
    %v4516 = vunpack.c.h.b16 %v3957
    %v4517 = vunpack.c.l.b16 %v3958
    %v4518 = vunpack.c.h.b16 %v3958
    %v4519 = vunpack.c.l.b16 %v3959
    %v4520 = vunpack.c.h.b16 %v3959
    %v4521 = vunpack.c.l.b16 %v3960
    %v4522 = vunpack.c.h.b16 %v3960
    %v4523 = vunpack.c.l.b16 %v3961
    %v4524 = vunpack.c.h.b16 %v3961
    %v4525 = vunpack.c.l.b16 %v3962
    %v4526 = vunpack.c.h.b16 %v3962
    %v4527 = vunpack.c.l.b16 %v3963
    %v4528 = vunpack.c.h.b16 %v3963
    %v4529 = vunpack.c.l.b16 %v3964
    %v4530 = vunpack.c.h.b16 %v3964
    %v4531 = vunpack.c.l.b16 %v3965
    %v4532 = vunpack.c.h.b16 %v3965
    %v4533 = vunpack.c.l.b16 %v3966
    %v4534 = vunpack.c.h.b16 %v3966
    %v4535 = vunpack.c.l.b16 %v3967
    %v4536 = vunpack.c.h.b16 %v3967
    %v4537 = vunpack.c.l.b16 %v3968
    %v4538 = vunpack.c.h.b16 %v3968
    %v4539 = vunpack.c.l.b16 %v3969
    %v4540 = vunpack.c.h.b16 %v3969
    %v4541 = vunpack.c.l.b16 %v3970
    %v4542 = vunpack.c.h.b16 %v3970
    %v4543 = vunpack.c.l.b16 %v3971
    %v4544 = vunpack.c.h.b16 %v3971
    %v4545 = vunpack.c.l.b16 %v3972
    %v4546 = vunpack.c.h.b16 %v3972
    %v4547 = vunpack.c.l.b16 %v3973
    %v4548 = vunpack.c.h.b16 %v3973
    %v4549 = vunpack.c.l.b16 %v3974
    %v4550 = vunpack.c.h.b16 %v3974
    %v4551 = vunpack.c.l.b16 %v3975
    %v4552 = vunpack.c.h.b16 %v3975
    %v4553 = vunpack.c.l.b16 %v3976
    %v4554 = vunpack.c.h.b16 %v3976
    %v4555 = vunpack.c.l.b16 %v3977
    %v4556 = vunpack.c.h.b16 %v3977
    %v4557 = vunpack.c.l.b16 %v3978
    %v4558 = vunpack.c.h.b16 %v3978
    %v4559 = vunpack.c.l.b16 %v3979
    %v4560 = vunpack.c.h.b16 %v3979
    %v4561 = vunpack.c.l.b16 %v3980
    %v4562 = vunpack.c.h.b16 %v3980
    %v4563 = vunpack.c.l.b16 %v3981
    %v4564 = vunpack.c.h.b16 %v3981
    %v4565 = vunpack.c.l.b16 %v3982
    %v4566 = vunpack.c.h.b16 %v3982
    %v4567 = vunpack.c.l.b16 %v3983
    %v4568 = vunpack.c.h.b16 %v3983
    %v4569 = vunpack.c.l.b16 %v3984
    %v4570 = vunpack.c.h.b16 %v3984
    %v4571 = vunpack.c.l.b16 %v3985
    %v4572 = vunpack.c.h.b16 %v3985
    %v4573 = vunpack.c.l.b16 %v3986
    %v4574 = vunpack.c.h.b16 %v3986
    %v4575 = vunpack.c.l.b16 %v3987
    %v4576 = vunpack.c.h.b16 %v3987
    %v4577 = vunpack.c.l.b16 %v3988
    %v4578 = vunpack.c.h.b16 %v3988
    %v4579 = vunpack.c.l.b16 %v3989
    %v4580 = vunpack.c.h.b16 %v3989
    %v4581 = vunpack.c.l.b16 %v3990
    %v4582 = vunpack.c.h.b16 %v3990
    %v4583 = vunpack.c.l.b16 %v3991
    %v4584 = vunpack.c.h.b16 %v3991
    %v4585 = vunpack.c.l.b16 %v3992
    %v4586 = vunpack.c.h.b16 %v3992
    %v4587 = vunpack.c.l.b16 %v3993
    %v4588 = vunpack.c.h.b16 %v3993
    %v4589 = vunpack.c.l.b16 %v3994
    %v4590 = vunpack.c.h.b16 %v3994
    %v4591 = vunpack.c.l.b16 %v3995
    %v4592 = vunpack.c.h.b16 %v3995
    %v4593 = vunpack.c.l.b16 %v3996
    %v4594 = vunpack.c.h.b16 %v3996
    %v4595 = vunpack.c.l.b16 %v3997
    %v4596 = vunpack.c.h.b16 %v3997
    %v4597 = vunpack.c.l.b16 %v3998
    %v4598 = vunpack.c.h.b16 %v3998
    %v4599 = vunpack.c.l.b16 %v3999
    %v4600 = vunpack.c.h.b16 %v3999
    %v4601 = vunpack.c.l.b16 %v4000
    %v4602 = vunpack.c.h.b16 %v4000
    %v4603 = vunpack.c.l.b16 %v4001
    %v4604 = vunpack.c.h.b16 %v4001
    %v4605 = vunpack.c.l.b16 %v4002
    %v4606 = vunpack.c.h.b16 %v4002
    %v4607 = vunpack.c.l.b16 %v4003
    %v4608 = vunpack.c.h.b16 %v4003
    %v4609 = vunpack.c.l.b16 %v4004
    %v4610 = vunpack.c.h.b16 %v4004
    %v4611 = vunpack.c.l.b16 %v4005
    %v4612 = vunpack.c.h.b16 %v4005
    %v4613 = vunpack.c.l.b16 %v4006
    %v4614 = vunpack.c.h.b16 %v4006
    %v4615 = vunpack.c.l.b16 %v4007
    %v4616 = vunpack.c.h.b16 %v4007
    %v4617 = vunpack.c.l.b16 %v4008
    %v4618 = vunpack.c.h.b16 %v4008
    %v4619 = vunpack.c.l.b16 %v4009
    %v4620 = vunpack.c.h.b16 %v4009
    %v4621 = vunpack.c.l.b16 %v4010
    %v4622 = vunpack.c.h.b16 %v4010
    %v4623 = vunpack.c.l.b16 %v4011
    %v4624 = vunpack.c.h.b16 %v4011
    %v4625 = vunpack.c.l.b16 %v4012
    %v4626 = vunpack.c.h.b16 %v4012
    %v4627 = vunpack.c.l.b16 %v4013
    %v4628 = vunpack.c.h.b16 %v4013
    %v4629 = vunpack.c.l.b16 %v4014
    %v4630 = vunpack.c.h.b16 %v4014
    %v4631 = vunpack.c.l.b16 %v4015
    %v4632 = vunpack.c.h.b16 %v4015
    %v4633 = vunpack.c.l.b16 %v4016
    %v4634 = vunpack.c.h.b16 %v4016
    %v4635 = vunpack.c.l.b16 %v4017
    %v4636 = vunpack.c.h.b16 %v4017
    %v4637 = vunpack.c.l.b16 %v4018
    %v4638 = vunpack.c.h.b16 %v4018
    %v4639 = vunpack.c.l.b16 %v4019
    %v4640 = vunpack.c.h.b16 %v4019
    %v4641 = vunpack.c.l.b16 %v4020
    %v4642 = vunpack.c.h.b16 %v4020
    %v4643 = vunpack.c.l.b16 %v4021
    %v4644 = vunpack.c.h.b16 %v4021
    %v4645 = vunpack.c.l.b16 %v4022
    %v4646 = vunpack.c.h.b16 %v4022
    %v4647 = vunpack.c.l.b16 %v4023
    %v4648 = vunpack.c.h.b16 %v4023
    %v4649 = vunpack.c.l.b16 %v4024
    %v4650 = vunpack.c.h.b16 %v4024
    %v4651 = vunpack.c.l.b16 %v4025
    %v4652 = vunpack.c.h.b16 %v4025
    %v4653 = vunpack.c.l.b16 %v4026
    %v4654 = vunpack.c.h.b16 %v4026
    %v4655 = vunpack.c.l.b16 %v4027
    %v4656 = vunpack.c.h.b16 %v4027
    %v4657 = vunpack.c.l.b16 %v4028
    %v4658 = vunpack.c.h.b16 %v4028
    %v4659 = vunpack.c.l.b16 %v4029
    %v4660 = vunpack.c.h.b16 %v4029
    %v4661 = vunpack.c.l.b16 %v4030
    %v4662 = vunpack.c.h.b16 %v4030
    %v4663 = vunpack.c.l.b16 %v4031
    %v4664 = vunpack.c.h.b16 %v4031
    %v4665 = vunpack.c.l.b16 %v4032
    %v4666 = vunpack.c.h.b16 %v4032
    %v4667 = vunpack.c.l.b16 %v4033
    %v4668 = vunpack.c.h.b16 %v4033
    %v4669 = vunpack.c.l.b16 %v4034
    %v4670 = vunpack.c.h.b16 %v4034
    %v4671 = vunpack.c.l.b16 %v4035
    %v4672 = vunpack.c.h.b16 %v4035
    %v4673 = vunpack.c.l.b16 %v4036
    %v4674 = vunpack.c.h.b16 %v4036
    %v4675 = vunpack.c.l.b16 %v4037
    %v4676 = vunpack.c.h.b16 %v4037
    %v4677 = vunpack.c.l.b16 %v4038
    %v4678 = vunpack.c.h.b16 %v4038
    %v4679 = vunpack.c.l.b16 %v4039
    %v4680 = vunpack.c.h.b16 %v4039
    %v4681 = vunpack.c.l.b16 %v4040
    %v4682 = vunpack.c.h.b16 %v4040
    %v4683 = vunpack.c.l.b16 %v4041
    %v4684 = vunpack.c.h.b16 %v4041
    %v4685 = vunpack.c.l.b16 %v4042
    %v4686 = vunpack.c.h.b16 %v4042
    %v4687 = vunpack.c.l.b16 %v4043
    %v4688 = vunpack.c.h.b16 %v4043
    %v4689 = vunpack.c.l.b16 %v4044
    %v4690 = vunpack.c.h.b16 %v4044
    %v4691 = vunpack.c.l.b16 %v4045
    %v4692 = vunpack.c.h.b16 %v4045
    %v4693 = vunpack.c.l.b16 %v4046
    %v4694 = vunpack.c.h.b16 %v4046
    %v4695 = vunpack.c.l.b16 %v4047
    %v4696 = vunpack.c.h.b16 %v4047
    %v4697 = vunpack.c.l.b16 %v4048
    %v4698 = vunpack.c.h.b16 %v4048
    %v4699 = vunpack.c.l.b16 %v4049
    %v4700 = vunpack.c.h.b16 %v4049
    %v4701 = vunpack.c.l.b16 %v4050
    %v4702 = vunpack.c.h.b16 %v4050
    %v4703 = vunpack.c.l.b16 %v4051
    %v4704 = vunpack.c.h.b16 %v4051
    %v4705 = vunpack.c.l.b16 %v4052
    %v4706 = vunpack.c.h.b16 %v4052
    %v4707 = vunpack.c.l.b16 %v4053
    %v4708 = vunpack.c.h.b16 %v4053
    %v4709 = vunpack.c.l.b16 %v4054
    %v4710 = vunpack.c.h.b16 %v4054
    %v4711 = vunpack.c.l.b16 %v4055
    %v4712 = vunpack.c.h.b16 %v4055
    %v4713 = vunpack.c.l.b16 %v4056
    %v4714 = vunpack.c.h.b16 %v4056
    %v4715 = vunpack.c.l.b16 %v4057
    %v4716 = vunpack.c.h.b16 %v4057
    %v4717 = vunpack.c.l.b16 %v4058
    %v4718 = vunpack.c.h.b16 %v4058
    %v4719 = vunpack.c.l.b16 %v4059
    %v4720 = vunpack.c.h.b16 %v4059
    %v4721 = vunpack.c.l.b16 %v4060
    %v4722 = vunpack.c.h.b16 %v4060
    %v4723 = vunpack.c.l.b16 %v4061
    %v4724 = vunpack.c.h.b16 %v4061
    %v4725 = vunpack.c.l.b16 %v4062
    %v4726 = vunpack.c.h.b16 %v4062
    %v4727 = vunpack.c.l.b16 %v4063
    %v4728 = vunpack.c.h.b16 %v4063
    %v4729 = vunpack.c.l.b16 %v4064
    %v4730 = vunpack.c.h.b16 %v4064
    %v4731 = vunpack.c.l.b16 %v4065
    %v4732 = vunpack.c.h.b16 %v4065
    %v4733 = vunpack.c.l.b16 %v4066
    %v4734 = vunpack.c.h.b16 %v4066
    %v4735 = vunpack.c.l.b16 %v4067
    %v4736 = vunpack.c.h.b16 %v4067
    %v4737 = vunpack.c.l.b16 %v4068
    %v4738 = vunpack.c.h.b16 %v4068
    %v4739 = vunpack.c.l.b16 %v4069
    %v4740 = vunpack.c.h.b16 %v4069
    %v4741 = vunpack.c.l.b16 %v4070
    %v4742 = vunpack.c.h.b16 %v4070
    %v4743 = vunpack.c.l.b16 %v4071
    %v4744 = vunpack.c.h.b16 %v4071
    %v4745 = vunpack.c.l.b16 %v4072
    %v4746 = vunpack.c.h.b16 %v4072
    %v4747 = vunpack.c.l.b16 %v4073
    %v4748 = vunpack.c.h.b16 %v4073
    %v4749 = vunpack.c.l.b16 %v4074
    %v4750 = vunpack.c.h.b16 %v4074
    %v4751 = vunpack.c.l.b16 %v4075
    %v4752 = vunpack.c.h.b16 %v4075
    %v4753 = vunpack.c.l.b16 %v4076
    %v4754 = vunpack.c.h.b16 %v4076
    %v4755 = vunpack.c.l.b16 %v4077
    %v4756 = vunpack.c.h.b16 %v4077
    %v4757 = vunpack.c.l.b16 %v4078
    %v4758 = vunpack.c.h.b16 %v4078
    %v4759 = vunpack.c.l.b16 %v4079
    %v4760 = vunpack.c.h.b16 %v4079
    %v4761 = vunpack.c.l.b16 %v4080
    %v4762 = vunpack.c.h.b16 %v4080
    %v4763 = vunpack.c.l.b16 %v4081
    %v4764 = vunpack.c.h.b16 %v4081
    %v4765 = vunpack.c.l.b16 %v4082
    %v4766 = vunpack.c.h.b16 %v4082
    %v4767 = vunpack.c.l.b16 %v4083
    %v4768 = vunpack.c.h.b16 %v4083
    %v4769 = vunpack.c.l.b16 %v4084
    %v4770 = vunpack.c.h.b16 %v4084
    %v4771 = vunpack.c.l.b16 %v4085
    %v4772 = vunpack.c.h.b16 %v4085
    %v4773 = vunpack.c.l.b16 %v4086
    %v4774 = vunpack.c.h.b16 %v4086
    %v4775 = vunpack.c.l.b16 %v4087
    %v4776 = vunpack.c.h.b16 %v4087
    %v4777 = vunpack.c.l.b16 %v4088
    %v4778 = vunpack.c.h.b16 %v4088
    %v4779 = vunpack.c.l.b16 %v4089
    %v4780 = vunpack.c.h.b16 %v4089
    %v4781 = vunpack.c.l.b16 %v4090
    %v4782 = vunpack.c.h.b16 %v4090
    %v4783 = vunpack.c.l.b16 %v4091
    %v4784 = vunpack.c.h.b16 %v4091
    %v4785 = vunpack.c.l.b16 %v4092
    %v4786 = vunpack.c.h.b16 %v4092
    %v4787 = vunpack.c.l.b16 %v4093
    %v4788 = vunpack.c.h.b16 %v4093
    %v4789 = vunpack.c.l.b16 %v4094
    %v4790 = vunpack.c.h.b16 %v4094
    %v4791 = vunpack.c.l.b16 %v4095
    %v4792 = vunpack.c.h.b16 %v4095
    %v4793 = vunpack.c.l.b16 %v4096
    %v4794 = vunpack.c.h.b16 %v4096
    %v4795 = vunpack.c.l.b16 %v4097
    %v4796 = vunpack.c.h.b16 %v4097
    %v4797 = vunpack.c.l.b16 %v4098
    %v4798 = vunpack.c.h.b16 %v4098
    %v4799 = vunpack.c.l.b16 %v4099
    %v4800 = vunpack.c.h.b16 %v4099
    %v4801 = vunpack.c.l.b16 %v4100
    %v4802 = vunpack.c.h.b16 %v4100
    %v4803 = vunpack.c.l.b16 %v4101
    %v4804 = vunpack.c.h.b16 %v4101
    %v4805 = vunpack.c.l.b16 %v4102
    %v4806 = vunpack.c.h.b16 %v4102
    %v4807 = vunpack.c.l.b16 %v4103
    %v4808 = vunpack.c.h.b16 %v4103
    %v4809 = vunpack.c.l.b16 %v4104
    %v4810 = vunpack.c.h.b16 %v4104
    %v4811 = vunpack.c.l.b16 %v4105
    %v4812 = vunpack.c.h.b16 %v4105
    %v4813 = vunpack.c.l.b16 %v4106
    %v4814 = vunpack.c.h.b16 %v4106
    %v4815 = vunpack.c.l.b16 %v4107
    %v4816 = vunpack.c.h.b16 %v4107
    %v4817 = vunpack.c.l.b16 %v4108
    %v4818 = vunpack.c.h.b16 %v4108
    %v4819 = vunpack.c.l.b16 %v4109
    %v4820 = vunpack.c.h.b16 %v4109
    %v4821 = vunpack.c.l.b16 %v4110
    %v4822 = vunpack.c.h.b16 %v4110
    %v4823 = vunpack.c.l.b16 %v4111
    %v4824 = vunpack.c.h.b16 %v4111
    %v4825 = vunpack.c.l.b16 %v4112
    %v4826 = vunpack.c.h.b16 %v4112
    %v4827 = vunpack.c.l.b16 %v4113
    %v4828 = vunpack.c.h.b16 %v4113
    %v4829 = vunpack.c.l.b16 %v4114
    %v4830 = vunpack.c.h.b16 %v4114
    %v4831 = vunpack.c.l.b16 %v4115
    %v4832 = vunpack.c.h.b16 %v4115
    %v4833 = vunpack.c.l.b16 %v4116
    %v4834 = vunpack.c.h.b16 %v4116
    %v4835 = vunpack.c.l.b16 %v4117
    %v4836 = vunpack.c.h.b16 %v4117
    %v4837 = vunpack.c.l.b16 %v4118
    %v4838 = vunpack.c.h.b16 %v4118
    %v4839 = vunpack.c.l.b16 %v4119
    %v4840 = vunpack.c.h.b16 %v4119
    %v4841 = vunpack.c.l.b16 %v4120
    %v4842 = vunpack.c.h.b16 %v4120
    %v4843 = vunpack.c.l.b16 %v4121
    %v4844 = vunpack.c.h.b16 %v4121
    %v4845 = vunpack.c.l.b16 %v4122
    %v4846 = vunpack.c.h.b16 %v4122
    %v4847 = vunpack.c.l.b16 %v4123
    %v4848 = vunpack.c.h.b16 %v4123
    %v4849 = vunpack.c.l.b16 %v4124
    %v4850 = vunpack.c.h.b16 %v4124
    %v4851 = vunpack.c.l.b16 %v4125
    %v4852 = vunpack.c.h.b16 %v4125
    %v4853 = vunpack.c.l.b16 %v4126
    %v4854 = vunpack.c.h.b16 %v4126
    %v4855 = vunpack.c.l.b16 %v4127
    %v4856 = vunpack.c.h.b16 %v4127
    %v4857 = vunpack.c.l.b16 %v4128
    %v4858 = vunpack.c.h.b16 %v4128
    %v4859 = vunpack.c.l.b16 %v4129
    %v4860 = vunpack.c.h.b16 %v4129
    %v4861 = vunpack.c.l.b16 %v4130
    %v4862 = vunpack.c.h.b16 %v4130
    %v4863 = vunpack.c.l.b16 %v4131
    %v4864 = vunpack.c.h.b16 %v4131
    %v4865 = vunpack.c.l.b16 %v4132
    %v4866 = vunpack.c.h.b16 %v4132
    %v4867 = vunpack.c.l.b16 %v4133
    %v4868 = vunpack.c.h.b16 %v4133
    %v4869 = vunpack.c.l.b16 %v4134
    %v4870 = vunpack.c.h.b16 %v4134
    %v4871 = vunpack.c.l.b16 %v4135
    %v4872 = vunpack.c.h.b16 %v4135
    %v4873 = vunpack.c.l.b16 %v4136
    %v4874 = vunpack.c.h.b16 %v4136
    %v4875 = vunpack.c.l.b16 %v4137
    %v4876 = vunpack.c.h.b16 %v4137
    %v4877 = vunpack.c.l.b16 %v4138
    %v4878 = vunpack.c.h.b16 %v4138
    %v4879 = vunpack.c.l.b16 %v4139
    %v4880 = vunpack.c.h.b16 %v4139
    %v4881 = vunpack.c.l.b16 %v4140
    %v4882 = vunpack.c.h.b16 %v4140
    %v4883 = vunpack.c.l.b16 %v4141
    %v4884 = vunpack.c.h.b16 %v4141
    %v4885 = vunpack.c.l.b16 %v4142
    %v4886 = vunpack.c.h.b16 %v4142
    %v4887 = vunpack.c.l.b16 %v4143
    %v4888 = vunpack.c.h.b16 %v4143
    %v4889 = vunpack.c.l.b16 %v4144
    %v4890 = vunpack.c.h.b16 %v4144
    %v4891 = vunpack.c.l.b16 %v4145
    %v4892 = vunpack.c.h.b16 %v4145
    %v4893 = vunpack.c.l.b16 %v4146
    %v4894 = vunpack.c.h.b16 %v4146
    %v4895 = vunpack.c.l.b16 %v4147
    %v4896 = vunpack.c.h.b16 %v4147
    %v4897 = vunpack.c.l.b16 %v4148
    %v4898 = vunpack.c.h.b16 %v4148
    %v4899 = vunpack.c.l.b16 %v4149
    %v4900 = vunpack.c.h.b16 %v4149
    %v4901 = vunpack.c.l.b16 %v4150
    %v4902 = vunpack.c.h.b16 %v4150
    %v4903 = vunpack.c.l.b16 %v4151
    %v4904 = vunpack.c.h.b16 %v4151
    %v4905 = vunpack.c.l.b16 %v4152
    %v4906 = vunpack.c.h.b16 %v4152
    %v4907 = vunpack.c.l.b16 %v4153
    %v4908 = vunpack.c.h.b16 %v4153
    %v4909 = vunpack.c.l.b16 %v4154
    %v4910 = vunpack.c.h.b16 %v4154
    %v4911 = vunpack.c.l.b16 %v4155
    %v4912 = vunpack.c.h.b16 %v4155
    %v4913 = vunpack.c.l.b16 %v4156
    %v4914 = vunpack.c.h.b16 %v4156
    %v4915 = vunpack.c.l.b16 %v4157
    %v4916 = vunpack.c.h.b16 %v4157
    %v4917 = vunpack.c.l.b16 %v4158
    %v4918 = vunpack.c.h.b16 %v4158
    %v4919 = vunpack.c.l.b16 %v4159
    %v4920 = vunpack.c.h.b16 %v4159
    %v4921 = vunpack.c.l.b16 %v4160
    %v4922 = vunpack.c.h.b16 %v4160
    %v4923 = vunpack.c.l.b16 %v4161
    %v4924 = vunpack.c.h.b16 %v4161
    %v4925 = vunpack.c.l.b16 %v4162
    %v4926 = vunpack.c.h.b16 %v4162
    %v4927 = vunpack.c.l.b16 %v4163
    %v4928 = vunpack.c.h.b16 %v4163
    %v4929 = vunpack.c.l.b16 %v4164
    %v4930 = vunpack.c.h.b16 %v4164
    %v4931 = vunpack.c.l.b16 %v4165
    %v4932 = vunpack.c.h.b16 %v4165
    %v4933 = vunpack.c.l.b16 %v4166
    %v4934 = vunpack.c.h.b16 %v4166
    %v4935 = vunpack.c.l.b16 %v4167
    %v4936 = vunpack.c.h.b16 %v4167
    %v4937 = vunpack.c.l.b16 %v4168
    %v4938 = vunpack.c.h.b16 %v4168
    %v4939 = vunpack.c.l.b16 %v4169
    %v4940 = vunpack.c.h.b16 %v4169
    %v4941 = vunpack.c.l.b16 %v4170
    %v4942 = vunpack.c.h.b16 %v4170
    %v4943 = vunpack.c.l.b16 %v4171
    %v4944 = vunpack.c.h.b16 %v4171
    %v4945 = vunpack.c.l.b16 %v4172
    %v4946 = vunpack.c.h.b16 %v4172
    %v4947 = vunpack.c.l.b16 %v4173
    %v4948 = vunpack.c.h.b16 %v4173
    %v4949 = vunpack.c.l.b16 %v4174
    %v4950 = vunpack.c.h.b16 %v4174
    %v4951 = vunpack.c.l.b16 %v4175
    %v4952 = vunpack.c.h.b16 %v4175
    %v4953 = vunpack.c.l.b16 %v4176
    %v4954 = vunpack.c.h.b16 %v4176
    %v4955 = vunpack.c.l.b16 %v4177
    %v4956 = vunpack.c.h.b16 %v4177
    %v4957 = vunpack.c.l.b16 %v4178
    %v4958 = vunpack.c.h.b16 %v4178
    %v4959 = vunpack.c.l.b16 %v4179
    %v4960 = vunpack.c.h.b16 %v4179
    %v4961 = vunpack.c.l.b16 %v4180
    %v4962 = vunpack.c.h.b16 %v4180
    %v4963 = vunpack.c.l.b16 %v4181
    %v4964 = vunpack.c.h.b16 %v4181
    %v4965 = vunpack.c.l.b16 %v4182
    %v4966 = vunpack.c.h.b16 %v4182
    %v4967 = vunpack.c.l.b16 %v4183
    %v4968 = vunpack.c.h.b16 %v4183
    %v4969 = vunpack.c.l.b16 %v4184
    %v4970 = vunpack.c.h.b16 %v4184
    %v4971 = vunpack.c.l.b16 %v4185
    %v4972 = vunpack.c.h.b16 %v4185
    %v4973 = vunpack.c.l.b16 %v4186
    %v4974 = vunpack.c.h.b16 %v4186
    %v4975 = vunpack.c.l.b16 %v4187
    %v4976 = vunpack.c.h.b16 %v4187
    %v4977 = vunpack.c.l.b16 %v4188
    %v4978 = vunpack.c.h.b16 %v4188
    %v4979 = vpack.c.b16 %v4471, %v4467
    %v4980 = vpack.c.b16 %v4472, %v4468
    %v4981 = vpack.c.b16 %v4473, %v4469
    %v4982 = vpack.c.b16 %v4474, %v4470
    %v4983 = vpack.c.b16 %v4479, %v4475
    %v4984 = vpack.c.b16 %v4480, %v4476
    %v4985 = vpack.c.b16 %v4481, %v4477
    %v4986 = vpack.c.b16 %v4482, %v4478
    %v4987 = vpack.c.b16 %v4487, %v4483
    %v4988 = vpack.c.b16 %v4488, %v4484
    %v4989 = vpack.c.b16 %v4489, %v4485
    %v4990 = vpack.c.b16 %v4490, %v4486
    %v4991 = vpack.c.b16 %v4495, %v4491
    %v4992 = vpack.c.b16 %v4496, %v4492
    %v4993 = vpack.c.b16 %v4497, %v4493
    %v4994 = vpack.c.b16 %v4498, %v4494
    %v4995 = vpack.c.b16 %v4503, %v4499
    %v4996 = vpack.c.b16 %v4504, %v4500
    %v4997 = vpack.c.b16 %v4505, %v4501
    %v4998 = vpack.c.b16 %v4506, %v4502
    %v4999 = vpack.c.b16 %v4511, %v4507
    %v5000 = vpack.c.b16 %v4512, %v4508
    %v5001 = vpack.c.b16 %v4513, %v4509
    %v5002 = vpack.c.b16 %v4514, %v4510
    %v5003 = vpack.c.b16 %v4519, %v4515
    %v5004 = vpack.c.b16 %v4520, %v4516
    %v5005 = vpack.c.b16 %v4521, %v4517
    %v5006 = vpack.c.b16 %v4522, %v4518
    %v5007 = vpack.c.b16 %v4527, %v4523
    %v5008 = vpack.c.b16 %v4528, %v4524
    %v5009 = vpack.c.b16 %v4529, %v4525
    %v5010 = vpack.c.b16 %v4530, %v4526
    %v5011 = vpack.c.b16 %v4535, %v4531
    %v5012 = vpack.c.b16 %v4536, %v4532
    %v5013 = vpack.c.b16 %v4537, %v4533
    %v5014 = vpack.c.b16 %v4538, %v4534
    %v5015 = vpack.c.b16 %v4543, %v4539
    %v5016 = vpack.c.b16 %v4544, %v4540
    %v5017 = vpack.c.b16 %v4545, %v4541
    %v5018 = vpack.c.b16 %v4546, %v4542
    %v5019 = vpack.c.b16 %v4551, %v4547
    %v5020 = vpack.c.b16 %v4552, %v4548
    %v5021 = vpack.c.b16 %v4553, %v4549
    %v5022 = vpack.c.b16 %v4554, %v4550
    %v5023 = vpack.c.b16 %v4559, %v4555
    %v5024 = vpack.c.b16 %v4560, %v4556
    %v5025 = vpack.c.b16 %v4561, %v4557
    %v5026 = vpack.c.b16 %v4562, %v4558
    %v5027 = vpack.c.b16 %v4567, %v4563
    %v5028 = vpack.c.b16 %v4568, %v4564
    %v5029 = vpack.c.b16 %v4569, %v4565
    %v5030 = vpack.c.b16 %v4570, %v4566
    %v5031 = vpack.c.b16 %v4575, %v4571
    %v5032 = vpack.c.b16 %v4576, %v4572
    %v5033 = vpack.c.b16 %v4577, %v4573
    %v5034 = vpack.c.b16 %v4578, %v4574
    %v5035 = vpack.c.b16 %v4583, %v4579
    %v5036 = vpack.c.b16 %v4584, %v4580
    %v5037 = vpack.c.b16 %v4585, %v4581
    %v5038 = vpack.c.b16 %v4586, %v4582
    %v5039 = vpack.c.b16 %v4591, %v4587
    %v5040 = vpack.c.b16 %v4592, %v4588
    %v5041 = vpack.c.b16 %v4593, %v4589
    %v5042 = vpack.c.b16 %v4594, %v4590
    %v5043 = vpack.c.b16 %v4599, %v4595
    %v5044 = vpack.c.b16 %v4600, %v4596
    %v5045 = vpack.c.b16 %v4601, %v4597
    %v5046 = vpack.c.b16 %v4602, %v4598
    %v5047 = vpack.c.b16 %v4607, %v4603
    %v5048 = vpack.c.b16 %v4608, %v4604
    %v5049 = vpack.c.b16 %v4609, %v4605
    %v5050 = vpack.c.b16 %v4610, %v4606
    %v5051 = vpack.c.b16 %v4615, %v4611
    %v5052 = vpack.c.b16 %v4616, %v4612
    %v5053 = vpack.c.b16 %v4617, %v4613
    %v5054 = vpack.c.b16 %v4618, %v4614
    %v5055 = vpack.c.b16 %v4623, %v4619
    %v5056 = vpack.c.b16 %v4624, %v4620
    %v5057 = vpack.c.b16 %v4625, %v4621
    %v5058 = vpack.c.b16 %v4626, %v4622
    %v5059 = vpack.c.b16 %v4631, %v4627
    %v5060 = vpack.c.b16 %v4632, %v4628
    %v5061 = vpack.c.b16 %v4633, %v4629
    %v5062 = vpack.c.b16 %v4634, %v4630
    %v5063 = vpack.c.b16 %v4639, %v4635
    %v5064 = vpack.c.b16 %v4640, %v4636
    %v5065 = vpack.c.b16 %v4641, %v4637
    %v5066 = vpack.c.b16 %v4642, %v4638
    %v5067 = vpack.c.b16 %v4647, %v4643
    %v5068 = vpack.c.b16 %v4648, %v4644
    %v5069 = vpack.c.b16 %v4649, %v4645
    %v5070 = vpack.c.b16 %v4650, %v4646
    %v5071 = vpack.c.b16 %v4655, %v4651
    %v5072 = vpack.c.b16 %v4656, %v4652
    %v5073 = vpack.c.b16 %v4657, %v4653
    %v5074 = vpack.c.b16 %v4658, %v4654
    %v5075 = vpack.c.b16 %v4663, %v4659
    %v5076 = vpack.c.b16 %v4664, %v4660
    %v5077 = vpack.c.b16 %v4665, %v4661
    %v5078 = vpack.c.b16 %v4666, %v4662
    %v5079 = vpack.c.b16 %v4671, %v4667
    %v5080 = vpack.c.b16 %v4672, %v4668
    %v5081 = vpack.c.b16 %v4673, %v4669
    %v5082 = vpack.c.b16 %v4674, %v4670
    %v5083 = vpack.c.b16 %v4679, %v4675
    %v5084 = vpack.c.b16 %v4680, %v4676
    %v5085 = vpack.c.b16 %v4681, %v4677
    %v5086 = vpack.c.b16 %v4682, %v4678
    %v5087 = vpack.c.b16 %v4687, %v4683
    %v5088 = vpack.c.b16 %v4688, %v4684
    %v5089 = vpack.c.b16 %v4689, %v4685
    %v5090 = vpack.c.b16 %v4690, %v4686
    %v5091 = vpack.c.b16 %v4695, %v4691
    %v5092 = vpack.c.b16 %v4696, %v4692
    %v5093 = vpack.c.b16 %v4697, %v4693
    %v5094 = vpack.c.b16 %v4698, %v4694
    %v5095 = vpack.c.b16 %v4703, %v4699
    %v5096 = vpack.c.b16 %v4704, %v4700
    %v5097 = vpack.c.b16 %v4705, %v4701
    %v5098 = vpack.c.b16 %v4706, %v4702
    %v5099 = vpack.c.b16 %v4711, %v4707
    %v5100 = vpack.c.b16 %v4712, %v4708
    %v5101 = vpack.c.b16 %v4713, %v4709
    %v5102 = vpack.c.b16 %v4714, %v4710
    %v5103 = vpack.c.b16 %v4719, %v4715
    %v5104 = vpack.c.b16 %v4720, %v4716
    %v5105 = vpack.c.b16 %v4721, %v4717
    %v5106 = vpack.c.b16 %v4722, %v4718
    %v5107 = vpack.c.b16 %v4727, %v4723
    %v5108 = vpack.c.b16 %v4728, %v4724
    %v5109 = vpack.c.b16 %v4729, %v4725
    %v5110 = vpack.c.b16 %v4730, %v4726
    %v5111 = vpack.c.b16 %v4735, %v4731
    %v5112 = vpack.c.b16 %v4736, %v4732
    %v5113 = vpack.c.b16 %v4737, %v4733
    %v5114 = vpack.c.b16 %v4738, %v4734
    %v5115 = vpack.c.b16 %v4743, %v4739
    %v5116 = vpack.c.b16 %v4744, %v4740
    %v5117 = vpack.c.b16 %v4745, %v4741
    %v5118 = vpack.c.b16 %v4746, %v4742
    %v5119 = vpack.c.b16 %v4751, %v4747
    %v5120 = vpack.c.b16 %v4752, %v4748
    %v5121 = vpack.c.b16 %v4753, %v4749
    %v5122 = vpack.c.b16 %v4754, %v4750
    %v5123 = vpack.c.b16 %v4759, %v4755
    %v5124 = vpack.c.b16 %v4760, %v4756
    %v5125 = vpack.c.b16 %v4761, %v4757
    %v5126 = vpack.c.b16 %v4762, %v4758
    %v5127 = vpack.c.b16 %v4767, %v4763
    %v5128 = vpack.c.b16 %v4768, %v4764
    %v5129 = vpack.c.b16 %v4769, %v4765
    %v5130 = vpack.c.b16 %v4770, %v4766
    %v5131 = vpack.c.b16 %v4775, %v4771
    %v5132 = vpack.c.b16 %v4776, %v4772
    %v5133 = vpack.c.b16 %v4777, %v4773
    %v5134 = vpack.c.b16 %v4778, %v4774
    %v5135 = vpack.c.b16 %v4783, %v4779
    %v5136 = vpack.c.b16 %v4784, %v4780
    %v5137 = vpack.c.b16 %v4785, %v4781
    %v5138 = vpack.c.b16 %v4786, %v4782
    %v5139 = vpack.c.b16 %v4791, %v4787
    %v5140 = vpack.c.b16 %v4792, %v4788
    %v5141 = vpack.c.b16 %v4793, %v4789
    %v5142 = vpack.c.b16 %v4794, %v4790
    %v5143 = vpack.c.b16 %v4799, %v4795
    %v5144 = vpack.c.b16 %v4800, %v4796
    %v5145 = vpack.c.b16 %v4801, %v4797
    %v5146 = vpack.c.b16 %v4802, %v4798
    %v5147 = vpack.c.b16 %v4807, %v4803
    %v5148 = vpack.c.b16 %v4808, %v4804
    %v5149 = vpack.c.b16 %v4809, %v4805
    %v5150 = vpack.c.b16 %v4810, %v4806
    %v5151 = vpack.c.b16 %v4815, %v4811
    %v5152 = vpack.c.b16 %v4816, %v4812
    %v5153 = vpack.c.b16 %v4817, %v4813
    %v5154 = vpack.c.b16 %v4818, %v4814
    %v5155 = vpack.c.b16 %v4823, %v4819
    %v5156 = vpack.c.b16 %v4824, %v4820
    %v5157 = vpack.c.b16 %v4825, %v4821
    %v5158 = vpack.c.b16 %v4826, %v4822
    %v5159 = vpack.c.b16 %v4831, %v4827
    %v5160 = vpack.c.b16 %v4832, %v4828
    %v5161 = vpack.c.b16 %v4833, %v4829
    %v5162 = vpack.c.b16 %v4834, %v4830
    %v5163 = vpack.c.b16 %v4839, %v4835
    %v5164 = vpack.c.b16 %v4840, %v4836
    %v5165 = vpack.c.b16 %v4841, %v4837
    %v5166 = vpack.c.b16 %v4842, %v4838
    %v5167 = vpack.c.b16 %v4847, %v4843
    %v5168 = vpack.c.b16 %v4848, %v4844
    %v5169 = vpack.c.b16 %v4849, %v4845
    %v5170 = vpack.c.b16 %v4850, %v4846
    %v5171 = vpack.c.b16 %v4855, %v4851
    %v5172 = vpack.c.b16 %v4856, %v4852
    %v5173 = vpack.c.b16 %v4857, %v4853
    %v5174 = vpack.c.b16 %v4858, %v4854
    %v5175 = vpack.c.b16 %v4863, %v4859
    %v5176 = vpack.c.b16 %v4864, %v4860
    %v5177 = vpack.c.b16 %v4865, %v4861
    %v5178 = vpack.c.b16 %v4866, %v4862
    %v5179 = vpack.c.b16 %v4871, %v4867
    %v5180 = vpack.c.b16 %v4872, %v4868
    %v5181 = vpack.c.b16 %v4873, %v4869
    %v5182 = vpack.c.b16 %v4874, %v4870
    %v5183 = vpack.c.b16 %v4879, %v4875
    %v5184 = vpack.c.b16 %v4880, %v4876
    %v5185 = vpack.c.b16 %v4881, %v4877
    %v5186 = vpack.c.b16 %v4882, %v4878
    %v5187 = vpack.c.b16 %v4887, %v4883
    %v5188 = vpack.c.b16 %v4888, %v4884
    %v5189 = vpack.c.b16 %v4889, %v4885
    %v5190 = vpack.c.b16 %v4890, %v4886
    %v5191 = vpack.c.b16 %v4895, %v4891
    %v5192 = vpack.c.b16 %v4896, %v4892
    %v5193 = vpack.c.b16 %v4897, %v4893
    %v5194 = vpack.c.b16 %v4898, %v4894
    %v5195 = vpack.c.b16 %v4903, %v4899
    %v5196 = vpack.c.b16 %v4904, %v4900
    %v5197 = vpack.c.b16 %v4905, %v4901
    %v5198 = vpack.c.b16 %v4906, %v4902
    %v5199 = vpack.c.b16 %v4911, %v4907
    %v5200 = vpack.c.b16 %v4912, %v4908
    %v5201 = vpack.c.b16 %v4913, %v4909
    %v5202 = vpack.c.b16 %v4914, %v4910
    %v5203 = vpack.c.b16 %v4919, %v4915
    %v5204 = vpack.c.b16 %v4920, %v4916
    %v5205 = vpack.c.b16 %v4921, %v4917
    %v5206 = vpack.c.b16 %v4922, %v4918
    %v5207 = vpack.c.b16 %v4927, %v4923
    %v5208 = vpack.c.b16 %v4928, %v4924
    %v5209 = vpack.c.b16 %v4929, %v4925
    %v5210 = vpack.c.b16 %v4930, %v4926
    %v5211 = vpack.c.b16 %v4935, %v4931
    %v5212 = vpack.c.b16 %v4936, %v4932
    %v5213 = vpack.c.b16 %v4937, %v4933
    %v5214 = vpack.c.b16 %v4938, %v4934
    %v5215 = vpack.c.b16 %v4943, %v4939
    %v5216 = vpack.c.b16 %v4944, %v4940
    %v5217 = vpack.c.b16 %v4945, %v4941
    %v5218 = vpack.c.b16 %v4946, %v4942
    %v5219 = vpack.c.b16 %v4951, %v4947
    %v5220 = vpack.c.b16 %v4952, %v4948
    %v5221 = vpack.c.b16 %v4953, %v4949
    %v5222 = vpack.c.b16 %v4954, %v4950
    %v5223 = vpack.c.b16 %v4959, %v4955
    %v5224 = vpack.c.b16 %v4960, %v4956
    %v5225 = vpack.c.b16 %v4961, %v4957
    %v5226 = vpack.c.b16 %v4962, %v4958
    %v5227 = vpack.c.b16 %v4967, %v4963
    %v5228 = vpack.c.b16 %v4968, %v4964
    %v5229 = vpack.c.b16 %v4969, %v4965
    %v5230 = vpack.c.b16 %v4970, %v4966
    %v5231 = vpack.c.b16 %v4975, %v4971
    %v5232 = vpack.c.b16 %v4976, %v4972
    %v5233 = vpack.c.b16 %v4977, %v4973
    %v5234 = vpack.c.b16 %v4978, %v4974
    %5491 = vmatprep.subr.bf16.mxu0 %v5008
    %5492 = vmatpush1.bf16.msra.mxu0 %v5007
    %5493 = vmatprep.subr.bf16.mxu0 %v5004
    %5494 = vmatpush1.bf16.msra.mxu0 %v5003
    %5495 = vmatprep.subr.bf16.mxu0 %v5000
    %5496 = vmatpush1.bf16.msra.mxu0 %v4999
    %5497 = vmatprep.subr.bf16.mxu0 %v4996
    %5498 = vmatpush1.bf16.msra.mxu0 %v4995
    %5499 = vmatprep.subr.bf16.mxu0 %v4992
    %5500 = vmatpush1.bf16.msra.mxu0 %v4991
    %5501 = vmatprep.subr.bf16.mxu0 %v4988
    %5502 = vmatpush1.bf16.msra.mxu0 %v4987
    %5503 = vmatprep.subr.bf16.mxu0 %v4984
    %5504 = vmatpush1.bf16.msra.mxu0 %v4983
    %5505 = vmatprep.subr.bf16.mxu0 %v4980
    %5506 = vmatpush1.bf16.msra.mxu0 %v4979
    %5507 = vmatprep.subr.bf16.mxu0 %v5040
    %5508 = vmatpush2.bf16.msra.mxu0 %v5039
    %5509 = vmatprep.subr.bf16.mxu0 %v5036
    %5510 = vmatpush2.bf16.msra.mxu0 %v5035
    %5511 = vmatprep.subr.bf16.mxu0 %v5032
    %5512 = vmatpush2.bf16.msra.mxu0 %v5031
    %5513 = vmatprep.subr.bf16.mxu0 %v5028
    %5514 = vmatpush2.bf16.msra.mxu0 %v5027
    %5515 = vmatprep.subr.bf16.mxu0 %v5024
    %5516 = vmatpush2.bf16.msra.mxu0 %v5023
    %5517 = vmatprep.subr.bf16.mxu0 %v5020
    %5518 = vmatpush2.bf16.msra.mxu0 %v5019
    %5519 = vmatprep.subr.bf16.mxu0 %v5016
    %5520 = vmatpush2.bf16.msra.mxu0 %v5015
    %5521 = vmatprep.subr.bf16.mxu0 %v5012
    %5522 = vmatpush2.bf16.msra.mxu0 %v5011
    %5523 = vmatprep.mubr.bf16.mxu0 %v3926
    %5524 = vmatmul.mubr.bf16.gmra.mxu0 %v3925
    %v5525 = vpop.f32.mrf.mxu0
    %v5526 = vadd.f32 %v4194, %v5525
    %v5527 = vpop.f32.mrf.mxu0
    %v5528 = vadd.f32 %v4198, %v5527
    %v5529 = vpop.f32.mrf.mxu0
    %v5530 = vpop.f32.mrf.mxu0
    %5531 = vdwg.mxu0
    %5532 = vmatprep.subr.bf16.mxu0 %v5072
    %5533 = vmatpush1.bf16.msra.mxu0 %v5071
    %5534 = vmatprep.subr.bf16.mxu0 %v5068
    %5535 = vmatpush1.bf16.msra.mxu0 %v5067
    %5536 = vmatprep.subr.bf16.mxu0 %v5064
    %5537 = vmatpush1.bf16.msra.mxu0 %v5063
    %5538 = vmatprep.subr.bf16.mxu0 %v5060
    %5539 = vmatpush1.bf16.msra.mxu0 %v5059
    %5540 = vmatprep.subr.bf16.mxu0 %v5056
    %5541 = vmatpush1.bf16.msra.mxu0 %v5055
    %5542 = vmatprep.subr.bf16.mxu0 %v5052
    %5543 = vmatpush1.bf16.msra.mxu0 %v5051
    %5544 = vmatprep.subr.bf16.mxu0 %v5048
    %5545 = vmatpush1.bf16.msra.mxu0 %v5047
    %5546 = vmatprep.subr.bf16.mxu0 %v5044
    %5547 = vmatpush1.bf16.msra.mxu0 %v5043
    %5548 = vmatprep.subr.bf16.mxu0 %v5104
    %5549 = vmatpush2.bf16.msra.mxu0 %v5103
    %5550 = vmatprep.subr.bf16.mxu0 %v5100
    %5551 = vmatpush2.bf16.msra.mxu0 %v5099
    %5552 = vmatprep.subr.bf16.mxu0 %v5096
    %5553 = vmatpush2.bf16.msra.mxu0 %v5095
    %5554 = vmatprep.subr.bf16.mxu0 %v5092
    %5555 = vmatpush2.bf16.msra.mxu0 %v5091
    %5556 = vmatprep.subr.bf16.mxu0 %v5088
    %5557 = vmatpush2.bf16.msra.mxu0 %v5087
    %5558 = vmatprep.subr.bf16.mxu0 %v5084
    %5559 = vmatpush2.bf16.msra.mxu0 %v5083
    %5560 = vmatprep.subr.bf16.mxu0 %v5080
    %5561 = vmatpush2.bf16.msra.mxu0 %v5079
    %5562 = vmatprep.subr.bf16.mxu0 %v5076
    %5563 = vmatpush2.bf16.msra.mxu0 %v5075
    %5564 = vmatprep.mubr.bf16.mxu0 %v3928
    %5565 = vmatmul.mubr.bf16.gmra.mxu0 %v3927
    %v5566 = vpop.f32.mrf.mxu0
    %v5567 = vadd.f32 %v5526, %v5566
    %v5568 = vpop.f32.mrf.mxu0
    %v5569 = vadd.f32 %v5528, %v5568
    %v5570 = vpop.f32.mrf.mxu0
    %v5571 = vpop.f32.mrf.mxu0
    %5572 = vdwg.mxu0
    %5573 = vmatprep.subr.bf16.mxu0 %v5136
    %5574 = vmatpush1.bf16.msra.mxu0 %v5135
    %5575 = vmatprep.subr.bf16.mxu0 %v5132
    %5576 = vmatpush1.bf16.msra.mxu0 %v5131
    %5577 = vmatprep.subr.bf16.mxu0 %v5128
    %5578 = vmatpush1.bf16.msra.mxu0 %v5127
    %5579 = vmatprep.subr.bf16.mxu0 %v5124
    %5580 = vmatpush1.bf16.msra.mxu0 %v5123
    %5581 = vmatprep.subr.bf16.mxu0 %v5120
    %5582 = vmatpush1.bf16.msra.mxu0 %v5119
    %5583 = vmatprep.subr.bf16.mxu0 %v5116
    %5584 = vmatpush1.bf16.msra.mxu0 %v5115
    %5585 = vmatprep.subr.bf16.mxu0 %v5112
    %5586 = vmatpush1.bf16.msra.mxu0 %v5111
    %5587 = vmatprep.subr.bf16.mxu0 %v5108
    %5588 = vmatpush1.bf16.msra.mxu0 %v5107
    %5589 = vmatprep.subr.bf16.mxu0 %v5168
    %5590 = vmatpush2.bf16.msra.mxu0 %v5167
    %5591 = vmatprep.subr.bf16.mxu0 %v5164
    %5592 = vmatpush2.bf16.msra.mxu0 %v5163
    %5593 = vmatprep.subr.bf16.mxu0 %v5160
    %5594 = vmatpush2.bf16.msra.mxu0 %v5159
    %5595 = vmatprep.subr.bf16.mxu0 %v5156
    %5596 = vmatpush2.bf16.msra.mxu0 %v5155
    %5597 = vmatprep.subr.bf16.mxu0 %v5152
    %5598 = vmatpush2.bf16.msra.mxu0 %v5151
    %5599 = vmatprep.subr.bf16.mxu0 %v5148
    %5600 = vmatpush2.bf16.msra.mxu0 %v5147
    %5601 = vmatprep.subr.bf16.mxu0 %v5144
    %5602 = vmatpush2.bf16.msra.mxu0 %v5143
    %5603 = vmatprep.subr.bf16.mxu0 %v5140
    %5604 = vmatpush2.bf16.msra.mxu0 %v5139
    %5605 = vmatprep.mubr.bf16.mxu0 %v3930
    %5606 = vmatmul.mubr.bf16.gmra.mxu0 %v3929
    %v5607 = vpop.f32.mrf.mxu0
    %v5608 = vadd.f32 %v5567, %v5607
    %v5609 = vpop.f32.mrf.mxu0
    %v5610 = vadd.f32 %v5569, %v5609
    %v5611 = vpop.f32.mrf.mxu0
    %v5612 = vpop.f32.mrf.mxu0
    %5613 = vdwg.mxu0
    %5614 = vmatprep.subr.bf16.mxu0 %v5200
    %5615 = vmatpush1.bf16.msra.mxu0 %v5199
    %5616 = vmatprep.subr.bf16.mxu0 %v5196
    %5617 = vmatpush1.bf16.msra.mxu0 %v5195
    %5618 = vmatprep.subr.bf16.mxu0 %v5192
    %5619 = vmatpush1.bf16.msra.mxu0 %v5191
    %5620 = vmatprep.subr.bf16.mxu0 %v5188
    %5621 = vmatpush1.bf16.msra.mxu0 %v5187
    %5622 = vmatprep.subr.bf16.mxu0 %v5184
    %5623 = vmatpush1.bf16.msra.mxu0 %v5183
    %5624 = vmatprep.subr.bf16.mxu0 %v5180
    %5625 = vmatpush1.bf16.msra.mxu0 %v5179
    %5626 = vmatprep.subr.bf16.mxu0 %v5176
    %5627 = vmatpush1.bf16.msra.mxu0 %v5175
    %5628 = vmatprep.subr.bf16.mxu0 %v5172
    %5629 = vmatpush1.bf16.msra.mxu0 %v5171
    %5630 = vmatprep.subr.bf16.mxu0 %v5232
    %5631 = vmatpush2.bf16.msra.mxu0 %v5231
    %5632 = vmatprep.subr.bf16.mxu0 %v5228
    %5633 = vmatpush2.bf16.msra.mxu0 %v5227
    %5634 = vmatprep.subr.bf16.mxu0 %v5224
    %5635 = vmatpush2.bf16.msra.mxu0 %v5223
    %5636 = vmatprep.subr.bf16.mxu0 %v5220
    %5637 = vmatpush2.bf16.msra.mxu0 %v5219
    %5638 = vmatprep.subr.bf16.mxu0 %v5216
    %5639 = vmatpush2.bf16.msra.mxu0 %v5215
    %5640 = vmatprep.subr.bf16.mxu0 %v5212
    %5641 = vmatpush2.bf16.msra.mxu0 %v5211
    %5642 = vmatprep.subr.bf16.mxu0 %v5208
    %5643 = vmatpush2.bf16.msra.mxu0 %v5207
    %5644 = vmatprep.subr.bf16.mxu0 %v5204
    %5645 = vmatpush2.bf16.msra.mxu0 %v5203
    %5646 = vmatprep.mubr.bf16.mxu0 %v3932
    %5647 = vmatmul.mubr.bf16.gmra.mxu0 %v3931
    %v5648 = vpop.f32.mrf.mxu0
    %v5649 = vadd.f32 %v5608, %v5648
    %v5650 = vpop.f32.mrf.mxu0
    %v5651 = vadd.f32 %v5610, %v5650
    %v5652 = vpop.f32.mrf.mxu0
    %v5653 = vpop.f32.mrf.mxu0
    %5654 = vdwg.mxu0
    %5655 = vmatprep.subr.bf16.mxu0 %v5010
    %5656 = vmatpush1.bf16.msra.mxu0 %v5009
    %5657 = vmatprep.subr.bf16.mxu0 %v5006
    %5658 = vmatpush1.bf16.msra.mxu0 %v5005
    %5659 = vmatprep.subr.bf16.mxu0 %v5002
    %5660 = vmatpush1.bf16.msra.mxu0 %v5001
    %5661 = vmatprep.subr.bf16.mxu0 %v4998
    %5662 = vmatpush1.bf16.msra.mxu0 %v4997
    %5663 = vmatprep.subr.bf16.mxu0 %v4994
    %5664 = vmatpush1.bf16.msra.mxu0 %v4993
    %5665 = vmatprep.subr.bf16.mxu0 %v4990
    %5666 = vmatpush1.bf16.msra.mxu0 %v4989
    %5667 = vmatprep.subr.bf16.mxu0 %v4986
    %5668 = vmatpush1.bf16.msra.mxu0 %v4985
    %5669 = vmatprep.subr.bf16.mxu0 %v4982
    %5670 = vmatpush1.bf16.msra.mxu0 %v4981
    %5671 = vmatprep.subr.bf16.mxu0 %v5042
    %5672 = vmatpush2.bf16.msra.mxu0 %v5041
    %5673 = vmatprep.subr.bf16.mxu0 %v5038
    %5674 = vmatpush2.bf16.msra.mxu0 %v5037
    %5675 = vmatprep.subr.bf16.mxu0 %v5034
    %5676 = vmatpush2.bf16.msra.mxu0 %v5033
    %5677 = vmatprep.subr.bf16.mxu0 %v5030
    %5678 = vmatpush2.bf16.msra.mxu0 %v5029
    %5679 = vmatprep.subr.bf16.mxu0 %v5026
    %5680 = vmatpush2.bf16.msra.mxu0 %v5025
    %5681 = vmatprep.subr.bf16.mxu0 %v5022
    %5682 = vmatpush2.bf16.msra.mxu0 %v5021
    %5683 = vmatprep.subr.bf16.mxu0 %v5018
    %5684 = vmatpush2.bf16.msra.mxu0 %v5017
    %5685 = vmatprep.subr.bf16.mxu0 %v5014
    %5686 = vmatpush2.bf16.msra.mxu0 %v5013
    %5687 = vmatprep.mubr.bf16.mxu0 %v3926
    %5688 = vmatmul.mubr.bf16.gmra.mxu0 %v3925
    %v5689 = vpop.f32.mrf.mxu0
    %v5690 = vadd.f32 %v4202, %v5689
    %v5691 = vpop.f32.mrf.mxu0
    %v5692 = vadd.f32 %v4206, %v5691
    %v5693 = vpop.f32.mrf.mxu0
    %v5694 = vpop.f32.mrf.mxu0
    %5695 = vdwg.mxu0
    %5696 = vmatprep.subr.bf16.mxu0 %v5074
    %5697 = vmatpush1.bf16.msra.mxu0 %v5073
    %5698 = vmatprep.subr.bf16.mxu0 %v5070
    %5699 = vmatpush1.bf16.msra.mxu0 %v5069
    %5700 = vmatprep.subr.bf16.mxu0 %v5066
    %5701 = vmatpush1.bf16.msra.mxu0 %v5065
    %5702 = vmatprep.subr.bf16.mxu0 %v5062
    %5703 = vmatpush1.bf16.msra.mxu0 %v5061
    %5704 = vmatprep.subr.bf16.mxu0 %v5058
    %5705 = vmatpush1.bf16.msra.mxu0 %v5057
    %5706 = vmatprep.subr.bf16.mxu0 %v5054
    %5707 = vmatpush1.bf16.msra.mxu0 %v5053
    %5708 = vmatprep.subr.bf16.mxu0 %v5050
    %5709 = vmatpush1.bf16.msra.mxu0 %v5049
    %5710 = vmatprep.subr.bf16.mxu0 %v5046
    %5711 = vmatpush1.bf16.msra.mxu0 %v5045
    %5712 = vmatprep.subr.bf16.mxu0 %v5106
    %5713 = vmatpush2.bf16.msra.mxu0 %v5105
    %5714 = vmatprep.subr.bf16.mxu0 %v5102
    %5715 = vmatpush2.bf16.msra.mxu0 %v5101
    %5716 = vmatprep.subr.bf16.mxu0 %v5098
    %5717 = vmatpush2.bf16.msra.mxu0 %v5097
    %5718 = vmatprep.subr.bf16.mxu0 %v5094
    %5719 = vmatpush2.bf16.msra.mxu0 %v5093
    %5720 = vmatprep.subr.bf16.mxu0 %v5090
    %5721 = vmatpush2.bf16.msra.mxu0 %v5089
    %5722 = vmatprep.subr.bf16.mxu0 %v5086
    %5723 = vmatpush2.bf16.msra.mxu0 %v5085
    %5724 = vmatprep.subr.bf16.mxu0 %v5082
    %5725 = vmatpush2.bf16.msra.mxu0 %v5081
    %5726 = vmatprep.subr.bf16.mxu0 %v5078
    %5727 = vmatpush2.bf16.msra.mxu0 %v5077
    %5728 = vmatprep.mubr.bf16.mxu0 %v3928
    %5729 = vmatmul.mubr.bf16.gmra.mxu0 %v3927
    %v5730 = vpop.f32.mrf.mxu0
    %v5731 = vadd.f32 %v5690, %v5730
    %v5732 = vpop.f32.mrf.mxu0
    %v5733 = vadd.f32 %v5692, %v5732
    %v5734 = vpop.f32.mrf.mxu0
    %v5735 = vpop.f32.mrf.mxu0
    %5736 = vdwg.mxu0
    %5737 = vmatprep.subr.bf16.mxu0 %v5138
    %5738 = vmatpush1.bf16.msra.mxu0 %v5137
    %5739 = vmatprep.subr.bf16.mxu0 %v5134
    %5740 = vmatpush1.bf16.msra.mxu0 %v5133
    %5741 = vmatprep.subr.bf16.mxu0 %v5130
    %5742 = vmatpush1.bf16.msra.mxu0 %v5129
    %5743 = vmatprep.subr.bf16.mxu0 %v5126
    %5744 = vmatpush1.bf16.msra.mxu0 %v5125
    %5745 = vmatprep.subr.bf16.mxu0 %v5122
    %5746 = vmatpush1.bf16.msra.mxu0 %v5121
    %5747 = vmatprep.subr.bf16.mxu0 %v5118
    %5748 = vmatpush1.bf16.msra.mxu0 %v5117
    %5749 = vmatprep.subr.bf16.mxu0 %v5114
    %5750 = vmatpush1.bf16.msra.mxu0 %v5113
    %5751 = vmatprep.subr.bf16.mxu0 %v5110
    %5752 = vmatpush1.bf16.msra.mxu0 %v5109
    %5753 = vmatprep.subr.bf16.mxu0 %v5170
    %5754 = vmatpush2.bf16.msra.mxu0 %v5169
    %5755 = vmatprep.subr.bf16.mxu0 %v5166
    %5756 = vmatpush2.bf16.msra.mxu0 %v5165
    %5757 = vmatprep.subr.bf16.mxu0 %v5162
    %5758 = vmatpush2.bf16.msra.mxu0 %v5161
    %5759 = vmatprep.subr.bf16.mxu0 %v5158
    %5760 = vmatpush2.bf16.msra.mxu0 %v5157
    %5761 = vmatprep.subr.bf16.mxu0 %v5154
    %5762 = vmatpush2.bf16.msra.mxu0 %v5153
    %5763 = vmatprep.subr.bf16.mxu0 %v5150
    %5764 = vmatpush2.bf16.msra.mxu0 %v5149
    %5765 = vmatprep.subr.bf16.mxu0 %v5146
    %5766 = vmatpush2.bf16.msra.mxu0 %v5145
    %5767 = vmatprep.subr.bf16.mxu0 %v5142
    %5768 = vmatpush2.bf16.msra.mxu0 %v5141
    %5769 = vmatprep.mubr.bf16.mxu0 %v3930
    %5770 = vmatmul.mubr.bf16.gmra.mxu0 %v3929
    %v5771 = vpop.f32.mrf.mxu0
    %v5772 = vadd.f32 %v5731, %v5771
    %v5773 = vpop.f32.mrf.mxu0
    %v5774 = vadd.f32 %v5733, %v5773
    %v5775 = vpop.f32.mrf.mxu0
    %v5776 = vpop.f32.mrf.mxu0
    %5777 = vdwg.mxu0
    %5778 = vmatprep.subr.bf16.mxu0 %v5202
    %5779 = vmatpush1.bf16.msra.mxu0 %v5201
    %5780 = vmatprep.subr.bf16.mxu0 %v5198
    %5781 = vmatpush1.bf16.msra.mxu0 %v5197
    %5782 = vmatprep.subr.bf16.mxu0 %v5194
    %5783 = vmatpush1.bf16.msra.mxu0 %v5193
    %5784 = vmatprep.subr.bf16.mxu0 %v5190
    %5785 = vmatpush1.bf16.msra.mxu0 %v5189
    %5786 = vmatprep.subr.bf16.mxu0 %v5186
    %5787 = vmatpush1.bf16.msra.mxu0 %v5185
    %5788 = vmatprep.subr.bf16.mxu0 %v5182
    %5789 = vmatpush1.bf16.msra.mxu0 %v5181
    %5790 = vmatprep.subr.bf16.mxu0 %v5178
    %5791 = vmatpush1.bf16.msra.mxu0 %v5177
    %5792 = vmatprep.subr.bf16.mxu0 %v5174
    %5793 = vmatpush1.bf16.msra.mxu0 %v5173
    %5794 = vmatprep.subr.bf16.mxu0 %v5234
    %5795 = vmatpush2.bf16.msra.mxu0 %v5233
    %5796 = vmatprep.subr.bf16.mxu0 %v5230
    %5797 = vmatpush2.bf16.msra.mxu0 %v5229
    %5798 = vmatprep.subr.bf16.mxu0 %v5226
    %5799 = vmatpush2.bf16.msra.mxu0 %v5225
    %5800 = vmatprep.subr.bf16.mxu0 %v5222
    %5801 = vmatpush2.bf16.msra.mxu0 %v5221
    %5802 = vmatprep.subr.bf16.mxu0 %v5218
    %5803 = vmatpush2.bf16.msra.mxu0 %v5217
    %5804 = vmatprep.subr.bf16.mxu0 %v5214
    %5805 = vmatpush2.bf16.msra.mxu0 %v5213
    %5806 = vmatprep.subr.bf16.mxu0 %v5210
    %5807 = vmatpush2.bf16.msra.mxu0 %v5209
    %5808 = vmatprep.subr.bf16.mxu0 %v5206
    %5809 = vmatpush2.bf16.msra.mxu0 %v5205
    %5810 = vmatprep.mubr.bf16.mxu0 %v3932
    %5811 = vmatmul.mubr.bf16.gmra.mxu0 %v3931
    %v5812 = vpop.f32.mrf.mxu0
    %v5813 = vadd.f32 %v5772, %v5812
    %v5814 = vpop.f32.mrf.mxu0
    %v5815 = vadd.f32 %v5774, %v5814
    %v5816 = vpop.f32.mrf.mxu0
    %v5817 = vpop.f32.mrf.mxu0
    %5818 = vdwg.mxu0
    %v5819 = vmax.f32 %v5649, 0.0
    %v5820 = vmax.f32 %v5651, 0.0
    %v5821 = vmax.f32 %v5813, 0.0
    %v5822 = vmax.f32 %v5815, 0.0
    %v5823 = vpack.c.bf16 %v5819, %v5819
    %v5824 = vpack.c.bf16 %v5820, %v5820
    %v5825 = vpack.c.bf16 %v5821, %v5821
    %v5826 = vpack.c.bf16 %v5822, %v5822
    %v5827 = vld [vmem:[#allocation11] sm:$0xf]
    %v5828 = vld [vmem:[#allocation11 + $0x4] sm:$0xf]
    %v5829 = vld [vmem:[#allocation11 + $0x8] sm:$0xf]
    %v5830 = vld [vmem:[#allocation11 + $0xc] sm:$0xf]
    %v5831 = vld [vmem:[#allocation11 + $0x10] sm:$0xf]
    %v5832 = vld [vmem:[#allocation11 + $0x14] sm:$0xf]
    %v5833 = vld [vmem:[#allocation11 + $0x18] sm:$0xf]
    %v5834 = vld [vmem:[#allocation11 + $0x1c] sm:$0xf]
    %v5835 = vld [vmem:[#allocation11 + $0x20] sm:$0xf]
    %v5836 = vld [vmem:[#allocation11 + $0x24] sm:$0xf]
    %v5837 = vld [vmem:[#allocation11 + $0x28] sm:$0xf]
    %v5838 = vld [vmem:[#allocation11 + $0x2c] sm:$0xf]
    %v5839 = vld [vmem:[#allocation11 + $0x30] sm:$0xf]
    %v5840 = vld [vmem:[#allocation11 + $0x34] sm:$0xf]
    %v5841 = vld [vmem:[#allocation11 + $0x38] sm:$0xf]
    %v5842 = vld [vmem:[#allocation11 + $0x3c] sm:$0xf]
    %v5843 = vld [vmem:[#allocation11 + $0x40] sm:$0xf]
    %v5844 = vld [vmem:[#allocation11 + $0x44] sm:$0xf]
    %v5845 = vld [vmem:[#allocation11 + $0x48] sm:$0xf]
    %v5846 = vld [vmem:[#allocation11 + $0x4c] sm:$0xf]
    %v5847 = vld [vmem:[#allocation11 + $0x50] sm:$0xf]
    %v5848 = vld [vmem:[#allocation11 + $0x54] sm:$0xf]
    %v5849 = vld [vmem:[#allocation11 + $0x58] sm:$0xf]
    %v5850 = vld [vmem:[#allocation11 + $0x5c] sm:$0xf]
    %v5851 = vld [vmem:[#allocation11 + $0x60] sm:$0xf]
    %v5852 = vld [vmem:[#allocation11 + $0x64] sm:$0xf]
    %v5853 = vld [vmem:[#allocation11 + $0x68] sm:$0xf]
    %v5854 = vld [vmem:[#allocation11 + $0x6c] sm:$0xf]
    %v5855 = vld [vmem:[#allocation11 + $0x70] sm:$0xf]
    %v5856 = vld [vmem:[#allocation11 + $0x74] sm:$0xf]
    %v5857 = vld [vmem:[#allocation11 + $0x78] sm:$0xf]
    %v5858 = vld [vmem:[#allocation11 + $0x7c] sm:$0xf]
    %v5859 = vld [vmem:[#allocation11 + $0x80] sm:$0xf]
    %v5860 = vld [vmem:[#allocation11 + $0x84] sm:$0xf]
    %v5861 = vld [vmem:[#allocation11 + $0x88] sm:$0xf]
    %v5862 = vld [vmem:[#allocation11 + $0x8c] sm:$0xf]
    %v5863 = vld [vmem:[#allocation11 + $0x90] sm:$0xf]
    %v5864 = vld [vmem:[#allocation11 + $0x94] sm:$0xf]
    %v5865 = vld [vmem:[#allocation11 + $0x98] sm:$0xf]
    %v5866 = vld [vmem:[#allocation11 + $0x9c] sm:$0xf]
    %v5867 = vld [vmem:[#allocation11 + $0xa0] sm:$0xf]
    %v5868 = vld [vmem:[#allocation11 + $0xa4] sm:$0xf]
    %v5869 = vld [vmem:[#allocation11 + $0xa8] sm:$0xf]
    %v5870 = vld [vmem:[#allocation11 + $0xac] sm:$0xf]
    %v5871 = vld [vmem:[#allocation11 + $0xb0] sm:$0xf]
    %v5872 = vld [vmem:[#allocation11 + $0xb4] sm:$0xf]
    %v5873 = vld [vmem:[#allocation11 + $0xb8] sm:$0xf]
    %v5874 = vld [vmem:[#allocation11 + $0xbc] sm:$0xf]
    %v5875 = vld [vmem:[#allocation11 + $0xc0] sm:$0xf]
    %v5876 = vld [vmem:[#allocation11 + $0xc4] sm:$0xf]
    %v5877 = vld [vmem:[#allocation11 + $0xc8] sm:$0xf]
    %v5878 = vld [vmem:[#allocation11 + $0xcc] sm:$0xf]
    %v5879 = vld [vmem:[#allocation11 + $0xd0] sm:$0xf]
    %v5880 = vld [vmem:[#allocation11 + $0xd4] sm:$0xf]
    %v5881 = vld [vmem:[#allocation11 + $0xd8] sm:$0xf]
    %v5882 = vld [vmem:[#allocation11 + $0xdc] sm:$0xf]
    %v5883 = vld [vmem:[#allocation11 + $0xe0] sm:$0xf]
    %v5884 = vld [vmem:[#allocation11 + $0xe4] sm:$0xf]
    %v5885 = vld [vmem:[#allocation11 + $0xe8] sm:$0xf]
    %v5886 = vld [vmem:[#allocation11 + $0xec] sm:$0xf]
    %v5887 = vld [vmem:[#allocation11 + $0xf0] sm:$0xf]
    %v5888 = vld [vmem:[#allocation11 + $0xf4] sm:$0xf]
    %v5889 = vld [vmem:[#allocation11 + $0xf8] sm:$0xf]
    %v5890 = vld [vmem:[#allocation11 + $0xfc] sm:$0xf]
    %v5891 = vld [vmem:[#allocation13] sm:$0x1]
    %v5893 = vlaneseq
    %v5894 = vshrl.u32 %v5893, 7
    %v5895 = vsub.s32 0, %v5894
    %v5896 = vrot.slane %v5891, %v5895
    %v5962 = vunpack.c.l.b16 %v5827
    %v5963 = vunpack.c.l.b16 %v5828
    %v5964 = vunpack.c.l.b16 %v5829
    %v5965 = vunpack.c.l.b16 %v5830
    %v5966 = vunpack.c.l.b16 %v5831
    %v5967 = vunpack.c.l.b16 %v5832
    %v5968 = vunpack.c.l.b16 %v5833
    %v5969 = vunpack.c.l.b16 %v5834
    %v5970 = vunpack.c.l.b16 %v5835
    %v5971 = vunpack.c.l.b16 %v5836
    %v5972 = vunpack.c.l.b16 %v5837
    %v5973 = vunpack.c.l.b16 %v5838
    %v5974 = vunpack.c.l.b16 %v5839
    %v5975 = vunpack.c.l.b16 %v5840
    %v5976 = vunpack.c.l.b16 %v5841
    %v5977 = vunpack.c.l.b16 %v5842
    %v5978 = vunpack.c.l.b16 %v5843
    %v5979 = vunpack.c.l.b16 %v5844
    %v5980 = vunpack.c.l.b16 %v5845
    %v5981 = vunpack.c.l.b16 %v5846
    %v5982 = vunpack.c.l.b16 %v5847
    %v5983 = vunpack.c.l.b16 %v5848
    %v5984 = vunpack.c.l.b16 %v5849
    %v5985 = vunpack.c.l.b16 %v5850
    %v5986 = vunpack.c.l.b16 %v5851
    %v5987 = vunpack.c.l.b16 %v5852
    %v5988 = vunpack.c.l.b16 %v5853
    %v5989 = vunpack.c.l.b16 %v5854
    %v5990 = vunpack.c.l.b16 %v5855
    %v5991 = vunpack.c.l.b16 %v5856
    %v5992 = vunpack.c.l.b16 %v5857
    %v5993 = vunpack.c.l.b16 %v5858
    %v5994 = vunpack.c.l.b16 %v5859
    %v5995 = vunpack.c.l.b16 %v5860
    %v5996 = vunpack.c.l.b16 %v5861
    %v5997 = vunpack.c.l.b16 %v5862
    %v5998 = vunpack.c.l.b16 %v5863
    %v5999 = vunpack.c.l.b16 %v5864
    %v6000 = vunpack.c.l.b16 %v5865
    %v6001 = vunpack.c.l.b16 %v5866
    %v6002 = vunpack.c.l.b16 %v5867
    %v6003 = vunpack.c.l.b16 %v5868
    %v6004 = vunpack.c.l.b16 %v5869
    %v6005 = vunpack.c.l.b16 %v5870
    %v6006 = vunpack.c.l.b16 %v5871
    %v6007 = vunpack.c.l.b16 %v5872
    %v6008 = vunpack.c.l.b16 %v5873
    %v6009 = vunpack.c.l.b16 %v5874
    %v6010 = vunpack.c.l.b16 %v5875
    %v6011 = vunpack.c.l.b16 %v5876
    %v6012 = vunpack.c.l.b16 %v5877
    %v6013 = vunpack.c.l.b16 %v5878
    %v6014 = vunpack.c.l.b16 %v5879
    %v6015 = vunpack.c.l.b16 %v5880
    %v6016 = vunpack.c.l.b16 %v5881
    %v6017 = vunpack.c.l.b16 %v5882
    %v6018 = vunpack.c.l.b16 %v5883
    %v6019 = vunpack.c.l.b16 %v5884
    %v6020 = vunpack.c.l.b16 %v5885
    %v6021 = vunpack.c.l.b16 %v5886
    %v6022 = vunpack.c.l.b16 %v5887
    %v6023 = vunpack.c.l.b16 %v5888
    %v6024 = vunpack.c.l.b16 %v5889
    %v6025 = vunpack.c.l.b16 %v5890
    %v6026 = vpack.c.b16 %v5963, %v5962
    %v6027 = vpack.c.b16 %v5965, %v5964
    %v6028 = vpack.c.b16 %v5967, %v5966
    %v6029 = vpack.c.b16 %v5969, %v5968
    %v6030 = vpack.c.b16 %v5971, %v5970
    %v6031 = vpack.c.b16 %v5973, %v5972
    %v6032 = vpack.c.b16 %v5975, %v5974
    %v6033 = vpack.c.b16 %v5977, %v5976
    %v6034 = vpack.c.b16 %v5979, %v5978
    %v6035 = vpack.c.b16 %v5981, %v5980
    %v6036 = vpack.c.b16 %v5983, %v5982
    %v6037 = vpack.c.b16 %v5985, %v5984
    %v6038 = vpack.c.b16 %v5987, %v5986
    %v6039 = vpack.c.b16 %v5989, %v5988
    %v6040 = vpack.c.b16 %v5991, %v5990
    %v6041 = vpack.c.b16 %v5993, %v5992
    %v6042 = vpack.c.b16 %v5995, %v5994
    %v6043 = vpack.c.b16 %v5997, %v5996
    %v6044 = vpack.c.b16 %v5999, %v5998
    %v6045 = vpack.c.b16 %v6001, %v6000
    %v6046 = vpack.c.b16 %v6003, %v6002
    %v6047 = vpack.c.b16 %v6005, %v6004
    %v6048 = vpack.c.b16 %v6007, %v6006
    %v6049 = vpack.c.b16 %v6009, %v6008
    %v6050 = vpack.c.b16 %v6011, %v6010
    %v6051 = vpack.c.b16 %v6013, %v6012
    %v6052 = vpack.c.b16 %v6015, %v6014
    %v6053 = vpack.c.b16 %v6017, %v6016
    %v6054 = vpack.c.b16 %v6019, %v6018
    %v6055 = vpack.c.b16 %v6021, %v6020
    %v6056 = vpack.c.b16 %v6023, %v6022
    %v6057 = vpack.c.b16 %v6025, %v6024
    %6090 = vmatprep.subr.bf16.mxu0 0
    %6091 = vmatpush1.bf16.msra.mxu0 %v6033
    %6092 = vmatprep.subr.bf16.mxu0 0
    %6093 = vmatpush1.bf16.msra.mxu0 %v6032
    %6094 = vmatprep.subr.bf16.mxu0 0
    %6095 = vmatpush1.bf16.msra.mxu0 %v6031
    %6096 = vmatprep.subr.bf16.mxu0 0
    %6097 = vmatpush1.bf16.msra.mxu0 %v6030
    %6098 = vmatprep.subr.bf16.mxu0 0
    %6099 = vmatpush1.bf16.msra.mxu0 %v6029
    %6100 = vmatprep.subr.bf16.mxu0 0
    %6101 = vmatpush1.bf16.msra.mxu0 %v6028
    %6102 = vmatprep.subr.bf16.mxu0 0
    %6103 = vmatpush1.bf16.msra.mxu0 %v6027
    %6104 = vmatprep.subr.bf16.mxu0 0
    %6105 = vmatpush1.bf16.msra.mxu0 %v6026
    %6106 = vmatprep.subr.bf16.mxu0 0
    %6107 = vmatpush2.bf16.msra.mxu0 %v6041
    %6108 = vmatprep.subr.bf16.mxu0 0
    %6109 = vmatpush2.bf16.msra.mxu0 %v6040
    %6110 = vmatprep.subr.bf16.mxu0 0
    %6111 = vmatpush2.bf16.msra.mxu0 %v6039
    %6112 = vmatprep.subr.bf16.mxu0 0
    %6113 = vmatpush2.bf16.msra.mxu0 %v6038
    %6114 = vmatprep.subr.bf16.mxu0 0
    %6115 = vmatpush2.bf16.msra.mxu0 %v6037
    %6116 = vmatprep.subr.bf16.mxu0 0
    %6117 = vmatpush2.bf16.msra.mxu0 %v6036
    %6118 = vmatprep.subr.bf16.mxu0 0
    %6119 = vmatpush2.bf16.msra.mxu0 %v6035
    %6120 = vmatprep.subr.bf16.mxu0 0
    %6121 = vmatpush2.bf16.msra.mxu0 %v6034
    %6122 = vmatprep.mubr.bf16.mxu0 %v5824
    %6123 = vmatmul.mubr.bf16.gmra.mxu0 %v5823
    %v6124 = vpop.f32.mrf.mxu0
    %v6125 = vadd.f32 %v5896, %v6124
    %v6126 = vpop.f32.mrf.mxu0
    %v6127 = vpop.f32.mrf.mxu0
    %v6128 = vpop.f32.mrf.mxu0
    %6129 = vdwg.mxu0
    %6130 = vmatprep.subr.bf16.mxu0 0
    %6131 = vmatpush1.bf16.msra.mxu0 %v6049
    %6132 = vmatprep.subr.bf16.mxu0 0
    %6133 = vmatpush1.bf16.msra.mxu0 %v6048
    %6134 = vmatprep.subr.bf16.mxu0 0
    %6135 = vmatpush1.bf16.msra.mxu0 %v6047
    %6136 = vmatprep.subr.bf16.mxu0 0
    %6137 = vmatpush1.bf16.msra.mxu0 %v6046
    %6138 = vmatprep.subr.bf16.mxu0 0
    %6139 = vmatpush1.bf16.msra.mxu0 %v6045
    %6140 = vmatprep.subr.bf16.mxu0 0
    %6141 = vmatpush1.bf16.msra.mxu0 %v6044
    %6142 = vmatprep.subr.bf16.mxu0 0
    %6143 = vmatpush1.bf16.msra.mxu0 %v6043
    %6144 = vmatprep.subr.bf16.mxu0 0
    %6145 = vmatpush1.bf16.msra.mxu0 %v6042
    %6146 = vmatprep.subr.bf16.mxu0 0
    %6147 = vmatpush2.bf16.msra.mxu0 %v6057
    %6148 = vmatprep.subr.bf16.mxu0 0
    %6149 = vmatpush2.bf16.msra.mxu0 %v6056
    %6150 = vmatprep.subr.bf16.mxu0 0
    %6151 = vmatpush2.bf16.msra.mxu0 %v6055
    %6152 = vmatprep.subr.bf16.mxu0 0
    %6153 = vmatpush2.bf16.msra.mxu0 %v6054
    %6154 = vmatprep.subr.bf16.mxu0 0
    %6155 = vmatpush2.bf16.msra.mxu0 %v6053
    %6156 = vmatprep.subr.bf16.mxu0 0
    %6157 = vmatpush2.bf16.msra.mxu0 %v6052
    %6158 = vmatprep.subr.bf16.mxu0 0
    %6159 = vmatpush2.bf16.msra.mxu0 %v6051
    %6160 = vmatprep.subr.bf16.mxu0 0
    %6161 = vmatpush2.bf16.msra.mxu0 %v6050
    %6162 = vmatprep.mubr.bf16.mxu0 %v5826
    %6163 = vmatmul.mubr.bf16.gmra.mxu0 %v5825
    %v6164 = vpop.f32.mrf.mxu0
    %v6165 = vadd.f32 %v6125, %v6164
    %v6166 = vpop.f32.mrf.mxu0
    %v6167 = vpop.f32.mrf.mxu0
    %v6168 = vpop.f32.mrf.mxu0
    %6169 = vdwg.mxu0
    %v6170 = vtanh.pop %v6165
    %6171 = vst [vmem:[#allocation14] sm:$0xff] %v6170
    // Predicated region
    $region58: #{tpu_custom_call.1} parent=1 // pred_check
      _
    $region59: #{tpu_custom_call.1} parent=1 // pred_check_branch
      %6173 = sbr.rel (0) target = $region61
    $region60: #{tpu_custom_call.1} parent=1 // pred_region
      %s6175 = ssub.s32 128, 128
      %6176 = vsyncadd [#allocation4], %s6175
      %s6178 = sshll.u32 [#allocation14], 4
      %s6179 = int_to_ptr.vmem [resolvable:$true] %s6178
      %6181 = dma.vmem_to_hbm [thread:$0]  %s6179, 128, %s7, [#allocation4]
    $region61: #{tpu_custom_call.1} parent=1 // pred_fallthru
      _
    // Predicated region
    $region62: #{tpu_custom_call.1} parent=1 // pred_check
      _
    $region63: #{tpu_custom_call.1} parent=1 // pred_check_branch
      %6183 = sbr.rel (0) target = $region65
    $region64: #{tpu_custom_call.1} parent=1 // pred_region
      %6184 = dma.done [#allocation4], 128
    $region65: #{tpu_custom_call.1} parent=1 // pred_fallthru
      _
    %6185 = vsyncpa [#allocation3], 1
    %6186 = vsyncpa [#allocation6], 1
    %6187 = vsyncpa [#allocation9], 1
    %6188 = vsyncpa [#allocation12], 1
    %6189 = vsyncpa [#allocation4], 1

// kernel: tpu_custom_call.1
$region0: #{tpu_custom_call.1}
  #allocation0 [shape = 'u32[]', space=smem, size = 0x4, offset = 0x4, fixed_abs, tag = 'smem constant byte address 0x4 - core index']
  #allocation1 [shape = 'u32[144,128]{1,0:T(1,128)}', space=vmem, size = 0x12000, scoped, tag = 'internal scratch']
  %s0 = inlined_call_operand.hbm [shape: bf16[8,1024], index: 0, kind: input, shape index: {}]
  %s1 = inlined_call_operand.hbm [shape: bf16[1024,1024], index: 1, kind: input, shape index: {}]
  %s2 = inlined_call_operand.hbm [shape: f32[1,1024], index: 2, kind: input, shape index: {}]
  %s3 = inlined_call_operand.hbm [shape: bf16[1024,512], index: 3, kind: input, shape index: {}]
  %s4 = inlined_call_operand.hbm [shape: f32[1,512], index: 4, kind: input, shape index: {}]
  %s5 = inlined_call_operand.hbm [shape: bf16[512,128], index: 5, kind: input, shape index: {}]
  %s6 = inlined_call_operand.hbm [shape: f32[1,128], index: 6, kind: input, shape index: {}]
  %s7 = inlined_call_operand.hbm [shape: f32[8,128], index: 7, kind: output, shape index: {}]
  %s8 = sld [smem:[#allocation0]]
  $region66: #{tpu_custom_call.1} parent=0
    _
  %s10 = ssub.s32 1, %s8
  %s11 = scalar_select 0, %s10, %s8
  $region1: #{tpu_custom_call.1} parent=0
    #allocation2 [shape = 'u8[16384]{0}', space=vmem, size = 0x4000, scoped, tag = 'input window, operand 0, single buffered']
    #allocation3 [shape = 's32[1]{0}', space=sflag, size = 0x4, scoped, tag = 'scoped memory for tpu_custom_call.1']
    #allocation4 [shape = 's32[1]{0}', space=sflag, size = 0x4, scoped, tag = 'scoped memory for tpu_custom_call.1']
    #allocation5 [shape = 'u8[2097152]{0}', space=vmem, size = 0x200000, scoped, tag = 'input window, operand 1, single buffered']
    #allocation6 [shape = 's32[1]{0}', space=sflag, size = 0x4, scoped, tag = 'scoped memory for tpu_custom_call.1']
    #allocation7 [shape = 'u8[4096]{0}', space=vmem, size = 0x1000, scoped, tag = 'input window, operand 2, single buffered']
    #allocation8 [shape = 'u8[1048576]{0}', space=vmem, size = 0x100000, scoped, tag = 'input window, operand 3, single buffered']
    #allocation9 [shape = 's32[1]{0}', space=sflag, size = 0x4, scoped, tag = 'scoped memory for tpu_custom_call.1']
    #allocation10 [shape = 'u8[2048]{0}', space=vmem, size = 0x800, scoped, tag = 'input window, operand 4, single buffered']
    #allocation11 [shape = 'u8[131072]{0}', space=vmem, size = 0x20000, scoped, tag = 'input window, operand 5, single buffered']
    #allocation12 [shape = 's32[1]{0}', space=sflag, size = 0x4, scoped, tag = 'scoped memory for tpu_custom_call.1']
    #allocation13 [shape = 'u8[512]{0}', space=vmem, size = 0x400, scoped, tag = 'input window, operand 6, single buffered']
    #allocation14 [shape = 'u8[4096]{0}', space=vmem, size = 0x1000, scoped, tag = 'output window, operand 0, single buffered']
    %12 = vsyncpa [#allocation3], 0
    %13 = vsyncpa [#allocation6], 0
    %14 = vsyncpa [#allocation9], 0
    %15 = vsyncpa [#allocation12], 0
    %16 = vsyncpa [#allocation4], 0
    // Predicated region
    $region2: #{tpu_custom_call.1} parent=1 // pred_check
      _
    $region3: #{tpu_custom_call.1} parent=1 // pred_check_branch
      %18 = sbr.rel (0) target = $region5
    $region4: #{tpu_custom_call.1} parent=1 // pred_region
      %s20 = ssub.s32 512, 512
      %21 = vsyncadd [#allocation3], %s20
      %s23 = sshll.u32 [#allocation2], 4
      %s24 = int_to_ptr.vmem [resolvable:$true] %s23
      %26 = dma.hbm_to_vmem [thread:$0]  %s0, 512, %s24, [#allocation3]
    $region5: #{tpu_custom_call.1} parent=1 // pred_fallthru
      _
    // Predicated region
    $region6: #{tpu_custom_call.1} parent=1 // pred_check
      _
    $region7: #{tpu_custom_call.1} parent=1 // pred_check_branch
      %28 = sbr.rel (0) target = $region9
    $region8: #{tpu_custom_call.1} parent=1 // pred_region
      %s30 = ssub.s32 65536, 65536
      %31 = vsyncadd [#allocation6], %s30
      %s32 = sshll.u32 [#allocation5], 4
      %s33 = int_to_ptr.vmem [resolvable:$true] %s32
      %38 = dma.hbm_to_vmem [thread:$0]  %s1, 65536, %s33, [#allocation6], 512, 512, 32
    $region9: #{tpu_custom_call.1} parent=1 // pred_fallthru
      _
    // Predicated region
    $region10: #{tpu_custom_call.1} parent=1 // pred_check
      _
    $region11: #{tpu_custom_call.1} parent=1 // pred_check_branch
      %40 = sbr.rel (0) target = $region13
    $region12: #{tpu_custom_call.1} parent=1 // pred_region
      %s42 = ssub.s32 128, 128
      %43 = vsyncadd [#allocation6], %s42
      %s45 = sshll.u32 [#allocation7], 4
      %s46 = int_to_ptr.vmem [resolvable:$true] %s45
      %48 = dma.hbm_to_vmem [thread:$0]  %s2, 128, %s46, [#allocation6]
    $region13: #{tpu_custom_call.1} parent=1 // pred_fallthru
      _
    // Predicated region
    $region14: #{tpu_custom_call.1} parent=1 // pred_check
      _
    $region15: #{tpu_custom_call.1} parent=1 // pred_check_branch
      %50 = sbr.rel (0) target = $region17
    $region16: #{tpu_custom_call.1} parent=1 // pred_region
      %s52 = ssub.s32 32768, 32768
      %53 = vsyncadd [#allocation9], %s52
      %s54 = sshll.u32 [#allocation8], 4
      %s55 = int_to_ptr.vmem [resolvable:$true] %s54
      %60 = dma.hbm_to_vmem [thread:$0]  %s3, 32768, %s55, [#allocation9], 256, 256, 16
    $region17: #{tpu_custom_call.1} parent=1 // pred_fallthru
      _
    // Predicated region
    $region18: #{tpu_custom_call.1} parent=1 // pred_check
      _
    $region19: #{tpu_custom_call.1} parent=1 // pred_check_branch
      %62 = sbr.rel (0) target = $region21
    $region20: #{tpu_custom_call.1} parent=1 // pred_region
      %s64 = ssub.s32 64, 64
      %65 = vsyncadd [#allocation9], %s64
      %s67 = sshll.u32 [#allocation10], 4
      %s68 = int_to_ptr.vmem [resolvable:$true] %s67
      %70 = dma.hbm_to_vmem [thread:$0]  %s4, 64, %s68, [#allocation9]
    $region21: #{tpu_custom_call.1} parent=1 // pred_fallthru
      _
    // Predicated region
    $region22: #{tpu_custom_call.1} parent=1 // pred_check
      _
    $region23: #{tpu_custom_call.1} parent=1 // pred_check_branch
      %72 = sbr.rel (0) target = $region25
    $region24: #{tpu_custom_call.1} parent=1 // pred_region
      %s74 = ssub.s32 4096, 4096
      %75 = vsyncadd [#allocation12], %s74
      %s76 = sshll.u32 [#allocation11], 4
      %s77 = int_to_ptr.vmem [resolvable:$true] %s76
      %82 = dma.hbm_to_vmem [thread:$0]  %s5, 4096, %s77, [#allocation12], 64, 64, 4
    $region25: #{tpu_custom_call.1} parent=1 // pred_fallthru
      _
    // Predicated region
    $region26: #{tpu_custom_call.1} parent=1 // pred_check
      _
    $region27: #{tpu_custom_call.1} parent=1 // pred_check_branch
      %84 = sbr.rel (0) target = $region29
    $region28: #{tpu_custom_call.1} parent=1 // pred_region
      %s86 = ssub.s32 16, 16
      %87 = vsyncadd [#allocation12], %s86
      %s89 = sshll.u32 [#allocation13], 4
      %s90 = int_to_ptr.vmem [resolvable:$true] %s89
      %92 = dma.hbm_to_vmem [thread:$0]  %s6, 16, %s90, [#allocation12]
    $region29: #{tpu_custom_call.1} parent=1 // pred_fallthru
      _
    // Predicated region
    $region30: #{tpu_custom_call.1} parent=1 // pred_check
      _
    $region31: #{tpu_custom_call.1} parent=1 // pred_check_branch
      %94 = sbr.rel (0) target = $region33
    $region32: #{tpu_custom_call.1} parent=1 // pred_region
      %95 = dma.done [#allocation3], 512
    $region33: #{tpu_custom_call.1} parent=1 // pred_fallthru
      _
    // Predicated region
    $region34: #{tpu_custom_call.1} parent=1 // pred_check
      _
    $region35: #{tpu_custom_call.1} parent=1 // pred_check_branch
      %97 = sbr.rel (0) target = $region37
    $region36: #{tpu_custom_call.1} parent=1 // pred_region
      %98 = dma.done [#allocation6], 65536
    $region37: #{tpu_custom_call.1} parent=1 // pred_fallthru
      _
    // Predicated region
    $region38: #{tpu_custom_call.1} parent=1 // pred_check
      _
    $region39: #{tpu_custom_call.1} parent=1 // pred_check_branch
      %100 = sbr.rel (0) target = $region41
    $region40: #{tpu_custom_call.1} parent=1 // pred_region
      %101 = dma.done [#allocation6], 128
    $region41: #{tpu_custom_call.1} parent=1 // pred_fallthru
      _
    // Predicated region
    $region42: #{tpu_custom_call.1} parent=1 // pred_check
      _
    $region43: #{tpu_custom_call.1} parent=1 // pred_check_branch
      %103 = sbr.rel (0) target = $region45
    $region44: #{tpu_custom_call.1} parent=1 // pred_region
      %104 = dma.done [#allocation9], 32768
    $region45: #{tpu_custom_call.1} parent=1 // pred_fallthru
      _
    // Predicated region
    $region46: #{tpu_custom_call.1} parent=1 // pred_check
      _
    $region47: #{tpu_custom_call.1} parent=1 // pred_check_branch
      %106 = sbr.rel (0) target = $region49
    $region48: #{tpu_custom_call.1} parent=1 // pred_region
      %107 = dma.done [#allocation9], 64
    $region49: #{tpu_custom_call.1} parent=1 // pred_fallthru
      _
    // Predicated region
    $region50: #{tpu_custom_call.1} parent=1 // pred_check
      _
    $region51: #{tpu_custom_call.1} parent=1 // pred_check_branch
      %109 = sbr.rel (0) target = $region53
    $region52: #{tpu_custom_call.1} parent=1 // pred_region
      %110 = dma.done [#allocation12], 4096
    $region53: #{tpu_custom_call.1} parent=1 // pred_fallthru
      _
    // Predicated region
    $region54: #{tpu_custom_call.1} parent=1 // pred_check
      _
    $region55: #{tpu_custom_call.1} parent=1 // pred_check_branch
      %112 = sbr.rel (0) target = $region57
    $region56: #{tpu_custom_call.1} parent=1 // pred_region
      %113 = dma.done [#allocation12], 16
    $region57: #{tpu_custom_call.1} parent=1 // pred_fallthru
      _
    %v115 = vld [vmem:[#allocation2] sm:$0xff]
    %v116 = vld [vmem:[#allocation2 + $0x8] sm:$0xff]
    %v117 = vld [vmem:[#allocation2 + $0x10] sm:$0xff]
    %v118 = vld [vmem:[#allocation2 + $0x18] sm:$0xff]
    %v119 = vld [vmem:[#allocation5] sm:$0xff]
    %v120 = vld [vmem:[#allocation5 + $0x8] sm:$0xff]
    %v121 = vld [vmem:[#allocation5 + $0x10] sm:$0xff]
    %v122 = vld [vmem:[#allocation5 + $0x18] sm:$0xff]
    %v123 = vld [vmem:[#allocation5 + $0x20] sm:$0xff]
    %v124 = vld [vmem:[#allocation5 + $0x28] sm:$0xff]
    %v125 = vld [vmem:[#allocation5 + $0x30] sm:$0xff]
    %v126 = vld [vmem:[#allocation5 + $0x38] sm:$0xff]
    %v127 = vld [vmem:[#allocation5 + $0x40] sm:$0xff]
    %v128 = vld [vmem:[#allocation5 + $0x48] sm:$0xff]
    %v129 = vld [vmem:[#allocation5 + $0x50] sm:$0xff]
    %v130 = vld [vmem:[#allocation5 + $0x58] sm:$0xff]
    %v131 = vld [vmem:[#allocation5 + $0x60] sm:$0xff]
    %v132 = vld [vmem:[#allocation5 + $0x68] sm:$0xff]
    %v133 = vld [vmem:[#allocation5 + $0x70] sm:$0xff]
    %v134 = vld [vmem:[#allocation5 + $0x78] sm:$0xff]
    %v135 = vld [vmem:[#allocation5 + $0x80] sm:$0xff]
    %v136 = vld [vmem:[#allocation5 + $0x88] sm:$0xff]
    %v137 = vld [vmem:[#allocation5 + $0x90] sm:$0xff]
    %v138 = vld [vmem:[#allocation5 + $0x98] sm:$0xff]
    %v139 = vld [vmem:[#allocation5 + $0xa0] sm:$0xff]
    %v140 = vld [vmem:[#allocation5 + $0xa8] sm:$0xff]
    %v141 = vld [vmem:[#allocation5 + $0xb0] sm:$0xff]
    %v142 = vld [vmem:[#allocation5 + $0xb8] sm:$0xff]
    %v143 = vld [vmem:[#allocation5 + $0xc0] sm:$0xff]
    %v144 = vld [vmem:[#allocation5 + $0xc8] sm:$0xff]
    %v145 = vld [vmem:[#allocation5 + $0xd0] sm:$0xff]
    %v146 = vld [vmem:[#allocation5 + $0xd8] sm:$0xff]
    %v147 = vld [vmem:[#allocation5 + $0xe0] sm:$0xff]
    %v148 = vld [vmem:[#allocation5 + $0xe8] sm:$0xff]
    %v149 = vld [vmem:[#allocation5 + $0xf0] sm:$0xff]
    %v150 = vld [vmem:[#allocation5 + $0xf8] sm:$0xff]
    %v151 = vld [vmem:[#allocation5 + $0x100] sm:$0xff]
    %v152 = vld [vmem:[#allocation5 + $0x108] sm:$0xff]
    %v153 = vld [vmem:[#allocation5 + $0x110] sm:$0xff]
    %v154 = vld [vmem:[#allocation5 + $0x118] sm:$0xff]
    %v155 = vld [vmem:[#allocation5 + $0x120] sm:$0xff]
    %v156 = vld [vmem:[#allocation5 + $0x128] sm:$0xff]
    %v157 = vld [vmem:[#allocation5 + $0x130] sm:$0xff]
    %v158 = vld [vmem:[#allocation5 + $0x138] sm:$0xff]
    %v159 = vld [vmem:[#allocation5 + $0x140] sm:$0xff]
    %v160 = vld [vmem:[#allocation5 + $0x148] sm:$0xff]
    %v161 = vld [vmem:[#allocation5 + $0x150] sm:$0xff]
    %v162 = vld [vmem:[#allocation5 + $0x158] sm:$0xff]
    %v163 = vld [vmem:[#allocation5 + $0x160] sm:$0xff]
    %v164 = vld [vmem:[#allocation5 + $0x168] sm:$0xff]
    %v165 = vld [vmem:[#allocation5 + $0x170] sm:$0xff]
    %v166 = vld [vmem:[#allocation5 + $0x178] sm:$0xff]
    %v167 = vld [vmem:[#allocation5 + $0x180] sm:$0xff]
    %v168 = vld [vmem:[#allocation5 + $0x188] sm:$0xff]
    %v169 = vld [vmem:[#allocation5 + $0x190] sm:$0xff]
    %v170 = vld [vmem:[#allocation5 + $0x198] sm:$0xff]
    %v171 = vld [vmem:[#allocation5 + $0x1a0] sm:$0xff]
    %v172 = vld [vmem:[#allocation5 + $0x1a8] sm:$0xff]
    %v173 = vld [vmem:[#allocation5 + $0x1b0] sm:$0xff]
    %v174 = vld [vmem:[#allocation5 + $0x1b8] sm:$0xff]
    %v175 = vld [vmem:[#allocation5 + $0x1c0] sm:$0xff]
    %v176 = vld [vmem:[#allocation5 + $0x1c8] sm:$0xff]
    %v177 = vld [vmem:[#allocation5 + $0x1d0] sm:$0xff]
    %v178 = vld [vmem:[#allocation5 + $0x1d8] sm:$0xff]
    %v179 = vld [vmem:[#allocation5 + $0x1e0] sm:$0xff]
    %v180 = vld [vmem:[#allocation5 + $0x1e8] sm:$0xff]
    %v181 = vld [vmem:[#allocation5 + $0x1f0] sm:$0xff]
    %v182 = vld [vmem:[#allocation5 + $0x1f8] sm:$0xff]
    %v183 = vld [vmem:[#allocation5 + $0x200] sm:$0xff]
    %v184 = vld [vmem:[#allocation5 + $0x208] sm:$0xff]
    %v185 = vld [vmem:[#allocation5 + $0x210] sm:$0xff]
    %v186 = vld [vmem:[#allocation5 + $0x218] sm:$0xff]
    %v187 = vld [vmem:[#allocation5 + $0x220] sm:$0xff]
    %v188 = vld [vmem:[#allocation5 + $0x228] sm:$0xff]
    %v189 = vld [vmem:[#allocation5 + $0x230] sm:$0xff]
    %v190 = vld [vmem:[#allocation5 + $0x238] sm:$0xff]
    %v191 = vld [vmem:[#allocation5 + $0x240] sm:$0xff]
    %v192 = vld [vmem:[#allocation5 + $0x248] sm:$0xff]
    %v193 = vld [vmem:[#allocation5 + $0x250] sm:$0xff]
    %v194 = vld [vmem:[#allocation5 + $0x258] sm:$0xff]
    %v195 = vld [vmem:[#allocation5 + $0x260] sm:$0xff]
    %v196 = vld [vmem:[#allocation5 + $0x268] sm:$0xff]
    %v197 = vld [vmem:[#allocation5 + $0x270] sm:$0xff]
    %v198 = vld [vmem:[#allocation5 + $0x278] sm:$0xff]
    %v199 = vld [vmem:[#allocation5 + $0x280] sm:$0xff]
    %v200 = vld [vmem:[#allocation5 + $0x288] sm:$0xff]
    %v201 = vld [vmem:[#allocation5 + $0x290] sm:$0xff]
    %v202 = vld [vmem:[#allocation5 + $0x298] sm:$0xff]
    %v203 = vld [vmem:[#allocation5 + $0x2a0] sm:$0xff]
    %v204 = vld [vmem:[#allocation5 + $0x2a8] sm:$0xff]
    %v205 = vld [vmem:[#allocation5 + $0x2b0] sm:$0xff]
    %v206 = vld [vmem:[#allocation5 + $0x2b8] sm:$0xff]
    %v207 = vld [vmem:[#allocation5 + $0x2c0] sm:$0xff]
    %v208 = vld [vmem:[#allocation5 + $0x2c8] sm:$0xff]
    %v209 = vld [vmem:[#allocation5 + $0x2d0] sm:$0xff]
    %v210 = vld [vmem:[#allocation5 + $0x2d8] sm:$0xff]
    %v211 = vld [vmem:[#allocation5 + $0x2e0] sm:$0xff]
    %v212 = vld [vmem:[#allocation5 + $0x2e8] sm:$0xff]
    %v213 = vld [vmem:[#allocation5 + $0x2f0] sm:$0xff]
    %v214 = vld [vmem:[#allocation5 + $0x2f8] sm:$0xff]
    %v215 = vld [vmem:[#allocation5 + $0x300] sm:$0xff]
    %v216 = vld [vmem:[#allocation5 + $0x308] sm:$0xff]
    %v217 = vld [vmem:[#allocation5 + $0x310] sm:$0xff]
    %v218 = vld [vmem:[#allocation5 + $0x318] sm:$0xff]
    %v219 = vld [vmem:[#allocation5 + $0x320] sm:$0xff]
    %v220 = vld [vmem:[#allocation5 + $0x328] sm:$0xff]
    %v221 = vld [vmem:[#allocation5 + $0x330] sm:$0xff]
    %v222 = vld [vmem:[#allocation5 + $0x338] sm:$0xff]
    %v223 = vld [vmem:[#allocation5 + $0x340] sm:$0xff]
    %v224 = vld [vmem:[#allocation5 + $0x348] sm:$0xff]
    %v225 = vld [vmem:[#allocation5 + $0x350] sm:$0xff]
    %v226 = vld [vmem:[#allocation5 + $0x358] sm:$0xff]
    %v227 = vld [vmem:[#allocation5 + $0x360] sm:$0xff]
    %v228 = vld [vmem:[#allocation5 + $0x368] sm:$0xff]
    %v229 = vld [vmem:[#allocation5 + $0x370] sm:$0xff]
    %v230 = vld [vmem:[#allocation5 + $0x378] sm:$0xff]
    %v231 = vld [vmem:[#allocation5 + $0x380] sm:$0xff]
    %v232 = vld [vmem:[#allocation5 + $0x388] sm:$0xff]
    %v233 = vld [vmem:[#allocation5 + $0x390] sm:$0xff]
    %v234 = vld [vmem:[#allocation5 + $0x398] sm:$0xff]
    %v235 = vld [vmem:[#allocation5 + $0x3a0] sm:$0xff]
    %v236 = vld [vmem:[#allocation5 + $0x3a8] sm:$0xff]
    %v237 = vld [vmem:[#allocation5 + $0x3b0] sm:$0xff]
    %v238 = vld [vmem:[#allocation5 + $0x3b8] sm:$0xff]
    %v239 = vld [vmem:[#allocation5 + $0x3c0] sm:$0xff]
    %v240 = vld [vmem:[#allocation5 + $0x3c8] sm:$0xff]
    %v241 = vld [vmem:[#allocation5 + $0x3d0] sm:$0xff]
    %v242 = vld [vmem:[#allocation5 + $0x3d8] sm:$0xff]
    %v243 = vld [vmem:[#allocation5 + $0x3e0] sm:$0xff]
    %v244 = vld [vmem:[#allocation5 + $0x3e8] sm:$0xff]
    %v245 = vld [vmem:[#allocation5 + $0x3f0] sm:$0xff]
    %v246 = vld [vmem:[#allocation5 + $0x3f8] sm:$0xff]
    %v247 = vld [vmem:[#allocation5 + $0x400] sm:$0xff]
    %v248 = vld [vmem:[#allocation5 + $0x408] sm:$0xff]
    %v249 = vld [vmem:[#allocation5 + $0x410] sm:$0xff]
    %v250 = vld [vmem:[#allocation5 + $0x418] sm:$0xff]
    %v251 = vld [vmem:[#allocation5 + $0x420] sm:$0xff]
    %v252 = vld [vmem:[#allocation5 + $0x428] sm:$0xff]
    %v253 = vld [vmem:[#allocation5 + $0x430] sm:$0xff]
    %v254 = vld [vmem:[#allocation5 + $0x438] sm:$0xff]
    %v255 = vld [vmem:[#allocation5 + $0x440] sm:$0xff]
    %v256 = vld [vmem:[#allocation5 + $0x448] sm:$0xff]
    %v257 = vld [vmem:[#allocation5 + $0x450] sm:$0xff]
    %v258 = vld [vmem:[#allocation5 + $0x458] sm:$0xff]
    %v259 = vld [vmem:[#allocation5 + $0x460] sm:$0xff]
    %v260 = vld [vmem:[#allocation5 + $0x468] sm:$0xff]
    %v261 = vld [vmem:[#allocation5 + $0x470] sm:$0xff]
    %v262 = vld [vmem:[#allocation5 + $0x478] sm:$0xff]
    %v263 = vld [vmem:[#allocation5 + $0x480] sm:$0xff]
    %v264 = vld [vmem:[#allocation5 + $0x488] sm:$0xff]
    %v265 = vld [vmem:[#allocation5 + $0x490] sm:$0xff]
    %v266 = vld [vmem:[#allocation5 + $0x498] sm:$0xff]
    %v267 = vld [vmem:[#allocation5 + $0x4a0] sm:$0xff]
    %v268 = vld [vmem:[#allocation5 + $0x4a8] sm:$0xff]
    %v269 = vld [vmem:[#allocation5 + $0x4b0] sm:$0xff]
    %v270 = vld [vmem:[#allocation5 + $0x4b8] sm:$0xff]
    %v271 = vld [vmem:[#allocation5 + $0x4c0] sm:$0xff]
    %v272 = vld [vmem:[#allocation5 + $0x4c8] sm:$0xff]
    %v273 = vld [vmem:[#allocation5 + $0x4d0] sm:$0xff]
    %v274 = vld [vmem:[#allocation5 + $0x4d8] sm:$0xff]
    %v275 = vld [vmem:[#allocation5 + $0x4e0] sm:$0xff]
    %v276 = vld [vmem:[#allocation5 + $0x4e8] sm:$0xff]
    %v277 = vld [vmem:[#allocation5 + $0x4f0] sm:$0xff]
    %v278 = vld [vmem:[#allocation5 + $0x4f8] sm:$0xff]
    %v279 = vld [vmem:[#allocation5 + $0x500] sm:$0xff]
    %v280 = vld [vmem:[#allocation5 + $0x508] sm:$0xff]
    %v281 = vld [vmem:[#allocation5 + $0x510] sm:$0xff]
    %v282 = vld [vmem:[#allocation5 + $0x518] sm:$0xff]
    %v283 = vld [vmem:[#allocation5 + $0x520] sm:$0xff]
    %v284 = vld [vmem:[#allocation5 + $0x528] sm:$0xff]
    %v285 = vld [vmem:[#allocation5 + $0x530] sm:$0xff]
    %v286 = vld [vmem:[#allocation5 + $0x538] sm:$0xff]
    %v287 = vld [vmem:[#allocation5 + $0x540] sm:$0xff]
    %v288 = vld [vmem:[#allocation5 + $0x548] sm:$0xff]
    %v289 = vld [vmem:[#allocation5 + $0x550] sm:$0xff]
    %v290 = vld [vmem:[#allocation5 + $0x558] sm:$0xff]
    %v291 = vld [vmem:[#allocation5 + $0x560] sm:$0xff]
    %v292 = vld [vmem:[#allocation5 + $0x568] sm:$0xff]
    %v293 = vld [vmem:[#allocation5 + $0x570] sm:$0xff]
    %v294 = vld [vmem:[#allocation5 + $0x578] sm:$0xff]
    %v295 = vld [vmem:[#allocation5 + $0x580] sm:$0xff]
    %v296 = vld [vmem:[#allocation5 + $0x588] sm:$0xff]
    %v297 = vld [vmem:[#allocation5 + $0x590] sm:$0xff]
    %v298 = vld [vmem:[#allocation5 + $0x598] sm:$0xff]
    %v299 = vld [vmem:[#allocation5 + $0x5a0] sm:$0xff]
    %v300 = vld [vmem:[#allocation5 + $0x5a8] sm:$0xff]
    %v301 = vld [vmem:[#allocation5 + $0x5b0] sm:$0xff]
    %v302 = vld [vmem:[#allocation5 + $0x5b8] sm:$0xff]
    %v303 = vld [vmem:[#allocation5 + $0x5c0] sm:$0xff]
    %v304 = vld [vmem:[#allocation5 + $0x5c8] sm:$0xff]
    %v305 = vld [vmem:[#allocation5 + $0x5d0] sm:$0xff]
    %v306 = vld [vmem:[#allocation5 + $0x5d8] sm:$0xff]
    %v307 = vld [vmem:[#allocation5 + $0x5e0] sm:$0xff]
    %v308 = vld [vmem:[#allocation5 + $0x5e8] sm:$0xff]
    %v309 = vld [vmem:[#allocation5 + $0x5f0] sm:$0xff]
    %v310 = vld [vmem:[#allocation5 + $0x5f8] sm:$0xff]
    %v311 = vld [vmem:[#allocation5 + $0x600] sm:$0xff]
    %v312 = vld [vmem:[#allocation5 + $0x608] sm:$0xff]
    %v313 = vld [vmem:[#allocation5 + $0x610] sm:$0xff]
    %v314 = vld [vmem:[#allocation5 + $0x618] sm:$0xff]
    %v315 = vld [vmem:[#allocation5 + $0x620] sm:$0xff]
    %v316 = vld [vmem:[#allocation5 + $0x628] sm:$0xff]
    %v317 = vld [vmem:[#allocation5 + $0x630] sm:$0xff]
    %v318 = vld [vmem:[#allocation5 + $0x638] sm:$0xff]
    %v319 = vld [vmem:[#allocation5 + $0x640] sm:$0xff]
    %v320 = vld [vmem:[#allocation5 + $0x648] sm:$0xff]
    %v321 = vld [vmem:[#allocation5 + $0x650] sm:$0xff]
    %v322 = vld [vmem:[#allocation5 + $0x658] sm:$0xff]
    %v323 = vld [vmem:[#allocation5 + $0x660] sm:$0xff]
    %v324 = vld [vmem:[#allocation5 + $0x668] sm:$0xff]
    %v325 = vld [vmem:[#allocation5 + $0x670] sm:$0xff]
    %v326 = vld [vmem:[#allocation5 + $0x678] sm:$0xff]
    %v327 = vld [vmem:[#allocation5 + $0x680] sm:$0xff]
    %v328 = vld [vmem:[#allocation5 + $0x688] sm:$0xff]
    %v329 = vld [vmem:[#allocation5 + $0x690] sm:$0xff]
    %v330 = vld [vmem:[#allocation5 + $0x698] sm:$0xff]
    %v331 = vld [vmem:[#allocation5 + $0x6a0] sm:$0xff]
    %v332 = vld [vmem:[#allocation5 + $0x6a8] sm:$0xff]
    %v333 = vld [vmem:[#allocation5 + $0x6b0] sm:$0xff]
    %v334 = vld [vmem:[#allocation5 + $0x6b8] sm:$0xff]
    %v335 = vld [vmem:[#allocation5 + $0x6c0] sm:$0xff]
    %v336 = vld [vmem:[#allocation5 + $0x6c8] sm:$0xff]
    %v337 = vld [vmem:[#allocation5 + $0x6d0] sm:$0xff]
    %v338 = vld [vmem:[#allocation5 + $0x6d8] sm:$0xff]
    %v339 = vld [vmem:[#allocation5 + $0x6e0] sm:$0xff]
    %v340 = vld [vmem:[#allocation5 + $0x6e8] sm:$0xff]
    %v341 = vld [vmem:[#allocation5 + $0x6f0] sm:$0xff]
    %v342 = vld [vmem:[#allocation5 + $0x6f8] sm:$0xff]
    %v343 = vld [vmem:[#allocation5 + $0x700] sm:$0xff]
    %v344 = vld [vmem:[#allocation5 + $0x708] sm:$0xff]
    %v345 = vld [vmem:[#allocation5 + $0x710] sm:$0xff]
    %v346 = vld [vmem:[#allocation5 + $0x718] sm:$0xff]
    %v347 = vld [vmem:[#allocation5 + $0x720] sm:$0xff]
    %v348 = vld [vmem:[#allocation5 + $0x728] sm:$0xff]
    %v349 = vld [vmem:[#allocation5 + $0x730] sm:$0xff]
    %v350 = vld [vmem:[#allocation5 + $0x738] sm:$0xff]
    %v351 = vld [vmem:[#allocation5 + $0x740] sm:$0xff]
    %v352 = vld [vmem:[#allocation5 + $0x748] sm:$0xff]
    %v353 = vld [vmem:[#allocation5 + $0x750] sm:$0xff]
    %v354 = vld [vmem:[#allocation5 + $0x758] sm:$0xff]
    %v355 = vld [vmem:[#allocation5 + $0x760] sm:$0xff]
    %v356 = vld [vmem:[#allocation5 + $0x768] sm:$0xff]
    %v357 = vld [vmem:[#allocation5 + $0x770] sm:$0xff]
    %v358 = vld [vmem:[#allocation5 + $0x778] sm:$0xff]
    %v359 = vld [vmem:[#allocation5 + $0x780] sm:$0xff]
    %v360 = vld [vmem:[#allocation5 + $0x788] sm:$0xff]
    %v361 = vld [vmem:[#allocation5 + $0x790] sm:$0xff]
    %v362 = vld [vmem:[#allocation5 + $0x798] sm:$0xff]
    %v363 = vld [vmem:[#allocation5 + $0x7a0] sm:$0xff]
    %v364 = vld [vmem:[#allocation5 + $0x7a8] sm:$0xff]
    %v365 = vld [vmem:[#allocation5 + $0x7b0] sm:$0xff]
    %v366 = vld [vmem:[#allocation5 + $0x7b8] sm:$0xff]
    %v367 = vld [vmem:[#allocation5 + $0x7c0] sm:$0xff]
    %v368 = vld [vmem:[#allocation5 + $0x7c8] sm:$0xff]
    %v369 = vld [vmem:[#allocation5 + $0x7d0] sm:$0xff]
    %v370 = vld [vmem:[#allocation5 + $0x7d8] sm:$0xff]
    %v371 = vld [vmem:[#allocation5 + $0x7e0] sm:$0xff]
    %v372 = vld [vmem:[#allocation5 + $0x7e8] sm:$0xff]
    %v373 = vld [vmem:[#allocation5 + $0x7f0] sm:$0xff]
    %v374 = vld [vmem:[#allocation5 + $0x7f8] sm:$0xff]
    %v375 = vld [vmem:[#allocation5 + $0x800] sm:$0xff]
    %v376 = vld [vmem:[#allocation5 + $0x808] sm:$0xff]
    %v377 = vld [vmem:[#allocation5 + $0x810] sm:$0xff]
    %v378 = vld [vmem:[#allocation5 + $0x818] sm:$0xff]
    %v379 = vld [vmem:[#allocation5 + $0x820] sm:$0xff]
    %v380 = vld [vmem:[#allocation5 + $0x828] sm:$0xff]
    %v381 = vld [vmem:[#allocation5 + $0x830] sm:$0xff]
    %v382 = vld [vmem:[#allocation5 + $0x838] sm:$0xff]
    %v383 = vld [vmem:[#allocation5 + $0x840] sm:$0xff]
    %v384 = vld [vmem:[#allocation5 + $0x848] sm:$0xff]
    %v385 = vld [vmem:[#allocation5 + $0x850] sm:$0xff]
    %v386 = vld [vmem:[#allocation5 + $0x858] sm:$0xff]
    %v387 = vld [vmem:[#allocation5 + $0x860] sm:$0xff]
    %v388 = vld [vmem:[#allocation5 + $0x868] sm:$0xff]
    %v389 = vld [vmem:[#allocation5 + $0x870] sm:$0xff]
    %v390 = vld [vmem:[#allocation5 + $0x878] sm:$0xff]
    %v391 = vld [vmem:[#allocation5 + $0x880] sm:$0xff]
    %v392 = vld [vmem:[#allocation5 + $0x888] sm:$0xff]
    %v393 = vld [vmem:[#allocation5 + $0x890] sm:$0xff]
    %v394 = vld [vmem:[#allocation5 + $0x898] sm:$0xff]
    %v395 = vld [vmem:[#allocation5 + $0x8a0] sm:$0xff]
    %v396 = vld [vmem:[#allocation5 + $0x8a8] sm:$0xff]
    %v397 = vld [vmem:[#allocation5 + $0x8b0] sm:$0xff]
    %v398 = vld [vmem:[#allocation5 + $0x8b8] sm:$0xff]
    %v399 = vld [vmem:[#allocation5 + $0x8c0] sm:$0xff]
    %v400 = vld [vmem:[#allocation5 + $0x8c8] sm:$0xff]
    %v401 = vld [vmem:[#allocation5 + $0x8d0] sm:$0xff]
    %v402 = vld [vmem:[#allocation5 + $0x8d8] sm:$0xff]
    %v403 = vld [vmem:[#allocation5 + $0x8e0] sm:$0xff]
    %v404 = vld [vmem:[#allocation5 + $0x8e8] sm:$0xff]
    %v405 = vld [vmem:[#allocation5 + $0x8f0] sm:$0xff]
    %v406 = vld [vmem:[#allocation5 + $0x8f8] sm:$0xff]
    %v407 = vld [vmem:[#allocation5 + $0x900] sm:$0xff]
    %v408 = vld [vmem:[#allocation5 + $0x908] sm:$0xff]
    %v409 = vld [vmem:[#allocation5 + $0x910] sm:$0xff]
    %v410 = vld [vmem:[#allocation5 + $0x918] sm:$0xff]
    %v411 = vld [vmem:[#allocation5 + $0x920] sm:$0xff]
    %v412 = vld [vmem:[#allocation5 + $0x928] sm:$0xff]
    %v413 = vld [vmem:[#allocation5 + $0x930] sm:$0xff]
    %v414 = vld [vmem:[#allocation5 + $0x938] sm:$0xff]
    %v415 = vld [vmem:[#allocation5 + $0x940] sm:$0xff]
    %v416 = vld [vmem:[#allocation5 + $0x948] sm:$0xff]
    %v417 = vld [vmem:[#allocation5 + $0x950] sm:$0xff]
    %v418 = vld [vmem:[#allocation5 + $0x958] sm:$0xff]
    %v419 = vld [vmem:[#allocation5 + $0x960] sm:$0xff]
    %v420 = vld [vmem:[#allocation5 + $0x968] sm:$0xff]
    %v421 = vld [vmem:[#allocation5 + $0x970] sm:$0xff]
    %v422 = vld [vmem:[#allocation5 + $0x978] sm:$0xff]
    %v423 = vld [vmem:[#allocation5 + $0x980] sm:$0xff]
    %v424 = vld [vmem:[#allocation5 + $0x988] sm:$0xff]
    %v425 = vld [vmem:[#allocation5 + $0x990] sm:$0xff]
    %v426 = vld [vmem:[#allocation5 + $0x998] sm:$0xff]
    %v427 = vld [vmem:[#allocation5 + $0x9a0] sm:$0xff]
    %v428 = vld [vmem:[#allocation5 + $0x9a8] sm:$0xff]
    %v429 = vld [vmem:[#allocation5 + $0x9b0] sm:$0xff]
    %v430 = vld [vmem:[#allocation5 + $0x9b8] sm:$0xff]
    %v431 = vld [vmem:[#allocation5 + $0x9c0] sm:$0xff]
    %v432 = vld [vmem:[#allocation5 + $0x9c8] sm:$0xff]
    %v433 = vld [vmem:[#allocation5 + $0x9d0] sm:$0xff]
    %v434 = vld [vmem:[#allocation5 + $0x9d8] sm:$0xff]
    %v435 = vld [vmem:[#allocation5 + $0x9e0] sm:$0xff]
    %v436 = vld [vmem:[#allocation5 + $0x9e8] sm:$0xff]
    %v437 = vld [vmem:[#allocation5 + $0x9f0] sm:$0xff]
    %v438 = vld [vmem:[#allocation5 + $0x9f8] sm:$0xff]
    %v439 = vld [vmem:[#allocation5 + $0xa00] sm:$0xff]
    %v440 = vld [vmem:[#allocation5 + $0xa08] sm:$0xff]
    %v441 = vld [vmem:[#allocation5 + $0xa10] sm:$0xff]
    %v442 = vld [vmem:[#allocation5 + $0xa18] sm:$0xff]
    %v443 = vld [vmem:[#allocation5 + $0xa20] sm:$0xff]
    %v444 = vld [vmem:[#allocation5 + $0xa28] sm:$0xff]
    %v445 = vld [vmem:[#allocation5 + $0xa30] sm:$0xff]
    %v446 = vld [vmem:[#allocation5 + $0xa38] sm:$0xff]
    %v447 = vld [vmem:[#allocation5 + $0xa40] sm:$0xff]
    %v448 = vld [vmem:[#allocation5 + $0xa48] sm:$0xff]
    %v449 = vld [vmem:[#allocation5 + $0xa50] sm:$0xff]
    %v450 = vld [vmem:[#allocation5 + $0xa58] sm:$0xff]
    %v451 = vld [vmem:[#allocation5 + $0xa60] sm:$0xff]
    %v452 = vld [vmem:[#allocation5 + $0xa68] sm:$0xff]
    %v453 = vld [vmem:[#allocation5 + $0xa70] sm:$0xff]
    %v454 = vld [vmem:[#allocation5 + $0xa78] sm:$0xff]
    %v455 = vld [vmem:[#allocation5 + $0xa80] sm:$0xff]
    %v456 = vld [vmem:[#allocation5 + $0xa88] sm:$0xff]
    %v457 = vld [vmem:[#allocation5 + $0xa90] sm:$0xff]
    %v458 = vld [vmem:[#allocation5 + $0xa98] sm:$0xff]
    %v459 = vld [vmem:[#allocation5 + $0xaa0] sm:$0xff]
    %v460 = vld [vmem:[#allocation5 + $0xaa8] sm:$0xff]
    %v461 = vld [vmem:[#allocation5 + $0xab0] sm:$0xff]
    %v462 = vld [vmem:[#allocation5 + $0xab8] sm:$0xff]
    %v463 = vld [vmem:[#allocation5 + $0xac0] sm:$0xff]
    %v464 = vld [vmem:[#allocation5 + $0xac8] sm:$0xff]
    %v465 = vld [vmem:[#allocation5 + $0xad0] sm:$0xff]
    %v466 = vld [vmem:[#allocation5 + $0xad8] sm:$0xff]
    %v467 = vld [vmem:[#allocation5 + $0xae0] sm:$0xff]
    %v468 = vld [vmem:[#allocation5 + $0xae8] sm:$0xff]
    %v469 = vld [vmem:[#allocation5 + $0xaf0] sm:$0xff]
    %v470 = vld [vmem:[#allocation5 + $0xaf8] sm:$0xff]
    %v471 = vld [vmem:[#allocation5 + $0xb00] sm:$0xff]
    %v472 = vld [vmem:[#allocation5 + $0xb08] sm:$0xff]
    %v473 = vld [vmem:[#allocation5 + $0xb10] sm:$0xff]
    %v474 = vld [vmem:[#allocation5 + $0xb18] sm:$0xff]
    %v475 = vld [vmem:[#allocation5 + $0xb20] sm:$0xff]
    %v476 = vld [vmem:[#allocation5 + $0xb28] sm:$0xff]
    %v477 = vld [vmem:[#allocation5 + $0xb30] sm:$0xff]
    %v478 = vld [vmem:[#allocation5 + $0xb38] sm:$0xff]
    %v479 = vld [vmem:[#allocation5 + $0xb40] sm:$0xff]
    %v480 = vld [vmem:[#allocation5 + $0xb48] sm:$0xff]
    %v481 = vld [vmem:[#allocation5 + $0xb50] sm:$0xff]
    %v482 = vld [vmem:[#allocation5 + $0xb58] sm:$0xff]
    %v483 = vld [vmem:[#allocation5 + $0xb60] sm:$0xff]
    %v484 = vld [vmem:[#allocation5 + $0xb68] sm:$0xff]
    %v485 = vld [vmem:[#allocation5 + $0xb70] sm:$0xff]
    %v486 = vld [vmem:[#allocation5 + $0xb78] sm:$0xff]
    %v487 = vld [vmem:[#allocation5 + $0xb80] sm:$0xff]
    %v488 = vld [vmem:[#allocation5 + $0xb88] sm:$0xff]
    %v489 = vld [vmem:[#allocation5 + $0xb90] sm:$0xff]
    %v490 = vld [vmem:[#allocation5 + $0xb98] sm:$0xff]
    %v491 = vld [vmem:[#allocation5 + $0xba0] sm:$0xff]
    %v492 = vld [vmem:[#allocation5 + $0xba8] sm:$0xff]
    %v493 = vld [vmem:[#allocation5 + $0xbb0] sm:$0xff]
    %v494 = vld [vmem:[#allocation5 + $0xbb8] sm:$0xff]
    %v495 = vld [vmem:[#allocation5 + $0xbc0] sm:$0xff]
    %v496 = vld [vmem:[#allocation5 + $0xbc8] sm:$0xff]
    %v497 = vld [vmem:[#allocation5 + $0xbd0] sm:$0xff]
    %v498 = vld [vmem:[#allocation5 + $0xbd8] sm:$0xff]
    %v499 = vld [vmem:[#allocation5 + $0xbe0] sm:$0xff]
    %v500 = vld [vmem:[#allocation5 + $0xbe8] sm:$0xff]
    %v501 = vld [vmem:[#allocation5 + $0xbf0] sm:$0xff]
    %v502 = vld [vmem:[#allocation5 + $0xbf8] sm:$0xff]
    %v503 = vld [vmem:[#allocation5 + $0xc00] sm:$0xff]
    %v504 = vld [vmem:[#allocation5 + $0xc08] sm:$0xff]
    %v505 = vld [vmem:[#allocation5 + $0xc10] sm:$0xff]
    %v506 = vld [vmem:[#allocation5 + $0xc18] sm:$0xff]
    %v507 = vld [vmem:[#allocation5 + $0xc20] sm:$0xff]
    %v508 = vld [vmem:[#allocation5 + $0xc28] sm:$0xff]
    %v509 = vld [vmem:[#allocation5 + $0xc30] sm:$0xff]
    %v510 = vld [vmem:[#allocation5 + $0xc38] sm:$0xff]
    %v511 = vld [vmem:[#allocation5 + $0xc40] sm:$0xff]
    %v512 = vld [vmem:[#allocation5 + $0xc48] sm:$0xff]
    %v513 = vld [vmem:[#allocation5 + $0xc50] sm:$0xff]
    %v514 = vld [vmem:[#allocation5 + $0xc58] sm:$0xff]
    %v515 = vld [vmem:[#allocation5 + $0xc60] sm:$0xff]
    %v516 = vld [vmem:[#allocation5 + $0xc68] sm:$0xff]
    %v517 = vld [vmem:[#allocation5 + $0xc70] sm:$0xff]
    %v518 = vld [vmem:[#allocation5 + $0xc78] sm:$0xff]
    %v519 = vld [vmem:[#allocation5 + $0xc80] sm:$0xff]
    %v520 = vld [vmem:[#allocation5 + $0xc88] sm:$0xff]
    %v521 = vld [vmem:[#allocation5 + $0xc90] sm:$0xff]
    %v522 = vld [vmem:[#allocation5 + $0xc98] sm:$0xff]
    %v523 = vld [vmem:[#allocation5 + $0xca0] sm:$0xff]
    %v524 = vld [vmem:[#allocation5 + $0xca8] sm:$0xff]
    %v525 = vld [vmem:[#allocation5 + $0xcb0] sm:$0xff]
    %v526 = vld [vmem:[#allocation5 + $0xcb8] sm:$0xff]
    %v527 = vld [vmem:[#allocation5 + $0xcc0] sm:$0xff]
    %v528 = vld [vmem:[#allocation5 + $0xcc8] sm:$0xff]
    %v529 = vld [vmem:[#allocation5 + $0xcd0] sm:$0xff]
    %v530 = vld [vmem:[#allocation5 + $0xcd8] sm:$0xff]
    %v531 = vld [vmem:[#allocation5 + $0xce0] sm:$0xff]
    %v532 = vld [vmem:[#allocation5 + $0xce8] sm:$0xff]
    %v533 = vld [vmem:[#allocation5 + $0xcf0] sm:$0xff]
    %v534 = vld [vmem:[#allocation5 + $0xcf8] sm:$0xff]
    %v535 = vld [vmem:[#allocation5 + $0xd00] sm:$0xff]
    %v536 = vld [vmem:[#allocation5 + $0xd08] sm:$0xff]
    %v537 = vld [vmem:[#allocation5 + $0xd10] sm:$0xff]
    %v538 = vld [vmem:[#allocation5 + $0xd18] sm:$0xff]
    %v539 = vld [vmem:[#allocation5 + $0xd20] sm:$0xff]
    %v540 = vld [vmem:[#allocation5 + $0xd28] sm:$0xff]
    %v541 = vld [vmem:[#allocation5 + $0xd30] sm:$0xff]
    %v542 = vld [vmem:[#allocation5 + $0xd38] sm:$0xff]
    %v543 = vld [vmem:[#allocation5 + $0xd40] sm:$0xff]
    %v544 = vld [vmem:[#allocation5 + $0xd48] sm:$0xff]
    %v545 = vld [vmem:[#allocation5 + $0xd50] sm:$0xff]
    %v546 = vld [vmem:[#allocation5 + $0xd58] sm:$0xff]
    %v547 = vld [vmem:[#allocation5 + $0xd60] sm:$0xff]
    %v548 = vld [vmem:[#allocation5 + $0xd68] sm:$0xff]
    %v549 = vld [vmem:[#allocation5 + $0xd70] sm:$0xff]
    %v550 = vld [vmem:[#allocation5 + $0xd78] sm:$0xff]
    %v551 = vld [vmem:[#allocation5 + $0xd80] sm:$0xff]
    %v552 = vld [vmem:[#allocation5 + $0xd88] sm:$0xff]
    %v553 = vld [vmem:[#allocation5 + $0xd90] sm:$0xff]
    %v554 = vld [vmem:[#allocation5 + $0xd98] sm:$0xff]
    %v555 = vld [vmem:[#allocation5 + $0xda0] sm:$0xff]
    %v556 = vld [vmem:[#allocation5 + $0xda8] sm:$0xff]
    %v557 = vld [vmem:[#allocation5 + $0xdb0] sm:$0xff]
    %v558 = vld [vmem:[#allocation5 + $0xdb8] sm:$0xff]
    %v559 = vld [vmem:[#allocation5 + $0xdc0] sm:$0xff]
    %v560 = vld [vmem:[#allocation5 + $0xdc8] sm:$0xff]
    %v561 = vld [vmem:[#allocation5 + $0xdd0] sm:$0xff]
    %v562 = vld [vmem:[#allocation5 + $0xdd8] sm:$0xff]
    %v563 = vld [vmem:[#allocation5 + $0xde0] sm:$0xff]
    %v564 = vld [vmem:[#allocation5 + $0xde8] sm:$0xff]
    %v565 = vld [vmem:[#allocation5 + $0xdf0] sm:$0xff]
    %v566 = vld [vmem:[#allocation5 + $0xdf8] sm:$0xff]
    %v567 = vld [vmem:[#allocation5 + $0xe00] sm:$0xff]
    %v568 = vld [vmem:[#allocation5 + $0xe08] sm:$0xff]
    %v569 = vld [vmem:[#allocation5 + $0xe10] sm:$0xff]
    %v570 = vld [vmem:[#allocation5 + $0xe18] sm:$0xff]
    %v571 = vld [vmem:[#allocation5 + $0xe20] sm:$0xff]
    %v572 = vld [vmem:[#allocation5 + $0xe28] sm:$0xff]
    %v573 = vld [vmem:[#allocation5 + $0xe30] sm:$0xff]
    %v574 = vld [vmem:[#allocation5 + $0xe38] sm:$0xff]
    %v575 = vld [vmem:[#allocation5 + $0xe40] sm:$0xff]
    %v576 = vld [vmem:[#allocation5 + $0xe48] sm:$0xff]
    %v577 = vld [vmem:[#allocation5 + $0xe50] sm:$0xff]
    %v578 = vld [vmem:[#allocation5 + $0xe58] sm:$0xff]
    %v579 = vld [vmem:[#allocation5 + $0xe60] sm:$0xff]
    %v580 = vld [vmem:[#allocation5 + $0xe68] sm:$0xff]
    %v581 = vld [vmem:[#allocation5 + $0xe70] sm:$0xff]
    %v582 = vld [vmem:[#allocation5 + $0xe78] sm:$0xff]
    %v583 = vld [vmem:[#allocation5 + $0xe80] sm:$0xff]
    %v584 = vld [vmem:[#allocation5 + $0xe88] sm:$0xff]
    %v585 = vld [vmem:[#allocation5 + $0xe90] sm:$0xff]
    %v586 = vld [vmem:[#allocation5 + $0xe98] sm:$0xff]
    %v587 = vld [vmem:[#allocation5 + $0xea0] sm:$0xff]
    %v588 = vld [vmem:[#allocation5 + $0xea8] sm:$0xff]
    %v589 = vld [vmem:[#allocation5 + $0xeb0] sm:$0xff]
    %v590 = vld [vmem:[#allocation5 + $0xeb8] sm:$0xff]
    %v591 = vld [vmem:[#allocation5 + $0xec0] sm:$0xff]
    %v592 = vld [vmem:[#allocation5 + $0xec8] sm:$0xff]
    %v593 = vld [vmem:[#allocation5 + $0xed0] sm:$0xff]
    %v594 = vld [vmem:[#allocation5 + $0xed8] sm:$0xff]
    %v595 = vld [vmem:[#allocation5 + $0xee0] sm:$0xff]
    %v596 = vld [vmem:[#allocation5 + $0xee8] sm:$0xff]
    %v597 = vld [vmem:[#allocation5 + $0xef0] sm:$0xff]
    %v598 = vld [vmem:[#allocation5 + $0xef8] sm:$0xff]
    %v599 = vld [vmem:[#allocation5 + $0xf00] sm:$0xff]
    %v600 = vld [vmem:[#allocation5 + $0xf08] sm:$0xff]
    %v601 = vld [vmem:[#allocation5 + $0xf10] sm:$0xff]
    %v602 = vld [vmem:[#allocation5 + $0xf18] sm:$0xff]
    %v603 = vld [vmem:[#allocation5 + $0xf20] sm:$0xff]
    %v604 = vld [vmem:[#allocation5 + $0xf28] sm:$0xff]
    %v605 = vld [vmem:[#allocation5 + $0xf30] sm:$0xff]
    %v606 = vld [vmem:[#allocation5 + $0xf38] sm:$0xff]
    %v607 = vld [vmem:[#allocation5 + $0xf40] sm:$0xff]
    %v608 = vld [vmem:[#allocation5 + $0xf48] sm:$0xff]
    %v609 = vld [vmem:[#allocation5 + $0xf50] sm:$0xff]
    %v610 = vld [vmem:[#allocation5 + $0xf58] sm:$0xff]
    %v611 = vld [vmem:[#allocation5 + $0xf60] sm:$0xff]
    %v612 = vld [vmem:[#allocation5 + $0xf68] sm:$0xff]
    %v613 = vld [vmem:[#allocation5 + $0xf70] sm:$0xff]
    %v614 = vld [vmem:[#allocation5 + $0xf78] sm:$0xff]
    %v615 = vld [vmem:[#allocation5 + $0xf80] sm:$0xff]
    %v616 = vld [vmem:[#allocation5 + $0xf88] sm:$0xff]
    %v617 = vld [vmem:[#allocation5 + $0xf90] sm:$0xff]
    %v618 = vld [vmem:[#allocation5 + $0xf98] sm:$0xff]
    %v619 = vld [vmem:[#allocation5 + $0xfa0] sm:$0xff]
    %v620 = vld [vmem:[#allocation5 + $0xfa8] sm:$0xff]
    %v621 = vld [vmem:[#allocation5 + $0xfb0] sm:$0xff]
    %v622 = vld [vmem:[#allocation5 + $0xfb8] sm:$0xff]
    %v623 = vld [vmem:[#allocation5 + $0xfc0] sm:$0xff]
    %v624 = vld [vmem:[#allocation5 + $0xfc8] sm:$0xff]
    %v625 = vld [vmem:[#allocation5 + $0xfd0] sm:$0xff]
    %v626 = vld [vmem:[#allocation5 + $0xfd8] sm:$0xff]
    %v627 = vld [vmem:[#allocation5 + $0xfe0] sm:$0xff]
    %v628 = vld [vmem:[#allocation5 + $0xfe8] sm:$0xff]
    %v629 = vld [vmem:[#allocation5 + $0xff0] sm:$0xff]
    %v630 = vld [vmem:[#allocation5 + $0xff8] sm:$0xff]
    %v631 = vld [vmem:[#allocation7] sm:$0xff]
    %v633 = vlaneseq
    %v634 = vshrl.u32 %v633, 7
    %v635 = vsub.s32 0, %v634
    %v636 = vrot.slane %v631, %v635
    %v637 = vlaneseq
    %v638 = vshrl.u32 %v637, 7
    %v639 = vsub.s32 1, %v638
    %v640 = vrot.slane %v631, %v639
    %v641 = vlaneseq
    %v642 = vshrl.u32 %v641, 7
    %v643 = vsub.s32 2, %v642
    %v644 = vrot.slane %v631, %v643
    %v645 = vlaneseq
    %v646 = vshrl.u32 %v645, 7
    %v647 = vsub.s32 3, %v646
    %v648 = vrot.slane %v631, %v647
    %v649 = vlaneseq
    %v650 = vshrl.u32 %v649, 7
    %v651 = vsub.s32 4, %v650
    %v652 = vrot.slane %v631, %v651
    %v653 = vlaneseq
    %v654 = vshrl.u32 %v653, 7
    %v655 = vsub.s32 5, %v654
    %v656 = vrot.slane %v631, %v655
    %v657 = vlaneseq
    %v658 = vshrl.u32 %v657, 7
    %v659 = vsub.s32 6, %v658
    %v660 = vrot.slane %v631, %v659
    %v661 = vlaneseq
    %v662 = vshrl.u32 %v661, 7
    %v663 = vsub.s32 7, %v662
    %v664 = vrot.slane %v631, %v663
    %v677 = vunpack.c.l.b16 %v115
    %v678 = vunpack.c.h.b16 %v115
    %v679 = vunpack.c.l.b16 %v116
    %v680 = vunpack.c.h.b16 %v116
    %v681 = vunpack.c.l.b16 %v117
    %v682 = vunpack.c.h.b16 %v117
    %v683 = vunpack.c.l.b16 %v118
    %v684 = vunpack.c.h.b16 %v118
    %v685 = vpack.c.b16 %v677, %v677
    %v686 = vpack.c.b16 %v678, %v678
    %v687 = vpack.c.b16 %v679, %v679
    %v688 = vpack.c.b16 %v680, %v680
    %v689 = vpack.c.b16 %v681, %v681
    %v690 = vpack.c.b16 %v682, %v682
    %v691 = vpack.c.b16 %v683, %v683
    %v692 = vpack.c.b16 %v684, %v684
    %v1213 = vunpack.c.l.b16 %v119
    %v1214 = vunpack.c.h.b16 %v119
    %v1215 = vunpack.c.l.b16 %v120
    %v1216 = vunpack.c.h.b16 %v120
    %v1217 = vunpack.c.l.b16 %v121
    %v1218 = vunpack.c.h.b16 %v121
    %v1219 = vunpack.c.l.b16 %v122
    %v1220 = vunpack.c.h.b16 %v122
    %v1221 = vunpack.c.l.b16 %v123
    %v1222 = vunpack.c.h.b16 %v123
    %v1223 = vunpack.c.l.b16 %v124
    %v1224 = vunpack.c.h.b16 %v124
    %v1225 = vunpack.c.l.b16 %v125
    %v1226 = vunpack.c.h.b16 %v125
    %v1227 = vunpack.c.l.b16 %v126
    %v1228 = vunpack.c.h.b16 %v126
    %v1229 = vunpack.c.l.b16 %v127
    %v1230 = vunpack.c.h.b16 %v127
    %v1231 = vunpack.c.l.b16 %v128
    %v1232 = vunpack.c.h.b16 %v128
    %v1233 = vunpack.c.l.b16 %v129
    %v1234 = vunpack.c.h.b16 %v129
    %v1235 = vunpack.c.l.b16 %v130
    %v1236 = vunpack.c.h.b16 %v130
    %v1237 = vunpack.c.l.b16 %v131
    %v1238 = vunpack.c.h.b16 %v131
    %v1239 = vunpack.c.l.b16 %v132
    %v1240 = vunpack.c.h.b16 %v132
    %v1241 = vunpack.c.l.b16 %v133
    %v1242 = vunpack.c.h.b16 %v133
    %v1243 = vunpack.c.l.b16 %v134
    %v1244 = vunpack.c.h.b16 %v134
    %v1245 = vunpack.c.l.b16 %v135
    %v1246 = vunpack.c.h.b16 %v135
    %v1247 = vunpack.c.l.b16 %v136
    %v1248 = vunpack.c.h.b16 %v136
    %v1249 = vunpack.c.l.b16 %v137
    %v1250 = vunpack.c.h.b16 %v137
    %v1251 = vunpack.c.l.b16 %v138
    %v1252 = vunpack.c.h.b16 %v138
    %v1253 = vunpack.c.l.b16 %v139
    %v1254 = vunpack.c.h.b16 %v139
    %v1255 = vunpack.c.l.b16 %v140
    %v1256 = vunpack.c.h.b16 %v140
    %v1257 = vunpack.c.l.b16 %v141
    %v1258 = vunpack.c.h.b16 %v141
    %v1259 = vunpack.c.l.b16 %v142
    %v1260 = vunpack.c.h.b16 %v142
    %v1261 = vunpack.c.l.b16 %v143
    %v1262 = vunpack.c.h.b16 %v143
    %v1263 = vunpack.c.l.b16 %v144
    %v1264 = vunpack.c.h.b16 %v144
    %v1265 = vunpack.c.l.b16 %v145
    %v1266 = vunpack.c.h.b16 %v145
    %v1267 = vunpack.c.l.b16 %v146
    %v1268 = vunpack.c.h.b16 %v146
    %v1269 = vunpack.c.l.b16 %v147
    %v1270 = vunpack.c.h.b16 %v147
    %v1271 = vunpack.c.l.b16 %v148
    %v1272 = vunpack.c.h.b16 %v148
    %v1273 = vunpack.c.l.b16 %v149
    %v1274 = vunpack.c.h.b16 %v149
    %v1275 = vunpack.c.l.b16 %v150
    %v1276 = vunpack.c.h.b16 %v150
    %v1277 = vunpack.c.l.b16 %v151
    %v1278 = vunpack.c.h.b16 %v151
    %v1279 = vunpack.c.l.b16 %v152
    %v1280 = vunpack.c.h.b16 %v152
    %v1281 = vunpack.c.l.b16 %v153
    %v1282 = vunpack.c.h.b16 %v153
    %v1283 = vunpack.c.l.b16 %v154
    %v1284 = vunpack.c.h.b16 %v154
    %v1285 = vunpack.c.l.b16 %v155
    %v1286 = vunpack.c.h.b16 %v155
    %v1287 = vunpack.c.l.b16 %v156
    %v1288 = vunpack.c.h.b16 %v156
    %v1289 = vunpack.c.l.b16 %v157
    %v1290 = vunpack.c.h.b16 %v157
    %v1291 = vunpack.c.l.b16 %v158
    %v1292 = vunpack.c.h.b16 %v158
    %v1293 = vunpack.c.l.b16 %v159
    %v1294 = vunpack.c.h.b16 %v159
    %v1295 = vunpack.c.l.b16 %v160
    %v1296 = vunpack.c.h.b16 %v160
    %v1297 = vunpack.c.l.b16 %v161
    %v1298 = vunpack.c.h.b16 %v161
    %v1299 = vunpack.c.l.b16 %v162
    %v1300 = vunpack.c.h.b16 %v162
    %v1301 = vunpack.c.l.b16 %v163
    %v1302 = vunpack.c.h.b16 %v163
    %v1303 = vunpack.c.l.b16 %v164
    %v1304 = vunpack.c.h.b16 %v164
    %v1305 = vunpack.c.l.b16 %v165
    %v1306 = vunpack.c.h.b16 %v165
    %v1307 = vunpack.c.l.b16 %v166
    %v1308 = vunpack.c.h.b16 %v166
    %v1309 = vunpack.c.l.b16 %v167
    %v1310 = vunpack.c.h.b16 %v167
    %v1311 = vunpack.c.l.b16 %v168
    %v1312 = vunpack.c.h.b16 %v168
    %v1313 = vunpack.c.l.b16 %v169
    %v1314 = vunpack.c.h.b16 %v169
    %v1315 = vunpack.c.l.b16 %v170
    %v1316 = vunpack.c.h.b16 %v170
    %v1317 = vunpack.c.l.b16 %v171
    %v1318 = vunpack.c.h.b16 %v171
    %v1319 = vunpack.c.l.b16 %v172
    %v1320 = vunpack.c.h.b16 %v172
    %v1321 = vunpack.c.l.b16 %v173
    %v1322 = vunpack.c.h.b16 %v173
    %v1323 = vunpack.c.l.b16 %v174
    %v1324 = vunpack.c.h.b16 %v174
    %v1325 = vunpack.c.l.b16 %v175
    %v1326 = vunpack.c.h.b16 %v175
    %v1327 = vunpack.c.l.b16 %v176
    %v1328 = vunpack.c.h.b16 %v176
    %v1329 = vunpack.c.l.b16 %v177
    %v1330 = vunpack.c.h.b16 %v177
    %v1331 = vunpack.c.l.b16 %v178
    %v1332 = vunpack.c.h.b16 %v178
    %v1333 = vunpack.c.l.b16 %v179
    %v1334 = vunpack.c.h.b16 %v179
    %v1335 = vunpack.c.l.b16 %v180
    %v1336 = vunpack.c.h.b16 %v180
    %v1337 = vunpack.c.l.b16 %v181
    %v1338 = vunpack.c.h.b16 %v181
    %v1339 = vunpack.c.l.b16 %v182
    %v1340 = vunpack.c.h.b16 %v182
    %v1341 = vunpack.c.l.b16 %v183
    %v1342 = vunpack.c.h.b16 %v183
    %v1343 = vunpack.c.l.b16 %v184
    %v1344 = vunpack.c.h.b16 %v184
    %v1345 = vunpack.c.l.b16 %v185
    %v1346 = vunpack.c.h.b16 %v185
    %v1347 = vunpack.c.l.b16 %v186
    %v1348 = vunpack.c.h.b16 %v186
    %v1349 = vunpack.c.l.b16 %v187
    %v1350 = vunpack.c.h.b16 %v187
    %v1351 = vunpack.c.l.b16 %v188
    %v1352 = vunpack.c.h.b16 %v188
    %v1353 = vunpack.c.l.b16 %v189
    %v1354 = vunpack.c.h.b16 %v189
    %v1355 = vunpack.c.l.b16 %v190
    %v1356 = vunpack.c.h.b16 %v190
    %v1357 = vunpack.c.l.b16 %v191
    %v1358 = vunpack.c.h.b16 %v191
    %v1359 = vunpack.c.l.b16 %v192
    %v1360 = vunpack.c.h.b16 %v192
    %v1361 = vunpack.c.l.b16 %v193
    %v1362 = vunpack.c.h.b16 %v193
    %v1363 = vunpack.c.l.b16 %v194
    %v1364 = vunpack.c.h.b16 %v194
    %v1365 = vunpack.c.l.b16 %v195
    %v1366 = vunpack.c.h.b16 %v195
    %v1367 = vunpack.c.l.b16 %v196
    %v1368 = vunpack.c.h.b16 %v196
    %v1369 = vunpack.c.l.b16 %v197
    %v1370 = vunpack.c.h.b16 %v197
    %v1371 = vunpack.c.l.b16 %v198
    %v1372 = vunpack.c.h.b16 %v198
    %v1373 = vunpack.c.l.b16 %v199
    %v1374 = vunpack.c.h.b16 %v199
    %v1375 = vunpack.c.l.b16 %v200
    %v1376 = vunpack.c.h.b16 %v200
    %v1377 = vunpack.c.l.b16 %v201
    %v1378 = vunpack.c.h.b16 %v201
    %v1379 = vunpack.c.l.b16 %v202
    %v1380 = vunpack.c.h.b16 %v202
    %v1381 = vunpack.c.l.b16 %v203
    %v1382 = vunpack.c.h.b16 %v203
    %v1383 = vunpack.c.l.b16 %v204
    %v1384 = vunpack.c.h.b16 %v204
    %v1385 = vunpack.c.l.b16 %v205
    %v1386 = vunpack.c.h.b16 %v205
    %v1387 = vunpack.c.l.b16 %v206
    %v1388 = vunpack.c.h.b16 %v206
    %v1389 = vunpack.c.l.b16 %v207
    %v1390 = vunpack.c.h.b16 %v207
    %v1391 = vunpack.c.l.b16 %v208
    %v1392 = vunpack.c.h.b16 %v208
    %v1393 = vunpack.c.l.b16 %v209
    %v1394 = vunpack.c.h.b16 %v209
    %v1395 = vunpack.c.l.b16 %v210
    %v1396 = vunpack.c.h.b16 %v210
    %v1397 = vunpack.c.l.b16 %v211
    %v1398 = vunpack.c.h.b16 %v211
    %v1399 = vunpack.c.l.b16 %v212
    %v1400 = vunpack.c.h.b16 %v212
    %v1401 = vunpack.c.l.b16 %v213
    %v1402 = vunpack.c.h.b16 %v213
    %v1403 = vunpack.c.l.b16 %v214
    %v1404 = vunpack.c.h.b16 %v214
    %v1405 = vunpack.c.l.b16 %v215
    %v1406 = vunpack.c.h.b16 %v215
    %v1407 = vunpack.c.l.b16 %v216
    %v1408 = vunpack.c.h.b16 %v216
    %v1409 = vunpack.c.l.b16 %v217
    %v1410 = vunpack.c.h.b16 %v217
    %v1411 = vunpack.c.l.b16 %v218
    %v1412 = vunpack.c.h.b16 %v218
    %v1413 = vunpack.c.l.b16 %v219
    %v1414 = vunpack.c.h.b16 %v219
    %v1415 = vunpack.c.l.b16 %v220
    %v1416 = vunpack.c.h.b16 %v220
    %v1417 = vunpack.c.l.b16 %v221
    %v1418 = vunpack.c.h.b16 %v221
    %v1419 = vunpack.c.l.b16 %v222
    %v1420 = vunpack.c.h.b16 %v222
    %v1421 = vunpack.c.l.b16 %v223
    %v1422 = vunpack.c.h.b16 %v223
    %v1423 = vunpack.c.l.b16 %v224
    %v1424 = vunpack.c.h.b16 %v224
    %v1425 = vunpack.c.l.b16 %v225
    %v1426 = vunpack.c.h.b16 %v225
    %v1427 = vunpack.c.l.b16 %v226
    %v1428 = vunpack.c.h.b16 %v226
    %v1429 = vunpack.c.l.b16 %v227
    %v1430 = vunpack.c.h.b16 %v227
    %v1431 = vunpack.c.l.b16 %v228
    %v1432 = vunpack.c.h.b16 %v228
    %v1433 = vunpack.c.l.b16 %v229
    %v1434 = vunpack.c.h.b16 %v229
    %v1435 = vunpack.c.l.b16 %v230
    %v1436 = vunpack.c.h.b16 %v230
    %v1437 = vunpack.c.l.b16 %v231
    %v1438 = vunpack.c.h.b16 %v231
    %v1439 = vunpack.c.l.b16 %v232
    %v1440 = vunpack.c.h.b16 %v232
    %v1441 = vunpack.c.l.b16 %v233
    %v1442 = vunpack.c.h.b16 %v233
    %v1443 = vunpack.c.l.b16 %v234
    %v1444 = vunpack.c.h.b16 %v234
    %v1445 = vunpack.c.l.b16 %v235
    %v1446 = vunpack.c.h.b16 %v235
    %v1447 = vunpack.c.l.b16 %v236
    %v1448 = vunpack.c.h.b16 %v236
    %v1449 = vunpack.c.l.b16 %v237
    %v1450 = vunpack.c.h.b16 %v237
    %v1451 = vunpack.c.l.b16 %v238
    %v1452 = vunpack.c.h.b16 %v238
    %v1453 = vunpack.c.l.b16 %v239
    %v1454 = vunpack.c.h.b16 %v239
    %v1455 = vunpack.c.l.b16 %v240
    %v1456 = vunpack.c.h.b16 %v240
    %v1457 = vunpack.c.l.b16 %v241
    %v1458 = vunpack.c.h.b16 %v241
    %v1459 = vunpack.c.l.b16 %v242
    %v1460 = vunpack.c.h.b16 %v242
    %v1461 = vunpack.c.l.b16 %v243
    %v1462 = vunpack.c.h.b16 %v243
    %v1463 = vunpack.c.l.b16 %v244
    %v1464 = vunpack.c.h.b16 %v244
    %v1465 = vunpack.c.l.b16 %v245
    %v1466 = vunpack.c.h.b16 %v245
    %v1467 = vunpack.c.l.b16 %v246
    %v1468 = vunpack.c.h.b16 %v246
    %v1469 = vunpack.c.l.b16 %v247
    %v1470 = vunpack.c.h.b16 %v247
    %v1471 = vunpack.c.l.b16 %v248
    %v1472 = vunpack.c.h.b16 %v248
    %v1473 = vunpack.c.l.b16 %v249
    %v1474 = vunpack.c.h.b16 %v249
    %v1475 = vunpack.c.l.b16 %v250
    %v1476 = vunpack.c.h.b16 %v250
    %v1477 = vunpack.c.l.b16 %v251
    %v1478 = vunpack.c.h.b16 %v251
    %v1479 = vunpack.c.l.b16 %v252
    %v1480 = vunpack.c.h.b16 %v252
    %v1481 = vunpack.c.l.b16 %v253
    %v1482 = vunpack.c.h.b16 %v253
    %v1483 = vunpack.c.l.b16 %v254
    %v1484 = vunpack.c.h.b16 %v254
    %v1485 = vunpack.c.l.b16 %v255
    %v1486 = vunpack.c.h.b16 %v255
    %v1487 = vunpack.c.l.b16 %v256
    %v1488 = vunpack.c.h.b16 %v256
    %v1489 = vunpack.c.l.b16 %v257
    %v1490 = vunpack.c.h.b16 %v257
    %v1491 = vunpack.c.l.b16 %v258
    %v1492 = vunpack.c.h.b16 %v258
    %v1493 = vunpack.c.l.b16 %v259
    %v1494 = vunpack.c.h.b16 %v259
    %v1495 = vunpack.c.l.b16 %v260
    %v1496 = vunpack.c.h.b16 %v260
    %v1497 = vunpack.c.l.b16 %v261
    %v1498 = vunpack.c.h.b16 %v261
    %v1499 = vunpack.c.l.b16 %v262
    %v1500 = vunpack.c.h.b16 %v262
    %v1501 = vunpack.c.l.b16 %v263
    %v1502 = vunpack.c.h.b16 %v263
    %v1503 = vunpack.c.l.b16 %v264
    %v1504 = vunpack.c.h.b16 %v264
    %v1505 = vunpack.c.l.b16 %v265
    %v1506 = vunpack.c.h.b16 %v265
    %v1507 = vunpack.c.l.b16 %v266
    %v1508 = vunpack.c.h.b16 %v266
    %v1509 = vunpack.c.l.b16 %v267
    %v1510 = vunpack.c.h.b16 %v267
    %v1511 = vunpack.c.l.b16 %v268
    %v1512 = vunpack.c.h.b16 %v268
    %v1513 = vunpack.c.l.b16 %v269
    %v1514 = vunpack.c.h.b16 %v269
    %v1515 = vunpack.c.l.b16 %v270
    %v1516 = vunpack.c.h.b16 %v270
    %v1517 = vunpack.c.l.b16 %v271
    %v1518 = vunpack.c.h.b16 %v271
    %v1519 = vunpack.c.l.b16 %v272
    %v1520 = vunpack.c.h.b16 %v272
    %v1521 = vunpack.c.l.b16 %v273
    %v1522 = vunpack.c.h.b16 %v273
    %v1523 = vunpack.c.l.b16 %v274
    %v1524 = vunpack.c.h.b16 %v274
    %v1525 = vunpack.c.l.b16 %v275
    %v1526 = vunpack.c.h.b16 %v275
    %v1527 = vunpack.c.l.b16 %v276
    %v1528 = vunpack.c.h.b16 %v276
    %v1529 = vunpack.c.l.b16 %v277
    %v1530 = vunpack.c.h.b16 %v277
    %v1531 = vunpack.c.l.b16 %v278
    %v1532 = vunpack.c.h.b16 %v278
    %v1533 = vunpack.c.l.b16 %v279
    %v1534 = vunpack.c.h.b16 %v279
    %v1535 = vunpack.c.l.b16 %v280
    %v1536 = vunpack.c.h.b16 %v280
    %v1537 = vunpack.c.l.b16 %v281
    %v1538 = vunpack.c.h.b16 %v281
    %v1539 = vunpack.c.l.b16 %v282
    %v1540 = vunpack.c.h.b16 %v282
    %v1541 = vunpack.c.l.b16 %v283
    %v1542 = vunpack.c.h.b16 %v283
    %v1543 = vunpack.c.l.b16 %v284
    %v1544 = vunpack.c.h.b16 %v284
    %v1545 = vunpack.c.l.b16 %v285
    %v1546 = vunpack.c.h.b16 %v285
    %v1547 = vunpack.c.l.b16 %v286
    %v1548 = vunpack.c.h.b16 %v286
    %v1549 = vunpack.c.l.b16 %v287
    %v1550 = vunpack.c.h.b16 %v287
    %v1551 = vunpack.c.l.b16 %v288
    %v1552 = vunpack.c.h.b16 %v288
    %v1553 = vunpack.c.l.b16 %v289
    %v1554 = vunpack.c.h.b16 %v289
    %v1555 = vunpack.c.l.b16 %v290
    %v1556 = vunpack.c.h.b16 %v290
    %v1557 = vunpack.c.l.b16 %v291
    %v1558 = vunpack.c.h.b16 %v291
    %v1559 = vunpack.c.l.b16 %v292
    %v1560 = vunpack.c.h.b16 %v292
    %v1561 = vunpack.c.l.b16 %v293
    %v1562 = vunpack.c.h.b16 %v293
    %v1563 = vunpack.c.l.b16 %v294
    %v1564 = vunpack.c.h.b16 %v294
    %v1565 = vunpack.c.l.b16 %v295
    %v1566 = vunpack.c.h.b16 %v295
    %v1567 = vunpack.c.l.b16 %v296
    %v1568 = vunpack.c.h.b16 %v296
    %v1569 = vunpack.c.l.b16 %v297
    %v1570 = vunpack.c.h.b16 %v297
    %v1571 = vunpack.c.l.b16 %v298
    %v1572 = vunpack.c.h.b16 %v298
    %v1573 = vunpack.c.l.b16 %v299
    %v1574 = vunpack.c.h.b16 %v299
    %v1575 = vunpack.c.l.b16 %v300
    %v1576 = vunpack.c.h.b16 %v300
    %v1577 = vunpack.c.l.b16 %v301
    %v1578 = vunpack.c.h.b16 %v301
    %v1579 = vunpack.c.l.b16 %v302
    %v1580 = vunpack.c.h.b16 %v302
    %v1581 = vunpack.c.l.b16 %v303
    %v1582 = vunpack.c.h.b16 %v303
    %v1583 = vunpack.c.l.b16 %v304
    %v1584 = vunpack.c.h.b16 %v304
    %v1585 = vunpack.c.l.b16 %v305
    %v1586 = vunpack.c.h.b16 %v305
    %v1587 = vunpack.c.l.b16 %v306
    %v1588 = vunpack.c.h.b16 %v306
    %v1589 = vunpack.c.l.b16 %v307
    %v1590 = vunpack.c.h.b16 %v307
    %v1591 = vunpack.c.l.b16 %v308
    %v1592 = vunpack.c.h.b16 %v308
    %v1593 = vunpack.c.l.b16 %v309
    %v1594 = vunpack.c.h.b16 %v309
    %v1595 = vunpack.c.l.b16 %v310
    %v1596 = vunpack.c.h.b16 %v310
    %v1597 = vunpack.c.l.b16 %v311
    %v1598 = vunpack.c.h.b16 %v311
    %v1599 = vunpack.c.l.b16 %v312
    %v1600 = vunpack.c.h.b16 %v312
    %v1601 = vunpack.c.l.b16 %v313
    %v1602 = vunpack.c.h.b16 %v313
    %v1603 = vunpack.c.l.b16 %v314
    %v1604 = vunpack.c.h.b16 %v314
    %v1605 = vunpack.c.l.b16 %v315
    %v1606 = vunpack.c.h.b16 %v315
    %v1607 = vunpack.c.l.b16 %v316
    %v1608 = vunpack.c.h.b16 %v316
    %v1609 = vunpack.c.l.b16 %v317
    %v1610 = vunpack.c.h.b16 %v317
    %v1611 = vunpack.c.l.b16 %v318
    %v1612 = vunpack.c.h.b16 %v318
    %v1613 = vunpack.c.l.b16 %v319
    %v1614 = vunpack.c.h.b16 %v319
    %v1615 = vunpack.c.l.b16 %v320
    %v1616 = vunpack.c.h.b16 %v320
    %v1617 = vunpack.c.l.b16 %v321
    %v1618 = vunpack.c.h.b16 %v321
    %v1619 = vunpack.c.l.b16 %v322
    %v1620 = vunpack.c.h.b16 %v322
    %v1621 = vunpack.c.l.b16 %v323
    %v1622 = vunpack.c.h.b16 %v323
    %v1623 = vunpack.c.l.b16 %v324
    %v1624 = vunpack.c.h.b16 %v324
    %v1625 = vunpack.c.l.b16 %v325
    %v1626 = vunpack.c.h.b16 %v325
    %v1627 = vunpack.c.l.b16 %v326
    %v1628 = vunpack.c.h.b16 %v326
    %v1629 = vunpack.c.l.b16 %v327
    %v1630 = vunpack.c.h.b16 %v327
    %v1631 = vunpack.c.l.b16 %v328
    %v1632 = vunpack.c.h.b16 %v328
    %v1633 = vunpack.c.l.b16 %v329
    %v1634 = vunpack.c.h.b16 %v329
    %v1635 = vunpack.c.l.b16 %v330
    %v1636 = vunpack.c.h.b16 %v330
    %v1637 = vunpack.c.l.b16 %v331
    %v1638 = vunpack.c.h.b16 %v331
    %v1639 = vunpack.c.l.b16 %v332
    %v1640 = vunpack.c.h.b16 %v332
    %v1641 = vunpack.c.l.b16 %v333
    %v1642 = vunpack.c.h.b16 %v333
    %v1643 = vunpack.c.l.b16 %v334
    %v1644 = vunpack.c.h.b16 %v334
    %v1645 = vunpack.c.l.b16 %v335
    %v1646 = vunpack.c.h.b16 %v335
    %v1647 = vunpack.c.l.b16 %v336
    %v1648 = vunpack.c.h.b16 %v336
    %v1649 = vunpack.c.l.b16 %v337
    %v1650 = vunpack.c.h.b16 %v337
    %v1651 = vunpack.c.l.b16 %v338
    %v1652 = vunpack.c.h.b16 %v338
    %v1653 = vunpack.c.l.b16 %v339
    %v1654 = vunpack.c.h.b16 %v339
    %v1655 = vunpack.c.l.b16 %v340
    %v1656 = vunpack.c.h.b16 %v340
    %v1657 = vunpack.c.l.b16 %v341
    %v1658 = vunpack.c.h.b16 %v341
    %v1659 = vunpack.c.l.b16 %v342
    %v1660 = vunpack.c.h.b16 %v342
    %v1661 = vunpack.c.l.b16 %v343
    %v1662 = vunpack.c.h.b16 %v343
    %v1663 = vunpack.c.l.b16 %v344
    %v1664 = vunpack.c.h.b16 %v344
    %v1665 = vunpack.c.l.b16 %v345
    %v1666 = vunpack.c.h.b16 %v345
    %v1667 = vunpack.c.l.b16 %v346
    %v1668 = vunpack.c.h.b16 %v346
    %v1669 = vunpack.c.l.b16 %v347
    %v1670 = vunpack.c.h.b16 %v347
    %v1671 = vunpack.c.l.b16 %v348
    %v1672 = vunpack.c.h.b16 %v348
    %v1673 = vunpack.c.l.b16 %v349
    %v1674 = vunpack.c.h.b16 %v349
    %v1675 = vunpack.c.l.b16 %v350
    %v1676 = vunpack.c.h.b16 %v350
    %v1677 = vunpack.c.l.b16 %v351
    %v1678 = vunpack.c.h.b16 %v351
    %v1679 = vunpack.c.l.b16 %v352
    %v1680 = vunpack.c.h.b16 %v352
    %v1681 = vunpack.c.l.b16 %v353
    %v1682 = vunpack.c.h.b16 %v353
    %v1683 = vunpack.c.l.b16 %v354
    %v1684 = vunpack.c.h.b16 %v354
    %v1685 = vunpack.c.l.b16 %v355
    %v1686 = vunpack.c.h.b16 %v355
    %v1687 = vunpack.c.l.b16 %v356
    %v1688 = vunpack.c.h.b16 %v356
    %v1689 = vunpack.c.l.b16 %v357
    %v1690 = vunpack.c.h.b16 %v357
    %v1691 = vunpack.c.l.b16 %v358
    %v1692 = vunpack.c.h.b16 %v358
    %v1693 = vunpack.c.l.b16 %v359
    %v1694 = vunpack.c.h.b16 %v359
    %v1695 = vunpack.c.l.b16 %v360
    %v1696 = vunpack.c.h.b16 %v360
    %v1697 = vunpack.c.l.b16 %v361
    %v1698 = vunpack.c.h.b16 %v361
    %v1699 = vunpack.c.l.b16 %v362
    %v1700 = vunpack.c.h.b16 %v362
    %v1701 = vunpack.c.l.b16 %v363
    %v1702 = vunpack.c.h.b16 %v363
    %v1703 = vunpack.c.l.b16 %v364
    %v1704 = vunpack.c.h.b16 %v364
    %v1705 = vunpack.c.l.b16 %v365
    %v1706 = vunpack.c.h.b16 %v365
    %v1707 = vunpack.c.l.b16 %v366
    %v1708 = vunpack.c.h.b16 %v366
    %v1709 = vunpack.c.l.b16 %v367
    %v1710 = vunpack.c.h.b16 %v367
    %v1711 = vunpack.c.l.b16 %v368
    %v1712 = vunpack.c.h.b16 %v368
    %v1713 = vunpack.c.l.b16 %v369
    %v1714 = vunpack.c.h.b16 %v369
    %v1715 = vunpack.c.l.b16 %v370
    %v1716 = vunpack.c.h.b16 %v370
    %v1717 = vunpack.c.l.b16 %v371
    %v1718 = vunpack.c.h.b16 %v371
    %v1719 = vunpack.c.l.b16 %v372
    %v1720 = vunpack.c.h.b16 %v372
    %v1721 = vunpack.c.l.b16 %v373
    %v1722 = vunpack.c.h.b16 %v373
    %v1723 = vunpack.c.l.b16 %v374
    %v1724 = vunpack.c.h.b16 %v374
    %v1725 = vunpack.c.l.b16 %v375
    %v1726 = vunpack.c.h.b16 %v375
    %v1727 = vunpack.c.l.b16 %v376
    %v1728 = vunpack.c.h.b16 %v376
    %v1729 = vunpack.c.l.b16 %v377
    %v1730 = vunpack.c.h.b16 %v377
    %v1731 = vunpack.c.l.b16 %v378
    %v1732 = vunpack.c.h.b16 %v378
    %v1733 = vunpack.c.l.b16 %v379
    %v1734 = vunpack.c.h.b16 %v379
    %v1735 = vunpack.c.l.b16 %v380
    %v1736 = vunpack.c.h.b16 %v380
    %v1737 = vunpack.c.l.b16 %v381
    %v1738 = vunpack.c.h.b16 %v381
    %v1739 = vunpack.c.l.b16 %v382
    %v1740 = vunpack.c.h.b16 %v382
    %v1741 = vunpack.c.l.b16 %v383
    %v1742 = vunpack.c.h.b16 %v383
    %v1743 = vunpack.c.l.b16 %v384
    %v1744 = vunpack.c.h.b16 %v384
    %v1745 = vunpack.c.l.b16 %v385
    %v1746 = vunpack.c.h.b16 %v385
    %v1747 = vunpack.c.l.b16 %v386
    %v1748 = vunpack.c.h.b16 %v386
    %v1749 = vunpack.c.l.b16 %v387
    %v1750 = vunpack.c.h.b16 %v387
    %v1751 = vunpack.c.l.b16 %v388
    %v1752 = vunpack.c.h.b16 %v388
    %v1753 = vunpack.c.l.b16 %v389
    %v1754 = vunpack.c.h.b16 %v389
    %v1755 = vunpack.c.l.b16 %v390
    %v1756 = vunpack.c.h.b16 %v390
    %v1757 = vunpack.c.l.b16 %v391
    %v1758 = vunpack.c.h.b16 %v391
    %v1759 = vunpack.c.l.b16 %v392
    %v1760 = vunpack.c.h.b16 %v392
    %v1761 = vunpack.c.l.b16 %v393
    %v1762 = vunpack.c.h.b16 %v393
    %v1763 = vunpack.c.l.b16 %v394
    %v1764 = vunpack.c.h.b16 %v394
    %v1765 = vunpack.c.l.b16 %v395
    %v1766 = vunpack.c.h.b16 %v395
    %v1767 = vunpack.c.l.b16 %v396
    %v1768 = vunpack.c.h.b16 %v396
    %v1769 = vunpack.c.l.b16 %v397
    %v1770 = vunpack.c.h.b16 %v397
    %v1771 = vunpack.c.l.b16 %v398
    %v1772 = vunpack.c.h.b16 %v398
    %v1773 = vunpack.c.l.b16 %v399
    %v1774 = vunpack.c.h.b16 %v399
    %v1775 = vunpack.c.l.b16 %v400
    %v1776 = vunpack.c.h.b16 %v400
    %v1777 = vunpack.c.l.b16 %v401
    %v1778 = vunpack.c.h.b16 %v401
    %v1779 = vunpack.c.l.b16 %v402
    %v1780 = vunpack.c.h.b16 %v402
    %v1781 = vunpack.c.l.b16 %v403
    %v1782 = vunpack.c.h.b16 %v403
    %v1783 = vunpack.c.l.b16 %v404
    %v1784 = vunpack.c.h.b16 %v404
    %v1785 = vunpack.c.l.b16 %v405
    %v1786 = vunpack.c.h.b16 %v405
    %v1787 = vunpack.c.l.b16 %v406
    %v1788 = vunpack.c.h.b16 %v406
    %v1789 = vunpack.c.l.b16 %v407
    %v1790 = vunpack.c.h.b16 %v407
    %v1791 = vunpack.c.l.b16 %v408
    %v1792 = vunpack.c.h.b16 %v408
    %v1793 = vunpack.c.l.b16 %v409
    %v1794 = vunpack.c.h.b16 %v409
    %v1795 = vunpack.c.l.b16 %v410
    %v1796 = vunpack.c.h.b16 %v410
    %v1797 = vunpack.c.l.b16 %v411
    %v1798 = vunpack.c.h.b16 %v411
    %v1799 = vunpack.c.l.b16 %v412
    %v1800 = vunpack.c.h.b16 %v412
    %v1801 = vunpack.c.l.b16 %v413
    %v1802 = vunpack.c.h.b16 %v413
    %v1803 = vunpack.c.l.b16 %v414
    %v1804 = vunpack.c.h.b16 %v414
    %v1805 = vunpack.c.l.b16 %v415
    %v1806 = vunpack.c.h.b16 %v415
    %v1807 = vunpack.c.l.b16 %v416
    %v1808 = vunpack.c.h.b16 %v416
    %v1809 = vunpack.c.l.b16 %v417
    %v1810 = vunpack.c.h.b16 %v417
    %v1811 = vunpack.c.l.b16 %v418
    %v1812 = vunpack.c.h.b16 %v418
    %v1813 = vunpack.c.l.b16 %v419
    %v1814 = vunpack.c.h.b16 %v419
    %v1815 = vunpack.c.l.b16 %v420
    %v1816 = vunpack.c.h.b16 %v420
    %v1817 = vunpack.c.l.b16 %v421
    %v1818 = vunpack.c.h.b16 %v421
    %v1819 = vunpack.c.l.b16 %v422
    %v1820 = vunpack.c.h.b16 %v422
    %v1821 = vunpack.c.l.b16 %v423
    %v1822 = vunpack.c.h.b16 %v423
    %v1823 = vunpack.c.l.b16 %v424
    %v1824 = vunpack.c.h.b16 %v424
    %v1825 = vunpack.c.l.b16 %v425
    %v1826 = vunpack.c.h.b16 %v425
    %v1827 = vunpack.c.l.b16 %v426
    %v1828 = vunpack.c.h.b16 %v426
    %v1829 = vunpack.c.l.b16 %v427
    %v1830 = vunpack.c.h.b16 %v427
    %v1831 = vunpack.c.l.b16 %v428
    %v1832 = vunpack.c.h.b16 %v428
    %v1833 = vunpack.c.l.b16 %v429
    %v1834 = vunpack.c.h.b16 %v429
    %v1835 = vunpack.c.l.b16 %v430
    %v1836 = vunpack.c.h.b16 %v430
    %v1837 = vunpack.c.l.b16 %v431
    %v1838 = vunpack.c.h.b16 %v431
    %v1839 = vunpack.c.l.b16 %v432
    %v1840 = vunpack.c.h.b16 %v432
    %v1841 = vunpack.c.l.b16 %v433
    %v1842 = vunpack.c.h.b16 %v433
    %v1843 = vunpack.c.l.b16 %v434
    %v1844 = vunpack.c.h.b16 %v434
    %v1845 = vunpack.c.l.b16 %v435
    %v1846 = vunpack.c.h.b16 %v435
    %v1847 = vunpack.c.l.b16 %v436
    %v1848 = vunpack.c.h.b16 %v436
    %v1849 = vunpack.c.l.b16 %v437
    %v1850 = vunpack.c.h.b16 %v437
    %v1851 = vunpack.c.l.b16 %v438
    %v1852 = vunpack.c.h.b16 %v438
    %v1853 = vunpack.c.l.b16 %v439
    %v1854 = vunpack.c.h.b16 %v439
    %v1855 = vunpack.c.l.b16 %v440
    %v1856 = vunpack.c.h.b16 %v440
    %v1857 = vunpack.c.l.b16 %v441
    %v1858 = vunpack.c.h.b16 %v441
    %v1859 = vunpack.c.l.b16 %v442
    %v1860 = vunpack.c.h.b16 %v442
    %v1861 = vunpack.c.l.b16 %v443
    %v1862 = vunpack.c.h.b16 %v443
    %v1863 = vunpack.c.l.b16 %v444
    %v1864 = vunpack.c.h.b16 %v444
    %v1865 = vunpack.c.l.b16 %v445
    %v1866 = vunpack.c.h.b16 %v445
    %v1867 = vunpack.c.l.b16 %v446
    %v1868 = vunpack.c.h.b16 %v446
    %v1869 = vunpack.c.l.b16 %v447
    %v1870 = vunpack.c.h.b16 %v447
    %v1871 = vunpack.c.l.b16 %v448
    %v1872 = vunpack.c.h.b16 %v448
    %v1873 = vunpack.c.l.b16 %v449
    %v1874 = vunpack.c.h.b16 %v449
    %v1875 = vunpack.c.l.b16 %v450
    %v1876 = vunpack.c.h.b16 %v450
    %v1877 = vunpack.c.l.b16 %v451
    %v1878 = vunpack.c.h.b16 %v451
    %v1879 = vunpack.c.l.b16 %v452
    %v1880 = vunpack.c.h.b16 %v452
    %v1881 = vunpack.c.l.b16 %v453
    %v1882 = vunpack.c.h.b16 %v453
    %v1883 = vunpack.c.l.b16 %v454
    %v1884 = vunpack.c.h.b16 %v454
    %v1885 = vunpack.c.l.b16 %v455
    %v1886 = vunpack.c.h.b16 %v455
    %v1887 = vunpack.c.l.b16 %v456
    %v1888 = vunpack.c.h.b16 %v456
    %v1889 = vunpack.c.l.b16 %v457
    %v1890 = vunpack.c.h.b16 %v457
    %v1891 = vunpack.c.l.b16 %v458
    %v1892 = vunpack.c.h.b16 %v458
    %v1893 = vunpack.c.l.b16 %v459
    %v1894 = vunpack.c.h.b16 %v459
    %v1895 = vunpack.c.l.b16 %v460
    %v1896 = vunpack.c.h.b16 %v460
    %v1897 = vunpack.c.l.b16 %v461
    %v1898 = vunpack.c.h.b16 %v461
    %v1899 = vunpack.c.l.b16 %v462
    %v1900 = vunpack.c.h.b16 %v462
    %v1901 = vunpack.c.l.b16 %v463
    %v1902 = vunpack.c.h.b16 %v463
    %v1903 = vunpack.c.l.b16 %v464
    %v1904 = vunpack.c.h.b16 %v464
    %v1905 = vunpack.c.l.b16 %v465
    %v1906 = vunpack.c.h.b16 %v465
    %v1907 = vunpack.c.l.b16 %v466
    %v1908 = vunpack.c.h.b16 %v466
    %v1909 = vunpack.c.l.b16 %v467
    %v1910 = vunpack.c.h.b16 %v467
    %v1911 = vunpack.c.l.b16 %v468
    %v1912 = vunpack.c.h.b16 %v468
    %v1913 = vunpack.c.l.b16 %v469
    %v1914 = vunpack.c.h.b16 %v469
    %v1915 = vunpack.c.l.b16 %v470
    %v1916 = vunpack.c.h.b16 %v470
    %v1917 = vunpack.c.l.b16 %v471
    %v1918 = vunpack.c.h.b16 %v471
    %v1919 = vunpack.c.l.b16 %v472
    %v1920 = vunpack.c.h.b16 %v472
    %v1921 = vunpack.c.l.b16 %v473
    %v1922 = vunpack.c.h.b16 %v473
    %v1923 = vunpack.c.l.b16 %v474
    %v1924 = vunpack.c.h.b16 %v474
    %v1925 = vunpack.c.l.b16 %v475
    %v1926 = vunpack.c.h.b16 %v475
    %v1927 = vunpack.c.l.b16 %v476
    %v1928 = vunpack.c.h.b16 %v476
    %v1929 = vunpack.c.l.b16 %v477
    %v1930 = vunpack.c.h.b16 %v477
    %v1931 = vunpack.c.l.b16 %v478
    %v1932 = vunpack.c.h.b16 %v478
    %v1933 = vunpack.c.l.b16 %v479
    %v1934 = vunpack.c.h.b16 %v479
    %v1935 = vunpack.c.l.b16 %v480
    %v1936 = vunpack.c.h.b16 %v480
    %v1937 = vunpack.c.l.b16 %v481
    %v1938 = vunpack.c.h.b16 %v481
    %v1939 = vunpack.c.l.b16 %v482
    %v1940 = vunpack.c.h.b16 %v482
    %v1941 = vunpack.c.l.b16 %v483
    %v1942 = vunpack.c.h.b16 %v483
    %v1943 = vunpack.c.l.b16 %v484
    %v1944 = vunpack.c.h.b16 %v484
    %v1945 = vunpack.c.l.b16 %v485
    %v1946 = vunpack.c.h.b16 %v485
    %v1947 = vunpack.c.l.b16 %v486
    %v1948 = vunpack.c.h.b16 %v486
    %v1949 = vunpack.c.l.b16 %v487
    %v1950 = vunpack.c.h.b16 %v487
    %v1951 = vunpack.c.l.b16 %v488
    %v1952 = vunpack.c.h.b16 %v488
    %v1953 = vunpack.c.l.b16 %v489
    %v1954 = vunpack.c.h.b16 %v489
    %v1955 = vunpack.c.l.b16 %v490
    %v1956 = vunpack.c.h.b16 %v490
    %v1957 = vunpack.c.l.b16 %v491
    %v1958 = vunpack.c.h.b16 %v491
    %v1959 = vunpack.c.l.b16 %v492
    %v1960 = vunpack.c.h.b16 %v492
    %v1961 = vunpack.c.l.b16 %v493
    %v1962 = vunpack.c.h.b16 %v493
    %v1963 = vunpack.c.l.b16 %v494
    %v1964 = vunpack.c.h.b16 %v494
    %v1965 = vunpack.c.l.b16 %v495
    %v1966 = vunpack.c.h.b16 %v495
    %v1967 = vunpack.c.l.b16 %v496
    %v1968 = vunpack.c.h.b16 %v496
    %v1969 = vunpack.c.l.b16 %v497
    %v1970 = vunpack.c.h.b16 %v497
    %v1971 = vunpack.c.l.b16 %v498
    %v1972 = vunpack.c.h.b16 %v498
    %v1973 = vunpack.c.l.b16 %v499
    %v1974 = vunpack.c.h.b16 %v499
    %v1975 = vunpack.c.l.b16 %v500
    %v1976 = vunpack.c.h.b16 %v500
    %v1977 = vunpack.c.l.b16 %v501
    %v1978 = vunpack.c.h.b16 %v501
    %v1979 = vunpack.c.l.b16 %v502
    %v1980 = vunpack.c.h.b16 %v502
    %v1981 = vunpack.c.l.b16 %v503
    %v1982 = vunpack.c.h.b16 %v503
    %v1983 = vunpack.c.l.b16 %v504
    %v1984 = vunpack.c.h.b16 %v504
    %v1985 = vunpack.c.l.b16 %v505
    %v1986 = vunpack.c.h.b16 %v505
    %v1987 = vunpack.c.l.b16 %v506
    %v1988 = vunpack.c.h.b16 %v506
    %v1989 = vunpack.c.l.b16 %v507
    %v1990 = vunpack.c.h.b16 %v507
    %v1991 = vunpack.c.l.b16 %v508
    %v1992 = vunpack.c.h.b16 %v508
    %v1993 = vunpack.c.l.b16 %v509
    %v1994 = vunpack.c.h.b16 %v509
    %v1995 = vunpack.c.l.b16 %v510
    %v1996 = vunpack.c.h.b16 %v510
    %v1997 = vunpack.c.l.b16 %v511
    %v1998 = vunpack.c.h.b16 %v511
    %v1999 = vunpack.c.l.b16 %v512
    %v2000 = vunpack.c.h.b16 %v512
    %v2001 = vunpack.c.l.b16 %v513
    %v2002 = vunpack.c.h.b16 %v513
    %v2003 = vunpack.c.l.b16 %v514
    %v2004 = vunpack.c.h.b16 %v514
    %v2005 = vunpack.c.l.b16 %v515
    %v2006 = vunpack.c.h.b16 %v515
    %v2007 = vunpack.c.l.b16 %v516
    %v2008 = vunpack.c.h.b16 %v516
    %v2009 = vunpack.c.l.b16 %v517
    %v2010 = vunpack.c.h.b16 %v517
    %v2011 = vunpack.c.l.b16 %v518
    %v2012 = vunpack.c.h.b16 %v518
    %v2013 = vunpack.c.l.b16 %v519
    %v2014 = vunpack.c.h.b16 %v519
    %v2015 = vunpack.c.l.b16 %v520
    %v2016 = vunpack.c.h.b16 %v520
    %v2017 = vunpack.c.l.b16 %v521
    %v2018 = vunpack.c.h.b16 %v521
    %v2019 = vunpack.c.l.b16 %v522
    %v2020 = vunpack.c.h.b16 %v522
    %v2021 = vunpack.c.l.b16 %v523
    %v2022 = vunpack.c.h.b16 %v523
    %v2023 = vunpack.c.l.b16 %v524
    %v2024 = vunpack.c.h.b16 %v524
    %v2025 = vunpack.c.l.b16 %v525
    %v2026 = vunpack.c.h.b16 %v525
    %v2027 = vunpack.c.l.b16 %v526
    %v2028 = vunpack.c.h.b16 %v526
    %v2029 = vunpack.c.l.b16 %v527
    %v2030 = vunpack.c.h.b16 %v527
    %v2031 = vunpack.c.l.b16 %v528
    %v2032 = vunpack.c.h.b16 %v528
    %v2033 = vunpack.c.l.b16 %v529
    %v2034 = vunpack.c.h.b16 %v529
    %v2035 = vunpack.c.l.b16 %v530
    %v2036 = vunpack.c.h.b16 %v530
    %v2037 = vunpack.c.l.b16 %v531
    %v2038 = vunpack.c.h.b16 %v531
    %v2039 = vunpack.c.l.b16 %v532
    %v2040 = vunpack.c.h.b16 %v532
    %v2041 = vunpack.c.l.b16 %v533
    %v2042 = vunpack.c.h.b16 %v533
    %v2043 = vunpack.c.l.b16 %v534
    %v2044 = vunpack.c.h.b16 %v534
    %v2045 = vunpack.c.l.b16 %v535
    %v2046 = vunpack.c.h.b16 %v535
    %v2047 = vunpack.c.l.b16 %v536
    %v2048 = vunpack.c.h.b16 %v536
    %v2049 = vunpack.c.l.b16 %v537
    %v2050 = vunpack.c.h.b16 %v537
    %v2051 = vunpack.c.l.b16 %v538
    %v2052 = vunpack.c.h.b16 %v538
    %v2053 = vunpack.c.l.b16 %v539
    %v2054 = vunpack.c.h.b16 %v539
    %v2055 = vunpack.c.l.b16 %v540
    %v2056 = vunpack.c.h.b16 %v540
    %v2057 = vunpack.c.l.b16 %v541
    %v2058 = vunpack.c.h.b16 %v541
    %v2059 = vunpack.c.l.b16 %v542
    %v2060 = vunpack.c.h.b16 %v542
    %v2061 = vunpack.c.l.b16 %v543
    %v2062 = vunpack.c.h.b16 %v543
    %v2063 = vunpack.c.l.b16 %v544
    %v2064 = vunpack.c.h.b16 %v544
    %v2065 = vunpack.c.l.b16 %v545
    %v2066 = vunpack.c.h.b16 %v545
    %v2067 = vunpack.c.l.b16 %v546
    %v2068 = vunpack.c.h.b16 %v546
    %v2069 = vunpack.c.l.b16 %v547
    %v2070 = vunpack.c.h.b16 %v547
    %v2071 = vunpack.c.l.b16 %v548
    %v2072 = vunpack.c.h.b16 %v548
    %v2073 = vunpack.c.l.b16 %v549
    %v2074 = vunpack.c.h.b16 %v549
    %v2075 = vunpack.c.l.b16 %v550
    %v2076 = vunpack.c.h.b16 %v550
    %v2077 = vunpack.c.l.b16 %v551
    %v2078 = vunpack.c.h.b16 %v551
    %v2079 = vunpack.c.l.b16 %v552
    %v2080 = vunpack.c.h.b16 %v552
    %v2081 = vunpack.c.l.b16 %v553
    %v2082 = vunpack.c.h.b16 %v553
    %v2083 = vunpack.c.l.b16 %v554
    %v2084 = vunpack.c.h.b16 %v554
    %v2085 = vunpack.c.l.b16 %v555
    %v2086 = vunpack.c.h.b16 %v555
    %v2087 = vunpack.c.l.b16 %v556
    %v2088 = vunpack.c.h.b16 %v556
    %v2089 = vunpack.c.l.b16 %v557
    %v2090 = vunpack.c.h.b16 %v557
    %v2091 = vunpack.c.l.b16 %v558
    %v2092 = vunpack.c.h.b16 %v558
    %v2093 = vunpack.c.l.b16 %v559
    %v2094 = vunpack.c.h.b16 %v559
    %v2095 = vunpack.c.l.b16 %v560
    %v2096 = vunpack.c.h.b16 %v560
    %v2097 = vunpack.c.l.b16 %v561
    %v2098 = vunpack.c.h.b16 %v561
    %v2099 = vunpack.c.l.b16 %v562
    %v2100 = vunpack.c.h.b16 %v562
    %v2101 = vunpack.c.l.b16 %v563
    %v2102 = vunpack.c.h.b16 %v563
    %v2103 = vunpack.c.l.b16 %v564
    %v2104 = vunpack.c.h.b16 %v564
    %v2105 = vunpack.c.l.b16 %v565
    %v2106 = vunpack.c.h.b16 %v565
    %v2107 = vunpack.c.l.b16 %v566
    %v2108 = vunpack.c.h.b16 %v566
    %v2109 = vunpack.c.l.b16 %v567
    %v2110 = vunpack.c.h.b16 %v567
    %v2111 = vunpack.c.l.b16 %v568
    %v2112 = vunpack.c.h.b16 %v568
    %v2113 = vunpack.c.l.b16 %v569
    %v2114 = vunpack.c.h.b16 %v569
    %v2115 = vunpack.c.l.b16 %v570
    %v2116 = vunpack.c.h.b16 %v570
    %v2117 = vunpack.c.l.b16 %v571
    %v2118 = vunpack.c.h.b16 %v571
    %v2119 = vunpack.c.l.b16 %v572
    %v2120 = vunpack.c.h.b16 %v572
    %v2121 = vunpack.c.l.b16 %v573
    %v2122 = vunpack.c.h.b16 %v573
    %v2123 = vunpack.c.l.b16 %v574
    %v2124 = vunpack.c.h.b16 %v574
    %v2125 = vunpack.c.l.b16 %v575
    %v2126 = vunpack.c.h.b16 %v575
    %v2127 = vunpack.c.l.b16 %v576
    %v2128 = vunpack.c.h.b16 %v576
    %v2129 = vunpack.c.l.b16 %v577
    %v2130 = vunpack.c.h.b16 %v577
    %v2131 = vunpack.c.l.b16 %v578
    %v2132 = vunpack.c.h.b16 %v578
    %v2133 = vunpack.c.l.b16 %v579
    %v2134 = vunpack.c.h.b16 %v579
    %v2135 = vunpack.c.l.b16 %v580
    %v2136 = vunpack.c.h.b16 %v580
    %v2137 = vunpack.c.l.b16 %v581
    %v2138 = vunpack.c.h.b16 %v581
    %v2139 = vunpack.c.l.b16 %v582
    %v2140 = vunpack.c.h.b16 %v582
    %v2141 = vunpack.c.l.b16 %v583
    %v2142 = vunpack.c.h.b16 %v583
    %v2143 = vunpack.c.l.b16 %v584
    %v2144 = vunpack.c.h.b16 %v584
    %v2145 = vunpack.c.l.b16 %v585
    %v2146 = vunpack.c.h.b16 %v585
    %v2147 = vunpack.c.l.b16 %v586
    %v2148 = vunpack.c.h.b16 %v586
    %v2149 = vunpack.c.l.b16 %v587
    %v2150 = vunpack.c.h.b16 %v587
    %v2151 = vunpack.c.l.b16 %v588
    %v2152 = vunpack.c.h.b16 %v588
    %v2153 = vunpack.c.l.b16 %v589
    %v2154 = vunpack.c.h.b16 %v589
    %v2155 = vunpack.c.l.b16 %v590
    %v2156 = vunpack.c.h.b16 %v590
    %v2157 = vunpack.c.l.b16 %v591
    %v2158 = vunpack.c.h.b16 %v591
    %v2159 = vunpack.c.l.b16 %v592
    %v2160 = vunpack.c.h.b16 %v592
    %v2161 = vunpack.c.l.b16 %v593
    %v2162 = vunpack.c.h.b16 %v593
    %v2163 = vunpack.c.l.b16 %v594
    %v2164 = vunpack.c.h.b16 %v594
    %v2165 = vunpack.c.l.b16 %v595
    %v2166 = vunpack.c.h.b16 %v595
    %v2167 = vunpack.c.l.b16 %v596
    %v2168 = vunpack.c.h.b16 %v596
    %v2169 = vunpack.c.l.b16 %v597
    %v2170 = vunpack.c.h.b16 %v597
    %v2171 = vunpack.c.l.b16 %v598
    %v2172 = vunpack.c.h.b16 %v598
    %v2173 = vunpack.c.l.b16 %v599
    %v2174 = vunpack.c.h.b16 %v599
    %v2175 = vunpack.c.l.b16 %v600
    %v2176 = vunpack.c.h.b16 %v600
    %v2177 = vunpack.c.l.b16 %v601
    %v2178 = vunpack.c.h.b16 %v601
    %v2179 = vunpack.c.l.b16 %v602
    %v2180 = vunpack.c.h.b16 %v602
    %v2181 = vunpack.c.l.b16 %v603
    %v2182 = vunpack.c.h.b16 %v603
    %v2183 = vunpack.c.l.b16 %v604
    %v2184 = vunpack.c.h.b16 %v604
    %v2185 = vunpack.c.l.b16 %v605
    %v2186 = vunpack.c.h.b16 %v605
    %v2187 = vunpack.c.l.b16 %v606
    %v2188 = vunpack.c.h.b16 %v606
    %v2189 = vunpack.c.l.b16 %v607
    %v2190 = vunpack.c.h.b16 %v607
    %v2191 = vunpack.c.l.b16 %v608
    %v2192 = vunpack.c.h.b16 %v608
    %v2193 = vunpack.c.l.b16 %v609
    %v2194 = vunpack.c.h.b16 %v609
    %v2195 = vunpack.c.l.b16 %v610
    %v2196 = vunpack.c.h.b16 %v610
    %v2197 = vunpack.c.l.b16 %v611
    %v2198 = vunpack.c.h.b16 %v611
    %v2199 = vunpack.c.l.b16 %v612
    %v2200 = vunpack.c.h.b16 %v612
    %v2201 = vunpack.c.l.b16 %v613
    %v2202 = vunpack.c.h.b16 %v613
    %v2203 = vunpack.c.l.b16 %v614
    %v2204 = vunpack.c.h.b16 %v614
    %v2205 = vunpack.c.l.b16 %v615
    %v2206 = vunpack.c.h.b16 %v615
    %v2207 = vunpack.c.l.b16 %v616
    %v2208 = vunpack.c.h.b16 %v616
    %v2209 = vunpack.c.l.b16 %v617
    %v2210 = vunpack.c.h.b16 %v617
    %v2211 = vunpack.c.l.b16 %v618
    %v2212 = vunpack.c.h.b16 %v618
    %v2213 = vunpack.c.l.b16 %v619
    %v2214 = vunpack.c.h.b16 %v619
    %v2215 = vunpack.c.l.b16 %v620
    %v2216 = vunpack.c.h.b16 %v620
    %v2217 = vunpack.c.l.b16 %v621
    %v2218 = vunpack.c.h.b16 %v621
    %v2219 = vunpack.c.l.b16 %v622
    %v2220 = vunpack.c.h.b16 %v622
    %v2221 = vunpack.c.l.b16 %v623
    %v2222 = vunpack.c.h.b16 %v623
    %v2223 = vunpack.c.l.b16 %v624
    %v2224 = vunpack.c.h.b16 %v624
    %v2225 = vunpack.c.l.b16 %v625
    %v2226 = vunpack.c.h.b16 %v625
    %v2227 = vunpack.c.l.b16 %v626
    %v2228 = vunpack.c.h.b16 %v626
    %v2229 = vunpack.c.l.b16 %v627
    %v2230 = vunpack.c.h.b16 %v627
    %v2231 = vunpack.c.l.b16 %v628
    %v2232 = vunpack.c.h.b16 %v628
    %v2233 = vunpack.c.l.b16 %v629
    %v2234 = vunpack.c.h.b16 %v629
    %v2235 = vunpack.c.l.b16 %v630
    %v2236 = vunpack.c.h.b16 %v630
    %v2237 = vpack.c.b16 %v1221, %v1213
    %v2238 = vpack.c.b16 %v1222, %v1214
    %v2239 = vpack.c.b16 %v1223, %v1215
    %v2240 = vpack.c.b16 %v1224, %v1216
    %v2241 = vpack.c.b16 %v1225, %v1217
    %v2242 = vpack.c.b16 %v1226, %v1218
    %v2243 = vpack.c.b16 %v1227, %v1219
    %v2244 = vpack.c.b16 %v1228, %v1220
    %v2245 = vpack.c.b16 %v1237, %v1229
    %v2246 = vpack.c.b16 %v1238, %v1230
    %v2247 = vpack.c.b16 %v1239, %v1231
    %v2248 = vpack.c.b16 %v1240, %v1232
    %v2249 = vpack.c.b16 %v1241, %v1233
    %v2250 = vpack.c.b16 %v1242, %v1234
    %v2251 = vpack.c.b16 %v1243, %v1235
    %v2252 = vpack.c.b16 %v1244, %v1236
    %v2253 = vpack.c.b16 %v1253, %v1245
    %v2254 = vpack.c.b16 %v1254, %v1246
    %v2255 = vpack.c.b16 %v1255, %v1247
    %v2256 = vpack.c.b16 %v1256, %v1248
    %v2257 = vpack.c.b16 %v1257, %v1249
    %v2258 = vpack.c.b16 %v1258, %v1250
    %v2259 = vpack.c.b16 %v1259, %v1251
    %v2260 = vpack.c.b16 %v1260, %v1252
    %v2261 = vpack.c.b16 %v1269, %v1261
    %v2262 = vpack.c.b16 %v1270, %v1262
    %v2263 = vpack.c.b16 %v1271, %v1263
    %v2264 = vpack.c.b16 %v1272, %v1264
    %v2265 = vpack.c.b16 %v1273, %v1265
    %v2266 = vpack.c.b16 %v1274, %v1266
    %v2267 = vpack.c.b16 %v1275, %v1267
    %v2268 = vpack.c.b16 %v1276, %v1268
    %v2269 = vpack.c.b16 %v1285, %v1277
    %v2270 = vpack.c.b16 %v1286, %v1278
    %v2271 = vpack.c.b16 %v1287, %v1279
    %v2272 = vpack.c.b16 %v1288, %v1280
    %v2273 = vpack.c.b16 %v1289, %v1281
    %v2274 = vpack.c.b16 %v1290, %v1282
    %v2275 = vpack.c.b16 %v1291, %v1283
    %v2276 = vpack.c.b16 %v1292, %v1284
    %v2277 = vpack.c.b16 %v1301, %v1293
    %v2278 = vpack.c.b16 %v1302, %v1294
    %v2279 = vpack.c.b16 %v1303, %v1295
    %v2280 = vpack.c.b16 %v1304, %v1296
    %v2281 = vpack.c.b16 %v1305, %v1297
    %v2282 = vpack.c.b16 %v1306, %v1298
    %v2283 = vpack.c.b16 %v1307, %v1299
    %v2284 = vpack.c.b16 %v1308, %v1300
    %v2285 = vpack.c.b16 %v1317, %v1309
    %v2286 = vpack.c.b16 %v1318, %v1310
    %v2287 = vpack.c.b16 %v1319, %v1311
    %v2288 = vpack.c.b16 %v1320, %v1312
    %v2289 = vpack.c.b16 %v1321, %v1313
    %v2290 = vpack.c.b16 %v1322, %v1314
    %v2291 = vpack.c.b16 %v1323, %v1315
    %v2292 = vpack.c.b16 %v1324, %v1316
    %v2293 = vpack.c.b16 %v1333, %v1325
    %v2294 = vpack.c.b16 %v1334, %v1326
    %v2295 = vpack.c.b16 %v1335, %v1327
    %v2296 = vpack.c.b16 %v1336, %v1328
    %v2297 = vpack.c.b16 %v1337, %v1329
    %v2298 = vpack.c.b16 %v1338, %v1330
    %v2299 = vpack.c.b16 %v1339, %v1331
    %v2300 = vpack.c.b16 %v1340, %v1332
    %v2301 = vpack.c.b16 %v1349, %v1341
    %v2302 = vpack.c.b16 %v1350, %v1342
    %v2303 = vpack.c.b16 %v1351, %v1343
    %v2304 = vpack.c.b16 %v1352, %v1344
    %v2305 = vpack.c.b16 %v1353, %v1345
    %v2306 = vpack.c.b16 %v1354, %v1346
    %v2307 = vpack.c.b16 %v1355, %v1347
    %v2308 = vpack.c.b16 %v1356, %v1348
    %v2309 = vpack.c.b16 %v1365, %v1357
    %v2310 = vpack.c.b16 %v1366, %v1358
    %v2311 = vpack.c.b16 %v1367, %v1359
    %v2312 = vpack.c.b16 %v1368, %v1360
    %v2313 = vpack.c.b16 %v1369, %v1361
    %v2314 = vpack.c.b16 %v1370, %v1362
    %v2315 = vpack.c.b16 %v1371, %v1363
    %v2316 = vpack.c.b16 %v1372, %v1364
    %v2317 = vpack.c.b16 %v1381, %v1373
    %v2318 = vpack.c.b16 %v1382, %v1374
    %v2319 = vpack.c.b16 %v1383, %v1375
    %v2320 = vpack.c.b16 %v1384, %v1376
    %v2321 = vpack.c.b16 %v1385, %v1377
    %v2322 = vpack.c.b16 %v1386, %v1378
    %v2323 = vpack.c.b16 %v1387, %v1379
    %v2324 = vpack.c.b16 %v1388, %v1380
    %v2325 = vpack.c.b16 %v1397, %v1389
    %v2326 = vpack.c.b16 %v1398, %v1390
    %v2327 = vpack.c.b16 %v1399, %v1391
    %v2328 = vpack.c.b16 %v1400, %v1392
    %v2329 = vpack.c.b16 %v1401, %v1393
    %v2330 = vpack.c.b16 %v1402, %v1394
    %v2331 = vpack.c.b16 %v1403, %v1395
    %v2332 = vpack.c.b16 %v1404, %v1396
    %v2333 = vpack.c.b16 %v1413, %v1405
    %v2334 = vpack.c.b16 %v1414, %v1406
    %v2335 = vpack.c.b16 %v1415, %v1407
    %v2336 = vpack.c.b16 %v1416, %v1408
    %v2337 = vpack.c.b16 %v1417, %v1409
    %v2338 = vpack.c.b16 %v1418, %v1410
    %v2339 = vpack.c.b16 %v1419, %v1411
    %v2340 = vpack.c.b16 %v1420, %v1412
    %v2341 = vpack.c.b16 %v1429, %v1421
    %v2342 = vpack.c.b16 %v1430, %v1422
    %v2343 = vpack.c.b16 %v1431, %v1423
    %v2344 = vpack.c.b16 %v1432, %v1424
    %v2345 = vpack.c.b16 %v1433, %v1425
    %v2346 = vpack.c.b16 %v1434, %v1426
    %v2347 = vpack.c.b16 %v1435, %v1427
    %v2348 = vpack.c.b16 %v1436, %v1428
    %v2349 = vpack.c.b16 %v1445, %v1437
    %v2350 = vpack.c.b16 %v1446, %v1438
    %v2351 = vpack.c.b16 %v1447, %v1439
    %v2352 = vpack.c.b16 %v1448, %v1440
    %v2353 = vpack.c.b16 %v1449, %v1441
    %v2354 = vpack.c.b16 %v1450, %v1442
    %v2355 = vpack.c.b16 %v1451, %v1443
    %v2356 = vpack.c.b16 %v1452, %v1444
    %v2357 = vpack.c.b16 %v1461, %v1453
    %v2358 = vpack.c.b16 %v1462, %v1454
    %v2359 = vpack.c.b16 %v1463, %v1455
    %v2360 = vpack.c.b16 %v1464, %v1456
    %v2361 = vpack.c.b16 %v1465, %v1457
    %v2362 = vpack.c.b16 %v1466, %v1458
    %v2363 = vpack.c.b16 %v1467, %v1459
    %v2364 = vpack.c.b16 %v1468, %v1460
    %v2365 = vpack.c.b16 %v1477, %v1469
    %v2366 = vpack.c.b16 %v1478, %v1470
    %v2367 = vpack.c.b16 %v1479, %v1471
    %v2368 = vpack.c.b16 %v1480, %v1472
    %v2369 = vpack.c.b16 %v1481, %v1473
    %v2370 = vpack.c.b16 %v1482, %v1474
    %v2371 = vpack.c.b16 %v1483, %v1475
    %v2372 = vpack.c.b16 %v1484, %v1476
    %v2373 = vpack.c.b16 %v1493, %v1485
    %v2374 = vpack.c.b16 %v1494, %v1486
    %v2375 = vpack.c.b16 %v1495, %v1487
    %v2376 = vpack.c.b16 %v1496, %v1488
    %v2377 = vpack.c.b16 %v1497, %v1489
    %v2378 = vpack.c.b16 %v1498, %v1490
    %v2379 = vpack.c.b16 %v1499, %v1491
    %v2380 = vpack.c.b16 %v1500, %v1492
    %v2381 = vpack.c.b16 %v1509, %v1501
    %v2382 = vpack.c.b16 %v1510, %v1502
    %v2383 = vpack.c.b16 %v1511, %v1503
    %v2384 = vpack.c.b16 %v1512, %v1504
    %v2385 = vpack.c.b16 %v1513, %v1505
    %v2386 = vpack.c.b16 %v1514, %v1506
    %v2387 = vpack.c.b16 %v1515, %v1507
    %v2388 = vpack.c.b16 %v1516, %v1508
    %v2389 = vpack.c.b16 %v1525, %v1517
    %v2390 = vpack.c.b16 %v1526, %v1518
    %v2391 = vpack.c.b16 %v1527, %v1519
    %v2392 = vpack.c.b16 %v1528, %v1520
    %v2393 = vpack.c.b16 %v1529, %v1521
    %v2394 = vpack.c.b16 %v1530, %v1522
    %v2395 = vpack.c.b16 %v1531, %v1523
    %v2396 = vpack.c.b16 %v1532, %v1524
    %v2397 = vpack.c.b16 %v1541, %v1533
    %v2398 = vpack.c.b16 %v1542, %v1534
    %v2399 = vpack.c.b16 %v1543, %v1535
    %v2400 = vpack.c.b16 %v1544, %v1536
    %v2401 = vpack.c.b16 %v1545, %v1537
    %v2402 = vpack.c.b16 %v1546, %v1538
    %v2403 = vpack.c.b16 %v1547, %v1539
    %v2404 = vpack.c.b16 %v1548, %v1540
    %v2405 = vpack.c.b16 %v1557, %v1549
    %v2406 = vpack.c.b16 %v1558, %v1550
    %v2407 = vpack.c.b16 %v1559, %v1551
    %v2408 = vpack.c.b16 %v1560, %v1552
    %v2409 = vpack.c.b16 %v1561, %v1553
    %v2410 = vpack.c.b16 %v1562, %v1554
    %v2411 = vpack.c.b16 %v1563, %v1555
    %v2412 = vpack.c.b16 %v1564, %v1556
    %v2413 = vpack.c.b16 %v1573, %v1565
    %v2414 = vpack.c.b16 %v1574, %v1566
    %v2415 = vpack.c.b16 %v1575, %v1567
    %v2416 = vpack.c.b16 %v1576, %v1568
    %v2417 = vpack.c.b16 %v1577, %v1569
    %v2418 = vpack.c.b16 %v1578, %v1570
    %v2419 = vpack.c.b16 %v1579, %v1571
    %v2420 = vpack.c.b16 %v1580, %v1572
    %v2421 = vpack.c.b16 %v1589, %v1581
    %v2422 = vpack.c.b16 %v1590, %v1582
    %v2423 = vpack.c.b16 %v1591, %v1583
    %v2424 = vpack.c.b16 %v1592, %v1584
    %v2425 = vpack.c.b16 %v1593, %v1585
    %v2426 = vpack.c.b16 %v1594, %v1586
    %v2427 = vpack.c.b16 %v1595, %v1587
    %v2428 = vpack.c.b16 %v1596, %v1588
    %v2429 = vpack.c.b16 %v1605, %v1597
    %v2430 = vpack.c.b16 %v1606, %v1598
    %v2431 = vpack.c.b16 %v1607, %v1599
    %v2432 = vpack.c.b16 %v1608, %v1600
    %v2433 = vpack.c.b16 %v1609, %v1601
    %v2434 = vpack.c.b16 %v1610, %v1602
    %v2435 = vpack.c.b16 %v1611, %v1603
    %v2436 = vpack.c.b16 %v1612, %v1604
    %v2437 = vpack.c.b16 %v1621, %v1613
    %v2438 = vpack.c.b16 %v1622, %v1614
    %v2439 = vpack.c.b16 %v1623, %v1615
    %v2440 = vpack.c.b16 %v1624, %v1616
    %v2441 = vpack.c.b16 %v1625, %v1617
    %v2442 = vpack.c.b16 %v1626, %v1618
    %v2443 = vpack.c.b16 %v1627, %v1619
    %v2444 = vpack.c.b16 %v1628, %v1620
    %v2445 = vpack.c.b16 %v1637, %v1629
    %v2446 = vpack.c.b16 %v1638, %v1630
    %v2447 = vpack.c.b16 %v1639, %v1631
    %v2448 = vpack.c.b16 %v1640, %v1632
    %v2449 = vpack.c.b16 %v1641, %v1633
    %v2450 = vpack.c.b16 %v1642, %v1634
    %v2451 = vpack.c.b16 %v1643, %v1635
    %v2452 = vpack.c.b16 %v1644, %v1636
    %v2453 = vpack.c.b16 %v1653, %v1645
    %v2454 = vpack.c.b16 %v1654, %v1646
    %v2455 = vpack.c.b16 %v1655, %v1647
    %v2456 = vpack.c.b16 %v1656, %v1648
    %v2457 = vpack.c.b16 %v1657, %v1649
    %v2458 = vpack.c.b16 %v1658, %v1650
    %v2459 = vpack.c.b16 %v1659, %v1651
    %v2460 = vpack.c.b16 %v1660, %v1652
    %v2461 = vpack.c.b16 %v1669, %v1661
    %v2462 = vpack.c.b16 %v1670, %v1662
    %v2463 = vpack.c.b16 %v1671, %v1663
    %v2464 = vpack.c.b16 %v1672, %v1664
    %v2465 = vpack.c.b16 %v1673, %v1665
    %v2466 = vpack.c.b16 %v1674, %v1666
    %v2467 = vpack.c.b16 %v1675, %v1667
    %v2468 = vpack.c.b16 %v1676, %v1668
    %v2469 = vpack.c.b16 %v1685, %v1677
    %v2470 = vpack.c.b16 %v1686, %v1678
    %v2471 = vpack.c.b16 %v1687, %v1679
    %v2472 = vpack.c.b16 %v1688, %v1680
    %v2473 = vpack.c.b16 %v1689, %v1681
    %v2474 = vpack.c.b16 %v1690, %v1682
    %v2475 = vpack.c.b16 %v1691, %v1683
    %v2476 = vpack.c.b16 %v1692, %v1684
    %v2477 = vpack.c.b16 %v1701, %v1693
    %v2478 = vpack.c.b16 %v1702, %v1694
    %v2479 = vpack.c.b16 %v1703, %v1695
    %v2480 = vpack.c.b16 %v1704, %v1696
    %v2481 = vpack.c.b16 %v1705, %v1697
    %v2482 = vpack.c.b16 %v1706, %v1698
    %v2483 = vpack.c.b16 %v1707, %v1699
    %v2484 = vpack.c.b16 %v1708, %v1700
    %v2485 = vpack.c.b16 %v1717, %v1709
    %v2486 = vpack.c.b16 %v1718, %v1710
    %v2487 = vpack.c.b16 %v1719, %v1711
    %v2488 = vpack.c.b16 %v1720, %v1712
    %v2489 = vpack.c.b16 %v1721, %v1713
    %v2490 = vpack.c.b16 %v1722, %v1714
    %v2491 = vpack.c.b16 %v1723, %v1715
    %v2492 = vpack.c.b16 %v1724, %v1716
    %v2493 = vpack.c.b16 %v1733, %v1725
    %v2494 = vpack.c.b16 %v1734, %v1726
    %v2495 = vpack.c.b16 %v1735, %v1727
    %v2496 = vpack.c.b16 %v1736, %v1728
    %v2497 = vpack.c.b16 %v1737, %v1729
    %v2498 = vpack.c.b16 %v1738, %v1730
    %v2499 = vpack.c.b16 %v1739, %v1731
    %v2500 = vpack.c.b16 %v1740, %v1732
    %v2501 = vpack.c.b16 %v1749, %v1741
    %v2502 = vpack.c.b16 %v1750, %v1742
    %v2503 = vpack.c.b16 %v1751, %v1743
    %v2504 = vpack.c.b16 %v1752, %v1744
    %v2505 = vpack.c.b16 %v1753, %v1745
    %v2506 = vpack.c.b16 %v1754, %v1746
    %v2507 = vpack.c.b16 %v1755, %v1747
    %v2508 = vpack.c.b16 %v1756, %v1748
    %v2509 = vpack.c.b16 %v1765, %v1757
    %v2510 = vpack.c.b16 %v1766, %v1758
    %v2511 = vpack.c.b16 %v1767, %v1759
    %v2512 = vpack.c.b16 %v1768, %v1760
    %v2513 = vpack.c.b16 %v1769, %v1761
    %v2514 = vpack.c.b16 %v1770, %v1762
    %v2515 = vpack.c.b16 %v1771, %v1763
    %v2516 = vpack.c.b16 %v1772, %v1764
    %v2517 = vpack.c.b16 %v1781, %v1773
    %v2518 = vpack.c.b16 %v1782, %v1774
    %v2519 = vpack.c.b16 %v1783, %v1775
    %v2520 = vpack.c.b16 %v1784, %v1776
    %v2521 = vpack.c.b16 %v1785, %v1777
    %v2522 = vpack.c.b16 %v1786, %v1778
    %v2523 = vpack.c.b16 %v1787, %v1779
    %v2524 = vpack.c.b16 %v1788, %v1780
    %v2525 = vpack.c.b16 %v1797, %v1789
    %v2526 = vpack.c.b16 %v1798, %v1790
    %v2527 = vpack.c.b16 %v1799, %v1791
    %v2528 = vpack.c.b16 %v1800, %v1792
    %v2529 = vpack.c.b16 %v1801, %v1793
    %v2530 = vpack.c.b16 %v1802, %v1794
    %v2531 = vpack.c.b16 %v1803, %v1795
    %v2532 = vpack.c.b16 %v1804, %v1796
    %v2533 = vpack.c.b16 %v1813, %v1805
    %v2534 = vpack.c.b16 %v1814, %v1806
    %v2535 = vpack.c.b16 %v1815, %v1807
    %v2536 = vpack.c.b16 %v1816, %v1808
    %v2537 = vpack.c.b16 %v1817, %v1809
    %v2538 = vpack.c.b16 %v1818, %v1810
    %v2539 = vpack.c.b16 %v1819, %v1811
    %v2540 = vpack.c.b16 %v1820, %v1812
    %v2541 = vpack.c.b16 %v1829, %v1821
    %v2542 = vpack.c.b16 %v1830, %v1822
    %v2543 = vpack.c.b16 %v1831, %v1823
    %v2544 = vpack.c.b16 %v1832, %v1824
    %v2545 = vpack.c.b16 %v1833, %v1825
    %v2546 = vpack.c.b16 %v1834, %v1826
    %v2547 = vpack.c.b16 %v1835, %v1827
    %v2548 = vpack.c.b16 %v1836, %v1828
    %v2549 = vpack.c.b16 %v1845, %v1837
    %v2550 = vpack.c.b16 %v1846, %v1838
    %v2551 = vpack.c.b16 %v1847, %v1839
    %v2552 = vpack.c.b16 %v1848, %v1840
    %v2553 = vpack.c.b16 %v1849, %v1841
    %v2554 = vpack.c.b16 %v1850, %v1842
    %v2555 = vpack.c.b16 %v1851, %v1843
    %v2556 = vpack.c.b16 %v1852, %v1844
    %v2557 = vpack.c.b16 %v1861, %v1853
    %v2558 = vpack.c.b16 %v1862, %v1854
    %v2559 = vpack.c.b16 %v1863, %v1855
    %v2560 = vpack.c.b16 %v1864, %v1856
    %v2561 = vpack.c.b16 %v1865, %v1857
    %v2562 = vpack.c.b16 %v1866, %v1858
    %v2563 = vpack.c.b16 %v1867, %v1859
    %v2564 = vpack.c.b16 %v1868, %v1860
    %v2565 = vpack.c.b16 %v1877, %v1869
    %v2566 = vpack.c.b16 %v1878, %v1870
    %v2567 = vpack.c.b16 %v1879, %v1871
    %v2568 = vpack.c.b16 %v1880, %v1872
    %v2569 = vpack.c.b16 %v1881, %v1873
    %v2570 = vpack.c.b16 %v1882, %v1874
    %v2571 = vpack.c.b16 %v1883, %v1875
    %v2572 = vpack.c.b16 %v1884, %v1876
    %v2573 = vpack.c.b16 %v1893, %v1885
    %v2574 = vpack.c.b16 %v1894, %v1886
    %v2575 = vpack.c.b16 %v1895, %v1887
    %v2576 = vpack.c.b16 %v1896, %v1888
    %v2577 = vpack.c.b16 %v1897, %v1889
    %v2578 = vpack.c.b16 %v1898, %v1890
    %v2579 = vpack.c.b16 %v1899, %v1891
    %v2580 = vpack.c.b16 %v1900, %v1892
    %v2581 = vpack.c.b16 %v1909, %v1901
    %v2582 = vpack.c.b16 %v1910, %v1902
    %v2583 = vpack.c.b16 %v1911, %v1903
    %v2584 = vpack.c.b16 %v1912, %v1904
    %v2585 = vpack.c.b16 %v1913, %v1905
    %v2586 = vpack.c.b16 %v1914, %v1906
    %v2587 = vpack.c.b16 %v1915, %v1907
    %v2588 = vpack.c.b16 %v1916, %v1908
    %v2589 = vpack.c.b16 %v1925, %v1917
    %v2590 = vpack.c.b16 %v1926, %v1918
    %v2591 = vpack.c.b16 %v1927, %v1919
    %v2592 = vpack.c.b16 %v1928, %v1920
    %v2593 = vpack.c.b16 %v1929, %v1921
    %v2594 = vpack.c.b16 %v1930, %v1922
    %v2595 = vpack.c.b16 %v1931, %v1923
    %v2596 = vpack.c.b16 %v1932, %v1924
    %v2597 = vpack.c.b16 %v1941, %v1933
    %v2598 = vpack.c.b16 %v1942, %v1934
    %v2599 = vpack.c.b16 %v1943, %v1935
    %v2600 = vpack.c.b16 %v1944, %v1936
    %v2601 = vpack.c.b16 %v1945, %v1937
    %v2602 = vpack.c.b16 %v1946, %v1938
    %v2603 = vpack.c.b16 %v1947, %v1939
    %v2604 = vpack.c.b16 %v1948, %v1940
    %v2605 = vpack.c.b16 %v1957, %v1949
    %v2606 = vpack.c.b16 %v1958, %v1950
    %v2607 = vpack.c.b16 %v1959, %v1951
    %v2608 = vpack.c.b16 %v1960, %v1952
    %v2609 = vpack.c.b16 %v1961, %v1953
    %v2610 = vpack.c.b16 %v1962, %v1954
    %v2611 = vpack.c.b16 %v1963, %v1955
    %v2612 = vpack.c.b16 %v1964, %v1956
    %v2613 = vpack.c.b16 %v1973, %v1965
    %v2614 = vpack.c.b16 %v1974, %v1966
    %v2615 = vpack.c.b16 %v1975, %v1967
    %v2616 = vpack.c.b16 %v1976, %v1968
    %v2617 = vpack.c.b16 %v1977, %v1969
    %v2618 = vpack.c.b16 %v1978, %v1970
    %v2619 = vpack.c.b16 %v1979, %v1971
    %v2620 = vpack.c.b16 %v1980, %v1972
    %v2621 = vpack.c.b16 %v1989, %v1981
    %v2622 = vpack.c.b16 %v1990, %v1982
    %v2623 = vpack.c.b16 %v1991, %v1983
    %v2624 = vpack.c.b16 %v1992, %v1984
    %v2625 = vpack.c.b16 %v1993, %v1985
    %v2626 = vpack.c.b16 %v1994, %v1986
    %v2627 = vpack.c.b16 %v1995, %v1987
    %v2628 = vpack.c.b16 %v1996, %v1988
    %v2629 = vpack.c.b16 %v2005, %v1997
    %v2630 = vpack.c.b16 %v2006, %v1998
    %v2631 = vpack.c.b16 %v2007, %v1999
    %v2632 = vpack.c.b16 %v2008, %v2000
    %v2633 = vpack.c.b16 %v2009, %v2001
    %v2634 = vpack.c.b16 %v2010, %v2002
    %v2635 = vpack.c.b16 %v2011, %v2003
    %v2636 = vpack.c.b16 %v2012, %v2004
    %v2637 = vpack.c.b16 %v2021, %v2013
    %v2638 = vpack.c.b16 %v2022, %v2014
    %v2639 = vpack.c.b16 %v2023, %v2015
    %v2640 = vpack.c.b16 %v2024, %v2016
    %v2641 = vpack.c.b16 %v2025, %v2017
    %v2642 = vpack.c.b16 %v2026, %v2018
    %v2643 = vpack.c.b16 %v2027, %v2019
    %v2644 = vpack.c.b16 %v2028, %v2020
    %v2645 = vpack.c.b16 %v2037, %v2029
    %v2646 = vpack.c.b16 %v2038, %v2030
    %v2647 = vpack.c.b16 %v2039, %v2031
    %v2648 = vpack.c.b16 %v2040, %v2032
    %v2649 = vpack.c.b16 %v2041, %v2033
    %v2650 = vpack.c.b16 %v2042, %v2034
    %v2651 = vpack.c.b16 %v2043, %v2035
    %v2652 = vpack.c.b16 %v2044, %v2036
    %v2653 = vpack.c.b16 %v2053, %v2045
    %v2654 = vpack.c.b16 %v2054, %v2046
    %v2655 = vpack.c.b16 %v2055, %v2047
    %v2656 = vpack.c.b16 %v2056, %v2048
    %v2657 = vpack.c.b16 %v2057, %v2049
    %v2658 = vpack.c.b16 %v2058, %v2050
    %v2659 = vpack.c.b16 %v2059, %v2051
    %v2660 = vpack.c.b16 %v2060, %v2052
    %v2661 = vpack.c.b16 %v2069, %v2061
    %v2662 = vpack.c.b16 %v2070, %v2062
    %v2663 = vpack.c.b16 %v2071, %v2063
    %v2664 = vpack.c.b16 %v2072, %v2064
    %v2665 = vpack.c.b16 %v2073, %v2065
    %v2666 = vpack.c.b16 %v2074, %v2066
    %v2667 = vpack.c.b16 %v2075, %v2067
    %v2668 = vpack.c.b16 %v2076, %v2068
    %v2669 = vpack.c.b16 %v2085, %v2077
    %v2670 = vpack.c.b16 %v2086, %v2078
    %v2671 = vpack.c.b16 %v2087, %v2079
    %v2672 = vpack.c.b16 %v2088, %v2080
    %v2673 = vpack.c.b16 %v2089, %v2081
    %v2674 = vpack.c.b16 %v2090, %v2082
    %v2675 = vpack.c.b16 %v2091, %v2083
    %v2676 = vpack.c.b16 %v2092, %v2084
    %v2677 = vpack.c.b16 %v2101, %v2093
    %v2678 = vpack.c.b16 %v2102, %v2094
    %v2679 = vpack.c.b16 %v2103, %v2095
    %v2680 = vpack.c.b16 %v2104, %v2096
    %v2681 = vpack.c.b16 %v2105, %v2097
    %v2682 = vpack.c.b16 %v2106, %v2098
    %v2683 = vpack.c.b16 %v2107, %v2099
    %v2684 = vpack.c.b16 %v2108, %v2100
    %v2685 = vpack.c.b16 %v2117, %v2109
    %v2686 = vpack.c.b16 %v2118, %v2110
    %v2687 = vpack.c.b16 %v2119, %v2111
    %v2688 = vpack.c.b16 %v2120, %v2112
    %v2689 = vpack.c.b16 %v2121, %v2113
    %v2690 = vpack.c.b16 %v2122, %v2114
    %v2691 = vpack.c.b16 %v2123, %v2115
    %v2692 = vpack.c.b16 %v2124, %v2116
    %v2693 = vpack.c.b16 %v2133, %v2125
    %v2694 = vpack.c.b16 %v2134, %v2126
    %v2695 = vpack.c.b16 %v2135, %v2127
    %v2696 = vpack.c.b16 %v2136, %v2128
    %v2697 = vpack.c.b16 %v2137, %v2129
    %v2698 = vpack.c.b16 %v2138, %v2130
    %v2699 = vpack.c.b16 %v2139, %v2131
    %v2700 = vpack.c.b16 %v2140, %v2132
    %v2701 = vpack.c.b16 %v2149, %v2141
    %v2702 = vpack.c.b16 %v2150, %v2142
    %v2703 = vpack.c.b16 %v2151, %v2143
    %v2704 = vpack.c.b16 %v2152, %v2144
    %v2705 = vpack.c.b16 %v2153, %v2145
    %v2706 = vpack.c.b16 %v2154, %v2146
    %v2707 = vpack.c.b16 %v2155, %v2147
    %v2708 = vpack.c.b16 %v2156, %v2148
    %v2709 = vpack.c.b16 %v2165, %v2157
    %v2710 = vpack.c.b16 %v2166, %v2158
    %v2711 = vpack.c.b16 %v2167, %v2159
    %v2712 = vpack.c.b16 %v2168, %v2160
    %v2713 = vpack.c.b16 %v2169, %v2161
    %v2714 = vpack.c.b16 %v2170, %v2162
    %v2715 = vpack.c.b16 %v2171, %v2163
    %v2716 = vpack.c.b16 %v2172, %v2164
    %v2717 = vpack.c.b16 %v2181, %v2173
    %v2718 = vpack.c.b16 %v2182, %v2174
    %v2719 = vpack.c.b16 %v2183, %v2175
    %v2720 = vpack.c.b16 %v2184, %v2176
    %v2721 = vpack.c.b16 %v2185, %v2177
    %v2722 = vpack.c.b16 %v2186, %v2178
    %v2723 = vpack.c.b16 %v2187, %v2179
    %v2724 = vpack.c.b16 %v2188, %v2180
    %v2725 = vpack.c.b16 %v2197, %v2189
    %v2726 = vpack.c.b16 %v2198, %v2190
    %v2727 = vpack.c.b16 %v2199, %v2191
    %v2728 = vpack.c.b16 %v2200, %v2192
    %v2729 = vpack.c.b16 %v2201, %v2193
    %v2730 = vpack.c.b16 %v2202, %v2194
    %v2731 = vpack.c.b16 %v2203, %v2195
    %v2732 = vpack.c.b16 %v2204, %v2196
    %v2733 = vpack.c.b16 %v2213, %v2205
    %v2734 = vpack.c.b16 %v2214, %v2206
    %v2735 = vpack.c.b16 %v2215, %v2207
    %v2736 = vpack.c.b16 %v2216, %v2208
    %v2737 = vpack.c.b16 %v2217, %v2209
    %v2738 = vpack.c.b16 %v2218, %v2210
    %v2739 = vpack.c.b16 %v2219, %v2211
    %v2740 = vpack.c.b16 %v2220, %v2212
    %v2741 = vpack.c.b16 %v2229, %v2221
    %v2742 = vpack.c.b16 %v2230, %v2222
    %v2743 = vpack.c.b16 %v2231, %v2223
    %v2744 = vpack.c.b16 %v2232, %v2224
    %v2745 = vpack.c.b16 %v2233, %v2225
    %v2746 = vpack.c.b16 %v2234, %v2226
    %v2747 = vpack.c.b16 %v2235, %v2227
    %v2748 = vpack.c.b16 %v2236, %v2228
    %3261 = vmatprep.subr.bf16.mxu0 %v2294
    %3262 = vmatpush1.bf16.msra.mxu0 %v2293
    %3263 = vmatprep.subr.bf16.mxu0 %v2286
    %3264 = vmatpush1.bf16.msra.mxu0 %v2285
    %3265 = vmatprep.subr.bf16.mxu0 %v2278
    %3266 = vmatpush1.bf16.msra.mxu0 %v2277
    %3267 = vmatprep.subr.bf16.mxu0 %v2270
    %3268 = vmatpush1.bf16.msra.mxu0 %v2269
    %3269 = vmatprep.subr.bf16.mxu0 %v2262
    %3270 = vmatpush1.bf16.msra.mxu0 %v2261
    %3271 = vmatprep.subr.bf16.mxu0 %v2254
    %3272 = vmatpush1.bf16.msra.mxu0 %v2253
    %3273 = vmatprep.subr.bf16.mxu0 %v2246
    %3274 = vmatpush1.bf16.msra.mxu0 %v2245
    %3275 = vmatprep.subr.bf16.mxu0 %v2238
    %3276 = vmatpush1.bf16.msra.mxu0 %v2237
    %3277 = vmatprep.subr.bf16.mxu0 %v2358
    %3278 = vmatpush2.bf16.msra.mxu0 %v2357
    %3279 = vmatprep.subr.bf16.mxu0 %v2350
    %3280 = vmatpush2.bf16.msra.mxu0 %v2349
    %3281 = vmatprep.subr.bf16.mxu0 %v2342
    %3282 = vmatpush2.bf16.msra.mxu0 %v2341
    %3283 = vmatprep.subr.bf16.mxu0 %v2334
    %3284 = vmatpush2.bf16.msra.mxu0 %v2333
    %3285 = vmatprep.subr.bf16.mxu0 %v2326
    %3286 = vmatpush2.bf16.msra.mxu0 %v2325
    %3287 = vmatprep.subr.bf16.mxu0 %v2318
    %3288 = vmatpush2.bf16.msra.mxu0 %v2317
    %3289 = vmatprep.subr.bf16.mxu0 %v2310
    %3290 = vmatpush2.bf16.msra.mxu0 %v2309
    %3291 = vmatprep.subr.bf16.mxu0 %v2302
    %3292 = vmatpush2.bf16.msra.mxu0 %v2301
    %3293 = vmatprep.mubr.bf16.mxu0 %v686
    %3294 = vmatmul.mubr.bf16.gmra.mxu0 %v685
    %v3295 = vpop.f32.mrf.mxu0
    %v3296 = vadd.f32 %v636, %v3295
    %v3297 = vpop.f32.mrf.mxu0
    %v3298 = vadd.f32 %v640, %v3297
    %v3299 = vpop.f32.mrf.mxu0
    %v3300 = vpop.f32.mrf.mxu0
    %3301 = vdwg.mxu0
    %3302 = vmatprep.subr.bf16.mxu0 %v2422
    %3303 = vmatpush1.bf16.msra.mxu0 %v2421
    %3304 = vmatprep.subr.bf16.mxu0 %v2414
    %3305 = vmatpush1.bf16.msra.mxu0 %v2413
    %3306 = vmatprep.subr.bf16.mxu0 %v2406
    %3307 = vmatpush1.bf16.msra.mxu0 %v2405
    %3308 = vmatprep.subr.bf16.mxu0 %v2398
    %3309 = vmatpush1.bf16.msra.mxu0 %v2397
    %3310 = vmatprep.subr.bf16.mxu0 %v2390
    %3311 = vmatpush1.bf16.msra.mxu0 %v2389
    %3312 = vmatprep.subr.bf16.mxu0 %v2382
    %3313 = vmatpush1.bf16.msra.mxu0 %v2381
    %3314 = vmatprep.subr.bf16.mxu0 %v2374
    %3315 = vmatpush1.bf16.msra.mxu0 %v2373
    %3316 = vmatprep.subr.bf16.mxu0 %v2366
    %3317 = vmatpush1.bf16.msra.mxu0 %v2365
    %3318 = vmatprep.subr.bf16.mxu0 %v2486
    %3319 = vmatpush2.bf16.msra.mxu0 %v2485
    %3320 = vmatprep.subr.bf16.mxu0 %v2478
    %3321 = vmatpush2.bf16.msra.mxu0 %v2477
    %3322 = vmatprep.subr.bf16.mxu0 %v2470
    %3323 = vmatpush2.bf16.msra.mxu0 %v2469
    %3324 = vmatprep.subr.bf16.mxu0 %v2462
    %3325 = vmatpush2.bf16.msra.mxu0 %v2461
    %3326 = vmatprep.subr.bf16.mxu0 %v2454
    %3327 = vmatpush2.bf16.msra.mxu0 %v2453
    %3328 = vmatprep.subr.bf16.mxu0 %v2446
    %3329 = vmatpush2.bf16.msra.mxu0 %v2445
    %3330 = vmatprep.subr.bf16.mxu0 %v2438
    %3331 = vmatpush2.bf16.msra.mxu0 %v2437
    %3332 = vmatprep.subr.bf16.mxu0 %v2430
    %3333 = vmatpush2.bf16.msra.mxu0 %v2429
    %3334 = vmatprep.mubr.bf16.mxu0 %v688
    %3335 = vmatmul.mubr.bf16.gmra.mxu0 %v687
    %v3336 = vpop.f32.mrf.mxu0
    %v3337 = vadd.f32 %v3296, %v3336
    %v3338 = vpop.f32.mrf.mxu0
    %v3339 = vadd.f32 %v3298, %v3338
    %v3340 = vpop.f32.mrf.mxu0
    %v3341 = vpop.f32.mrf.mxu0
    %3342 = vdwg.mxu0
    %3343 = vmatprep.subr.bf16.mxu0 %v2550
    %3344 = vmatpush1.bf16.msra.mxu0 %v2549
    %3345 = vmatprep.subr.bf16.mxu0 %v2542
    %3346 = vmatpush1.bf16.msra.mxu0 %v2541
    %3347 = vmatprep.subr.bf16.mxu0 %v2534
    %3348 = vmatpush1.bf16.msra.mxu0 %v2533
    %3349 = vmatprep.subr.bf16.mxu0 %v2526
    %3350 = vmatpush1.bf16.msra.mxu0 %v2525
    %3351 = vmatprep.subr.bf16.mxu0 %v2518
    %3352 = vmatpush1.bf16.msra.mxu0 %v2517
    %3353 = vmatprep.subr.bf16.mxu0 %v2510
    %3354 = vmatpush1.bf16.msra.mxu0 %v2509
    %3355 = vmatprep.subr.bf16.mxu0 %v2502
    %3356 = vmatpush1.bf16.msra.mxu0 %v2501
    %3357 = vmatprep.subr.bf16.mxu0 %v2494
    %3358 = vmatpush1.bf16.msra.mxu0 %v2493
    %3359 = vmatprep.subr.bf16.mxu0 %v2614
    %3360 = vmatpush2.bf16.msra.mxu0 %v2613
    %3361 = vmatprep.subr.bf16.mxu0 %v2606
    %3362 = vmatpush2.bf16.msra.mxu0 %v2605
    %3363 = vmatprep.subr.bf16.mxu0 %v2598
    %3364 = vmatpush2.bf16.msra.mxu0 %v2597
    %3365 = vmatprep.subr.bf16.mxu0 %v2590
    %3366 = vmatpush2.bf16.msra.mxu0 %v2589
    %3367 = vmatprep.subr.bf16.mxu0 %v2582
    %3368 = vmatpush2.bf16.msra.mxu0 %v2581
    %3369 = vmatprep.subr.bf16.mxu0 %v2574
    %3370 = vmatpush2.bf16.msra.mxu0 %v2573
    %3371 = vmatprep.subr.bf16.mxu0 %v2566
    %3372 = vmatpush2.bf16.msra.mxu0 %v2565
    %3373 = vmatprep.subr.bf16.mxu0 %v2558
    %3374 = vmatpush2.bf16.msra.mxu0 %v2557
    %3375 = vmatprep.mubr.bf16.mxu0 %v690
    %3376 = vmatmul.mubr.bf16.gmra.mxu0 %v689
    %v3377 = vpop.f32.mrf.mxu0
    %v3378 = vadd.f32 %v3337, %v3377
    %v3379 = vpop.f32.mrf.mxu0
    %v3380 = vadd.f32 %v3339, %v3379
    %v3381 = vpop.f32.mrf.mxu0
    %v3382 = vpop.f32.mrf.mxu0
    %3383 = vdwg.mxu0
    %3384 = vmatprep.subr.bf16.mxu0 %v2678
    %3385 = vmatpush1.bf16.msra.mxu0 %v2677
    %3386 = vmatprep.subr.bf16.mxu0 %v2670
    %3387 = vmatpush1.bf16.msra.mxu0 %v2669
    %3388 = vmatprep.subr.bf16.mxu0 %v2662
    %3389 = vmatpush1.bf16.msra.mxu0 %v2661
    %3390 = vmatprep.subr.bf16.mxu0 %v2654
    %3391 = vmatpush1.bf16.msra.mxu0 %v2653
    %3392 = vmatprep.subr.bf16.mxu0 %v2646
    %3393 = vmatpush1.bf16.msra.mxu0 %v2645
    %3394 = vmatprep.subr.bf16.mxu0 %v2638
    %3395 = vmatpush1.bf16.msra.mxu0 %v2637
    %3396 = vmatprep.subr.bf16.mxu0 %v2630
    %3397 = vmatpush1.bf16.msra.mxu0 %v2629
    %3398 = vmatprep.subr.bf16.mxu0 %v2622
    %3399 = vmatpush1.bf16.msra.mxu0 %v2621
    %3400 = vmatprep.subr.bf16.mxu0 %v2742
    %3401 = vmatpush2.bf16.msra.mxu0 %v2741
    %3402 = vmatprep.subr.bf16.mxu0 %v2734
    %3403 = vmatpush2.bf16.msra.mxu0 %v2733
    %3404 = vmatprep.subr.bf16.mxu0 %v2726
    %3405 = vmatpush2.bf16.msra.mxu0 %v2725
    %3406 = vmatprep.subr.bf16.mxu0 %v2718
    %3407 = vmatpush2.bf16.msra.mxu0 %v2717
    %3408 = vmatprep.subr.bf16.mxu0 %v2710
    %3409 = vmatpush2.bf16.msra.mxu0 %v2709
    %3410 = vmatprep.subr.bf16.mxu0 %v2702
    %3411 = vmatpush2.bf16.msra.mxu0 %v2701
    %3412 = vmatprep.subr.bf16.mxu0 %v2694
    %3413 = vmatpush2.bf16.msra.mxu0 %v2693
    %3414 = vmatprep.subr.bf16.mxu0 %v2686
    %3415 = vmatpush2.bf16.msra.mxu0 %v2685
    %3416 = vmatprep.mubr.bf16.mxu0 %v692
    %3417 = vmatmul.mubr.bf16.gmra.mxu0 %v691
    %v3418 = vpop.f32.mrf.mxu0
    %v3419 = vadd.f32 %v3378, %v3418
    %v3420 = vpop.f32.mrf.mxu0
    %v3421 = vadd.f32 %v3380, %v3420
    %v3422 = vpop.f32.mrf.mxu0
    %v3423 = vpop.f32.mrf.mxu0
    %3424 = vdwg.mxu0
    %3425 = vmatprep.subr.bf16.mxu0 %v2296
    %3426 = vmatpush1.bf16.msra.mxu0 %v2295
    %3427 = vmatprep.subr.bf16.mxu0 %v2288
    %3428 = vmatpush1.bf16.msra.mxu0 %v2287
    %3429 = vmatprep.subr.bf16.mxu0 %v2280
    %3430 = vmatpush1.bf16.msra.mxu0 %v2279
    %3431 = vmatprep.subr.bf16.mxu0 %v2272
    %3432 = vmatpush1.bf16.msra.mxu0 %v2271
    %3433 = vmatprep.subr.bf16.mxu0 %v2264
    %3434 = vmatpush1.bf16.msra.mxu0 %v2263
    %3435 = vmatprep.subr.bf16.mxu0 %v2256
    %3436 = vmatpush1.bf16.msra.mxu0 %v2255
    %3437 = vmatprep.subr.bf16.mxu0 %v2248
    %3438 = vmatpush1.bf16.msra.mxu0 %v2247
    %3439 = vmatprep.subr.bf16.mxu0 %v2240
    %3440 = vmatpush1.bf16.msra.mxu0 %v2239
    %3441 = vmatprep.subr.bf16.mxu0 %v2360
    %3442 = vmatpush2.bf16.msra.mxu0 %v2359
    %3443 = vmatprep.subr.bf16.mxu0 %v2352
    %3444 = vmatpush2.bf16.msra.mxu0 %v2351
    %3445 = vmatprep.subr.bf16.mxu0 %v2344
    %3446 = vmatpush2.bf16.msra.mxu0 %v2343
    %3447 = vmatprep.subr.bf16.mxu0 %v2336
    %3448 = vmatpush2.bf16.msra.mxu0 %v2335
    %3449 = vmatprep.subr.bf16.mxu0 %v2328
    %3450 = vmatpush2.bf16.msra.mxu0 %v2327
    %3451 = vmatprep.subr.bf16.mxu0 %v2320
    %3452 = vmatpush2.bf16.msra.mxu0 %v2319
    %3453 = vmatprep.subr.bf16.mxu0 %v2312
    %3454 = vmatpush2.bf16.msra.mxu0 %v2311
    %3455 = vmatprep.subr.bf16.mxu0 %v2304
    %3456 = vmatpush2.bf16.msra.mxu0 %v2303
    %3457 = vmatprep.mubr.bf16.mxu0 %v686
    %3458 = vmatmul.mubr.bf16.gmra.mxu0 %v685
    %v3459 = vpop.f32.mrf.mxu0
    %v3460 = vadd.f32 %v644, %v3459
    %v3461 = vpop.f32.mrf.mxu0
    %v3462 = vadd.f32 %v648, %v3461
    %v3463 = vpop.f32.mrf.mxu0
    %v3464 = vpop.f32.mrf.mxu0
    %3465 = vdwg.mxu0
    %3466 = vmatprep.subr.bf16.mxu0 %v2424
    %3467 = vmatpush1.bf16.msra.mxu0 %v2423
    %3468 = vmatprep.subr.bf16.mxu0 %v2416
    %3469 = vmatpush1.bf16.msra.mxu0 %v2415
    %3470 = vmatprep.subr.bf16.mxu0 %v2408
    %3471 = vmatpush1.bf16.msra.mxu0 %v2407
    %3472 = vmatprep.subr.bf16.mxu0 %v2400
    %3473 = vmatpush1.bf16.msra.mxu0 %v2399
    %3474 = vmatprep.subr.bf16.mxu0 %v2392
    %3475 = vmatpush1.bf16.msra.mxu0 %v2391
    %3476 = vmatprep.subr.bf16.mxu0 %v2384
    %3477 = vmatpush1.bf16.msra.mxu0 %v2383
    %3478 = vmatprep.subr.bf16.mxu0 %v2376
    %3479 = vmatpush1.bf16.msra.mxu0 %v2375
    %3480 = vmatprep.subr.bf16.mxu0 %v2368
    %3481 = vmatpush1.bf16.msra.mxu0 %v2367
    %3482 = vmatprep.subr.bf16.mxu0 %v2488
    %3483 = vmatpush2.bf16.msra.mxu0 %v2487
    %3484 = vmatprep.subr.bf16.mxu0 %v2480
    %3485 = vmatpush2.bf16.msra.mxu0 %v2479
    %3486 = vmatprep.subr.bf16.mxu0 %v2472
    %3487 = vmatpush2.bf16.msra.mxu0 %v2471
    %3488 = vmatprep.subr.bf16.mxu0 %v2464
    %3489 = vmatpush2.bf16.msra.mxu0 %v2463
    %3490 = vmatprep.subr.bf16.mxu0 %v2456
    %3491 = vmatpush2.bf16.msra.mxu0 %v2455
    %3492 = vmatprep.subr.bf16.mxu0 %v2448
    %3493 = vmatpush2.bf16.msra.mxu0 %v2447
    %3494 = vmatprep.subr.bf16.mxu0 %v2440
    %3495 = vmatpush2.bf16.msra.mxu0 %v2439
    %3496 = vmatprep.subr.bf16.mxu0 %v2432
    %3497 = vmatpush2.bf16.msra.mxu0 %v2431
    %3498 = vmatprep.mubr.bf16.mxu0 %v688
    %3499 = vmatmul.mubr.bf16.gmra.mxu0 %v687
    %v3500 = vpop.f32.mrf.mxu0
    %v3501 = vadd.f32 %v3460, %v3500
    %v3502 = vpop.f32.mrf.mxu0
    %v3503 = vadd.f32 %v3462, %v3502
    %v3504 = vpop.f32.mrf.mxu0
    %v3505 = vpop.f32.mrf.mxu0
    %3506 = vdwg.mxu0
    %3507 = vmatprep.subr.bf16.mxu0 %v2552
    %3508 = vmatpush1.bf16.msra.mxu0 %v2551
    %3509 = vmatprep.subr.bf16.mxu0 %v2544
    %3510 = vmatpush1.bf16.msra.mxu0 %v2543
    %3511 = vmatprep.subr.bf16.mxu0 %v2536
    %3512 = vmatpush1.bf16.msra.mxu0 %v2535
    %3513 = vmatprep.subr.bf16.mxu0 %v2528
    %3514 = vmatpush1.bf16.msra.mxu0 %v2527
    %3515 = vmatprep.subr.bf16.mxu0 %v2520
    %3516 = vmatpush1.bf16.msra.mxu0 %v2519
    %3517 = vmatprep.subr.bf16.mxu0 %v2512
    %3518 = vmatpush1.bf16.msra.mxu0 %v2511
    %3519 = vmatprep.subr.bf16.mxu0 %v2504
    %3520 = vmatpush1.bf16.msra.mxu0 %v2503
    %3521 = vmatprep.subr.bf16.mxu0 %v2496
    %3522 = vmatpush1.bf16.msra.mxu0 %v2495
    %3523 = vmatprep.subr.bf16.mxu0 %v2616
    %3524 = vmatpush2.bf16.msra.mxu0 %v2615
    %3525 = vmatprep.subr.bf16.mxu0 %v2608
    %3526 = vmatpush2.bf16.msra.mxu0 %v2607
    %3527 = vmatprep.subr.bf16.mxu0 %v2600
    %3528 = vmatpush2.bf16.msra.mxu0 %v2599
    %3529 = vmatprep.subr.bf16.mxu0 %v2592
    %3530 = vmatpush2.bf16.msra.mxu0 %v2591
    %3531 = vmatprep.subr.bf16.mxu0 %v2584
    %3532 = vmatpush2.bf16.msra.mxu0 %v2583
    %3533 = vmatprep.subr.bf16.mxu0 %v2576
    %3534 = vmatpush2.bf16.msra.mxu0 %v2575
    %3535 = vmatprep.subr.bf16.mxu0 %v2568
    %3536 = vmatpush2.bf16.msra.mxu0 %v2567
    %3537 = vmatprep.subr.bf16.mxu0 %v2560
    %3538 = vmatpush2.bf16.msra.mxu0 %v2559
    %3539 = vmatprep.mubr.bf16.mxu0 %v690
    %3540 = vmatmul.mubr.bf16.gmra.mxu0 %v689
    %v3541 = vpop.f32.mrf.mxu0
    %v3542 = vadd.f32 %v3501, %v3541
    %v3543 = vpop.f32.mrf.mxu0
    %v3544 = vadd.f32 %v3503, %v3543
    %v3545 = vpop.f32.mrf.mxu0
    %v3546 = vpop.f32.mrf.mxu0
    %3547 = vdwg.mxu0
    %3548 = vmatprep.subr.bf16.mxu0 %v2680
    %3549 = vmatpush1.bf16.msra.mxu0 %v2679
    %3550 = vmatprep.subr.bf16.mxu0 %v2672
    %3551 = vmatpush1.bf16.msra.mxu0 %v2671
    %3552 = vmatprep.subr.bf16.mxu0 %v2664
    %3553 = vmatpush1.bf16.msra.mxu0 %v2663
    %3554 = vmatprep.subr.bf16.mxu0 %v2656
    %3555 = vmatpush1.bf16.msra.mxu0 %v2655
    %3556 = vmatprep.subr.bf16.mxu0 %v2648
    %3557 = vmatpush1.bf16.msra.mxu0 %v2647
    %3558 = vmatprep.subr.bf16.mxu0 %v2640
    %3559 = vmatpush1.bf16.msra.mxu0 %v2639
    %3560 = vmatprep.subr.bf16.mxu0 %v2632
    %3561 = vmatpush1.bf16.msra.mxu0 %v2631
    %3562 = vmatprep.subr.bf16.mxu0 %v2624
    %3563 = vmatpush1.bf16.msra.mxu0 %v2623
    %3564 = vmatprep.subr.bf16.mxu0 %v2744
    %3565 = vmatpush2.bf16.msra.mxu0 %v2743
    %3566 = vmatprep.subr.bf16.mxu0 %v2736
    %3567 = vmatpush2.bf16.msra.mxu0 %v2735
    %3568 = vmatprep.subr.bf16.mxu0 %v2728
    %3569 = vmatpush2.bf16.msra.mxu0 %v2727
    %3570 = vmatprep.subr.bf16.mxu0 %v2720
    %3571 = vmatpush2.bf16.msra.mxu0 %v2719
    %3572 = vmatprep.subr.bf16.mxu0 %v2712
    %3573 = vmatpush2.bf16.msra.mxu0 %v2711
    %3574 = vmatprep.subr.bf16.mxu0 %v2704
    %3575 = vmatpush2.bf16.msra.mxu0 %v2703
    %3576 = vmatprep.subr.bf16.mxu0 %v2696
    %3577 = vmatpush2.bf16.msra.mxu0 %v2695
    %3578 = vmatprep.subr.bf16.mxu0 %v2688
    %3579 = vmatpush2.bf16.msra.mxu0 %v2687
    %3580 = vmatprep.mubr.bf16.mxu0 %v692
    %3581 = vmatmul.mubr.bf16.gmra.mxu0 %v691
    %v3582 = vpop.f32.mrf.mxu0
    %v3583 = vadd.f32 %v3542, %v3582
    %v3584 = vpop.f32.mrf.mxu0
    %v3585 = vadd.f32 %v3544, %v3584
    %v3586 = vpop.f32.mrf.mxu0
    %v3587 = vpop.f32.mrf.mxu0
    %3588 = vdwg.mxu0
    %3589 = vmatprep.subr.bf16.mxu0 %v2298
    %3590 = vmatpush1.bf16.msra.mxu0 %v2297
    %3591 = vmatprep.subr.bf16.mxu0 %v2290
    %3592 = vmatpush1.bf16.msra.mxu0 %v2289
    %3593 = vmatprep.subr.bf16.mxu0 %v2282
    %3594 = vmatpush1.bf16.msra.mxu0 %v2281
    %3595 = vmatprep.subr.bf16.mxu0 %v2274
    %3596 = vmatpush1.bf16.msra.mxu0 %v2273
    %3597 = vmatprep.subr.bf16.mxu0 %v2266
    %3598 = vmatpush1.bf16.msra.mxu0 %v2265
    %3599 = vmatprep.subr.bf16.mxu0 %v2258
    %3600 = vmatpush1.bf16.msra.mxu0 %v2257
    %3601 = vmatprep.subr.bf16.mxu0 %v2250
    %3602 = vmatpush1.bf16.msra.mxu0 %v2249
    %3603 = vmatprep.subr.bf16.mxu0 %v2242
    %3604 = vmatpush1.bf16.msra.mxu0 %v2241
    %3605 = vmatprep.subr.bf16.mxu0 %v2362
    %3606 = vmatpush2.bf16.msra.mxu0 %v2361
    %3607 = vmatprep.subr.bf16.mxu0 %v2354
    %3608 = vmatpush2.bf16.msra.mxu0 %v2353
    %3609 = vmatprep.subr.bf16.mxu0 %v2346
    %3610 = vmatpush2.bf16.msra.mxu0 %v2345
    %3611 = vmatprep.subr.bf16.mxu0 %v2338
    %3612 = vmatpush2.bf16.msra.mxu0 %v2337
    %3613 = vmatprep.subr.bf16.mxu0 %v2330
    %3614 = vmatpush2.bf16.msra.mxu0 %v2329
    %3615 = vmatprep.subr.bf16.mxu0 %v2322
    %3616 = vmatpush2.bf16.msra.mxu0 %v2321
    %3617 = vmatprep.subr.bf16.mxu0 %v2314
    %3618 = vmatpush2.bf16.msra.mxu0 %v2313
    %3619 = vmatprep.subr.bf16.mxu0 %v2306
    %3620 = vmatpush2.bf16.msra.mxu0 %v2305
    %3621 = vmatprep.mubr.bf16.mxu0 %v686
    %3622 = vmatmul.mubr.bf16.gmra.mxu0 %v685
    %v3623 = vpop.f32.mrf.mxu0
    %v3624 = vadd.f32 %v652, %v3623
    %v3625 = vpop.f32.mrf.mxu0
    %v3626 = vadd.f32 %v656, %v3625
    %v3627 = vpop.f32.mrf.mxu0
    %v3628 = vpop.f32.mrf.mxu0
    %3629 = vdwg.mxu0
    %3630 = vmatprep.subr.bf16.mxu0 %v2426
    %3631 = vmatpush1.bf16.msra.mxu0 %v2425
    %3632 = vmatprep.subr.bf16.mxu0 %v2418
    %3633 = vmatpush1.bf16.msra.mxu0 %v2417
    %3634 = vmatprep.subr.bf16.mxu0 %v2410
    %3635 = vmatpush1.bf16.msra.mxu0 %v2409
    %3636 = vmatprep.subr.bf16.mxu0 %v2402
    %3637 = vmatpush1.bf16.msra.mxu0 %v2401
    %3638 = vmatprep.subr.bf16.mxu0 %v2394
    %3639 = vmatpush1.bf16.msra.mxu0 %v2393
    %3640 = vmatprep.subr.bf16.mxu0 %v2386
    %3641 = vmatpush1.bf16.msra.mxu0 %v2385
    %3642 = vmatprep.subr.bf16.mxu0 %v2378
    %3643 = vmatpush1.bf16.msra.mxu0 %v2377
    %3644 = vmatprep.subr.bf16.mxu0 %v2370
    %3645 = vmatpush1.bf16.msra.mxu0 %v2369
    %3646 = vmatprep.subr.bf16.mxu0 %v2490
    %3647 = vmatpush2.bf16.msra.mxu0 %v2489
    %3648 = vmatprep.subr.bf16.mxu0 %v2482
    %3649 = vmatpush2.bf16.msra.mxu0 %v2481
    %3650 = vmatprep.subr.bf16.mxu0 %v2474
    %3651 = vmatpush2.bf16.msra.mxu0 %v2473
    %3652 = vmatprep.subr.bf16.mxu0 %v2466
    %3653 = vmatpush2.bf16.msra.mxu0 %v2465
    %3654 = vmatprep.subr.bf16.mxu0 %v2458
    %3655 = vmatpush2.bf16.msra.mxu0 %v2457
    %3656 = vmatprep.subr.bf16.mxu0 %v2450
    %3657 = vmatpush2.bf16.msra.mxu0 %v2449
    %3658 = vmatprep.subr.bf16.mxu0 %v2442
    %3659 = vmatpush2.bf16.msra.mxu0 %v2441
    %3660 = vmatprep.subr.bf16.mxu0 %v2434
    %3661 = vmatpush2.bf16.msra.mxu0 %v2433
    %3662 = vmatprep.mubr.bf16.mxu0 %v688
    %3663 = vmatmul.mubr.bf16.gmra.mxu0 %v687
    %v3664 = vpop.f32.mrf.mxu0
    %v3665 = vadd.f32 %v3624, %v3664
    %v3666 = vpop.f32.mrf.mxu0
    %v3667 = vadd.f32 %v3626, %v3666
    %v3668 = vpop.f32.mrf.mxu0
    %v3669 = vpop.f32.mrf.mxu0
    %3670 = vdwg.mxu0
    %3671 = vmatprep.subr.bf16.mxu0 %v2554
    %3672 = vmatpush1.bf16.msra.mxu0 %v2553
    %3673 = vmatprep.subr.bf16.mxu0 %v2546
    %3674 = vmatpush1.bf16.msra.mxu0 %v2545
    %3675 = vmatprep.subr.bf16.mxu0 %v2538
    %3676 = vmatpush1.bf16.msra.mxu0 %v2537
    %3677 = vmatprep.subr.bf16.mxu0 %v2530
    %3678 = vmatpush1.bf16.msra.mxu0 %v2529
    %3679 = vmatprep.subr.bf16.mxu0 %v2522
    %3680 = vmatpush1.bf16.msra.mxu0 %v2521
    %3681 = vmatprep.subr.bf16.mxu0 %v2514
    %3682 = vmatpush1.bf16.msra.mxu0 %v2513
    %3683 = vmatprep.subr.bf16.mxu0 %v2506
    %3684 = vmatpush1.bf16.msra.mxu0 %v2505
    %3685 = vmatprep.subr.bf16.mxu0 %v2498
    %3686 = vmatpush1.bf16.msra.mxu0 %v2497
    %3687 = vmatprep.subr.bf16.mxu0 %v2618
    %3688 = vmatpush2.bf16.msra.mxu0 %v2617
    %3689 = vmatprep.subr.bf16.mxu0 %v2610
    %3690 = vmatpush2.bf16.msra.mxu0 %v2609
    %3691 = vmatprep.subr.bf16.mxu0 %v2602
    %3692 = vmatpush2.bf16.msra.mxu0 %v2601
    %3693 = vmatprep.subr.bf16.mxu0 %v2594
    %3694 = vmatpush2.bf16.msra.mxu0 %v2593
    %3695 = vmatprep.subr.bf16.mxu0 %v2586
    %3696 = vmatpush2.bf16.msra.mxu0 %v2585
    %3697 = vmatprep.subr.bf16.mxu0 %v2578
    %3698 = vmatpush2.bf16.msra.mxu0 %v2577
    %3699 = vmatprep.subr.bf16.mxu0 %v2570
    %3700 = vmatpush2.bf16.msra.mxu0 %v2569
    %3701 = vmatprep.subr.bf16.mxu0 %v2562
    %3702 = vmatpush2.bf16.msra.mxu0 %v2561
    %3703 = vmatprep.mubr.bf16.mxu0 %v690
    %3704 = vmatmul.mubr.bf16.gmra.mxu0 %v689
    %v3705 = vpop.f32.mrf.mxu0
    %v3706 = vadd.f32 %v3665, %v3705
    %v3707 = vpop.f32.mrf.mxu0
    %v3708 = vadd.f32 %v3667, %v3707
    %v3709 = vpop.f32.mrf.mxu0
    %v3710 = vpop.f32.mrf.mxu0
    %3711 = vdwg.mxu0
    %3712 = vmatprep.subr.bf16.mxu0 %v2682
    %3713 = vmatpush1.bf16.msra.mxu0 %v2681
    %3714 = vmatprep.subr.bf16.mxu0 %v2674
    %3715 = vmatpush1.bf16.msra.mxu0 %v2673
    %3716 = vmatprep.subr.bf16.mxu0 %v2666
    %3717 = vmatpush1.bf16.msra.mxu0 %v2665
    %3718 = vmatprep.subr.bf16.mxu0 %v2658
    %3719 = vmatpush1.bf16.msra.mxu0 %v2657
    %3720 = vmatprep.subr.bf16.mxu0 %v2650
    %3721 = vmatpush1.bf16.msra.mxu0 %v2649
    %3722 = vmatprep.subr.bf16.mxu0 %v2642
    %3723 = vmatpush1.bf16.msra.mxu0 %v2641
    %3724 = vmatprep.subr.bf16.mxu0 %v2634
    %3725 = vmatpush1.bf16.msra.mxu0 %v2633
    %3726 = vmatprep.subr.bf16.mxu0 %v2626
    %3727 = vmatpush1.bf16.msra.mxu0 %v2625
    %3728 = vmatprep.subr.bf16.mxu0 %v2746
    %3729 = vmatpush2.bf16.msra.mxu0 %v2745
    %3730 = vmatprep.subr.bf16.mxu0 %v2738
    %3731 = vmatpush2.bf16.msra.mxu0 %v2737
    %3732 = vmatprep.subr.bf16.mxu0 %v2730
    %3733 = vmatpush2.bf16.msra.mxu0 %v2729
    %3734 = vmatprep.subr.bf16.mxu0 %v2722
    %3735 = vmatpush2.bf16.msra.mxu0 %v2721
    %3736 = vmatprep.subr.bf16.mxu0 %v2714
    %3737 = vmatpush2.bf16.msra.mxu0 %v2713
    %3738 = vmatprep.subr.bf16.mxu0 %v2706
    %3739 = vmatpush2.bf16.msra.mxu0 %v2705
    %3740 = vmatprep.subr.bf16.mxu0 %v2698
    %3741 = vmatpush2.bf16.msra.mxu0 %v2697
    %3742 = vmatprep.subr.bf16.mxu0 %v2690
    %3743 = vmatpush2.bf16.msra.mxu0 %v2689
    %3744 = vmatprep.mubr.bf16.mxu0 %v692
    %3745 = vmatmul.mubr.bf16.gmra.mxu0 %v691
    %v3746 = vpop.f32.mrf.mxu0
    %v3747 = vadd.f32 %v3706, %v3746
    %v3748 = vpop.f32.mrf.mxu0
    %v3749 = vadd.f32 %v3708, %v3748
    %v3750 = vpop.f32.mrf.mxu0
    %v3751 = vpop.f32.mrf.mxu0
    %3752 = vdwg.mxu0
    %3753 = vmatprep.subr.bf16.mxu0 %v2300
    %3754 = vmatpush1.bf16.msra.mxu0 %v2299
    %3755 = vmatprep.subr.bf16.mxu0 %v2292
    %3756 = vmatpush1.bf16.msra.mxu0 %v2291
    %3757 = vmatprep.subr.bf16.mxu0 %v2284
    %3758 = vmatpush1.bf16.msra.mxu0 %v2283
    %3759 = vmatprep.subr.bf16.mxu0 %v2276
    %3760 = vmatpush1.bf16.msra.mxu0 %v2275
    %3761 = vmatprep.subr.bf16.mxu0 %v2268
    %3762 = vmatpush1.bf16.msra.mxu0 %v2267
    %3763 = vmatprep.subr.bf16.mxu0 %v2260
    %3764 = vmatpush1.bf16.msra.mxu0 %v2259
    %3765 = vmatprep.subr.bf16.mxu0 %v2252
    %3766 = vmatpush1.bf16.msra.mxu0 %v2251
    %3767 = vmatprep.subr.bf16.mxu0 %v2244
    %3768 = vmatpush1.bf16.msra.mxu0 %v2243
    %3769 = vmatprep.subr.bf16.mxu0 %v2364
    %3770 = vmatpush2.bf16.msra.mxu0 %v2363
    %3771 = vmatprep.subr.bf16.mxu0 %v2356
    %3772 = vmatpush2.bf16.msra.mxu0 %v2355
    %3773 = vmatprep.subr.bf16.mxu0 %v2348
    %3774 = vmatpush2.bf16.msra.mxu0 %v2347
    %3775 = vmatprep.subr.bf16.mxu0 %v2340
    %3776 = vmatpush2.bf16.msra.mxu0 %v2339
    %3777 = vmatprep.subr.bf16.mxu0 %v2332
    %3778 = vmatpush2.bf16.msra.mxu0 %v2331
    %3779 = vmatprep.subr.bf16.mxu0 %v2324
    %3780 = vmatpush2.bf16.msra.mxu0 %v2323
    %3781 = vmatprep.subr.bf16.mxu0 %v2316
    %3782 = vmatpush2.bf16.msra.mxu0 %v2315
    %3783 = vmatprep.subr.bf16.mxu0 %v2308
    %3784 = vmatpush2.bf16.msra.mxu0 %v2307
    %3785 = vmatprep.mubr.bf16.mxu0 %v686
    %3786 = vmatmul.mubr.bf16.gmra.mxu0 %v685
    %v3787 = vpop.f32.mrf.mxu0
    %v3788 = vadd.f32 %v660, %v3787
    %v3789 = vpop.f32.mrf.mxu0
    %v3790 = vadd.f32 %v664, %v3789
    %v3791 = vpop.f32.mrf.mxu0
    %v3792 = vpop.f32.mrf.mxu0
    %3793 = vdwg.mxu0
    %3794 = vmatprep.subr.bf16.mxu0 %v2428
    %3795 = vmatpush1.bf16.msra.mxu0 %v2427
    %3796 = vmatprep.subr.bf16.mxu0 %v2420
    %3797 = vmatpush1.bf16.msra.mxu0 %v2419
    %3798 = vmatprep.subr.bf16.mxu0 %v2412
    %3799 = vmatpush1.bf16.msra.mxu0 %v2411
    %3800 = vmatprep.subr.bf16.mxu0 %v2404
    %3801 = vmatpush1.bf16.msra.mxu0 %v2403
    %3802 = vmatprep.subr.bf16.mxu0 %v2396
    %3803 = vmatpush1.bf16.msra.mxu0 %v2395
    %3804 = vmatprep.subr.bf16.mxu0 %v2388
    %3805 = vmatpush1.bf16.msra.mxu0 %v2387
    %3806 = vmatprep.subr.bf16.mxu0 %v2380
    %3807 = vmatpush1.bf16.msra.mxu0 %v2379
    %3808 = vmatprep.subr.bf16.mxu0 %v2372
    %3809 = vmatpush1.bf16.msra.mxu0 %v2371
    %3810 = vmatprep.subr.bf16.mxu0 %v2492
    %3811 = vmatpush2.bf16.msra.mxu0 %v2491
    %3812 = vmatprep.subr.bf16.mxu0 %v2484
    %3813 = vmatpush2.bf16.msra.mxu0 %v2483
    %3814 = vmatprep.subr.bf16.mxu0 %v2476
    %3815 = vmatpush2.bf16.msra.mxu0 %v2475
    %3816 = vmatprep.subr.bf16.mxu0 %v2468
    %3817 = vmatpush2.bf16.msra.mxu0 %v2467
    %3818 = vmatprep.subr.bf16.mxu0 %v2460
    %3819 = vmatpush2.bf16.msra.mxu0 %v2459
    %3820 = vmatprep.subr.bf16.mxu0 %v2452
    %3821 = vmatpush2.bf16.msra.mxu0 %v2451
    %3822 = vmatprep.subr.bf16.mxu0 %v2444
    %3823 = vmatpush2.bf16.msra.mxu0 %v2443
    %3824 = vmatprep.subr.bf16.mxu0 %v2436
    %3825 = vmatpush2.bf16.msra.mxu0 %v2435
    %3826 = vmatprep.mubr.bf16.mxu0 %v688
    %3827 = vmatmul.mubr.bf16.gmra.mxu0 %v687
    %v3828 = vpop.f32.mrf.mxu0
    %v3829 = vadd.f32 %v3788, %v3828
    %v3830 = vpop.f32.mrf.mxu0
    %v3831 = vadd.f32 %v3790, %v3830
    %v3832 = vpop.f32.mrf.mxu0
    %v3833 = vpop.f32.mrf.mxu0
    %3834 = vdwg.mxu0
    %3835 = vmatprep.subr.bf16.mxu0 %v2556
    %3836 = vmatpush1.bf16.msra.mxu0 %v2555
    %3837 = vmatprep.subr.bf16.mxu0 %v2548
    %3838 = vmatpush1.bf16.msra.mxu0 %v2547
    %3839 = vmatprep.subr.bf16.mxu0 %v2540
    %3840 = vmatpush1.bf16.msra.mxu0 %v2539
    %3841 = vmatprep.subr.bf16.mxu0 %v2532
    %3842 = vmatpush1.bf16.msra.mxu0 %v2531
    %3843 = vmatprep.subr.bf16.mxu0 %v2524
    %3844 = vmatpush1.bf16.msra.mxu0 %v2523
    %3845 = vmatprep.subr.bf16.mxu0 %v2516
    %3846 = vmatpush1.bf16.msra.mxu0 %v2515
    %3847 = vmatprep.subr.bf16.mxu0 %v2508
    %3848 = vmatpush1.bf16.msra.mxu0 %v2507
    %3849 = vmatprep.subr.bf16.mxu0 %v2500
    %3850 = vmatpush1.bf16.msra.mxu0 %v2499
    %3851 = vmatprep.subr.bf16.mxu0 %v2620
    %3852 = vmatpush2.bf16.msra.mxu0 %v2619
    %3853 = vmatprep.subr.bf16.mxu0 %v2612
    %3854 = vmatpush2.bf16.msra.mxu0 %v2611
    %3855 = vmatprep.subr.bf16.mxu0 %v2604
    %3856 = vmatpush2.bf16.msra.mxu0 %v2603
    %3857 = vmatprep.subr.bf16.mxu0 %v2596
    %3858 = vmatpush2.bf16.msra.mxu0 %v2595
    %3859 = vmatprep.subr.bf16.mxu0 %v2588
    %3860 = vmatpush2.bf16.msra.mxu0 %v2587
    %3861 = vmatprep.subr.bf16.mxu0 %v2580
    %3862 = vmatpush2.bf16.msra.mxu0 %v2579
    %3863 = vmatprep.subr.bf16.mxu0 %v2572
    %3864 = vmatpush2.bf16.msra.mxu0 %v2571
    %3865 = vmatprep.subr.bf16.mxu0 %v2564
    %3866 = vmatpush2.bf16.msra.mxu0 %v2563
    %3867 = vmatprep.mubr.bf16.mxu0 %v690
    %3868 = vmatmul.mubr.bf16.gmra.mxu0 %v689
    %v3869 = vpop.f32.mrf.mxu0
    %v3870 = vadd.f32 %v3829, %v3869
    %v3871 = vpop.f32.mrf.mxu0
    %v3872 = vadd.f32 %v3831, %v3871
    %v3873 = vpop.f32.mrf.mxu0
    %v3874 = vpop.f32.mrf.mxu0
    %3875 = vdwg.mxu0
    %3876 = vmatprep.subr.bf16.mxu0 %v2684
    %3877 = vmatpush1.bf16.msra.mxu0 %v2683
    %3878 = vmatprep.subr.bf16.mxu0 %v2676
    %3879 = vmatpush1.bf16.msra.mxu0 %v2675
    %3880 = vmatprep.subr.bf16.mxu0 %v2668
    %3881 = vmatpush1.bf16.msra.mxu0 %v2667
    %3882 = vmatprep.subr.bf16.mxu0 %v2660
    %3883 = vmatpush1.bf16.msra.mxu0 %v2659
    %3884 = vmatprep.subr.bf16.mxu0 %v2652
    %3885 = vmatpush1.bf16.msra.mxu0 %v2651
    %3886 = vmatprep.subr.bf16.mxu0 %v2644
    %3887 = vmatpush1.bf16.msra.mxu0 %v2643
    %3888 = vmatprep.subr.bf16.mxu0 %v2636
    %3889 = vmatpush1.bf16.msra.mxu0 %v2635
    %3890 = vmatprep.subr.bf16.mxu0 %v2628
    %3891 = vmatpush1.bf16.msra.mxu0 %v2627
    %3892 = vmatprep.subr.bf16.mxu0 %v2748
    %3893 = vmatpush2.bf16.msra.mxu0 %v2747
    %3894 = vmatprep.subr.bf16.mxu0 %v2740
    %3895 = vmatpush2.bf16.msra.mxu0 %v2739
    %3896 = vmatprep.subr.bf16.mxu0 %v2732
    %3897 = vmatpush2.bf16.msra.mxu0 %v2731
    %3898 = vmatprep.subr.bf16.mxu0 %v2724
    %3899 = vmatpush2.bf16.msra.mxu0 %v2723
    %3900 = vmatprep.subr.bf16.mxu0 %v2716
    %3901 = vmatpush2.bf16.msra.mxu0 %v2715
    %3902 = vmatprep.subr.bf16.mxu0 %v2708
    %3903 = vmatpush2.bf16.msra.mxu0 %v2707
    %3904 = vmatprep.subr.bf16.mxu0 %v2700
    %3905 = vmatpush2.bf16.msra.mxu0 %v2699
    %3906 = vmatprep.subr.bf16.mxu0 %v2692
    %3907 = vmatpush2.bf16.msra.mxu0 %v2691
    %3908 = vmatprep.mubr.bf16.mxu0 %v692
    %3909 = vmatmul.mubr.bf16.gmra.mxu0 %v691
    %v3910 = vpop.f32.mrf.mxu0
    %v3911 = vadd.f32 %v3870, %v3910
    %v3912 = vpop.f32.mrf.mxu0
    %v3913 = vadd.f32 %v3872, %v3912
    %v3914 = vpop.f32.mrf.mxu0
    %v3915 = vpop.f32.mrf.mxu0
    %3916 = vdwg.mxu0
    %v3917 = vmax.f32 %v3419, 0.0
    %v3918 = vmax.f32 %v3421, 0.0
    %v3919 = vmax.f32 %v3583, 0.0
    %v3920 = vmax.f32 %v3585, 0.0
    %v3921 = vmax.f32 %v3747, 0.0
    %v3922 = vmax.f32 %v3749, 0.0
    %v3923 = vmax.f32 %v3911, 0.0
    %v3924 = vmax.f32 %v3913, 0.0
    %v3925 = vpack.c.bf16 %v3917, %v3917
    %v3926 = vpack.c.bf16 %v3918, %v3918
    %v3927 = vpack.c.bf16 %v3919, %v3919
    %v3928 = vpack.c.bf16 %v3920, %v3920
    %v3929 = vpack.c.bf16 %v3921, %v3921
    %v3930 = vpack.c.bf16 %v3922, %v3922
    %v3931 = vpack.c.bf16 %v3923, %v3923
    %v3932 = vpack.c.bf16 %v3924, %v3924
    %v3933 = vld [vmem:[#allocation8] sm:$0xff]
    %v3934 = vld [vmem:[#allocation8 + $0x8] sm:$0xff]
    %v3935 = vld [vmem:[#allocation8 + $0x10] sm:$0xff]
    %v3936 = vld [vmem:[#allocation8 + $0x18] sm:$0xff]
    %v3937 = vld [vmem:[#allocation8 + $0x20] sm:$0xff]
    %v3938 = vld [vmem:[#allocation8 + $0x28] sm:$0xff]
    %v3939 = vld [vmem:[#allocation8 + $0x30] sm:$0xff]
    %v3940 = vld [vmem:[#allocation8 + $0x38] sm:$0xff]
    %v3941 = vld [vmem:[#allocation8 + $0x40] sm:$0xff]
    %v3942 = vld [vmem:[#allocation8 + $0x48] sm:$0xff]
    %v3943 = vld [vmem:[#allocation8 + $0x50] sm:$0xff]
    %v3944 = vld [vmem:[#allocation8 + $0x58] sm:$0xff]
    %v3945 = vld [vmem:[#allocation8 + $0x60] sm:$0xff]
    %v3946 = vld [vmem:[#allocation8 + $0x68] sm:$0xff]
    %v3947 = vld [vmem:[#allocation8 + $0x70] sm:$0xff]
    %v3948 = vld [vmem:[#allocation8 + $0x78] sm:$0xff]
    %v3949 = vld [vmem:[#allocation8 + $0x80] sm:$0xff]
    %v3950 = vld [vmem:[#allocation8 + $0x88] sm:$0xff]
    %v3951 = vld [vmem:[#allocation8 + $0x90] sm:$0xff]
    %v3952 = vld [vmem:[#allocation8 + $0x98] sm:$0xff]
    %v3953 = vld [vmem:[#allocation8 + $0xa0] sm:$0xff]
    %v3954 = vld [vmem:[#allocation8 + $0xa8] sm:$0xff]
    %v3955 = vld [vmem:[#allocation8 + $0xb0] sm:$0xff]
    %v3956 = vld [vmem:[#allocation8 + $0xb8] sm:$0xff]
    %v3957 = vld [vmem:[#allocation8 + $0xc0] sm:$0xff]
    %v3958 = vld [vmem:[#allocation8 + $0xc8] sm:$0xff]
    %v3959 = vld [vmem:[#allocation8 + $0xd0] sm:$0xff]
    %v3960 = vld [vmem:[#allocation8 + $0xd8] sm:$0xff]
    %v3961 = vld [vmem:[#allocation8 + $0xe0] sm:$0xff]
    %v3962 = vld [vmem:[#allocation8 + $0xe8] sm:$0xff]
    %v3963 = vld [vmem:[#allocation8 + $0xf0] sm:$0xff]
    %v3964 = vld [vmem:[#allocation8 + $0xf8] sm:$0xff]
    %v3965 = vld [vmem:[#allocation8 + $0x100] sm:$0xff]
    %v3966 = vld [vmem:[#allocation8 + $0x108] sm:$0xff]
    %v3967 = vld [vmem:[#allocation8 + $0x110] sm:$0xff]
    %v3968 = vld [vmem:[#allocation8 + $0x118] sm:$0xff]
    %v3969 = vld [vmem:[#allocation8 + $0x120] sm:$0xff]
    %v3970 = vld [vmem:[#allocation8 + $0x128] sm:$0xff]
    %v3971 = vld [vmem:[#allocation8 + $0x130] sm:$0xff]
    %v3972 = vld [vmem:[#allocation8 + $0x138] sm:$0xff]
    %v3973 = vld [vmem:[#allocation8 + $0x140] sm:$0xff]
    %v3974 = vld [vmem:[#allocation8 + $0x148] sm:$0xff]
    %v3975 = vld [vmem:[#allocation8 + $0x150] sm:$0xff]
    %v3976 = vld [vmem:[#allocation8 + $0x158] sm:$0xff]
    %v3977 = vld [vmem:[#allocation8 + $0x160] sm:$0xff]
    %v3978 = vld [vmem:[#allocation8 + $0x168] sm:$0xff]
    %v3979 = vld [vmem:[#allocation8 + $0x170] sm:$0xff]
    %v3980 = vld [vmem:[#allocation8 + $0x178] sm:$0xff]
    %v3981 = vld [vmem:[#allocation8 + $0x180] sm:$0xff]
    %v3982 = vld [vmem:[#allocation8 + $0x188] sm:$0xff]
    %v3983 = vld [vmem:[#allocation8 + $0x190] sm:$0xff]
    %v3984 = vld [vmem:[#allocation8 + $0x198] sm:$0xff]
    %v3985 = vld [vmem:[#allocation8 + $0x1a0] sm:$0xff]
    %v3986 = vld [vmem:[#allocation8 + $0x1a8] sm:$0xff]
    %v3987 = vld [vmem:[#allocation8 + $0x1b0] sm:$0xff]
    %v3988 = vld [vmem:[#allocation8 + $0x1b8] sm:$0xff]
    %v3989 = vld [vmem:[#allocation8 + $0x1c0] sm:$0xff]
    %v3990 = vld [vmem:[#allocation8 + $0x1c8] sm:$0xff]
    %v3991 = vld [vmem:[#allocation8 + $0x1d0] sm:$0xff]
    %v3992 = vld [vmem:[#allocation8 + $0x1d8] sm:$0xff]
    %v3993 = vld [vmem:[#allocation8 + $0x1e0] sm:$0xff]
    %v3994 = vld [vmem:[#allocation8 + $0x1e8] sm:$0xff]
    %v3995 = vld [vmem:[#allocation8 + $0x1f0] sm:$0xff]
    %v3996 = vld [vmem:[#allocation8 + $0x1f8] sm:$0xff]
    %v3997 = vld [vmem:[#allocation8 + $0x200] sm:$0xff]
    %v3998 = vld [vmem:[#allocation8 + $0x208] sm:$0xff]
    %v3999 = vld [vmem:[#allocation8 + $0x210] sm:$0xff]
    %v4000 = vld [vmem:[#allocation8 + $0x218] sm:$0xff]
    %v4001 = vld [vmem:[#allocation8 + $0x220] sm:$0xff]
    %v4002 = vld [vmem:[#allocation8 + $0x228] sm:$0xff]
    %v4003 = vld [vmem:[#allocation8 + $0x230] sm:$0xff]
    %v4004 = vld [vmem:[#allocation8 + $0x238] sm:$0xff]
    %v4005 = vld [vmem:[#allocation8 + $0x240] sm:$0xff]
    %v4006 = vld [vmem:[#allocation8 + $0x248] sm:$0xff]
    %v4007 = vld [vmem:[#allocation8 + $0x250] sm:$0xff]
    %v4008 = vld [vmem:[#allocation8 + $0x258] sm:$0xff]
    %v4009 = vld [vmem:[#allocation8 + $0x260] sm:$0xff]
    %v4010 = vld [vmem:[#allocation8 + $0x268] sm:$0xff]
    %v4011 = vld [vmem:[#allocation8 + $0x270] sm:$0xff]
    %v4012 = vld [vmem:[#allocation8 + $0x278] sm:$0xff]
    %v4013 = vld [vmem:[#allocation8 + $0x280] sm:$0xff]
    %v4014 = vld [vmem:[#allocation8 + $0x288] sm:$0xff]
    %v4015 = vld [vmem:[#allocation8 + $0x290] sm:$0xff]
    %v4016 = vld [vmem:[#allocation8 + $0x298] sm:$0xff]
    %v4017 = vld [vmem:[#allocation8 + $0x2a0] sm:$0xff]
    %v4018 = vld [vmem:[#allocation8 + $0x2a8] sm:$0xff]
    %v4019 = vld [vmem:[#allocation8 + $0x2b0] sm:$0xff]
    %v4020 = vld [vmem:[#allocation8 + $0x2b8] sm:$0xff]
    %v4021 = vld [vmem:[#allocation8 + $0x2c0] sm:$0xff]
    %v4022 = vld [vmem:[#allocation8 + $0x2c8] sm:$0xff]
    %v4023 = vld [vmem:[#allocation8 + $0x2d0] sm:$0xff]
    %v4024 = vld [vmem:[#allocation8 + $0x2d8] sm:$0xff]
    %v4025 = vld [vmem:[#allocation8 + $0x2e0] sm:$0xff]
    %v4026 = vld [vmem:[#allocation8 + $0x2e8] sm:$0xff]
    %v4027 = vld [vmem:[#allocation8 + $0x2f0] sm:$0xff]
    %v4028 = vld [vmem:[#allocation8 + $0x2f8] sm:$0xff]
    %v4029 = vld [vmem:[#allocation8 + $0x300] sm:$0xff]
    %v4030 = vld [vmem:[#allocation8 + $0x308] sm:$0xff]
    %v4031 = vld [vmem:[#allocation8 + $0x310] sm:$0xff]
    %v4032 = vld [vmem:[#allocation8 + $0x318] sm:$0xff]
    %v4033 = vld [vmem:[#allocation8 + $0x320] sm:$0xff]
    %v4034 = vld [vmem:[#allocation8 + $0x328] sm:$0xff]
    %v4035 = vld [vmem:[#allocation8 + $0x330] sm:$0xff]
    %v4036 = vld [vmem:[#allocation8 + $0x338] sm:$0xff]
    %v4037 = vld [vmem:[#allocation8 + $0x340] sm:$0xff]
    %v4038 = vld [vmem:[#allocation8 + $0x348] sm:$0xff]
    %v4039 = vld [vmem:[#allocation8 + $0x350] sm:$0xff]
    %v4040 = vld [vmem:[#allocation8 + $0x358] sm:$0xff]
    %v4041 = vld [vmem:[#allocation8 + $0x360] sm:$0xff]
    %v4042 = vld [vmem:[#allocation8 + $0x368] sm:$0xff]
    %v4043 = vld [vmem:[#allocation8 + $0x370] sm:$0xff]
    %v4044 = vld [vmem:[#allocation8 + $0x378] sm:$0xff]
    %v4045 = vld [vmem:[#allocation8 + $0x380] sm:$0xff]
    %v4046 = vld [vmem:[#allocation8 + $0x388] sm:$0xff]
    %v4047 = vld [vmem:[#allocation8 + $0x390] sm:$0xff]
    %v4048 = vld [vmem:[#allocation8 + $0x398] sm:$0xff]
    %v4049 = vld [vmem:[#allocation8 + $0x3a0] sm:$0xff]
    %v4050 = vld [vmem:[#allocation8 + $0x3a8] sm:$0xff]
    %v4051 = vld [vmem:[#allocation8 + $0x3b0] sm:$0xff]
    %v4052 = vld [vmem:[#allocation8 + $0x3b8] sm:$0xff]
    %v4053 = vld [vmem:[#allocation8 + $0x3c0] sm:$0xff]
    %v4054 = vld [vmem:[#allocation8 + $0x3c8] sm:$0xff]
    %v4055 = vld [vmem:[#allocation8 + $0x3d0] sm:$0xff]
    %v4056 = vld [vmem:[#allocation8 + $0x3d8] sm:$0xff]
    %v4057 = vld [vmem:[#allocation8 + $0x3e0] sm:$0xff]
    %v4058 = vld [vmem:[#allocation8 + $0x3e8] sm:$0xff]
    %v4059 = vld [vmem:[#allocation8 + $0x3f0] sm:$0xff]
    %v4060 = vld [vmem:[#allocation8 + $0x3f8] sm:$0xff]
    %v4061 = vld [vmem:[#allocation8 + $0x400] sm:$0xff]
    %v4062 = vld [vmem:[#allocation8 + $0x408] sm:$0xff]
    %v4063 = vld [vmem:[#allocation8 + $0x410] sm:$0xff]
    %v4064 = vld [vmem:[#allocation8 + $0x418] sm:$0xff]
    %v4065 = vld [vmem:[#allocation8 + $0x420] sm:$0xff]
    %v4066 = vld [vmem:[#allocation8 + $0x428] sm:$0xff]
    %v4067 = vld [vmem:[#allocation8 + $0x430] sm:$0xff]
    %v4068 = vld [vmem:[#allocation8 + $0x438] sm:$0xff]
    %v4069 = vld [vmem:[#allocation8 + $0x440] sm:$0xff]
    %v4070 = vld [vmem:[#allocation8 + $0x448] sm:$0xff]
    %v4071 = vld [vmem:[#allocation8 + $0x450] sm:$0xff]
    %v4072 = vld [vmem:[#allocation8 + $0x458] sm:$0xff]
    %v4073 = vld [vmem:[#allocation8 + $0x460] sm:$0xff]
    %v4074 = vld [vmem:[#allocation8 + $0x468] sm:$0xff]
    %v4075 = vld [vmem:[#allocation8 + $0x470] sm:$0xff]
    %v4076 = vld [vmem:[#allocation8 + $0x478] sm:$0xff]
    %v4077 = vld [vmem:[#allocation8 + $0x480] sm:$0xff]
    %v4078 = vld [vmem:[#allocation8 + $0x488] sm:$0xff]
    %v4079 = vld [vmem:[#allocation8 + $0x490] sm:$0xff]
    %v4080 = vld [vmem:[#allocation8 + $0x498] sm:$0xff]
    %v4081 = vld [vmem:[#allocation8 + $0x4a0] sm:$0xff]
    %v4082 = vld [vmem:[#allocation8 + $0x4a8] sm:$0xff]
    %v4083 = vld [vmem:[#allocation8 + $0x4b0] sm:$0xff]
    %v4084 = vld [vmem:[#allocation8 + $0x4b8] sm:$0xff]
    %v4085 = vld [vmem:[#allocation8 + $0x4c0] sm:$0xff]
    %v4086 = vld [vmem:[#allocation8 + $0x4c8] sm:$0xff]
    %v4087 = vld [vmem:[#allocation8 + $0x4d0] sm:$0xff]
    %v4088 = vld [vmem:[#allocation8 + $0x4d8] sm:$0xff]
    %v4089 = vld [vmem:[#allocation8 + $0x4e0] sm:$0xff]
    %v4090 = vld [vmem:[#allocation8 + $0x4e8] sm:$0xff]
    %v4091 = vld [vmem:[#allocation8 + $0x4f0] sm:$0xff]
    %v4092 = vld [vmem:[#allocation8 + $0x4f8] sm:$0xff]
    %v4093 = vld [vmem:[#allocation8 + $0x500] sm:$0xff]
    %v4094 = vld [vmem:[#allocation8 + $0x508] sm:$0xff]
    %v4095 = vld [vmem:[#allocation8 + $0x510] sm:$0xff]
    %v4096 = vld [vmem:[#allocation8 + $0x518] sm:$0xff]
    %v4097 = vld [vmem:[#allocation8 + $0x520] sm:$0xff]
    %v4098 = vld [vmem:[#allocation8 + $0x528] sm:$0xff]
    %v4099 = vld [vmem:[#allocation8 + $0x530] sm:$0xff]
    %v4100 = vld [vmem:[#allocation8 + $0x538] sm:$0xff]
    %v4101 = vld [vmem:[#allocation8 + $0x540] sm:$0xff]
    %v4102 = vld [vmem:[#allocation8 + $0x548] sm:$0xff]
    %v4103 = vld [vmem:[#allocation8 + $0x550] sm:$0xff]
    %v4104 = vld [vmem:[#allocation8 + $0x558] sm:$0xff]
    %v4105 = vld [vmem:[#allocation8 + $0x560] sm:$0xff]
    %v4106 = vld [vmem:[#allocation8 + $0x568] sm:$0xff]
    %v4107 = vld [vmem:[#allocation8 + $0x570] sm:$0xff]
    %v4108 = vld [vmem:[#allocation8 + $0x578] sm:$0xff]
    %v4109 = vld [vmem:[#allocation8 + $0x580] sm:$0xff]
    %v4110 = vld [vmem:[#allocation8 + $0x588] sm:$0xff]
    %v4111 = vld [vmem:[#allocation8 + $0x590] sm:$0xff]
    %v4112 = vld [vmem:[#allocation8 + $0x598] sm:$0xff]
    %v4113 = vld [vmem:[#allocation8 + $0x5a0] sm:$0xff]
    %v4114 = vld [vmem:[#allocation8 + $0x5a8] sm:$0xff]
    %v4115 = vld [vmem:[#allocation8 + $0x5b0] sm:$0xff]
    %v4116 = vld [vmem:[#allocation8 + $0x5b8] sm:$0xff]
    %v4117 = vld [vmem:[#allocation8 + $0x5c0] sm:$0xff]
    %v4118 = vld [vmem:[#allocation8 + $0x5c8] sm:$0xff]
    %v4119 = vld [vmem:[#allocation8 + $0x5d0] sm:$0xff]
    %v4120 = vld [vmem:[#allocation8 + $0x5d8] sm:$0xff]
    %v4121 = vld [vmem:[#allocation8 + $0x5e0] sm:$0xff]
    %v4122 = vld [vmem:[#allocation8 + $0x5e8] sm:$0xff]
    %v4123 = vld [vmem:[#allocation8 + $0x5f0] sm:$0xff]
    %v4124 = vld [vmem:[#allocation8 + $0x5f8] sm:$0xff]
    %v4125 = vld [vmem:[#allocation8 + $0x600] sm:$0xff]
    %v4126 = vld [vmem:[#allocation8 + $0x608] sm:$0xff]
    %v4127 = vld [vmem:[#allocation8 + $0x610] sm:$0xff]
    %v4128 = vld [vmem:[#allocation8 + $0x618] sm:$0xff]
    %v4129 = vld [vmem:[#allocation8 + $0x620] sm:$0xff]
    %v4130 = vld [vmem:[#allocation8 + $0x628] sm:$0xff]
    %v4131 = vld [vmem:[#allocation8 + $0x630] sm:$0xff]
    %v4132 = vld [vmem:[#allocation8 + $0x638] sm:$0xff]
    %v4133 = vld [vmem:[#allocation8 + $0x640] sm:$0xff]
    %v4134 = vld [vmem:[#allocation8 + $0x648] sm:$0xff]
    %v4135 = vld [vmem:[#allocation8 + $0x650] sm:$0xff]
    %v4136 = vld [vmem:[#allocation8 + $0x658] sm:$0xff]
    %v4137 = vld [vmem:[#allocation8 + $0x660] sm:$0xff]
    %v4138 = vld [vmem:[#allocation8 + $0x668] sm:$0xff]
    %v4139 = vld [vmem:[#allocation8 + $0x670] sm:$0xff]
    %v4140 = vld [vmem:[#allocation8 + $0x678] sm:$0xff]
    %v4141 = vld [vmem:[#allocation8 + $0x680] sm:$0xff]
    %v4142 = vld [vmem:[#allocation8 + $0x688] sm:$0xff]
    %v4143 = vld [vmem:[#allocation8 + $0x690] sm:$0xff]
    %v4144 = vld [vmem:[#allocation8 + $0x698] sm:$0xff]
    %v4145 = vld [vmem:[#allocation8 + $0x6a0] sm:$0xff]
    %v4146 = vld [vmem:[#allocation8 + $0x6a8] sm:$0xff]
    %v4147 = vld [vmem:[#allocation8 + $0x6b0] sm:$0xff]
    %v4148 = vld [vmem:[#allocation8 + $0x6b8] sm:$0xff]
    %v4149 = vld [vmem:[#allocation8 + $0x6c0] sm:$0xff]
    %v4150 = vld [vmem:[#allocation8 + $0x6c8] sm:$0xff]
    %v4151 = vld [vmem:[#allocation8 + $0x6d0] sm:$0xff]
    %v4152 = vld [vmem:[#allocation8 + $0x6d8] sm:$0xff]
    %v4153 = vld [vmem:[#allocation8 + $0x6e0] sm:$0xff]
    %v4154 = vld [vmem:[#allocation8 + $0x6e8] sm:$0xff]
    %v4155 = vld [vmem:[#allocation8 + $0x6f0] sm:$0xff]
    %v4156 = vld [vmem:[#allocation8 + $0x6f8] sm:$0xff]
    %v4157 = vld [vmem:[#allocation8 + $0x700] sm:$0xff]
    %v4158 = vld [vmem:[#allocation8 + $0x708] sm:$0xff]
    %v4159 = vld [vmem:[#allocation8 + $0x710] sm:$0xff]
    %v4160 = vld [vmem:[#allocation8 + $0x718] sm:$0xff]
    %v4161 = vld [vmem:[#allocation8 + $0x720] sm:$0xff]
    %v4162 = vld [vmem:[#allocation8 + $0x728] sm:$0xff]
    %v4163 = vld [vmem:[#allocation8 + $0x730] sm:$0xff]
    %v4164 = vld [vmem:[#allocation8 + $0x738] sm:$0xff]
    %v4165 = vld [vmem:[#allocation8 + $0x740] sm:$0xff]
    %v4166 = vld [vmem:[#allocation8 + $0x748] sm:$0xff]
    %v4167 = vld [vmem:[#allocation8 + $0x750] sm:$0xff]
    %v4168 = vld [vmem:[#allocation8 + $0x758] sm:$0xff]
    %v4169 = vld [vmem:[#allocation8 + $0x760] sm:$0xff]
    %v4170 = vld [vmem:[#allocation8 + $0x768] sm:$0xff]
    %v4171 = vld [vmem:[#allocation8 + $0x770] sm:$0xff]
    %v4172 = vld [vmem:[#allocation8 + $0x778] sm:$0xff]
    %v4173 = vld [vmem:[#allocation8 + $0x780] sm:$0xff]
    %v4174 = vld [vmem:[#allocation8 + $0x788] sm:$0xff]
    %v4175 = vld [vmem:[#allocation8 + $0x790] sm:$0xff]
    %v4176 = vld [vmem:[#allocation8 + $0x798] sm:$0xff]
    %v4177 = vld [vmem:[#allocation8 + $0x7a0] sm:$0xff]
    %v4178 = vld [vmem:[#allocation8 + $0x7a8] sm:$0xff]
    %v4179 = vld [vmem:[#allocation8 + $0x7b0] sm:$0xff]
    %v4180 = vld [vmem:[#allocation8 + $0x7b8] sm:$0xff]
    %v4181 = vld [vmem:[#allocation8 + $0x7c0] sm:$0xff]
    %v4182 = vld [vmem:[#allocation8 + $0x7c8] sm:$0xff]
    %v4183 = vld [vmem:[#allocation8 + $0x7d0] sm:$0xff]
    %v4184 = vld [vmem:[#allocation8 + $0x7d8] sm:$0xff]
    %v4185 = vld [vmem:[#allocation8 + $0x7e0] sm:$0xff]
    %v4186 = vld [vmem:[#allocation8 + $0x7e8] sm:$0xff]
    %v4187 = vld [vmem:[#allocation8 + $0x7f0] sm:$0xff]
    %v4188 = vld [vmem:[#allocation8 + $0x7f8] sm:$0xff]
    %v4189 = vld [vmem:[#allocation10] sm:$0xf]
    %v4191 = vlaneseq
    %v4192 = vshrl.u32 %v4191, 7
    %v4193 = vsub.s32 0, %v4192
    %v4194 = vrot.slane %v4189, %v4193
    %v4195 = vlaneseq
    %v4196 = vshrl.u32 %v4195, 7
    %v4197 = vsub.s32 1, %v4196
    %v4198 = vrot.slane %v4189, %v4197
    %v4199 = vlaneseq
    %v4200 = vshrl.u32 %v4199, 7
    %v4201 = vsub.s32 2, %v4200
    %v4202 = vrot.slane %v4189, %v4201
    %v4203 = vlaneseq
    %v4204 = vshrl.u32 %v4203, 7
    %v4205 = vsub.s32 3, %v4204
    %v4206 = vrot.slane %v4189, %v4205
    %v4467 = vunpack.c.l.b16 %v3933
    %v4468 = vunpack.c.h.b16 %v3933
    %v4469 = vunpack.c.l.b16 %v3934
    %v4470 = vunpack.c.h.b16 %v3934
    %v4471 = vunpack.c.l.b16 %v3935
    %v4472 = vunpack.c.h.b16 %v3935
    %v4473 = vunpack.c.l.b16 %v3936
    %v4474 = vunpack.c.h.b16 %v3936
    %v4475 = vunpack.c.l.b16 %v3937
    %v4476 = vunpack.c.h.b16 %v3937
    %v4477 = vunpack.c.l.b16 %v3938
    %v4478 = vunpack.c.h.b16 %v3938
    %v4479 = vunpack.c.l.b16 %v3939
    %v4480 = vunpack.c.h.b16 %v3939
    %v4481 = vunpack.c.l.b16 %v3940
    %v4482 = vunpack.c.h.b16 %v3940
    %v4483 = vunpack.c.l.b16 %v3941
    %v4484 = vunpack.c.h.b16 %v3941
    %v4485 = vunpack.c.l.b16 %v3942
    %v4486 = vunpack.c.h.b16 %v3942
    %v4487 = vunpack.c.l.b16 %v3943
    %v4488 = vunpack.c.h.b16 %v3943
    %v4489 = vunpack.c.l.b16 %v3944
    %v4490 = vunpack.c.h.b16 %v3944
    %v4491 = vunpack.c.l.b16 %v3945
    %v4492 = vunpack.c.h.b16 %v3945
    %v4493 = vunpack.c.l.b16 %v3946
    %v4494 = vunpack.c.h.b16 %v3946
    %v4495 = vunpack.c.l.b16 %v3947
    %v4496 = vunpack.c.h.b16 %v3947
    %v4497 = vunpack.c.l.b16 %v3948
    %v4498 = vunpack.c.h.b16 %v3948
    %v4499 = vunpack.c.l.b16 %v3949
    %v4500 = vunpack.c.h.b16 %v3949
    %v4501 = vunpack.c.l.b16 %v3950
    %v4502 = vunpack.c.h.b16 %v3950
    %v4503 = vunpack.c.l.b16 %v3951
    %v4504 = vunpack.c.h.b16 %v3951
    %v4505 = vunpack.c.l.b16 %v3952
    %v4506 = vunpack.c.h.b16 %v3952
    %v4507 = vunpack.c.l.b16 %v3953
    %v4508 = vunpack.c.h.b16 %v3953
    %v4509 = vunpack.c.l.b16 %v3954
    %v4510 = vunpack.c.h.b16 %v3954
    %v4511 = vunpack.c.l.b16 %v3955
    %v4512 = vunpack.c.h.b16 %v3955
    %v4513 = vunpack.c.l.b16 %v3956
    %v4514 = vunpack.c.h.b16 %v3956
    %v4515 = vunpack.c.l.b16 %v3957
    %v4516 = vunpack.c.h.b16 %v3957
    %v4517 = vunpack.c.l.b16 %v3958
    %v4518 = vunpack.c.h.b16 %v3958
    %v4519 = vunpack.c.l.b16 %v3959
    %v4520 = vunpack.c.h.b16 %v3959
    %v4521 = vunpack.c.l.b16 %v3960
    %v4522 = vunpack.c.h.b16 %v3960
    %v4523 = vunpack.c.l.b16 %v3961
    %v4524 = vunpack.c.h.b16 %v3961
    %v4525 = vunpack.c.l.b16 %v3962
    %v4526 = vunpack.c.h.b16 %v3962
    %v4527 = vunpack.c.l.b16 %v3963
    %v4528 = vunpack.c.h.b16 %v3963
    %v4529 = vunpack.c.l.b16 %v3964
    %v4530 = vunpack.c.h.b16 %v3964
    %v4531 = vunpack.c.l.b16 %v3965
    %v4532 = vunpack.c.h.b16 %v3965
    %v4533 = vunpack.c.l.b16 %v3966
    %v4534 = vunpack.c.h.b16 %v3966
    %v4535 = vunpack.c.l.b16 %v3967
    %v4536 = vunpack.c.h.b16 %v3967
    %v4537 = vunpack.c.l.b16 %v3968
    %v4538 = vunpack.c.h.b16 %v3968
    %v4539 = vunpack.c.l.b16 %v3969
    %v4540 = vunpack.c.h.b16 %v3969
    %v4541 = vunpack.c.l.b16 %v3970
    %v4542 = vunpack.c.h.b16 %v3970
    %v4543 = vunpack.c.l.b16 %v3971
    %v4544 = vunpack.c.h.b16 %v3971
    %v4545 = vunpack.c.l.b16 %v3972
    %v4546 = vunpack.c.h.b16 %v3972
    %v4547 = vunpack.c.l.b16 %v3973
    %v4548 = vunpack.c.h.b16 %v3973
    %v4549 = vunpack.c.l.b16 %v3974
    %v4550 = vunpack.c.h.b16 %v3974
    %v4551 = vunpack.c.l.b16 %v3975
    %v4552 = vunpack.c.h.b16 %v3975
    %v4553 = vunpack.c.l.b16 %v3976
    %v4554 = vunpack.c.h.b16 %v3976
    %v4555 = vunpack.c.l.b16 %v3977
    %v4556 = vunpack.c.h.b16 %v3977
    %v4557 = vunpack.c.l.b16 %v3978
    %v4558 = vunpack.c.h.b16 %v3978
    %v4559 = vunpack.c.l.b16 %v3979
    %v4560 = vunpack.c.h.b16 %v3979
    %v4561 = vunpack.c.l.b16 %v3980
    %v4562 = vunpack.c.h.b16 %v3980
    %v4563 = vunpack.c.l.b16 %v3981
    %v4564 = vunpack.c.h.b16 %v3981
    %v4565 = vunpack.c.l.b16 %v3982
    %v4566 = vunpack.c.h.b16 %v3982
    %v4567 = vunpack.c.l.b16 %v3983
    %v4568 = vunpack.c.h.b16 %v3983
    %v4569 = vunpack.c.l.b16 %v3984
    %v4570 = vunpack.c.h.b16 %v3984
    %v4571 = vunpack.c.l.b16 %v3985
    %v4572 = vunpack.c.h.b16 %v3985
    %v4573 = vunpack.c.l.b16 %v3986
    %v4574 = vunpack.c.h.b16 %v3986
    %v4575 = vunpack.c.l.b16 %v3987
    %v4576 = vunpack.c.h.b16 %v3987
    %v4577 = vunpack.c.l.b16 %v3988
    %v4578 = vunpack.c.h.b16 %v3988
    %v4579 = vunpack.c.l.b16 %v3989
    %v4580 = vunpack.c.h.b16 %v3989
    %v4581 = vunpack.c.l.b16 %v3990
    %v4582 = vunpack.c.h.b16 %v3990
    %v4583 = vunpack.c.l.b16 %v3991
    %v4584 = vunpack.c.h.b16 %v3991
    %v4585 = vunpack.c.l.b16 %v3992
    %v4586 = vunpack.c.h.b16 %v3992
    %v4587 = vunpack.c.l.b16 %v3993
    %v4588 = vunpack.c.h.b16 %v3993
    %v4589 = vunpack.c.l.b16 %v3994
    %v4590 = vunpack.c.h.b16 %v3994
    %v4591 = vunpack.c.l.b16 %v3995
    %v4592 = vunpack.c.h.b16 %v3995
    %v4593 = vunpack.c.l.b16 %v3996
    %v4594 = vunpack.c.h.b16 %v3996
    %v4595 = vunpack.c.l.b16 %v3997
    %v4596 = vunpack.c.h.b16 %v3997
    %v4597 = vunpack.c.l.b16 %v3998
    %v4598 = vunpack.c.h.b16 %v3998
    %v4599 = vunpack.c.l.b16 %v3999
    %v4600 = vunpack.c.h.b16 %v3999
    %v4601 = vunpack.c.l.b16 %v4000
    %v4602 = vunpack.c.h.b16 %v4000
    %v4603 = vunpack.c.l.b16 %v4001
    %v4604 = vunpack.c.h.b16 %v4001
    %v4605 = vunpack.c.l.b16 %v4002
    %v4606 = vunpack.c.h.b16 %v4002
    %v4607 = vunpack.c.l.b16 %v4003
    %v4608 = vunpack.c.h.b16 %v4003
    %v4609 = vunpack.c.l.b16 %v4004
    %v4610 = vunpack.c.h.b16 %v4004
    %v4611 = vunpack.c.l.b16 %v4005
    %v4612 = vunpack.c.h.b16 %v4005
    %v4613 = vunpack.c.l.b16 %v4006
    %v4614 = vunpack.c.h.b16 %v4006
    %v4615 = vunpack.c.l.b16 %v4007
    %v4616 = vunpack.c.h.b16 %v4007
    %v4617 = vunpack.c.l.b16 %v4008
    %v4618 = vunpack.c.h.b16 %v4008
    %v4619 = vunpack.c.l.b16 %v4009
    %v4620 = vunpack.c.h.b16 %v4009
    %v4621 = vunpack.c.l.b16 %v4010
    %v4622 = vunpack.c.h.b16 %v4010
    %v4623 = vunpack.c.l.b16 %v4011
    %v4624 = vunpack.c.h.b16 %v4011
    %v4625 = vunpack.c.l.b16 %v4012
    %v4626 = vunpack.c.h.b16 %v4012
    %v4627 = vunpack.c.l.b16 %v4013
    %v4628 = vunpack.c.h.b16 %v4013
    %v4629 = vunpack.c.l.b16 %v4014
    %v4630 = vunpack.c.h.b16 %v4014
    %v4631 = vunpack.c.l.b16 %v4015
    %v4632 = vunpack.c.h.b16 %v4015
    %v4633 = vunpack.c.l.b16 %v4016
    %v4634 = vunpack.c.h.b16 %v4016
    %v4635 = vunpack.c.l.b16 %v4017
    %v4636 = vunpack.c.h.b16 %v4017
    %v4637 = vunpack.c.l.b16 %v4018
    %v4638 = vunpack.c.h.b16 %v4018
    %v4639 = vunpack.c.l.b16 %v4019
    %v4640 = vunpack.c.h.b16 %v4019
    %v4641 = vunpack.c.l.b16 %v4020
    %v4642 = vunpack.c.h.b16 %v4020
    %v4643 = vunpack.c.l.b16 %v4021
    %v4644 = vunpack.c.h.b16 %v4021
    %v4645 = vunpack.c.l.b16 %v4022
    %v4646 = vunpack.c.h.b16 %v4022
    %v4647 = vunpack.c.l.b16 %v4023
    %v4648 = vunpack.c.h.b16 %v4023
    %v4649 = vunpack.c.l.b16 %v4024
    %v4650 = vunpack.c.h.b16 %v4024
    %v4651 = vunpack.c.l.b16 %v4025
    %v4652 = vunpack.c.h.b16 %v4025
    %v4653 = vunpack.c.l.b16 %v4026
    %v4654 = vunpack.c.h.b16 %v4026
    %v4655 = vunpack.c.l.b16 %v4027
    %v4656 = vunpack.c.h.b16 %v4027
    %v4657 = vunpack.c.l.b16 %v4028
    %v4658 = vunpack.c.h.b16 %v4028
    %v4659 = vunpack.c.l.b16 %v4029
    %v4660 = vunpack.c.h.b16 %v4029
    %v4661 = vunpack.c.l.b16 %v4030
    %v4662 = vunpack.c.h.b16 %v4030
    %v4663 = vunpack.c.l.b16 %v4031
    %v4664 = vunpack.c.h.b16 %v4031
    %v4665 = vunpack.c.l.b16 %v4032
    %v4666 = vunpack.c.h.b16 %v4032
    %v4667 = vunpack.c.l.b16 %v4033
    %v4668 = vunpack.c.h.b16 %v4033
    %v4669 = vunpack.c.l.b16 %v4034
    %v4670 = vunpack.c.h.b16 %v4034
    %v4671 = vunpack.c.l.b16 %v4035
    %v4672 = vunpack.c.h.b16 %v4035
    %v4673 = vunpack.c.l.b16 %v4036
    %v4674 = vunpack.c.h.b16 %v4036
    %v4675 = vunpack.c.l.b16 %v4037
    %v4676 = vunpack.c.h.b16 %v4037
    %v4677 = vunpack.c.l.b16 %v4038
    %v4678 = vunpack.c.h.b16 %v4038
    %v4679 = vunpack.c.l.b16 %v4039
    %v4680 = vunpack.c.h.b16 %v4039
    %v4681 = vunpack.c.l.b16 %v4040
    %v4682 = vunpack.c.h.b16 %v4040
    %v4683 = vunpack.c.l.b16 %v4041
    %v4684 = vunpack.c.h.b16 %v4041
    %v4685 = vunpack.c.l.b16 %v4042
    %v4686 = vunpack.c.h.b16 %v4042
    %v4687 = vunpack.c.l.b16 %v4043
    %v4688 = vunpack.c.h.b16 %v4043
    %v4689 = vunpack.c.l.b16 %v4044
    %v4690 = vunpack.c.h.b16 %v4044
    %v4691 = vunpack.c.l.b16 %v4045
    %v4692 = vunpack.c.h.b16 %v4045
    %v4693 = vunpack.c.l.b16 %v4046
    %v4694 = vunpack.c.h.b16 %v4046
    %v4695 = vunpack.c.l.b16 %v4047
    %v4696 = vunpack.c.h.b16 %v4047
    %v4697 = vunpack.c.l.b16 %v4048
    %v4698 = vunpack.c.h.b16 %v4048
    %v4699 = vunpack.c.l.b16 %v4049
    %v4700 = vunpack.c.h.b16 %v4049
    %v4701 = vunpack.c.l.b16 %v4050
    %v4702 = vunpack.c.h.b16 %v4050
    %v4703 = vunpack.c.l.b16 %v4051
    %v4704 = vunpack.c.h.b16 %v4051
    %v4705 = vunpack.c.l.b16 %v4052
    %v4706 = vunpack.c.h.b16 %v4052
    %v4707 = vunpack.c.l.b16 %v4053
    %v4708 = vunpack.c.h.b16 %v4053
    %v4709 = vunpack.c.l.b16 %v4054
    %v4710 = vunpack.c.h.b16 %v4054
    %v4711 = vunpack.c.l.b16 %v4055
    %v4712 = vunpack.c.h.b16 %v4055
    %v4713 = vunpack.c.l.b16 %v4056
    %v4714 = vunpack.c.h.b16 %v4056
    %v4715 = vunpack.c.l.b16 %v4057
    %v4716 = vunpack.c.h.b16 %v4057
    %v4717 = vunpack.c.l.b16 %v4058
    %v4718 = vunpack.c.h.b16 %v4058
    %v4719 = vunpack.c.l.b16 %v4059
    %v4720 = vunpack.c.h.b16 %v4059
    %v4721 = vunpack.c.l.b16 %v4060
    %v4722 = vunpack.c.h.b16 %v4060
    %v4723 = vunpack.c.l.b16 %v4061
    %v4724 = vunpack.c.h.b16 %v4061
    %v4725 = vunpack.c.l.b16 %v4062
    %v4726 = vunpack.c.h.b16 %v4062
    %v4727 = vunpack.c.l.b16 %v4063
    %v4728 = vunpack.c.h.b16 %v4063
    %v4729 = vunpack.c.l.b16 %v4064
    %v4730 = vunpack.c.h.b16 %v4064
    %v4731 = vunpack.c.l.b16 %v4065
    %v4732 = vunpack.c.h.b16 %v4065
    %v4733 = vunpack.c.l.b16 %v4066
    %v4734 = vunpack.c.h.b16 %v4066
    %v4735 = vunpack.c.l.b16 %v4067
    %v4736 = vunpack.c.h.b16 %v4067
    %v4737 = vunpack.c.l.b16 %v4068
    %v4738 = vunpack.c.h.b16 %v4068
    %v4739 = vunpack.c.l.b16 %v4069
    %v4740 = vunpack.c.h.b16 %v4069
    %v4741 = vunpack.c.l.b16 %v4070
    %v4742 = vunpack.c.h.b16 %v4070
    %v4743 = vunpack.c.l.b16 %v4071
    %v4744 = vunpack.c.h.b16 %v4071
    %v4745 = vunpack.c.l.b16 %v4072
    %v4746 = vunpack.c.h.b16 %v4072
    %v4747 = vunpack.c.l.b16 %v4073
    %v4748 = vunpack.c.h.b16 %v4073
    %v4749 = vunpack.c.l.b16 %v4074
    %v4750 = vunpack.c.h.b16 %v4074
    %v4751 = vunpack.c.l.b16 %v4075
    %v4752 = vunpack.c.h.b16 %v4075
    %v4753 = vunpack.c.l.b16 %v4076
    %v4754 = vunpack.c.h.b16 %v4076
    %v4755 = vunpack.c.l.b16 %v4077
    %v4756 = vunpack.c.h.b16 %v4077
    %v4757 = vunpack.c.l.b16 %v4078
    %v4758 = vunpack.c.h.b16 %v4078
    %v4759 = vunpack.c.l.b16 %v4079
    %v4760 = vunpack.c.h.b16 %v4079
    %v4761 = vunpack.c.l.b16 %v4080
    %v4762 = vunpack.c.h.b16 %v4080
    %v4763 = vunpack.c.l.b16 %v4081
    %v4764 = vunpack.c.h.b16 %v4081
    %v4765 = vunpack.c.l.b16 %v4082
    %v4766 = vunpack.c.h.b16 %v4082
    %v4767 = vunpack.c.l.b16 %v4083
    %v4768 = vunpack.c.h.b16 %v4083
    %v4769 = vunpack.c.l.b16 %v4084
    %v4770 = vunpack.c.h.b16 %v4084
    %v4771 = vunpack.c.l.b16 %v4085
    %v4772 = vunpack.c.h.b16 %v4085
    %v4773 = vunpack.c.l.b16 %v4086
    %v4774 = vunpack.c.h.b16 %v4086
    %v4775 = vunpack.c.l.b16 %v4087
    %v4776 = vunpack.c.h.b16 %v4087
    %v4777 = vunpack.c.l.b16 %v4088
    %v4778 = vunpack.c.h.b16 %v4088
    %v4779 = vunpack.c.l.b16 %v4089
    %v4780 = vunpack.c.h.b16 %v4089
    %v4781 = vunpack.c.l.b16 %v4090
    %v4782 = vunpack.c.h.b16 %v4090
    %v4783 = vunpack.c.l.b16 %v4091
    %v4784 = vunpack.c.h.b16 %v4091
    %v4785 = vunpack.c.l.b16 %v4092
    %v4786 = vunpack.c.h.b16 %v4092
    %v4787 = vunpack.c.l.b16 %v4093
    %v4788 = vunpack.c.h.b16 %v4093
    %v4789 = vunpack.c.l.b16 %v4094
    %v4790 = vunpack.c.h.b16 %v4094
    %v4791 = vunpack.c.l.b16 %v4095
    %v4792 = vunpack.c.h.b16 %v4095
    %v4793 = vunpack.c.l.b16 %v4096
    %v4794 = vunpack.c.h.b16 %v4096
    %v4795 = vunpack.c.l.b16 %v4097
    %v4796 = vunpack.c.h.b16 %v4097
    %v4797 = vunpack.c.l.b16 %v4098
    %v4798 = vunpack.c.h.b16 %v4098
    %v4799 = vunpack.c.l.b16 %v4099
    %v4800 = vunpack.c.h.b16 %v4099
    %v4801 = vunpack.c.l.b16 %v4100
    %v4802 = vunpack.c.h.b16 %v4100
    %v4803 = vunpack.c.l.b16 %v4101
    %v4804 = vunpack.c.h.b16 %v4101
    %v4805 = vunpack.c.l.b16 %v4102
    %v4806 = vunpack.c.h.b16 %v4102
    %v4807 = vunpack.c.l.b16 %v4103
    %v4808 = vunpack.c.h.b16 %v4103
    %v4809 = vunpack.c.l.b16 %v4104
    %v4810 = vunpack.c.h.b16 %v4104
    %v4811 = vunpack.c.l.b16 %v4105
    %v4812 = vunpack.c.h.b16 %v4105
    %v4813 = vunpack.c.l.b16 %v4106
    %v4814 = vunpack.c.h.b16 %v4106
    %v4815 = vunpack.c.l.b16 %v4107
    %v4816 = vunpack.c.h.b16 %v4107
    %v4817 = vunpack.c.l.b16 %v4108
    %v4818 = vunpack.c.h.b16 %v4108
    %v4819 = vunpack.c.l.b16 %v4109
    %v4820 = vunpack.c.h.b16 %v4109
    %v4821 = vunpack.c.l.b16 %v4110
    %v4822 = vunpack.c.h.b16 %v4110
    %v4823 = vunpack.c.l.b16 %v4111
    %v4824 = vunpack.c.h.b16 %v4111
    %v4825 = vunpack.c.l.b16 %v4112
    %v4826 = vunpack.c.h.b16 %v4112
    %v4827 = vunpack.c.l.b16 %v4113
    %v4828 = vunpack.c.h.b16 %v4113
    %v4829 = vunpack.c.l.b16 %v4114
    %v4830 = vunpack.c.h.b16 %v4114
    %v4831 = vunpack.c.l.b16 %v4115
    %v4832 = vunpack.c.h.b16 %v4115
    %v4833 = vunpack.c.l.b16 %v4116
    %v4834 = vunpack.c.h.b16 %v4116
    %v4835 = vunpack.c.l.b16 %v4117
    %v4836 = vunpack.c.h.b16 %v4117
    %v4837 = vunpack.c.l.b16 %v4118
    %v4838 = vunpack.c.h.b16 %v4118
    %v4839 = vunpack.c.l.b16 %v4119
    %v4840 = vunpack.c.h.b16 %v4119
    %v4841 = vunpack.c.l.b16 %v4120
    %v4842 = vunpack.c.h.b16 %v4120
    %v4843 = vunpack.c.l.b16 %v4121
    %v4844 = vunpack.c.h.b16 %v4121
    %v4845 = vunpack.c.l.b16 %v4122
    %v4846 = vunpack.c.h.b16 %v4122
    %v4847 = vunpack.c.l.b16 %v4123
    %v4848 = vunpack.c.h.b16 %v4123
    %v4849 = vunpack.c.l.b16 %v4124
    %v4850 = vunpack.c.h.b16 %v4124
    %v4851 = vunpack.c.l.b16 %v4125
    %v4852 = vunpack.c.h.b16 %v4125
    %v4853 = vunpack.c.l.b16 %v4126
    %v4854 = vunpack.c.h.b16 %v4126
    %v4855 = vunpack.c.l.b16 %v4127
    %v4856 = vunpack.c.h.b16 %v4127
    %v4857 = vunpack.c.l.b16 %v4128
    %v4858 = vunpack.c.h.b16 %v4128
    %v4859 = vunpack.c.l.b16 %v4129
    %v4860 = vunpack.c.h.b16 %v4129
    %v4861 = vunpack.c.l.b16 %v4130
    %v4862 = vunpack.c.h.b16 %v4130
    %v4863 = vunpack.c.l.b16 %v4131
    %v4864 = vunpack.c.h.b16 %v4131
    %v4865 = vunpack.c.l.b16 %v4132
    %v4866 = vunpack.c.h.b16 %v4132
    %v4867 = vunpack.c.l.b16 %v4133
    %v4868 = vunpack.c.h.b16 %v4133
    %v4869 = vunpack.c.l.b16 %v4134
    %v4870 = vunpack.c.h.b16 %v4134
    %v4871 = vunpack.c.l.b16 %v4135
    %v4872 = vunpack.c.h.b16 %v4135
    %v4873 = vunpack.c.l.b16 %v4136
    %v4874 = vunpack.c.h.b16 %v4136
    %v4875 = vunpack.c.l.b16 %v4137
    %v4876 = vunpack.c.h.b16 %v4137
    %v4877 = vunpack.c.l.b16 %v4138
    %v4878 = vunpack.c.h.b16 %v4138
    %v4879 = vunpack.c.l.b16 %v4139
    %v4880 = vunpack.c.h.b16 %v4139
    %v4881 = vunpack.c.l.b16 %v4140
    %v4882 = vunpack.c.h.b16 %v4140
    %v4883 = vunpack.c.l.b16 %v4141
    %v4884 = vunpack.c.h.b16 %v4141
    %v4885 = vunpack.c.l.b16 %v4142
    %v4886 = vunpack.c.h.b16 %v4142
    %v4887 = vunpack.c.l.b16 %v4143
    %v4888 = vunpack.c.h.b16 %v4143
    %v4889 = vunpack.c.l.b16 %v4144
    %v4890 = vunpack.c.h.b16 %v4144
    %v4891 = vunpack.c.l.b16 %v4145
    %v4892 = vunpack.c.h.b16 %v4145
    %v4893 = vunpack.c.l.b16 %v4146
    %v4894 = vunpack.c.h.b16 %v4146
    %v4895 = vunpack.c.l.b16 %v4147
    %v4896 = vunpack.c.h.b16 %v4147
    %v4897 = vunpack.c.l.b16 %v4148
    %v4898 = vunpack.c.h.b16 %v4148
    %v4899 = vunpack.c.l.b16 %v4149
    %v4900 = vunpack.c.h.b16 %v4149
    %v4901 = vunpack.c.l.b16 %v4150
    %v4902 = vunpack.c.h.b16 %v4150
    %v4903 = vunpack.c.l.b16 %v4151
    %v4904 = vunpack.c.h.b16 %v4151
    %v4905 = vunpack.c.l.b16 %v4152
    %v4906 = vunpack.c.h.b16 %v4152
    %v4907 = vunpack.c.l.b16 %v4153
    %v4908 = vunpack.c.h.b16 %v4153
    %v4909 = vunpack.c.l.b16 %v4154
    %v4910 = vunpack.c.h.b16 %v4154
    %v4911 = vunpack.c.l.b16 %v4155
    %v4912 = vunpack.c.h.b16 %v4155
    %v4913 = vunpack.c.l.b16 %v4156
    %v4914 = vunpack.c.h.b16 %v4156
    %v4915 = vunpack.c.l.b16 %v4157
    %v4916 = vunpack.c.h.b16 %v4157
    %v4917 = vunpack.c.l.b16 %v4158
    %v4918 = vunpack.c.h.b16 %v4158
    %v4919 = vunpack.c.l.b16 %v4159
    %v4920 = vunpack.c.h.b16 %v4159
    %v4921 = vunpack.c.l.b16 %v4160
    %v4922 = vunpack.c.h.b16 %v4160
    %v4923 = vunpack.c.l.b16 %v4161
    %v4924 = vunpack.c.h.b16 %v4161
    %v4925 = vunpack.c.l.b16 %v4162
    %v4926 = vunpack.c.h.b16 %v4162
    %v4927 = vunpack.c.l.b16 %v4163
    %v4928 = vunpack.c.h.b16 %v4163
    %v4929 = vunpack.c.l.b16 %v4164
    %v4930 = vunpack.c.h.b16 %v4164
    %v4931 = vunpack.c.l.b16 %v4165
    %v4932 = vunpack.c.h.b16 %v4165
    %v4933 = vunpack.c.l.b16 %v4166
    %v4934 = vunpack.c.h.b16 %v4166
    %v4935 = vunpack.c.l.b16 %v4167
    %v4936 = vunpack.c.h.b16 %v4167
    %v4937 = vunpack.c.l.b16 %v4168
    %v4938 = vunpack.c.h.b16 %v4168
    %v4939 = vunpack.c.l.b16 %v4169
    %v4940 = vunpack.c.h.b16 %v4169
    %v4941 = vunpack.c.l.b16 %v4170
    %v4942 = vunpack.c.h.b16 %v4170
    %v4943 = vunpack.c.l.b16 %v4171
    %v4944 = vunpack.c.h.b16 %v4171
    %v4945 = vunpack.c.l.b16 %v4172
    %v4946 = vunpack.c.h.b16 %v4172
    %v4947 = vunpack.c.l.b16 %v4173
    %v4948 = vunpack.c.h.b16 %v4173
    %v4949 = vunpack.c.l.b16 %v4174
    %v4950 = vunpack.c.h.b16 %v4174
    %v4951 = vunpack.c.l.b16 %v4175
    %v4952 = vunpack.c.h.b16 %v4175
    %v4953 = vunpack.c.l.b16 %v4176
    %v4954 = vunpack.c.h.b16 %v4176
    %v4955 = vunpack.c.l.b16 %v4177
    %v4956 = vunpack.c.h.b16 %v4177
    %v4957 = vunpack.c.l.b16 %v4178
    %v4958 = vunpack.c.h.b16 %v4178
    %v4959 = vunpack.c.l.b16 %v4179
    %v4960 = vunpack.c.h.b16 %v4179
    %v4961 = vunpack.c.l.b16 %v4180
    %v4962 = vunpack.c.h.b16 %v4180
    %v4963 = vunpack.c.l.b16 %v4181
    %v4964 = vunpack.c.h.b16 %v4181
    %v4965 = vunpack.c.l.b16 %v4182
    %v4966 = vunpack.c.h.b16 %v4182
    %v4967 = vunpack.c.l.b16 %v4183
    %v4968 = vunpack.c.h.b16 %v4183
    %v4969 = vunpack.c.l.b16 %v4184
    %v4970 = vunpack.c.h.b16 %v4184
    %v4971 = vunpack.c.l.b16 %v4185
    %v4972 = vunpack.c.h.b16 %v4185
    %v4973 = vunpack.c.l.b16 %v4186
    %v4974 = vunpack.c.h.b16 %v4186
    %v4975 = vunpack.c.l.b16 %v4187
    %v4976 = vunpack.c.h.b16 %v4187
    %v4977 = vunpack.c.l.b16 %v4188
    %v4978 = vunpack.c.h.b16 %v4188
    %v4979 = vpack.c.b16 %v4471, %v4467
    %v4980 = vpack.c.b16 %v4472, %v4468
    %v4981 = vpack.c.b16 %v4473, %v4469
    %v4982 = vpack.c.b16 %v4474, %v4470
    %v4983 = vpack.c.b16 %v4479, %v4475
    %v4984 = vpack.c.b16 %v4480, %v4476
    %v4985 = vpack.c.b16 %v4481, %v4477
    %v4986 = vpack.c.b16 %v4482, %v4478
    %v4987 = vpack.c.b16 %v4487, %v4483
    %v4988 = vpack.c.b16 %v4488, %v4484
    %v4989 = vpack.c.b16 %v4489, %v4485
    %v4990 = vpack.c.b16 %v4490, %v4486
    %v4991 = vpack.c.b16 %v4495, %v4491
    %v4992 = vpack.c.b16 %v4496, %v4492
    %v4993 = vpack.c.b16 %v4497, %v4493
    %v4994 = vpack.c.b16 %v4498, %v4494
    %v4995 = vpack.c.b16 %v4503, %v4499
    %v4996 = vpack.c.b16 %v4504, %v4500
    %v4997 = vpack.c.b16 %v4505, %v4501
    %v4998 = vpack.c.b16 %v4506, %v4502
    %v4999 = vpack.c.b16 %v4511, %v4507
    %v5000 = vpack.c.b16 %v4512, %v4508
    %v5001 = vpack.c.b16 %v4513, %v4509
    %v5002 = vpack.c.b16 %v4514, %v4510
    %v5003 = vpack.c.b16 %v4519, %v4515
    %v5004 = vpack.c.b16 %v4520, %v4516
    %v5005 = vpack.c.b16 %v4521, %v4517
    %v5006 = vpack.c.b16 %v4522, %v4518
    %v5007 = vpack.c.b16 %v4527, %v4523
    %v5008 = vpack.c.b16 %v4528, %v4524
    %v5009 = vpack.c.b16 %v4529, %v4525
    %v5010 = vpack.c.b16 %v4530, %v4526
    %v5011 = vpack.c.b16 %v4535, %v4531
    %v5012 = vpack.c.b16 %v4536, %v4532
    %v5013 = vpack.c.b16 %v4537, %v4533
    %v5014 = vpack.c.b16 %v4538, %v4534
    %v5015 = vpack.c.b16 %v4543, %v4539
    %v5016 = vpack.c.b16 %v4544, %v4540
    %v5017 = vpack.c.b16 %v4545, %v4541
    %v5018 = vpack.c.b16 %v4546, %v4542
    %v5019 = vpack.c.b16 %v4551, %v4547
    %v5020 = vpack.c.b16 %v4552, %v4548
    %v5021 = vpack.c.b16 %v4553, %v4549
    %v5022 = vpack.c.b16 %v4554, %v4550
    %v5023 = vpack.c.b16 %v4559, %v4555
    %v5024 = vpack.c.b16 %v4560, %v4556
    %v5025 = vpack.c.b16 %v4561, %v4557
    %v5026 = vpack.c.b16 %v4562, %v4558
    %v5027 = vpack.c.b16 %v4567, %v4563
    %v5028 = vpack.c.b16 %v4568, %v4564
    %v5029 = vpack.c.b16 %v4569, %v4565
    %v5030 = vpack.c.b16 %v4570, %v4566
    %v5031 = vpack.c.b16 %v4575, %v4571
    %v5032 = vpack.c.b16 %v4576, %v4572
    %v5033 = vpack.c.b16 %v4577, %v4573
    %v5034 = vpack.c.b16 %v4578, %v4574
    %v5035 = vpack.c.b16 %v4583, %v4579
    %v5036 = vpack.c.b16 %v4584, %v4580
    %v5037 = vpack.c.b16 %v4585, %v4581
    %v5038 = vpack.c.b16 %v4586, %v4582
    %v5039 = vpack.c.b16 %v4591, %v4587
    %v5040 = vpack.c.b16 %v4592, %v4588
    %v5041 = vpack.c.b16 %v4593, %v4589
    %v5042 = vpack.c.b16 %v4594, %v4590
    %v5043 = vpack.c.b16 %v4599, %v4595
    %v5044 = vpack.c.b16 %v4600, %v4596
    %v5045 = vpack.c.b16 %v4601, %v4597
    %v5046 = vpack.c.b16 %v4602, %v4598
    %v5047 = vpack.c.b16 %v4607, %v4603
    %v5048 = vpack.c.b16 %v4608, %v4604
    %v5049 = vpack.c.b16 %v4609, %v4605
    %v5050 = vpack.c.b16 %v4610, %v4606
    %v5051 = vpack.c.b16 %v4615, %v4611
    %v5052 = vpack.c.b16 %v4616, %v4612
    %v5053 = vpack.c.b16 %v4617, %v4613
    %v5054 = vpack.c.b16 %v4618, %v4614
    %v5055 = vpack.c.b16 %v4623, %v4619
    %v5056 = vpack.c.b16 %v4624, %v4620
    %v5057 = vpack.c.b16 %v4625, %v4621
    %v5058 = vpack.c.b16 %v4626, %v4622
    %v5059 = vpack.c.b16 %v4631, %v4627
    %v5060 = vpack.c.b16 %v4632, %v4628
    %v5061 = vpack.c.b16 %v4633, %v4629
    %v5062 = vpack.c.b16 %v4634, %v4630
    %v5063 = vpack.c.b16 %v4639, %v4635
    %v5064 = vpack.c.b16 %v4640, %v4636
    %v5065 = vpack.c.b16 %v4641, %v4637
    %v5066 = vpack.c.b16 %v4642, %v4638
    %v5067 = vpack.c.b16 %v4647, %v4643
    %v5068 = vpack.c.b16 %v4648, %v4644
    %v5069 = vpack.c.b16 %v4649, %v4645
    %v5070 = vpack.c.b16 %v4650, %v4646
    %v5071 = vpack.c.b16 %v4655, %v4651
    %v5072 = vpack.c.b16 %v4656, %v4652
    %v5073 = vpack.c.b16 %v4657, %v4653
    %v5074 = vpack.c.b16 %v4658, %v4654
    %v5075 = vpack.c.b16 %v4663, %v4659
    %v5076 = vpack.c.b16 %v4664, %v4660
    %v5077 = vpack.c.b16 %v4665, %v4661
    %v5078 = vpack.c.b16 %v4666, %v4662
    %v5079 = vpack.c.b16 %v4671, %v4667
    %v5080 = vpack.c.b16 %v4672, %v4668
    %v5081 = vpack.c.b16 %v4673, %v4669
    %v5082 = vpack.c.b16 %v4674, %v4670
    %v5083 = vpack.c.b16 %v4679, %v4675
    %v5084 = vpack.c.b16 %v4680, %v4676
    %v5085 = vpack.c.b16 %v4681, %v4677
    %v5086 = vpack.c.b16 %v4682, %v4678
    %v5087 = vpack.c.b16 %v4687, %v4683
    %v5088 = vpack.c.b16 %v4688, %v4684
    %v5089 = vpack.c.b16 %v4689, %v4685
    %v5090 = vpack.c.b16 %v4690, %v4686
    %v5091 = vpack.c.b16 %v4695, %v4691
    %v5092 = vpack.c.b16 %v4696, %v4692
    %v5093 = vpack.c.b16 %v4697, %v4693
    %v5094 = vpack.c.b16 %v4698, %v4694
    %v5095 = vpack.c.b16 %v4703, %v4699
    %v5096 = vpack.c.b16 %v4704, %v4700
    %v5097 = vpack.c.b16 %v4705, %v4701
    %v5098 = vpack.c.b16 %v4706, %v4702
    %v5099 = vpack.c.b16 %v4711, %v4707
    %v5100 = vpack.c.b16 %v4712, %v4708
    %v5101 = vpack.c.b16 %v4713, %v4709
    %v5102 = vpack.c.b16 %v4714, %v4710
    %v5103 = vpack.c.b16 %v4719, %v4715
    %v5104 = vpack.c.b16 %v4720, %v4716
    %v5105 = vpack.c.b16 %v4721, %v4717
    %v5106 = vpack.c.b16 %v4722, %v4718
    %v5107 = vpack.c.b16 %v4727, %v4723
    %v5108 = vpack.c.b16 %v4728, %v4724
    %v5109 = vpack.c.b16 %v4729, %v4725
    %v5110 = vpack.c.b16 %v4730, %v4726
    %v5111 = vpack.c.b16 %v4735, %v4731
    %v5112 = vpack.c.b16 %v4736, %v4732
    %v5113 = vpack.c.b16 %v4737, %v4733
    %v5114 = vpack.c.b16 %v4738, %v4734
    %v5115 = vpack.c.b16 %v4743, %v4739
    %v5116 = vpack.c.b16 %v4744, %v4740
    %v5117 = vpack.c.b16 %v4745, %v4741
    %v5118 = vpack.c.b16 %v4746, %v4742
    %v5119 = vpack.c.b16 %v4751, %v4747
    %v5120 = vpack.c.b16 %v4752, %v4748
    %v5121 = vpack.c.b16 %v4753, %v4749
    %v5122 = vpack.c.b16 %v4754, %v4750
    %v5123 = vpack.c.b16 %v4759, %v4755
    %v5124 = vpack.c.b16 %v4760, %v4756
    %v5125 = vpack.c.b16 %v4761, %v4757
    %v5126 = vpack.c.b16 %v4762, %v4758
    %v5127 = vpack.c.b16 %v4767, %v4763
    %v5128 = vpack.c.b16 %v4768, %v4764
    %v5129 = vpack.c.b16 %v4769, %v4765
    %v5130 = vpack.c.b16 %v4770, %v4766
    %v5131 = vpack.c.b16 %v4775, %v4771
    %v5132 = vpack.c.b16 %v4776, %v4772
    %v5133 = vpack.c.b16 %v4777, %v4773
    %v5134 = vpack.c.b16 %v4778, %v4774
    %v5135 = vpack.c.b16 %v4783, %v4779
    %v5136 = vpack.c.b16 %v4784, %v4780
    %v5137 = vpack.c.b16 %v4785, %v4781
    %v5138 = vpack.c.b16 %v4786, %v4782
    %v5139 = vpack.c.b16 %v4791, %v4787
    %v5140 = vpack.c.b16 %v4792, %v4788
    %v5141 = vpack.c.b16 %v4793, %v4789
    %v5142 = vpack.c.b16 %v4794, %v4790
    %v5143 = vpack.c.b16 %v4799, %v4795
    %v5144 = vpack.c.b16 %v4800, %v4796
    %v5145 = vpack.c.b16 %v4801, %v4797
    %v5146 = vpack.c.b16 %v4802, %v4798
    %v5147 = vpack.c.b16 %v4807, %v4803
    %v5148 = vpack.c.b16 %v4808, %v4804
    %v5149 = vpack.c.b16 %v4809, %v4805
    %v5150 = vpack.c.b16 %v4810, %v4806
    %v5151 = vpack.c.b16 %v4815, %v4811
    %v5152 = vpack.c.b16 %v4816, %v4812
    %v5153 = vpack.c.b16 %v4817, %v4813
    %v5154 = vpack.c.b16 %v4818, %v4814
    %v5155 = vpack.c.b16 %v4823, %v4819
    %v5156 = vpack.c.b16 %v4824, %v4820
    %v5157 = vpack.c.b16 %v4825, %v4821
    %v5158 = vpack.c.b16 %v4826, %v4822
    %v5159 = vpack.c.b16 %v4831, %v4827
    %v5160 = vpack.c.b16 %v4832, %v4828
    %v5161 = vpack.c.b16 %v4833, %v4829
    %v5162 = vpack.c.b16 %v4834, %v4830
    %v5163 = vpack.c.b16 %v4839, %v4835
    %v5164 = vpack.c.b16 %v4840, %v4836
    %v5165 = vpack.c.b16 %v4841, %v4837
    %v5166 = vpack.c.b16 %v4842, %v4838
    %v5167 = vpack.c.b16 %v4847, %v4843
    %v5168 = vpack.c.b16 %v4848, %v4844
    %v5169 = vpack.c.b16 %v4849, %v4845
    %v5170 = vpack.c.b16 %v4850, %v4846
    %v5171 = vpack.c.b16 %v4855, %v4851
    %v5172 = vpack.c.b16 %v4856, %v4852
    %v5173 = vpack.c.b16 %v4857, %v4853
    %v5174 = vpack.c.b16 %v4858, %v4854
    %v5175 = vpack.c.b16 %v4863, %v4859
    %v5176 = vpack.c.b16 %v4864, %v4860
    %v5177 = vpack.c.b16 %v4865, %v4861
    %v5178 = vpack.c.b16 %v4866, %v4862
    %v5179 = vpack.c.b16 %v4871, %v4867
    %v5180 = vpack.c.b16 %v4872, %v4868
    %v5181 = vpack.c.b16 %v4873, %v4869
    %v5182 = vpack.c.b16 %v4874, %v4870
    %v5183 = vpack.c.b16 %v4879, %v4875
    %v5184 = vpack.c.b16 %v4880, %v4876
    %v5185 = vpack.c.b16 %v4881, %v4877
    %v5186 = vpack.c.b16 %v4882, %v4878
    %v5187 = vpack.c.b16 %v4887, %v4883
    %v5188 = vpack.c.b16 %v4888, %v4884
    %v5189 = vpack.c.b16 %v4889, %v4885
    %v5190 = vpack.c.b16 %v4890, %v4886
    %v5191 = vpack.c.b16 %v4895, %v4891
    %v5192 = vpack.c.b16 %v4896, %v4892
    %v5193 = vpack.c.b16 %v4897, %v4893
    %v5194 = vpack.c.b16 %v4898, %v4894
    %v5195 = vpack.c.b16 %v4903, %v4899
    %v5196 = vpack.c.b16 %v4904, %v4900
    %v5197 = vpack.c.b16 %v4905, %v4901
    %v5198 = vpack.c.b16 %v4906, %v4902
    %v5199 = vpack.c.b16 %v4911, %v4907
    %v5200 = vpack.c.b16 %v4912, %v4908
    %v5201 = vpack.c.b16 %v4913, %v4909
    %v5202 = vpack.c.b16 %v4914, %v4910
    %v5203 = vpack.c.b16 %v4919, %v4915
    %v5204 = vpack.c.b16 %v4920, %v4916
    %v5205 = vpack.c.b16 %v4921, %v4917
    %v5206 = vpack.c.b16 %v4922, %v4918
    %v5207 = vpack.c.b16 %v4927, %v4923
    %v5208 = vpack.c.b16 %v4928, %v4924
    %v5209 = vpack.c.b16 %v4929, %v4925
    %v5210 = vpack.c.b16 %v4930, %v4926
    %v5211 = vpack.c.b16 %v4935, %v4931
    %v5212 = vpack.c.b16 %v4936, %v4932
    %v5213 = vpack.c.b16 %v4937, %v4933
    %v5214 = vpack.c.b16 %v4938, %v4934
    %v5215 = vpack.c.b16 %v4943, %v4939
    %v5216 = vpack.c.b16 %v4944, %v4940
    %v5217 = vpack.c.b16 %v4945, %v4941
    %v5218 = vpack.c.b16 %v4946, %v4942
    %v5219 = vpack.c.b16 %v4951, %v4947
    %v5220 = vpack.c.b16 %v4952, %v4948
    %v5221 = vpack.c.b16 %v4953, %v4949
    %v5222 = vpack.c.b16 %v4954, %v4950
    %v5223 = vpack.c.b16 %v4959, %v4955
    %v5224 = vpack.c.b16 %v4960, %v4956
    %v5225 = vpack.c.b16 %v4961, %v4957
    %v5226 = vpack.c.b16 %v4962, %v4958
    %v5227 = vpack.c.b16 %v4967, %v4963
    %v5228 = vpack.c.b16 %v4968, %v4964
    %v5229 = vpack.c.b16 %v4969, %v4965
    %v5230 = vpack.c.b16 %v4970, %v4966
    %v5231 = vpack.c.b16 %v4975, %v4971
    %v5232 = vpack.c.b16 %v4976, %v4972
    %v5233 = vpack.c.b16 %v4977, %v4973
    %v5234 = vpack.c.b16 %v4978, %v4974
    %5491 = vmatprep.subr.bf16.mxu0 %v5008
    %5492 = vmatpush1.bf16.msra.mxu0 %v5007
    %5493 = vmatprep.subr.bf16.mxu0 %v5004
    %5494 = vmatpush1.bf16.msra.mxu0 %v5003
    %5495 = vmatprep.subr.bf16.mxu0 %v5000
    %5496 = vmatpush1.bf16.msra.mxu0 %v4999
    %5497 = vmatprep.subr.bf16.mxu0 %v4996
    %5498 = vmatpush1.bf16.msra.mxu0 %v4995
    %5499 = vmatprep.subr.bf16.mxu0 %v4992
    %5500 = vmatpush1.bf16.msra.mxu0 %v4991
    %5501 = vmatprep.subr.bf16.mxu0 %v4988
    %5502 = vmatpush1.bf16.msra.mxu0 %v4987
    %5503 = vmatprep.subr.bf16.mxu0 %v4984
    %5504 = vmatpush1.bf16.msra.mxu0 %v4983
    %5505 = vmatprep.subr.bf16.mxu0 %v4980
    %5506 = vmatpush1.bf16.msra.mxu0 %v4979
    %5507 = vmatprep.subr.bf16.mxu0 %v5040
    %5508 = vmatpush2.bf16.msra.mxu0 %v5039
    %5509 = vmatprep.subr.bf16.mxu0 %v5036
    %5510 = vmatpush2.bf16.msra.mxu0 %v5035
    %5511 = vmatprep.subr.bf16.mxu0 %v5032
    %5512 = vmatpush2.bf16.msra.mxu0 %v5031
    %5513 = vmatprep.subr.bf16.mxu0 %v5028
    %5514 = vmatpush2.bf16.msra.mxu0 %v5027
    %5515 = vmatprep.subr.bf16.mxu0 %v5024
    %5516 = vmatpush2.bf16.msra.mxu0 %v5023
    %5517 = vmatprep.subr.bf16.mxu0 %v5020
    %5518 = vmatpush2.bf16.msra.mxu0 %v5019
    %5519 = vmatprep.subr.bf16.mxu0 %v5016
    %5520 = vmatpush2.bf16.msra.mxu0 %v5015
    %5521 = vmatprep.subr.bf16.mxu0 %v5012
    %5522 = vmatpush2.bf16.msra.mxu0 %v5011
    %5523 = vmatprep.mubr.bf16.mxu0 %v3926
    %5524 = vmatmul.mubr.bf16.gmra.mxu0 %v3925
    %v5525 = vpop.f32.mrf.mxu0
    %v5526 = vadd.f32 %v4194, %v5525
    %v5527 = vpop.f32.mrf.mxu0
    %v5528 = vadd.f32 %v4198, %v5527
    %v5529 = vpop.f32.mrf.mxu0
    %v5530 = vpop.f32.mrf.mxu0
    %5531 = vdwg.mxu0
    %5532 = vmatprep.subr.bf16.mxu0 %v5072
    %5533 = vmatpush1.bf16.msra.mxu0 %v5071
    %5534 = vmatprep.subr.bf16.mxu0 %v5068
    %5535 = vmatpush1.bf16.msra.mxu0 %v5067
    %5536 = vmatprep.subr.bf16.mxu0 %v5064
    %5537 = vmatpush1.bf16.msra.mxu0 %v5063
    %5538 = vmatprep.subr.bf16.mxu0 %v5060
    %5539 = vmatpush1.bf16.msra.mxu0 %v5059
    %5540 = vmatprep.subr.bf16.mxu0 %v5056
    %5541 = vmatpush1.bf16.msra.mxu0 %v5055
    %5542 = vmatprep.subr.bf16.mxu0 %v5052
    %5543 = vmatpush1.bf16.msra.mxu0 %v5051
    %5544 = vmatprep.subr.bf16.mxu0 %v5048
    %5545 = vmatpush1.bf16.msra.mxu0 %v5047
    %5546 = vmatprep.subr.bf16.mxu0 %v5044
    %5547 = vmatpush1.bf16.msra.mxu0 %v5043
    %5548 = vmatprep.subr.bf16.mxu0 %v5104
    %5549 = vmatpush2.bf16.msra.mxu0 %v5103
    %5550 = vmatprep.subr.bf16.mxu0 %v5100
    %5551 = vmatpush2.bf16.msra.mxu0 %v5099
    %5552 = vmatprep.subr.bf16.mxu0 %v5096
    %5553 = vmatpush2.bf16.msra.mxu0 %v5095
    %5554 = vmatprep.subr.bf16.mxu0 %v5092
    %5555 = vmatpush2.bf16.msra.mxu0 %v5091
    %5556 = vmatprep.subr.bf16.mxu0 %v5088
    %5557 = vmatpush2.bf16.msra.mxu0 %v5087
    %5558 = vmatprep.subr.bf16.mxu0 %v5084
    %5559 = vmatpush2.bf16.msra.mxu0 %v5083
    %5560 = vmatprep.subr.bf16.mxu0 %v5080
    %5561 = vmatpush2.bf16.msra.mxu0 %v5079
    %5562 = vmatprep.subr.bf16.mxu0 %v5076
    %5563 = vmatpush2.bf16.msra.mxu0 %v5075
    %5564 = vmatprep.mubr.bf16.mxu0 %v3928
    %5565 = vmatmul.mubr.bf16.gmra.mxu0 %v3927
    %v5566 = vpop.f32.mrf.mxu0
    %v5567 = vadd.f32 %v5526, %v5566
    %v5568 = vpop.f32.mrf.mxu0
    %v5569 = vadd.f32 %v5528, %v5568
    %v5570 = vpop.f32.mrf.mxu0
    %v5571 = vpop.f32.mrf.mxu0
    %5572 = vdwg.mxu0
    %5573 = vmatprep.subr.bf16.mxu0 %v5136
    %5574 = vmatpush1.bf16.msra.mxu0 %v5135
    %5575 = vmatprep.subr.bf16.mxu0 %v5132
    %5576 = vmatpush1.bf16.msra.mxu0 %v5131
    %5577 = vmatprep.subr.bf16.mxu0 %v5128
    %5578 = vmatpush1.bf16.msra.mxu0 %v5127
    %5579 = vmatprep.subr.bf16.mxu0 %v5124
    %5580 = vmatpush1.bf16.msra.mxu0 %v5123
    %5581 = vmatprep.subr.bf16.mxu0 %v5120
    %5582 = vmatpush1.bf16.msra.mxu0 %v5119
    %5583 = vmatprep.subr.bf16.mxu0 %v5116
    %5584 = vmatpush1.bf16.msra.mxu0 %v5115
    %5585 = vmatprep.subr.bf16.mxu0 %v5112
    %5586 = vmatpush1.bf16.msra.mxu0 %v5111
    %5587 = vmatprep.subr.bf16.mxu0 %v5108
    %5588 = vmatpush1.bf16.msra.mxu0 %v5107
    %5589 = vmatprep.subr.bf16.mxu0 %v5168
    %5590 = vmatpush2.bf16.msra.mxu0 %v5167
    %5591 = vmatprep.subr.bf16.mxu0 %v5164
    %5592 = vmatpush2.bf16.msra.mxu0 %v5163
    %5593 = vmatprep.subr.bf16.mxu0 %v5160
    %5594 = vmatpush2.bf16.msra.mxu0 %v5159
    %5595 = vmatprep.subr.bf16.mxu0 %v5156
    %5596 = vmatpush2.bf16.msra.mxu0 %v5155
    %5597 = vmatprep.subr.bf16.mxu0 %v5152
    %5598 = vmatpush2.bf16.msra.mxu0 %v5151
    %5599 = vmatprep.subr.bf16.mxu0 %v5148
    %5600 = vmatpush2.bf16.msra.mxu0 %v5147
    %5601 = vmatprep.subr.bf16.mxu0 %v5144
    %5602 = vmatpush2.bf16.msra.mxu0 %v5143
    %5603 = vmatprep.subr.bf16.mxu0 %v5140
    %5604 = vmatpush2.bf16.msra.mxu0 %v5139
    %5605 = vmatprep.mubr.bf16.mxu0 %v3930
    %5606 = vmatmul.mubr.bf16.gmra.mxu0 %v3929
    %v5607 = vpop.f32.mrf.mxu0
    %v5608 = vadd.f32 %v5567, %v5607
    %v5609 = vpop.f32.mrf.mxu0
    %v5610 = vadd.f32 %v5569, %v5609
    %v5611 = vpop.f32.mrf.mxu0
    %v5612 = vpop.f32.mrf.mxu0
    %5613 = vdwg.mxu0
    %5614 = vmatprep.subr.bf16.mxu0 %v5200
    %5615 = vmatpush1.bf16.msra.mxu0 %v5199
    %5616 = vmatprep.subr.bf16.mxu0 %v5196
    %5617 = vmatpush1.bf16.msra.mxu0 %v5195
    %5618 = vmatprep.subr.bf16.mxu0 %v5192
    %5619 = vmatpush1.bf16.msra.mxu0 %v5191
    %5620 = vmatprep.subr.bf16.mxu0 %v5188
    %5621 = vmatpush1.bf16.msra.mxu0 %v5187
    %5622 = vmatprep.subr.bf16.mxu0 %v5184
    %5623 = vmatpush1.bf16.msra.mxu0 %v5183
    %5624 = vmatprep.subr.bf16.mxu0 %v5180
    %5625 = vmatpush1.bf16.msra.mxu0 %v5179
    %5626 = vmatprep.subr.bf16.mxu0 %v5176
    %5627 = vmatpush1.bf16.msra.mxu0 %v5175
    %5628 = vmatprep.subr.bf16.mxu0 %v5172
    %5629 = vmatpush1.bf16.msra.mxu0 %v5171
    %5630 = vmatprep.subr.bf16.mxu0 %v5232
    %5631 = vmatpush2.bf16.msra.mxu0 %v5231
    %5632 = vmatprep.subr.bf16.mxu0 %v5228
    %5633 = vmatpush2.bf16.msra.mxu0 %v5227
    %5634 = vmatprep.subr.bf16.mxu0 %v5224
    %5635 = vmatpush2.bf16.msra.mxu0 %v5223
    %5636 = vmatprep.subr.bf16.mxu0 %v5220
    %5637 = vmatpush2.bf16.msra.mxu0 %v5219
    %5638 = vmatprep.subr.bf16.mxu0 %v5216
    %5639 = vmatpush2.bf16.msra.mxu0 %v5215
    %5640 = vmatprep.subr.bf16.mxu0 %v5212
    %5641 = vmatpush2.bf16.msra.mxu0 %v5211
    %5642 = vmatprep.subr.bf16.mxu0 %v5208
    %5643 = vmatpush2.bf16.msra.mxu0 %v5207
    %5644 = vmatprep.subr.bf16.mxu0 %v5204
    %5645 = vmatpush2.bf16.msra.mxu0 %v5203
    %5646 = vmatprep.mubr.bf16.mxu0 %v3932
    %5647 = vmatmul.mubr.bf16.gmra.mxu0 %v3931
    %v5648 = vpop.f32.mrf.mxu0
    %v5649 = vadd.f32 %v5608, %v5648
    %v5650 = vpop.f32.mrf.mxu0
    %v5651 = vadd.f32 %v5610, %v5650
    %v5652 = vpop.f32.mrf.mxu0
    %v5653 = vpop.f32.mrf.mxu0
    %5654 = vdwg.mxu0
    %5655 = vmatprep.subr.bf16.mxu0 %v5010
    %5656 = vmatpush1.bf16.msra.mxu0 %v5009
    %5657 = vmatprep.subr.bf16.mxu0 %v5006
    %5658 = vmatpush1.bf16.msra.mxu0 %v5005
    %5659 = vmatprep.subr.bf16.mxu0 %v5002
    %5660 = vmatpush1.bf16.msra.mxu0 %v5001
    %5661 = vmatprep.subr.bf16.mxu0 %v4998
    %5662 = vmatpush1.bf16.msra.mxu0 %v4997
    %5663 = vmatprep.subr.bf16.mxu0 %v4994
    %5664 = vmatpush1.bf16.msra.mxu0 %v4993
    %5665 = vmatprep.subr.bf16.mxu0 %v4990
    %5666 = vmatpush1.bf16.msra.mxu0 %v4989
    %5667 = vmatprep.subr.bf16.mxu0 %v4986
    %5668 = vmatpush1.bf16.msra.mxu0 %v4985
    %5669 = vmatprep.subr.bf16.mxu0 %v4982
    %5670 = vmatpush1.bf16.msra.mxu0 %v4981
    %5671 = vmatprep.subr.bf16.mxu0 %v5042
    %5672 = vmatpush2.bf16.msra.mxu0 %v5041
    %5673 = vmatprep.subr.bf16.mxu0 %v5038
    %5674 = vmatpush2.bf16.msra.mxu0 %v5037
    %5675 = vmatprep.subr.bf16.mxu0 %v5034
    %5676 = vmatpush2.bf16.msra.mxu0 %v5033
    %5677 = vmatprep.subr.bf16.mxu0 %v5030
    %5678 = vmatpush2.bf16.msra.mxu0 %v5029
    %5679 = vmatprep.subr.bf16.mxu0 %v5026
    %5680 = vmatpush2.bf16.msra.mxu0 %v5025
    %5681 = vmatprep.subr.bf16.mxu0 %v5022
    %5682 = vmatpush2.bf16.msra.mxu0 %v5021
    %5683 = vmatprep.subr.bf16.mxu0 %v5018
    %5684 = vmatpush2.bf16.msra.mxu0 %v5017
    %5685 = vmatprep.subr.bf16.mxu0 %v5014
    %5686 = vmatpush2.bf16.msra.mxu0 %v5013
    %5687 = vmatprep.mubr.bf16.mxu0 %v3926
    %5688 = vmatmul.mubr.bf16.gmra.mxu0 %v3925
    %v5689 = vpop.f32.mrf.mxu0
    %v5690 = vadd.f32 %v4202, %v5689
    %v5691 = vpop.f32.mrf.mxu0
    %v5692 = vadd.f32 %v4206, %v5691
    %v5693 = vpop.f32.mrf.mxu0
    %v5694 = vpop.f32.mrf.mxu0
    %5695 = vdwg.mxu0
    %5696 = vmatprep.subr.bf16.mxu0 %v5074
    %5697 = vmatpush1.bf16.msra.mxu0 %v5073
    %5698 = vmatprep.subr.bf16.mxu0 %v5070
    %5699 = vmatpush1.bf16.msra.mxu0 %v5069
    %5700 = vmatprep.subr.bf16.mxu0 %v5066
    %5701 = vmatpush1.bf16.msra.mxu0 %v5065
    %5702 = vmatprep.subr.bf16.mxu0 %v5062
    %5703 = vmatpush1.bf16.msra.mxu0 %v5061
    %5704 = vmatprep.subr.bf16.mxu0 %v5058
    %5705 = vmatpush1.bf16.msra.mxu0 %v5057
    %5706 = vmatprep.subr.bf16.mxu0 %v5054
    %5707 = vmatpush1.bf16.msra.mxu0 %v5053
    %5708 = vmatprep.subr.bf16.mxu0 %v5050
    %5709 = vmatpush1.bf16.msra.mxu0 %v5049
    %5710 = vmatprep.subr.bf16.mxu0 %v5046
    %5711 = vmatpush1.bf16.msra.mxu0 %v5045
    %5712 = vmatprep.subr.bf16.mxu0 %v5106
    %5713 = vmatpush2.bf16.msra.mxu0 %v5105
    %5714 = vmatprep.subr.bf16.mxu0 %v5102
    %5715 = vmatpush2.bf16.msra.mxu0 %v5101
    %5716 = vmatprep.subr.bf16.mxu0 %v5098
    %5717 = vmatpush2.bf16.msra.mxu0 %v5097
    %5718 = vmatprep.subr.bf16.mxu0 %v5094
    %5719 = vmatpush2.bf16.msra.mxu0 %v5093
    %5720 = vmatprep.subr.bf16.mxu0 %v5090
    %5721 = vmatpush2.bf16.msra.mxu0 %v5089
    %5722 = vmatprep.subr.bf16.mxu0 %v5086
    %5723 = vmatpush2.bf16.msra.mxu0 %v5085
    %5724 = vmatprep.subr.bf16.mxu0 %v5082
    %5725 = vmatpush2.bf16.msra.mxu0 %v5081
    %5726 = vmatprep.subr.bf16.mxu0 %v5078
    %5727 = vmatpush2.bf16.msra.mxu0 %v5077
    %5728 = vmatprep.mubr.bf16.mxu0 %v3928
    %5729 = vmatmul.mubr.bf16.gmra.mxu0 %v3927
    %v5730 = vpop.f32.mrf.mxu0
    %v5731 = vadd.f32 %v5690, %v5730
    %v5732 = vpop.f32.mrf.mxu0
    %v5733 = vadd.f32 %v5692, %v5732
    %v5734 = vpop.f32.mrf.mxu0
    %v5735 = vpop.f32.mrf.mxu0
    %5736 = vdwg.mxu0
    %5737 = vmatprep.subr.bf16.mxu0 %v5138
    %5738 = vmatpush1.bf16.msra.mxu0 %v5137
    %5739 = vmatprep.subr.bf16.mxu0 %v5134
    %5740 = vmatpush1.bf16.msra.mxu0 %v5133
    %5741 = vmatprep.subr.bf16.mxu0 %v5130
    %5742 = vmatpush1.bf16.msra.mxu0 %v5129
    %5743 = vmatprep.subr.bf16.mxu0 %v5126
    %5744 = vmatpush1.bf16.msra.mxu0 %v5125
    %5745 = vmatprep.subr.bf16.mxu0 %v5122
    %5746 = vmatpush1.bf16.msra.mxu0 %v5121
    %5747 = vmatprep.subr.bf16.mxu0 %v5118
    %5748 = vmatpush1.bf16.msra.mxu0 %v5117
    %5749 = vmatprep.subr.bf16.mxu0 %v5114
    %5750 = vmatpush1.bf16.msra.mxu0 %v5113
    %5751 = vmatprep.subr.bf16.mxu0 %v5110
    %5752 = vmatpush1.bf16.msra.mxu0 %v5109
    %5753 = vmatprep.subr.bf16.mxu0 %v5170
    %5754 = vmatpush2.bf16.msra.mxu0 %v5169
    %5755 = vmatprep.subr.bf16.mxu0 %v5166
    %5756 = vmatpush2.bf16.msra.mxu0 %v5165
    %5757 = vmatprep.subr.bf16.mxu0 %v5162
    %5758 = vmatpush2.bf16.msra.mxu0 %v5161
    %5759 = vmatprep.subr.bf16.mxu0 %v5158
    %5760 = vmatpush2.bf16.msra.mxu0 %v5157
    %5761 = vmatprep.subr.bf16.mxu0 %v5154
    %5762 = vmatpush2.bf16.msra.mxu0 %v5153
    %5763 = vmatprep.subr.bf16.mxu0 %v5150
    %5764 = vmatpush2.bf16.msra.mxu0 %v5149
    %5765 = vmatprep.subr.bf16.mxu0 %v5146
    %5766 = vmatpush2.bf16.msra.mxu0 %v5145
    %5767 = vmatprep.subr.bf16.mxu0 %v5142
    %5768 = vmatpush2.bf16.msra.mxu0 %v5141
    %5769 = vmatprep.mubr.bf16.mxu0 %v3930
    %5770 = vmatmul.mubr.bf16.gmra.mxu0 %v3929
    %v5771 = vpop.f32.mrf.mxu0
    %v5772 = vadd.f32 %v5731, %v5771
    %v5773 = vpop.f32.mrf.mxu0
    %v5774 = vadd.f32 %v5733, %v5773
    %v5775 = vpop.f32.mrf.mxu0
    %v5776 = vpop.f32.mrf.mxu0
    %5777 = vdwg.mxu0
    %5778 = vmatprep.subr.bf16.mxu0 %v5202
    %5779 = vmatpush1.bf16.msra.mxu0 %v5201
    %5780 = vmatprep.subr.bf16.mxu0 %v5198
    %5781 = vmatpush1.bf16.msra.mxu0 %v5197
    %5782 = vmatprep.subr.bf16.mxu0 %v5194
    %5783 = vmatpush1.bf16.msra.mxu0 %v5193
    %5784 = vmatprep.subr.bf16.mxu0 %v5190
    %5785 = vmatpush1.bf16.msra.mxu0 %v5189
    %5786 = vmatprep.subr.bf16.mxu0 %v5186
    %5787 = vmatpush1.bf16.msra.mxu0 %v5185
    %5788 = vmatprep.subr.bf16.mxu0 %v5182
    %5789 = vmatpush1.bf16.msra.mxu0 %v5181
    %5790 = vmatprep.subr.bf16.mxu0 %v5178
    %5791 = vmatpush1.bf16.msra.mxu0 %v5177
    %5792 = vmatprep.subr.bf16.mxu0 %v5174
    %5793 = vmatpush1.bf16.msra.mxu0 %v5173
    %5794 = vmatprep.subr.bf16.mxu0 %v5234
    %5795 = vmatpush2.bf16.msra.mxu0 %v5233
    %5796 = vmatprep.subr.bf16.mxu0 %v5230
    %5797 = vmatpush2.bf16.msra.mxu0 %v5229
    %5798 = vmatprep.subr.bf16.mxu0 %v5226
    %5799 = vmatpush2.bf16.msra.mxu0 %v5225
    %5800 = vmatprep.subr.bf16.mxu0 %v5222
    %5801 = vmatpush2.bf16.msra.mxu0 %v5221
    %5802 = vmatprep.subr.bf16.mxu0 %v5218
    %5803 = vmatpush2.bf16.msra.mxu0 %v5217
    %5804 = vmatprep.subr.bf16.mxu0 %v5214
    %5805 = vmatpush2.bf16.msra.mxu0 %v5213
    %5806 = vmatprep.subr.bf16.mxu0 %v5210
    %5807 = vmatpush2.bf16.msra.mxu0 %v5209
    %5808 = vmatprep.subr.bf16.mxu0 %v5206
    %5809 = vmatpush2.bf16.msra.mxu0 %v5205
    %5810 = vmatprep.mubr.bf16.mxu0 %v3932
    %5811 = vmatmul.mubr.bf16.gmra.mxu0 %v3931
    %v5812 = vpop.f32.mrf.mxu0
    %v5813 = vadd.f32 %v5772, %v5812
    %v5814 = vpop.f32.mrf.mxu0
    %v5815 = vadd.f32 %v5774, %v5814
    %v5816 = vpop.f32.mrf.mxu0
    %v5817 = vpop.f32.mrf.mxu0
    %5818 = vdwg.mxu0
    %v5819 = vmax.f32 %v5649, 0.0
    %v5820 = vmax.f32 %v5651, 0.0
    %v5821 = vmax.f32 %v5813, 0.0
    %v5822 = vmax.f32 %v5815, 0.0
    %v5823 = vpack.c.bf16 %v5819, %v5819
    %v5824 = vpack.c.bf16 %v5820, %v5820
    %v5825 = vpack.c.bf16 %v5821, %v5821
    %v5826 = vpack.c.bf16 %v5822, %v5822
    %v5827 = vld [vmem:[#allocation11] sm:$0xf]
    %v5828 = vld [vmem:[#allocation11 + $0x4] sm:$0xf]
    %v5829 = vld [vmem:[#allocation11 + $0x8] sm:$0xf]
    %v5830 = vld [vmem:[#allocation11 + $0xc] sm:$0xf]
    %v5831 = vld [vmem:[#allocation11 + $0x10] sm:$0xf]
    %v5832 = vld [vmem:[#allocation11 + $0x14] sm:$0xf]
    %v5833 = vld [vmem:[#allocation11 + $0x18] sm:$0xf]
    %v5834 = vld [vmem:[#allocation11 + $0x1c] sm:$0xf]
    %v5835 = vld [vmem:[#allocation11 + $0x20] sm:$0xf]
    %v5836 = vld [vmem:[#allocation11 + $0x24] sm:$0xf]
    %v5837 = vld [vmem:[#allocation11 + $0x28] sm:$0xf]
    %v5838 = vld [vmem:[#allocation11 + $0x2c] sm:$0xf]
    %v5839 = vld [vmem:[#allocation11 + $0x30] sm:$0xf]
    %v5840 = vld [vmem:[#allocation11 + $0x34] sm:$0xf]
    %v5841 = vld [vmem:[#allocation11 + $0x38] sm:$0xf]
    %v5842 = vld [vmem:[#allocation11 + $0x3c] sm:$0xf]
    %v5843 = vld [vmem:[#allocation11 + $0x40] sm:$0xf]
    %v5844 = vld [vmem:[#allocation11 + $0x44] sm:$0xf]
    %v5845 = vld [vmem:[#allocation11 + $0x48] sm:$0xf]
    %v5846 = vld [vmem:[#allocation11 + $0x4c] sm:$0xf]
    %v5847 = vld [vmem:[#allocation11 + $0x50] sm:$0xf]
    %v5848 = vld [vmem:[#allocation11 + $0x54] sm:$0xf]
    %v5849 = vld [vmem:[#allocation11 + $0x58] sm:$0xf]
    %v5850 = vld [vmem:[#allocation11 + $0x5c] sm:$0xf]
    %v5851 = vld [vmem:[#allocation11 + $0x60] sm:$0xf]
    %v5852 = vld [vmem:[#allocation11 + $0x64] sm:$0xf]
    %v5853 = vld [vmem:[#allocation11 + $0x68] sm:$0xf]
    %v5854 = vld [vmem:[#allocation11 + $0x6c] sm:$0xf]
    %v5855 = vld [vmem:[#allocation11 + $0x70] sm:$0xf]
    %v5856 = vld [vmem:[#allocation11 + $0x74] sm:$0xf]
    %v5857 = vld [vmem:[#allocation11 + $0x78] sm:$0xf]
    %v5858 = vld [vmem:[#allocation11 + $0x7c] sm:$0xf]
    %v5859 = vld [vmem:[#allocation11 + $0x80] sm:$0xf]
    %v5860 = vld [vmem:[#allocation11 + $0x84] sm:$0xf]
    %v5861 = vld [vmem:[#allocation11 + $0x88] sm:$0xf]
    %v5862 = vld [vmem:[#allocation11 + $0x8c] sm:$0xf]
    %v5863 = vld [vmem:[#allocation11 + $0x90] sm:$0xf]
    %v5864 = vld [vmem:[#allocation11 + $0x94] sm:$0xf]
    %v5865 = vld [vmem:[#allocation11 + $0x98] sm:$0xf]
    %v5866 = vld [vmem:[#allocation11 + $0x9c] sm:$0xf]
    %v5867 = vld [vmem:[#allocation11 + $0xa0] sm:$0xf]
    %v5868 = vld [vmem:[#allocation11 + $0xa4] sm:$0xf]
    %v5869 = vld [vmem:[#allocation11 + $0xa8] sm:$0xf]
    %v5870 = vld [vmem:[#allocation11 + $0xac] sm:$0xf]
    %v5871 = vld [vmem:[#allocation11 + $0xb0] sm:$0xf]
    %v5872 = vld [vmem:[#allocation11 + $0xb4] sm:$0xf]
    %v5873 = vld [vmem:[#allocation11 + $0xb8] sm:$0xf]
    %v5874 = vld [vmem:[#allocation11 + $0xbc] sm:$0xf]
    %v5875 = vld [vmem:[#allocation11 + $0xc0] sm:$0xf]
    %v5876 = vld [vmem:[#allocation11 + $0xc4] sm:$0xf]
    %v5877 = vld [vmem:[#allocation11 + $0xc8] sm:$0xf]
    %v5878 = vld [vmem:[#allocation11 + $0xcc] sm:$0xf]
    %v5879 = vld [vmem:[#allocation11 + $0xd0] sm:$0xf]
    %v5880 = vld [vmem:[#allocation11 + $0xd4] sm:$0xf]
    %v5881 = vld [vmem:[#allocation11 + $0xd8] sm:$0xf]
    %v5882 = vld [vmem:[#allocation11 + $0xdc] sm:$0xf]
    %v5883 = vld [vmem:[#allocation11 + $0xe0] sm:$0xf]
    %v5884 = vld [vmem:[#allocation11 + $0xe4] sm:$0xf]
    %v5885 = vld [vmem:[#allocation11 + $0xe8] sm:$0xf]
    %v5886 = vld [vmem:[#allocation11 + $0xec] sm:$0xf]
    %v5887 = vld [vmem:[#allocation11 + $0xf0] sm:$0xf]
    %v5888 = vld [vmem:[#allocation11 + $0xf4] sm:$0xf]
    %v5889 = vld [vmem:[#allocation11 + $0xf8] sm:$0xf]
    %v5890 = vld [vmem:[#allocation11 + $0xfc] sm:$0xf]
    %v5891 = vld [vmem:[#allocation13] sm:$0x1]
    %v5893 = vlaneseq
    %v5894 = vshrl.u32 %v5893, 7
    %v5895 = vsub.s32 0, %v5894
    %v5896 = vrot.slane %v5891, %v5895
    %v5962 = vunpack.c.l.b16 %v5827
    %v5963 = vunpack.c.l.b16 %v5828
    %v5964 = vunpack.c.l.b16 %v5829
    %v5965 = vunpack.c.l.b16 %v5830
    %v5966 = vunpack.c.l.b16 %v5831
    %v5967 = vunpack.c.l.b16 %v5832
    %v5968 = vunpack.c.l.b16 %v5833
    %v5969 = vunpack.c.l.b16 %v5834
    %v5970 = vunpack.c.l.b16 %v5835
    %v5971 = vunpack.c.l.b16 %v5836
    %v5972 = vunpack.c.l.b16 %v5837
    %v5973 = vunpack.c.l.b16 %v5838
    %v5974 = vunpack.c.l.b16 %v5839
    %v5975 = vunpack.c.l.b16 %v5840
    %v5976 = vunpack.c.l.b16 %v5841
    %v5977 = vunpack.c.l.b16 %v5842
    %v5978 = vunpack.c.l.b16 %v5843
    %v5979 = vunpack.c.l.b16 %v5844
    %v5980 = vunpack.c.l.b16 %v5845
    %v5981 = vunpack.c.l.b16 %v5846
    %v5982 = vunpack.c.l.b16 %v5847
    %v5983 = vunpack.c.l.b16 %v5848
    %v5984 = vunpack.c.l.b16 %v5849
    %v5985 = vunpack.c.l.b16 %v5850
    %v5986 = vunpack.c.l.b16 %v5851
    %v5987 = vunpack.c.l.b16 %v5852
    %v5988 = vunpack.c.l.b16 %v5853
    %v5989 = vunpack.c.l.b16 %v5854
    %v5990 = vunpack.c.l.b16 %v5855
    %v5991 = vunpack.c.l.b16 %v5856
    %v5992 = vunpack.c.l.b16 %v5857
    %v5993 = vunpack.c.l.b16 %v5858
    %v5994 = vunpack.c.l.b16 %v5859
    %v5995 = vunpack.c.l.b16 %v5860
    %v5996 = vunpack.c.l.b16 %v5861
    %v5997 = vunpack.c.l.b16 %v5862
    %v5998 = vunpack.c.l.b16 %v5863
    %v5999 = vunpack.c.l.b16 %v5864
    %v6000 = vunpack.c.l.b16 %v5865
    %v6001 = vunpack.c.l.b16 %v5866
    %v6002 = vunpack.c.l.b16 %v5867
    %v6003 = vunpack.c.l.b16 %v5868
    %v6004 = vunpack.c.l.b16 %v5869
    %v6005 = vunpack.c.l.b16 %v5870
    %v6006 = vunpack.c.l.b16 %v5871
    %v6007 = vunpack.c.l.b16 %v5872
    %v6008 = vunpack.c.l.b16 %v5873
    %v6009 = vunpack.c.l.b16 %v5874
    %v6010 = vunpack.c.l.b16 %v5875
    %v6011 = vunpack.c.l.b16 %v5876
    %v6012 = vunpack.c.l.b16 %v5877
    %v6013 = vunpack.c.l.b16 %v5878
    %v6014 = vunpack.c.l.b16 %v5879
    %v6015 = vunpack.c.l.b16 %v5880
    %v6016 = vunpack.c.l.b16 %v5881
    %v6017 = vunpack.c.l.b16 %v5882
    %v6018 = vunpack.c.l.b16 %v5883
    %v6019 = vunpack.c.l.b16 %v5884
    %v6020 = vunpack.c.l.b16 %v5885
    %v6021 = vunpack.c.l.b16 %v5886
    %v6022 = vunpack.c.l.b16 %v5887
    %v6023 = vunpack.c.l.b16 %v5888
    %v6024 = vunpack.c.l.b16 %v5889
    %v6025 = vunpack.c.l.b16 %v5890
    %v6026 = vpack.c.b16 %v5963, %v5962
    %v6027 = vpack.c.b16 %v5965, %v5964
    %v6028 = vpack.c.b16 %v5967, %v5966
    %v6029 = vpack.c.b16 %v5969, %v5968
    %v6030 = vpack.c.b16 %v5971, %v5970
    %v6031 = vpack.c.b16 %v5973, %v5972
    %v6032 = vpack.c.b16 %v5975, %v5974
    %v6033 = vpack.c.b16 %v5977, %v5976
    %v6034 = vpack.c.b16 %v5979, %v5978
    %v6035 = vpack.c.b16 %v5981, %v5980
    %v6036 = vpack.c.b16 %v5983, %v5982
    %v6037 = vpack.c.b16 %v5985, %v5984
    %v6038 = vpack.c.b16 %v5987, %v5986
    %v6039 = vpack.c.b16 %v5989, %v5988
    %v6040 = vpack.c.b16 %v5991, %v5990
    %v6041 = vpack.c.b16 %v5993, %v5992
    %v6042 = vpack.c.b16 %v5995, %v5994
    %v6043 = vpack.c.b16 %v5997, %v5996
    %v6044 = vpack.c.b16 %v5999, %v5998
    %v6045 = vpack.c.b16 %v6001, %v6000
    %v6046 = vpack.c.b16 %v6003, %v6002
    %v6047 = vpack.c.b16 %v6005, %v6004
    %v6048 = vpack.c.b16 %v6007, %v6006
    %v6049 = vpack.c.b16 %v6009, %v6008
    %v6050 = vpack.c.b16 %v6011, %v6010
    %v6051 = vpack.c.b16 %v6013, %v6012
    %v6052 = vpack.c.b16 %v6015, %v6014
    %v6053 = vpack.c.b16 %v6017, %v6016
    %v6054 = vpack.c.b16 %v6019, %v6018
    %v6055 = vpack.c.b16 %v6021, %v6020
    %v6056 = vpack.c.b16 %v6023, %v6022
    %v6057 = vpack.c.b16 %v6025, %v6024
    %6090 = vmatprep.subr.bf16.mxu0 0
    %6091 = vmatpush1.bf16.msra.mxu0 %v6033
    %6092 = vmatprep.subr.bf16.mxu0 0
    %6093 = vmatpush1.bf16.msra.mxu0 %v6032
    %6094 = vmatprep.subr.bf16.mxu0 0
    %6095 = vmatpush1.bf16.msra.mxu0 %v6031
    %6096 = vmatprep.subr.bf16.mxu0 0
    %6097 = vmatpush1.bf16.msra.mxu0 %v6030
    %6098 = vmatprep.subr.bf16.mxu0 0
    %6099 = vmatpush1.bf16.msra.mxu0 %v6029
    %6100 = vmatprep.subr.bf16.mxu0 0
    %6101 = vmatpush1.bf16.msra.mxu0 %v6028
    %6102 = vmatprep.subr.bf16.mxu0 0
    %6103 = vmatpush1.bf16.msra.mxu0 %v6027
    %6104 = vmatprep.subr.bf16.mxu0 0
    %6105 = vmatpush1.bf16.msra.mxu0 %v6026
    %6106 = vmatprep.subr.bf16.mxu0 0
    %6107 = vmatpush2.bf16.msra.mxu0 %v6041
    %6108 = vmatprep.subr.bf16.mxu0 0
    %6109 = vmatpush2.bf16.msra.mxu0 %v6040
    %6110 = vmatprep.subr.bf16.mxu0 0
    %6111 = vmatpush2.bf16.msra.mxu0 %v6039
    %6112 = vmatprep.subr.bf16.mxu0 0
    %6113 = vmatpush2.bf16.msra.mxu0 %v6038
    %6114 = vmatprep.subr.bf16.mxu0 0
    %6115 = vmatpush2.bf16.msra.mxu0 %v6037
    %6116 = vmatprep.subr.bf16.mxu0 0
    %6117 = vmatpush2.bf16.msra.mxu0 %v6036
    %6118 = vmatprep.subr.bf16.mxu0 0
    %6119 = vmatpush2.bf16.msra.mxu0 %v6035
    %6120 = vmatprep.subr.bf16.mxu0 0
    %6121 = vmatpush2.bf16.msra.mxu0 %v6034
    %6122 = vmatprep.mubr.bf16.mxu0 %v5824
    %6123 = vmatmul.mubr.bf16.gmra.mxu0 %v5823
    %v6124 = vpop.f32.mrf.mxu0
    %v6125 = vadd.f32 %v5896, %v6124
    %v6126 = vpop.f32.mrf.mxu0
    %v6127 = vpop.f32.mrf.mxu0
    %v6128 = vpop.f32.mrf.mxu0
    %6129 = vdwg.mxu0
    %6130 = vmatprep.subr.bf16.mxu0 0
    %6131 = vmatpush1.bf16.msra.mxu0 %v6049
    %6132 = vmatprep.subr.bf16.mxu0 0
    %6133 = vmatpush1.bf16.msra.mxu0 %v6048
    %6134 = vmatprep.subr.bf16.mxu0 0
    %6135 = vmatpush1.bf16.msra.mxu0 %v6047
    %6136 = vmatprep.subr.bf16.mxu0 0
    %6137 = vmatpush1.bf16.msra.mxu0 %v6046
    %6138 = vmatprep.subr.bf16.mxu0 0
    %6139 = vmatpush1.bf16.msra.mxu0 %v6045
    %6140 = vmatprep.subr.bf16.mxu0 0
    %6141 = vmatpush1.bf16.msra.mxu0 %v6044
    %6142 = vmatprep.subr.bf16.mxu0 0
    %6143 = vmatpush1.bf16.msra.mxu0 %v6043
    %6144 = vmatprep.subr.bf16.mxu0 0
    %6145 = vmatpush1.bf16.msra.mxu0 %v6042
    %6146 = vmatprep.subr.bf16.mxu0 0
    %6147 = vmatpush2.bf16.msra.mxu0 %v6057
    %6148 = vmatprep.subr.bf16.mxu0 0
    %6149 = vmatpush2.bf16.msra.mxu0 %v6056
    %6150 = vmatprep.subr.bf16.mxu0 0
    %6151 = vmatpush2.bf16.msra.mxu0 %v6055
    %6152 = vmatprep.subr.bf16.mxu0 0
    %6153 = vmatpush2.bf16.msra.mxu0 %v6054
    %6154 = vmatprep.subr.bf16.mxu0 0
    %6155 = vmatpush2.bf16.msra.mxu0 %v6053
    %6156 = vmatprep.subr.bf16.mxu0 0
    %6157 = vmatpush2.bf16.msra.mxu0 %v6052
    %6158 = vmatprep.subr.bf16.mxu0 0
    %6159 = vmatpush2.bf16.msra.mxu0 %v6051
    %6160 = vmatprep.subr.bf16.mxu0 0
    %6161 = vmatpush2.bf16.msra.mxu0 %v6050
    %6162 = vmatprep.mubr.bf16.mxu0 %v5826
    %6163 = vmatmul.mubr.bf16.gmra.mxu0 %v5825
    %v6164 = vpop.f32.mrf.mxu0
    %v6165 = vadd.f32 %v6125, %v6164
    %v6166 = vpop.f32.mrf.mxu0
    %v6167 = vpop.f32.mrf.mxu0
    %v6168 = vpop.f32.mrf.mxu0
    %6169 = vdwg.mxu0
    %v6170 = vtanh.pop %v6165
    %6171 = vst [vmem:[#allocation14] sm:$0xff] %v6170
    // Predicated region
    $region58: #{tpu_custom_call.1} parent=1 // pred_check
      _
    $region59: #{tpu_custom_call.1} parent=1 // pred_check_branch
      %6173 = sbr.rel (0) target = $region61
    $region60: #{tpu_custom_call.1} parent=1 // pred_region
      %s6175 = ssub.s32 128, 128
      %6176 = vsyncadd [#allocation4], %s6175
      %s6178 = sshll.u32 [#allocation14], 4
      %s6179 = int_to_ptr.vmem [resolvable:$true] %s6178
      %6181 = dma.vmem_to_hbm [thread:$0]  %s6179, 128, %s7, [#allocation4]
    $region61: #{tpu_custom_call.1} parent=1 // pred_fallthru
      _
    // Predicated region
    $region62: #{tpu_custom_call.1} parent=1 // pred_check
      _
    $region63: #{tpu_custom_call.1} parent=1 // pred_check_branch
      %6183 = sbr.rel (0) target = $region65
    $region64: #{tpu_custom_call.1} parent=1 // pred_region
      %6184 = dma.done [#allocation4], 128
    $region65: #{tpu_custom_call.1} parent=1 // pred_fallthru
      _
    %6185 = vsyncpa [#allocation3], 1
    %6186 = vsyncpa [#allocation6], 1
    %6187 = vsyncpa [#allocation9], 1
    %6188 = vsyncpa [#allocation12], 1
    %6189 = vsyncpa [#allocation4], 1

</llo_original>
